<compile_context>
chip_gen: v7x
topology: tpu7x:2x2x1
jax: 0.10.0
libtpu: 0.0.40
codegen_flags: <defaults>
</compile_context>

<pallas_src>
import math

import jax
import jax.numpy as jnp
from jax.experimental import pallas as pl
from jax.experimental.pallas import tpu as pltpu

# ---- problem sizes (small, consistent with the module) ----------------------
B, S = 2, 8                             # batch, sequence length
D_OHLCV, D_ONCHAIN, D_SENT = 5, 4, 3
D_IN = D_OHLCV + D_ONCHAIN + D_SENT     # 12 (fused modality width)
D_MODEL = 32                            # model_dimension
N_HEADS = 4                             # nhead=4 (PyTorch default in module)
D_HEAD = D_MODEL // N_HEADS             # 8
D_FF = 4 * D_MODEL                      # dim_feedforward = model_dimension * 4
N_LAYERS = 2                            # layer_count
LN_EPS = 1e-5
BS = B * S

N_PARAMS = 16                           # 2 fused-embed + 12 encoder + 2 regressor


def _layer_norm(x, g, b, eps=LN_EPS):
    mu = jnp.mean(x, axis=-1, keepdims=True)
    var = jnp.mean((x - mu) ** 2, axis=-1, keepdims=True)
    return (x - mu) * jax.lax.rsqrt(var + eps) * g + b


def _softmax_lastdim(s, *, approx_recip):
    m = jnp.max(s, axis=-1, keepdims=True)
    e = jnp.exp(s - m)
    denom = jnp.sum(e, axis=-1, keepdims=True)
    if approx_recip:
        return e * pl.reciprocal(denom, approx=True)    # EUP slot, ~free
    return e / denom


# -----------------------------------------------------------------------------
# Kernel: everything resident in VMEM, parameters loaded per-use from refs.
# -----------------------------------------------------------------------------
def _kernel(x_ref, w_emb_ref, b_emb_ref, wqkv_ref, bqkv_ref, wo_ref, bo_ref,
            ln1_g_ref, ln1_b_ref, w1_ref, b1_ref, w2_ref, b2_ref,
            ln2_g_ref, ln2_b_ref, w_reg_ref, b_reg_ref, out_ref, ctx_ref):
    scale = 1.0 / math.sqrt(D_HEAD)

    # --- fused modality embedding: single (BS,12)@(12,32) matmul -------------
    x = jnp.dot(x_ref[...], w_emb_ref[...],
                preferred_element_type=jnp.float32) + b_emb_ref[...]    # (BS,D)

    for l in range(N_LAYERS):
        # --- multi-head self-attention (post-norm layer) ----------------------
        # Head-blocked weights: each head is a lane-0-aligned (32,8) matmul,
        # so no lane-offset slicing of q/k/v values is needed.  Per-head
        # contexts are assembled in one VMEM scratch (no concat), followed by
        # a single fused output projection over all heads / all tokens.
        for h in range(N_HEADS):
            q = jnp.dot(x, wqkv_ref[l, 0, h],
                        preferred_element_type=jnp.float32) + bqkv_ref[l, 0, h]
            k = jnp.dot(x, wqkv_ref[l, 1, h],
                        preferred_element_type=jnp.float32) + bqkv_ref[l, 1, h]
            v = jnp.dot(x, wqkv_ref[l, 2, h],
                        preferred_element_type=jnp.float32) + bqkv_ref[l, 2, h]
            q3 = q.reshape(B, S, D_HEAD)       # leading sublane split, free
            k3 = k.reshape(B, S, D_HEAD)
            v3 = v.reshape(B, S, D_HEAD)
            s_h = jnp.einsum('bqd,bkd->bqk', q3, k3,
                             preferred_element_type=jnp.float32) * scale
            p_h = _softmax_lastdim(s_h, approx_recip=True)
            c_h = jnp.einsum('bqk,bkd->bqd', p_h, v3,
                             preferred_element_type=jnp.float32)
            ctx_ref[:, h * D_HEAD:(h + 1) * D_HEAD] = c_h.reshape(BS, D_HEAD)

        attn = jnp.dot(ctx_ref[...], wo_ref[l],
                       preferred_element_type=jnp.float32) + bo_ref[l]
        x = _layer_norm(x + attn, ln1_g_ref[l], ln1_b_ref[l])

        # --- feed-forward (relu), flattened over tokens -----------------------
        h1 = jnp.maximum(
            jnp.dot(x, w1_ref[l], preferred_element_type=jnp.float32) + b1_ref[l],
            0.0)
        ffn = jnp.dot(h1, w2_ref[l],
                      preferred_element_type=jnp.float32) + b2_ref[l]
        x = _layer_norm(x + ffn, ln2_g_ref[l], ln2_b_ref[l])

    # --- regression head on last time step: VPU multiply + lane reduce --------
    last = x.reshape(B, S, D_MODEL)[:, S - 1, :]                       # (B, D)
    out_ref[...] = (jnp.sum(last * w_reg_ref[...], axis=-1, keepdims=True)
                    + b_reg_ref[...])                                  # (B, 1)


def multimodal_transformer(ohlcv, onchain, sent, params):
    # Modality fusion + token flatten done in the wrapper (free XLA ops):
    # the three Linears share the output space, so concat(inputs) @ stacked(W)
    # + summed biases is exactly e_ohlcv + e_onchain + e_sentiment.
    fused = jnp.concatenate([ohlcv, onchain, sent], axis=-1).reshape(BS, D_IN)
    vmem = pltpu.MemorySpace.VMEM
    fwd = pl.pallas_call(
        _kernel,
        out_shape=jax.ShapeDtypeStruct((B, 1), jnp.float32),
        in_specs=[pl.BlockSpec(memory_space=vmem)] * (1 + N_PARAMS),
        out_specs=pl.BlockSpec(memory_space=vmem),
        scratch_shapes=[pltpu.VMEM((BS, D_MODEL), jnp.float32)],   # ctx assembly
    )
    return fwd(fused, *params)


# -----------------------------------------------------------------------------
# Pure-JAX (XLA) reference of the identical math (exact softmax divide).
# -----------------------------------------------------------------------------
def _reference(fused_flat, params):
    (w_emb, b_emb, wqkv, bqkv, wo, bo, ln1_g, ln1_b,
     w1, b1, w2, b2, ln2_g, ln2_b, w_reg, b_reg) = params
    x = fused_flat @ w_emb + b_emb
    scale = 1.0 / math.sqrt(D_HEAD)
    for l in range(N_LAYERS):
        heads = []
        for h in range(N_HEADS):
            q = (x @ wqkv[l, 0, h] + bqkv[l, 0, h]).reshape(B, S, D_HEAD)
            k = (x @ wqkv[l, 1, h] + bqkv[l, 1, h]).reshape(B, S, D_HEAD)
            v = (x @ wqkv[l, 2, h] + bqkv[l, 2, h]).reshape(B, S, D_HEAD)
            s_h = jnp.einsum('bqd,bkd->bqk', q, k) * scale
            p_h = _softmax_lastdim(s_h, approx_recip=False)
            heads.append(jnp.einsum('bqk,bkd->bqd', p_h, v).reshape(BS, D_HEAD))
        ctx = jnp.concatenate(heads, axis=-1)
        attn = ctx @ wo[l] + bo[l]
        x = _layer_norm(x + attn, ln1_g[l], ln1_b[l])
        h1 = jnp.maximum(x @ w1[l] + b1[l], 0.0)
        ffn = h1 @ w2[l] + b2[l]
        x = _layer_norm(x + ffn, ln2_g[l], ln2_b[l])
    last = x.reshape(B, S, D_MODEL)[:, -1, :]
    return jnp.sum(last * w_reg, axis=-1, keepdims=True) + b_reg


def init_params(key):
    ks = iter(jax.random.split(key, 16))

    def w(shape, scale=0.05):
        return (scale * jax.random.normal(next(ks), shape)).astype(jnp.float32)

    def b(shape, scale=0.01):
        return (scale * jax.random.normal(next(ks), shape)).astype(jnp.float32)

    return (
        # fused modality embedding: rows 0:5 ohlcv, 5:9 onchain, 9:12 sentiment
        w((D_IN, D_MODEL)), b((1, D_MODEL)),
        # encoder layers; Q/K/V weights stored head-blocked (lane-0-aligned)
        w((N_LAYERS, 3, N_HEADS, D_MODEL, D_HEAD)),
        b((N_LAYERS, 3, N_HEADS, 1, D_HEAD)),
        w((N_LAYERS, D_MODEL, D_MODEL)), b((N_LAYERS, 1, D_MODEL)),   # out-proj
        jnp.ones((N_LAYERS, 1, D_MODEL), jnp.float32),                # ln1 gamma
        jnp.zeros((N_LAYERS, 1, D_MODEL), jnp.float32),               # ln1 beta
        w((N_LAYERS, D_MODEL, D_FF)), b((N_LAYERS, 1, D_FF)),
        w((N_LAYERS, D_FF, D_MODEL)), b((N_LAYERS, 1, D_MODEL)),
        jnp.ones((N_LAYERS, 1, D_MODEL), jnp.float32),                # ln2 gamma
        jnp.zeros((N_LAYERS, 1, D_MODEL), jnp.float32),               # ln2 beta
        # regressor weight stored as a (1, D_MODEL) lane-row for the VPU reduce
        w((1, D_MODEL)), b((1, 1)),
    )


if __name__ == "__main__":
    key = jax.random.PRNGKey(0)
    k_oh, k_on, k_se, k_p = jax.random.split(key, 4)

    ohlcv = jax.random.normal(k_oh, (B, S, D_OHLCV), jnp.float32)
    onchain = jax.random.normal(k_on, (B, S, D_ONCHAIN), jnp.float32)
    sent = jax.random.normal(k_se, (B, S, D_SENT), jnp.float32)
    params = init_params(k_p)

    out = jax.block_until_ready(multimodal_transformer(ohlcv, onchain, sent, params))

    fused_flat = jnp.concatenate([ohlcv, onchain, sent], axis=-1).reshape(BS, D_IN)
    ref = jax.block_until_ready(_reference(fused_flat, params))

    assert out.shape == (B, 1), out.shape
    assert bool(jnp.all(jnp.isfinite(out)))
    assert bool(jnp.allclose(out, ref, rtol=1e-2, atol=1e-2)), (out, ref)

    # TODO(synk): dropout (p=0.1) is identity here (eval mode); training-mode
    # dropout would need pltpu.prng_* masks.
    print("KERNEL_OK")
</pallas_src>

<mosaic_0001>
module attributes {stable_mosaic.version = 11 : i64} {
  func.func @_kernel(%arg0: memref<16x12xf32, #tpu.memory_space<vmem>>, %arg1: memref<12x32xf32, #tpu.memory_space<vmem>>, %arg2: memref<1x32xf32, #tpu.memory_space<vmem>>, %arg3: memref<2x3x4x32x8xf32, #tpu.memory_space<vmem>>, %arg4: memref<2x3x4x1x8xf32, #tpu.memory_space<vmem>>, %arg5: memref<2x32x32xf32, #tpu.memory_space<vmem>>, %arg6: memref<2x1x32xf32, #tpu.memory_space<vmem>>, %arg7: memref<2x1x32xf32, #tpu.memory_space<vmem>>, %arg8: memref<2x1x32xf32, #tpu.memory_space<vmem>>, %arg9: memref<2x32x128xf32, #tpu.memory_space<vmem>>, %arg10: memref<2x1x128xf32, #tpu.memory_space<vmem>>, %arg11: memref<2x128x32xf32, #tpu.memory_space<vmem>>, %arg12: memref<2x1x32xf32, #tpu.memory_space<vmem>>, %arg13: memref<2x1x32xf32, #tpu.memory_space<vmem>>, %arg14: memref<2x1x32xf32, #tpu.memory_space<vmem>>, %arg15: memref<1x32xf32, #tpu.memory_space<vmem>>, %arg16: memref<1x1xf32, #tpu.memory_space<vmem>>, %arg17: memref<2x1xf32, #tpu.memory_space<vmem>>, %arg18: memref<16x32xf32, #tpu.memory_space<vmem>>) attributes {dimension_semantics = [], scalar_prefetch = 0 : i64, scratch_operands = 1 : i64, tpu.core_type = #tpu.core_type<tc>} {
    %c0 = arith.constant 0 : index
    %c0_0 = arith.constant 0 : index
    %0 = vector.load %arg0[%c0, %c0_0] : memref<16x12xf32, #tpu.memory_space<vmem>>, vector<16x12xf32>
    %c0_1 = arith.constant 0 : index
    %c0_2 = arith.constant 0 : index
    %1 = vector.load %arg1[%c0_1, %c0_2] : memref<12x32xf32, #tpu.memory_space<vmem>>, vector<12x32xf32>
    %cst = arith.constant dense<0.000000e+00> : vector<16x32xf32>
    %2 = tpu.matmul %0, %1, %cst {dimension_numbers = #tpu.dot_dimension_numbers<[1], [0], [0], [1], [0, 0, 1, 1], [], []>} : vector<16x12xf32>, vector<12x32xf32>, vector<16x32xf32> -> vector<16x32xf32>
    %c0_3 = arith.constant 0 : index
    %c0_4 = arith.constant 0 : index
    %3 = vector.load %arg2[%c0_3, %c0_4] : memref<1x32xf32, #tpu.memory_space<vmem>>, vector<1x32xf32>
    %4 = vector.broadcast %3 : vector<1x32xf32> to vector<16x32xf32>
    %5 = arith.addf %2, %4 : vector<16x32xf32>
    %c0_5 = arith.constant 0 : index
    %c0_6 = arith.constant 0 : index
    %c0_7 = arith.constant 0 : index
    %c0_8 = arith.constant 0 : index
    %c0_9 = arith.constant 0 : index
    %6 = vector.load %arg3[%c0_5, %c0_6, %c0_7, %c0_8, %c0_9] : memref<2x3x4x32x8xf32, #tpu.memory_space<vmem>>, vector<1x1x1x32x8xf32>
    %7 = vector.shape_cast %6 : vector<1x1x1x32x8xf32> to vector<32x8xf32>
    %cst_10 = arith.constant dense<0.000000e+00> : vector<16x8xf32>
    %8 = tpu.matmul %5, %7, %cst_10 {dimension_numbers = #tpu.dot_dimension_numbers<[1], [0], [0], [1], [0, 0, 1, 1], [], []>} : vector<16x32xf32>, vector<32x8xf32>, vector<16x8xf32> -> vector<16x8xf32>
    %c0_11 = arith.constant 0 : index
    %c0_12 = arith.constant 0 : index
    %c0_13 = arith.constant 0 : index
    %c0_14 = arith.constant 0 : index
    %c0_15 = arith.constant 0 : index
    %9 = vector.load %arg4[%c0_11, %c0_12, %c0_13, %c0_14, %c0_15] : memref<2x3x4x1x8xf32, #tpu.memory_space<vmem>>, vector<1x1x1x1x8xf32>
    %10 = vector.shape_cast %9 : vector<1x1x1x1x8xf32> to vector<1x8xf32>
    %11 = vector.broadcast %10 : vector<1x8xf32> to vector<16x8xf32>
    %12 = arith.addf %8, %11 : vector<16x8xf32>
    %c0_16 = arith.constant 0 : index
    %c1 = arith.constant 1 : index
    %c0_17 = arith.constant 0 : index
    %c0_18 = arith.constant 0 : index
    %c0_19 = arith.constant 0 : index
    %13 = vector.load %arg3[%c0_16, %c1, %c0_17, %c0_18, %c0_19] : memref<2x3x4x32x8xf32, #tpu.memory_space<vmem>>, vector<1x1x1x32x8xf32>
    %14 = vector.shape_cast %13 : vector<1x1x1x32x8xf32> to vector<32x8xf32>
    %cst_20 = arith.constant dense<0.000000e+00> : vector<16x8xf32>
    %15 = tpu.matmul %5, %14, %cst_20 {dimension_numbers = #tpu.dot_dimension_numbers<[1], [0], [0], [1], [0, 0, 1, 1], [], []>} : vector<16x32xf32>, vector<32x8xf32>, vector<16x8xf32> -> vector<16x8xf32>
    %c0_21 = arith.constant 0 : index
    %c1_22 = arith.constant 1 : index
    %c0_23 = arith.constant 0 : index
    %c0_24 = arith.constant 0 : index
    %c0_25 = arith.constant 0 : index
    %16 = vector.load %arg4[%c0_21, %c1_22, %c0_23, %c0_24, %c0_25] : memref<2x3x4x1x8xf32, #tpu.memory_space<vmem>>, vector<1x1x1x1x8xf32>
    %17 = vector.shape_cast %16 : vector<1x1x1x1x8xf32> to vector<1x8xf32>
    %18 = vector.broadcast %17 : vector<1x8xf32> to vector<16x8xf32>
    %19 = arith.addf %15, %18 : vector<16x8xf32>
    %c0_26 = arith.constant 0 : index
    %c2 = arith.constant 2 : index
    %c0_27 = arith.constant 0 : index
    %c0_28 = arith.constant 0 : index
    %c0_29 = arith.constant 0 : index
    %20 = vector.load %arg3[%c0_26, %c2, %c0_27, %c0_28, %c0_29] : memref<2x3x4x32x8xf32, #tpu.memory_space<vmem>>, vector<1x1x1x32x8xf32>
    %21 = vector.shape_cast %20 : vector<1x1x1x32x8xf32> to vector<32x8xf32>
    %cst_30 = arith.constant dense<0.000000e+00> : vector<16x8xf32>
    %22 = tpu.matmul %5, %21, %cst_30 {dimension_numbers = #tpu.dot_dimension_numbers<[1], [0], [0], [1], [0, 0, 1, 1], [], []>} : vector<16x32xf32>, vector<32x8xf32>, vector<16x8xf32> -> vector<16x8xf32>
    %c0_31 = arith.constant 0 : index
    %c2_32 = arith.constant 2 : index
    %c0_33 = arith.constant 0 : index
    %c0_34 = arith.constant 0 : index
    %c0_35 = arith.constant 0 : index
    %23 = vector.load %arg4[%c0_31, %c2_32, %c0_33, %c0_34, %c0_35] : memref<2x3x4x1x8xf32, #tpu.memory_space<vmem>>, vector<1x1x1x1x8xf32>
    %24 = vector.shape_cast %23 : vector<1x1x1x1x8xf32> to vector<1x8xf32>
    %25 = vector.broadcast %24 : vector<1x8xf32> to vector<16x8xf32>
    %26 = arith.addf %22, %25 : vector<16x8xf32>
    %27 = vector.shape_cast %12 : vector<16x8xf32> to vector<2x8x8xf32>
    %28 = vector.shape_cast %19 : vector<16x8xf32> to vector<2x8x8xf32>
    %29 = vector.shape_cast %26 : vector<16x8xf32> to vector<2x8x8xf32>
    "tpu.trace_start"() <{level = 10 : i32, message = "bqd,bkd->bqk"}> : () -> ()
    %cst_36 = arith.constant dense<0.000000e+00> : vector<2x8x8xf32>
    %30 = tpu.matmul %27, %28, %cst_36 {dimension_numbers = #tpu.dot_dimension_numbers<[2], [2], [1], [1], [0, 0, 0, 1, 1, 1], [0], [0]>} : vector<2x8x8xf32>, vector<2x8x8xf32>, vector<2x8x8xf32> -> vector<2x8x8xf32>
    "tpu.trace_stop"() : () -> ()
    %cst_37 = arith.constant 0.353553385 : f32
    %31 = vector.broadcast %cst_37 : f32 to vector<2x8x8xf32>
    %32 = arith.mulf %30, %31 : vector<2x8x8xf32>
    %cst_38 = arith.constant dense<0xFF800000> : vector<2x8xf32>
    %33 = vector.multi_reduction <maximumf>, %32, %cst_38 [2] : vector<2x8x8xf32> to vector<2x8xf32>
    %34 = vector.shape_cast %33 : vector<2x8xf32> to vector<2x8x1xf32>
    %35 = vector.broadcast %34 : vector<2x8x1xf32> to vector<2x8x8xf32>
    %36 = arith.subf %32, %35 : vector<2x8x8xf32>
    %37 = math.exp %36 : vector<2x8x8xf32>
    %cst_39 = arith.constant dense<0.000000e+00> : vector<2x8xf32>
    %38 = vector.multi_reduction <add>, %37, %cst_39 [2] : vector<2x8x8xf32> to vector<2x8xf32>
    %39 = vector.shape_cast %38 : vector<2x8xf32> to vector<2x8x1xf32>
    %40 = tpu.reciprocal %39 {approx = true} : vector<2x8x1xf32> -> vector<2x8x1xf32>
    %41 = vector.broadcast %40 : vector<2x8x1xf32> to vector<2x8x8xf32>
    %42 = arith.mulf %37, %41 : vector<2x8x8xf32>
    "tpu.trace_start"() <{level = 10 : i32, message = "bqk,bkd->bqd"}> : () -> ()
    %cst_40 = arith.constant dense<0.000000e+00> : vector<2x8x8xf32>
    %43 = tpu.matmul %42, %29, %cst_40 {dimension_numbers = #tpu.dot_dimension_numbers<[2], [1], [1], [2], [0, 0, 0, 1, 1, 2], [0], [0]>} : vector<2x8x8xf32>, vector<2x8x8xf32>, vector<2x8x8xf32> -> vector<2x8x8xf32>
    "tpu.trace_stop"() : () -> ()
    %44 = vector.shape_cast %43 : vector<2x8x8xf32> to vector<16x8xf32>
    %c0_41 = arith.constant 0 : index
    %c0_42 = arith.constant 0 : index
    %45 = vector.load %arg18[%c0_41, %c0_42] : memref<16x32xf32, #tpu.memory_space<vmem>>, vector<16x8xf32>
    tpu.vector_store %arg18[%c0_41, %c0_42], %44 {strides = array<i32>} : memref<16x32xf32, #tpu.memory_space<vmem>>, vector<16x8xf32>,
    %c0_43 = arith.constant 0 : index
    %c0_44 = arith.constant 0 : index
    %c1_45 = arith.constant 1 : index
    %c0_46 = arith.constant 0 : index
    %c0_47 = arith.constant 0 : index
    %46 = vector.load %arg3[%c0_43, %c0_44, %c1_45, %c0_46, %c0_47] : memref<2x3x4x32x8xf32, #tpu.memory_space<vmem>>, vector<1x1x1x32x8xf32>
    %47 = vector.shape_cast %46 : vector<1x1x1x32x8xf32> to vector<32x8xf32>
    %cst_48 = arith.constant dense<0.000000e+00> : vector<16x8xf32>
    %48 = tpu.matmul %5, %47, %cst_48 {dimension_numbers = #tpu.dot_dimension_numbers<[1], [0], [0], [1], [0, 0, 1, 1], [], []>} : vector<16x32xf32>, vector<32x8xf32>, vector<16x8xf32> -> vector<16x8xf32>
    %c0_49 = arith.constant 0 : index
    %c0_50 = arith.constant 0 : index
    %c1_51 = arith.constant 1 : index
    %c0_52 = arith.constant 0 : index
    %c0_53 = arith.constant 0 : index
    %49 = vector.load %arg4[%c0_49, %c0_50, %c1_51, %c0_52, %c0_53] : memref<2x3x4x1x8xf32, #tpu.memory_space<vmem>>, vector<1x1x1x1x8xf32>
    %50 = vector.shape_cast %49 : vector<1x1x1x1x8xf32> to vector<1x8xf32>
    %51 = vector.broadcast %50 : vector<1x8xf32> to vector<16x8xf32>
    %52 = arith.addf %48, %51 : vector<16x8xf32>
    %c0_54 = arith.constant 0 : index
    %c1_55 = arith.constant 1 : index
    %c1_56 = arith.constant 1 : index
    %c0_57 = arith.constant 0 : index
    %c0_58 = arith.constant 0 : index
    %53 = vector.load %arg3[%c0_54, %c1_55, %c1_56, %c0_57, %c0_58] : memref<2x3x4x32x8xf32, #tpu.memory_space<vmem>>, vector<1x1x1x32x8xf32>
    %54 = vector.shape_cast %53 : vector<1x1x1x32x8xf32> to vector<32x8xf32>
    %cst_59 = arith.constant dense<0.000000e+00> : vector<16x8xf32>
    %55 = tpu.matmul %5, %54, %cst_59 {dimension_numbers = #tpu.dot_dimension_numbers<[1], [0], [0], [1], [0, 0, 1, 1], [], []>} : vector<16x32xf32>, vector<32x8xf32>, vector<16x8xf32> -> vector<16x8xf32>
    %c0_60 = arith.constant 0 : index
    %c1_61 = arith.constant 1 : index
    %c1_62 = arith.constant 1 : index
    %c0_63 = arith.constant 0 : index
    %c0_64 = arith.constant 0 : index
    %56 = vector.load %arg4[%c0_60, %c1_61, %c1_62, %c0_63, %c0_64] : memref<2x3x4x1x8xf32, #tpu.memory_space<vmem>>, vector<1x1x1x1x8xf32>
    %57 = vector.shape_cast %56 : vector<1x1x1x1x8xf32> to vector<1x8xf32>
    %58 = vector.broadcast %57 : vector<1x8xf32> to vector<16x8xf32>
    %59 = arith.addf %55, %58 : vector<16x8xf32>
    %c0_65 = arith.constant 0 : index
    %c2_66 = arith.constant 2 : index
    %c1_67 = arith.constant 1 : index
    %c0_68 = arith.constant 0 : index
    %c0_69 = arith.constant 0 : index
    %60 = vector.load %arg3[%c0_65, %c2_66, %c1_67, %c0_68, %c0_69] : memref<2x3x4x32x8xf32, #tpu.memory_space<vmem>>, vector<1x1x1x32x8xf32>
    %61 = vector.shape_cast %60 : vector<1x1x1x32x8xf32> to vector<32x8xf32>
    %cst_70 = arith.constant dense<0.000000e+00> : vector<16x8xf32>
    %62 = tpu.matmul %5, %61, %cst_70 {dimension_numbers = #tpu.dot_dimension_numbers<[1], [0], [0], [1], [0, 0, 1, 1], [], []>} : vector<16x32xf32>, vector<32x8xf32>, vector<16x8xf32> -> vector<16x8xf32>
    %c0_71 = arith.constant 0 : index
    %c2_72 = arith.constant 2 : index
    %c1_73 = arith.constant 1 : index
    %c0_74 = arith.constant 0 : index
    %c0_75 = arith.constant 0 : index
    %63 = vector.load %arg4[%c0_71, %c2_72, %c1_73, %c0_74, %c0_75] : memref<2x3x4x1x8xf32, #tpu.memory_space<vmem>>, vector<1x1x1x1x8xf32>
    %64 = vector.shape_cast %63 : vector<1x1x1x1x8xf32> to vector<1x8xf32>
    %65 = vector.broadcast %64 : vector<1x8xf32> to vector<16x8xf32>
    %66 = arith.addf %62, %65 : vector<16x8xf32>
    %67 = vector.shape_cast %52 : vector<16x8xf32> to vector<2x8x8xf32>
    %68 = vector.shape_cast %59 : vector<16x8xf32> to vector<2x8x8xf32>
    %69 = vector.shape_cast %66 : vector<16x8xf32> to vector<2x8x8xf32>
    "tpu.trace_start"() <{level = 10 : i32, message = "bqd,bkd->bqk"}> : () -> ()
    %cst_76 = arith.constant dense<0.000000e+00> : vector<2x8x8xf32>
    %70 = tpu.matmul %67, %68, %cst_76 {dimension_numbers = #tpu.dot_dimension_numbers<[2], [2], [1], [1], [0, 0, 0, 1, 1, 1], [0], [0]>} : vector<2x8x8xf32>, vector<2x8x8xf32>, vector<2x8x8xf32> -> vector<2x8x8xf32>
    "tpu.trace_stop"() : () -> ()
    %cst_77 = arith.constant 0.353553385 : f32
    %71 = vector.broadcast %cst_77 : f32 to vector<2x8x8xf32>
    %72 = arith.mulf %70, %71 : vector<2x8x8xf32>
    %cst_78 = arith.constant dense<0xFF800000> : vector<2x8xf32>
    %73 = vector.multi_reduction <maximumf>, %72, %cst_78 [2] : vector<2x8x8xf32> to vector<2x8xf32>
    %74 = vector.shape_cast %73 : vector<2x8xf32> to vector<2x8x1xf32>
    %75 = vector.broadcast %74 : vector<2x8x1xf32> to vector<2x8x8xf32>
    %76 = arith.subf %72, %75 : vector<2x8x8xf32>
    %77 = math.exp %76 : vector<2x8x8xf32>
    %cst_79 = arith.constant dense<0.000000e+00> : vector<2x8xf32>
    %78 = vector.multi_reduction <add>, %77, %cst_79 [2] : vector<2x8x8xf32> to vector<2x8xf32>
    %79 = vector.shape_cast %78 : vector<2x8xf32> to vector<2x8x1xf32>
    %80 = tpu.reciprocal %79 {approx = true} : vector<2x8x1xf32> -> vector<2x8x1xf32>
    %81 = vector.broadcast %80 : vector<2x8x1xf32> to vector<2x8x8xf32>
    %82 = arith.mulf %77, %81 : vector<2x8x8xf32>
    "tpu.trace_start"() <{level = 10 : i32, message = "bqk,bkd->bqd"}> : () -> ()
    %cst_80 = arith.constant dense<0.000000e+00> : vector<2x8x8xf32>
    %83 = tpu.matmul %82, %69, %cst_80 {dimension_numbers = #tpu.dot_dimension_numbers<[2], [1], [1], [2], [0, 0, 0, 1, 1, 2], [0], [0]>} : vector<2x8x8xf32>, vector<2x8x8xf32>, vector<2x8x8xf32> -> vector<2x8x8xf32>
    "tpu.trace_stop"() : () -> ()
    %84 = vector.shape_cast %83 : vector<2x8x8xf32> to vector<16x8xf32>
    %c0_81 = arith.constant 0 : index
    %c8 = arith.constant 8 : index
    %85 = vector.load %arg18[%c0_81, %c8] : memref<16x32xf32, #tpu.memory_space<vmem>>, vector<16x8xf32>
    tpu.vector_store %arg18[%c0_81, %c8], %84 {strides = array<i32>} : memref<16x32xf32, #tpu.memory_space<vmem>>, vector<16x8xf32>,
    %c0_82 = arith.constant 0 : index
    %c0_83 = arith.constant 0 : index
    %c2_84 = arith.constant 2 : index
    %c0_85 = arith.constant 0 : index
    %c0_86 = arith.constant 0 : index
    %86 = vector.load %arg3[%c0_82, %c0_83, %c2_84, %c0_85, %c0_86] : memref<2x3x4x32x8xf32, #tpu.memory_space<vmem>>, vector<1x1x1x32x8xf32>
    %87 = vector.shape_cast %86 : vector<1x1x1x32x8xf32> to vector<32x8xf32>
    %cst_87 = arith.constant dense<0.000000e+00> : vector<16x8xf32>
    %88 = tpu.matmul %5, %87, %cst_87 {dimension_numbers = #tpu.dot_dimension_numbers<[1], [0], [0], [1], [0, 0, 1, 1], [], []>} : vector<16x32xf32>, vector<32x8xf32>, vector<16x8xf32> -> vector<16x8xf32>
    %c0_88 = arith.constant 0 : index
    %c0_89 = arith.constant 0 : index
    %c2_90 = arith.constant 2 : index
    %c0_91 = arith.constant 0 : index
    %c0_92 = arith.constant 0 : index
    %89 = vector.load %arg4[%c0_88, %c0_89, %c2_90, %c0_91, %c0_92] : memref<2x3x4x1x8xf32, #tpu.memory_space<vmem>>, vector<1x1x1x1x8xf32>
    %90 = vector.shape_cast %89 : vector<1x1x1x1x8xf32> to vector<1x8xf32>
    %91 = vector.broadcast %90 : vector<1x8xf32> to vector<16x8xf32>
    %92 = arith.addf %88, %91 : vector<16x8xf32>
    %c0_93 = arith.constant 0 : index
    %c1_94 = arith.constant 1 : index
    %c2_95 = arith.constant 2 : index
    %c0_96 = arith.constant 0 : index
    %c0_97 = arith.constant 0 : index
    %93 = vector.load %arg3[%c0_93, %c1_94, %c2_95, %c0_96, %c0_97] : memref<2x3x4x32x8xf32, #tpu.memory_space<vmem>>, vector<1x1x1x32x8xf32>
    %94 = vector.shape_cast %93 : vector<1x1x1x32x8xf32> to vector<32x8xf32>
    %cst_98 = arith.constant dense<0.000000e+00> : vector<16x8xf32>
    %95 = tpu.matmul %5, %94, %cst_98 {dimension_numbers = #tpu.dot_dimension_numbers<[1], [0], [0], [1], [0, 0, 1, 1], [], []>} : vector<16x32xf32>, vector<32x8xf32>, vector<16x8xf32> -> vector<16x8xf32>
    %c0_99 = arith.constant 0 : index
    %c1_100 = arith.constant 1 : index
    %c2_101 = arith.constant 2 : index
    %c0_102 = arith.constant 0 : index
    %c0_103 = arith.constant 0 : index
    %96 = vector.load %arg4[%c0_99, %c1_100, %c2_101, %c0_102, %c0_103] : memref<2x3x4x1x8xf32, #tpu.memory_space<vmem>>, vector<1x1x1x1x8xf32>
    %97 = vector.shape_cast %96 : vector<1x1x1x1x8xf32> to vector<1x8xf32>
    %98 = vector.broadcast %97 : vector<1x8xf32> to vector<16x8xf32>
    %99 = arith.addf %95, %98 : vector<16x8xf32>
    %c0_104 = arith.constant 0 : index
    %c2_105 = arith.constant 2 : index
    %c2_106 = arith.constant 2 : index
    %c0_107 = arith.constant 0 : index
    %c0_108 = arith.constant 0 : index
    %100 = vector.load %arg3[%c0_104, %c2_105, %c2_106, %c0_107, %c0_108] : memref<2x3x4x32x8xf32, #tpu.memory_space<vmem>>, vector<1x1x1x32x8xf32>
    %101 = vector.shape_cast %100 : vector<1x1x1x32x8xf32> to vector<32x8xf32>
    %cst_109 = arith.constant dense<0.000000e+00> : vector<16x8xf32>
    %102 = tpu.matmul %5, %101, %cst_109 {dimension_numbers = #tpu.dot_dimension_numbers<[1], [0], [0], [1], [0, 0, 1, 1], [], []>} : vector<16x32xf32>, vector<32x8xf32>, vector<16x8xf32> -> vector<16x8xf32>
    %c0_110 = arith.constant 0 : index
    %c2_111 = arith.constant 2 : index
    %c2_112 = arith.constant 2 : index
    %c0_113 = arith.constant 0 : index
    %c0_114 = arith.constant 0 : index
    %103 = vector.load %arg4[%c0_110, %c2_111, %c2_112, %c0_113, %c0_114] : memref<2x3x4x1x8xf32, #tpu.memory_space<vmem>>, vector<1x1x1x1x8xf32>
    %104 = vector.shape_cast %103 : vector<1x1x1x1x8xf32> to vector<1x8xf32>
    %105 = vector.broadcast %104 : vector<1x8xf32> to vector<16x8xf32>
    %106 = arith.addf %102, %105 : vector<16x8xf32>
    %107 = vector.shape_cast %92 : vector<16x8xf32> to vector<2x8x8xf32>
    %108 = vector.shape_cast %99 : vector<16x8xf32> to vector<2x8x8xf32>
    %109 = vector.shape_cast %106 : vector<16x8xf32> to vector<2x8x8xf32>
    "tpu.trace_start"() <{level = 10 : i32, message = "bqd,bkd->bqk"}> : () -> ()
    %cst_115 = arith.constant dense<0.000000e+00> : vector<2x8x8xf32>
    %110 = tpu.matmul %107, %108, %cst_115 {dimension_numbers = #tpu.dot_dimension_numbers<[2], [2], [1], [1], [0, 0, 0, 1, 1, 1], [0], [0]>} : vector<2x8x8xf32>, vector<2x8x8xf32>, vector<2x8x8xf32> -> vector<2x8x8xf32>
    "tpu.trace_stop"() : () -> ()
    %cst_116 = arith.constant 0.353553385 : f32
    %111 = vector.broadcast %cst_116 : f32 to vector<2x8x8xf32>
    %112 = arith.mulf %110, %111 : vector<2x8x8xf32>
    %cst_117 = arith.constant dense<0xFF800000> : vector<2x8xf32>
    %113 = vector.multi_reduction <maximumf>, %112, %cst_117 [2] : vector<2x8x8xf32> to vector<2x8xf32>
    %114 = vector.shape_cast %113 : vector<2x8xf32> to vector<2x8x1xf32>
    %115 = vector.broadcast %114 : vector<2x8x1xf32> to vector<2x8x8xf32>
    %116 = arith.subf %112, %115 : vector<2x8x8xf32>
    %117 = math.exp %116 : vector<2x8x8xf32>
    %cst_118 = arith.constant dense<0.000000e+00> : vector<2x8xf32>
    %118 = vector.multi_reduction <add>, %117, %cst_118 [2] : vector<2x8x8xf32> to vector<2x8xf32>
    %119 = vector.shape_cast %118 : vector<2x8xf32> to vector<2x8x1xf32>
    %120 = tpu.reciprocal %119 {approx = true} : vector<2x8x1xf32> -> vector<2x8x1xf32>
    %121 = vector.broadcast %120 : vector<2x8x1xf32> to vector<2x8x8xf32>
    %122 = arith.mulf %117, %121 : vector<2x8x8xf32>
    "tpu.trace_start"() <{level = 10 : i32, message = "bqk,bkd->bqd"}> : () -> ()
    %cst_119 = arith.constant dense<0.000000e+00> : vector<2x8x8xf32>
    %123 = tpu.matmul %122, %109, %cst_119 {dimension_numbers = #tpu.dot_dimension_numbers<[2], [1], [1], [2], [0, 0, 0, 1, 1, 2], [0], [0]>} : vector<2x8x8xf32>, vector<2x8x8xf32>, vector<2x8x8xf32> -> vector<2x8x8xf32>
    "tpu.trace_stop"() : () -> ()
    %124 = vector.shape_cast %123 : vector<2x8x8xf32> to vector<16x8xf32>
    %c0_120 = arith.constant 0 : index
    %c16 = arith.constant 16 : index
    %125 = vector.load %arg18[%c0_120, %c16] : memref<16x32xf32, #tpu.memory_space<vmem>>, vector<16x8xf32>
    tpu.vector_store %arg18[%c0_120, %c16], %124 {strides = array<i32>} : memref<16x32xf32, #tpu.memory_space<vmem>>, vector<16x8xf32>,
    %c0_121 = arith.constant 0 : index
    %c0_122 = arith.constant 0 : index
    %c3 = arith.constant 3 : index
    %c0_123 = arith.constant 0 : index
    %c0_124 = arith.constant 0 : index
    %126 = vector.load %arg3[%c0_121, %c0_122, %c3, %c0_123, %c0_124] : memref<2x3x4x32x8xf32, #tpu.memory_space<vmem>>, vector<1x1x1x32x8xf32>
    %127 = vector.shape_cast %126 : vector<1x1x1x32x8xf32> to vector<32x8xf32>
    %cst_125 = arith.constant dense<0.000000e+00> : vector<16x8xf32>
    %128 = tpu.matmul %5, %127, %cst_125 {dimension_numbers = #tpu.dot_dimension_numbers<[1], [0], [0], [1], [0, 0, 1, 1], [], []>} : vector<16x32xf32>, vector<32x8xf32>, vector<16x8xf32> -> vector<16x8xf32>
    %c0_126 = arith.constant 0 : index
    %c0_127 = arith.constant 0 : index
    %c3_128 = arith.constant 3 : index
    %c0_129 = arith.constant 0 : index
    %c0_130 = arith.constant 0 : index
    %129 = vector.load %arg4[%c0_126, %c0_127, %c3_128, %c0_129, %c0_130] : memref<2x3x4x1x8xf32, #tpu.memory_space<vmem>>, vector<1x1x1x1x8xf32>
    %130 = vector.shape_cast %129 : vector<1x1x1x1x8xf32> to vector<1x8xf32>
    %131 = vector.broadcast %130 : vector<1x8xf32> to vector<16x8xf32>
    %132 = arith.addf %128, %131 : vector<16x8xf32>
    %c0_131 = arith.constant 0 : index
    %c1_132 = arith.constant 1 : index
    %c3_133 = arith.constant 3 : index
    %c0_134 = arith.constant 0 : index
    %c0_135 = arith.constant 0 : index
    %133 = vector.load %arg3[%c0_131, %c1_132, %c3_133, %c0_134, %c0_135] : memref<2x3x4x32x8xf32, #tpu.memory_space<vmem>>, vector<1x1x1x32x8xf32>
    %134 = vector.shape_cast %133 : vector<1x1x1x32x8xf32> to vector<32x8xf32>
    %cst_136 = arith.constant dense<0.000000e+00> : vector<16x8xf32>
    %135 = tpu.matmul %5, %134, %cst_136 {dimension_numbers = #tpu.dot_dimension_numbers<[1], [0], [0], [1], [0, 0, 1, 1], [], []>} : vector<16x32xf32>, vector<32x8xf32>, vector<16x8xf32> -> vector<16x8xf32>
    %c0_137 = arith.constant 0 : index
    %c1_138 = arith.constant 1 : index
    %c3_139 = arith.constant 3 : index
    %c0_140 = arith.constant 0 : index
    %c0_141 = arith.constant 0 : index
    %136 = vector.load %arg4[%c0_137, %c1_138, %c3_139, %c0_140, %c0_141] : memref<2x3x4x1x8xf32, #tpu.memory_space<vmem>>, vector<1x1x1x1x8xf32>
    %137 = vector.shape_cast %136 : vector<1x1x1x1x8xf32> to vector<1x8xf32>
    %138 = vector.broadcast %137 : vector<1x8xf32> to vector<16x8xf32>
    %139 = arith.addf %135, %138 : vector<16x8xf32>
    %c0_142 = arith.constant 0 : index
    %c2_143 = arith.constant 2 : index
    %c3_144 = arith.constant 3 : index
    %c0_145 = arith.constant 0 : index
    %c0_146 = arith.constant 0 : index
    %140 = vector.load %arg3[%c0_142, %c2_143, %c3_144, %c0_145, %c0_146] : memref<2x3x4x32x8xf32, #tpu.memory_space<vmem>>, vector<1x1x1x32x8xf32>
    %141 = vector.shape_cast %140 : vector<1x1x1x32x8xf32> to vector<32x8xf32>
    %cst_147 = arith.constant dense<0.000000e+00> : vector<16x8xf32>
    %142 = tpu.matmul %5, %141, %cst_147 {dimension_numbers = #tpu.dot_dimension_numbers<[1], [0], [0], [1], [0, 0, 1, 1], [], []>} : vector<16x32xf32>, vector<32x8xf32>, vector<16x8xf32> -> vector<16x8xf32>
    %c0_148 = arith.constant 0 : index
    %c2_149 = arith.constant 2 : index
    %c3_150 = arith.constant 3 : index
    %c0_151 = arith.constant 0 : index
    %c0_152 = arith.constant 0 : index
    %143 = vector.load %arg4[%c0_148, %c2_149, %c3_150, %c0_151, %c0_152] : memref<2x3x4x1x8xf32, #tpu.memory_space<vmem>>, vector<1x1x1x1x8xf32>
    %144 = vector.shape_cast %143 : vector<1x1x1x1x8xf32> to vector<1x8xf32>
    %145 = vector.broadcast %144 : vector<1x8xf32> to vector<16x8xf32>
    %146 = arith.addf %142, %145 : vector<16x8xf32>
    %147 = vector.shape_cast %132 : vector<16x8xf32> to vector<2x8x8xf32>
    %148 = vector.shape_cast %139 : vector<16x8xf32> to vector<2x8x8xf32>
    %149 = vector.shape_cast %146 : vector<16x8xf32> to vector<2x8x8xf32>
    "tpu.trace_start"() <{level = 10 : i32, message = "bqd,bkd->bqk"}> : () -> ()
    %cst_153 = arith.constant dense<0.000000e+00> : vector<2x8x8xf32>
    %150 = tpu.matmul %147, %148, %cst_153 {dimension_numbers = #tpu.dot_dimension_numbers<[2], [2], [1], [1], [0, 0, 0, 1, 1, 1], [0], [0]>} : vector<2x8x8xf32>, vector<2x8x8xf32>, vector<2x8x8xf32> -> vector<2x8x8xf32>
    "tpu.trace_stop"() : () -> ()
    %cst_154 = arith.constant 0.353553385 : f32
    %151 = vector.broadcast %cst_154 : f32 to vector<2x8x8xf32>
    %152 = arith.mulf %150, %151 : vector<2x8x8xf32>
    %cst_155 = arith.constant dense<0xFF800000> : vector<2x8xf32>
    %153 = vector.multi_reduction <maximumf>, %152, %cst_155 [2] : vector<2x8x8xf32> to vector<2x8xf32>
    %154 = vector.shape_cast %153 : vector<2x8xf32> to vector<2x8x1xf32>
    %155 = vector.broadcast %154 : vector<2x8x1xf32> to vector<2x8x8xf32>
    %156 = arith.subf %152, %155 : vector<2x8x8xf32>
    %157 = math.exp %156 : vector<2x8x8xf32>
    %cst_156 = arith.constant dense<0.000000e+00> : vector<2x8xf32>
    %158 = vector.multi_reduction <add>, %157, %cst_156 [2] : vector<2x8x8xf32> to vector<2x8xf32>
    %159 = vector.shape_cast %158 : vector<2x8xf32> to vector<2x8x1xf32>
    %160 = tpu.reciprocal %159 {approx = true} : vector<2x8x1xf32> -> vector<2x8x1xf32>
    %161 = vector.broadcast %160 : vector<2x8x1xf32> to vector<2x8x8xf32>
    %162 = arith.mulf %157, %161 : vector<2x8x8xf32>
    "tpu.trace_start"() <{level = 10 : i32, message = "bqk,bkd->bqd"}> : () -> ()
    %cst_157 = arith.constant dense<0.000000e+00> : vector<2x8x8xf32>
    %163 = tpu.matmul %162, %149, %cst_157 {dimension_numbers = #tpu.dot_dimension_numbers<[2], [1], [1], [2], [0, 0, 0, 1, 1, 2], [0], [0]>} : vector<2x8x8xf32>, vector<2x8x8xf32>, vector<2x8x8xf32> -> vector<2x8x8xf32>
    "tpu.trace_stop"() : () -> ()
    %164 = vector.shape_cast %163 : vector<2x8x8xf32> to vector<16x8xf32>
    %c0_158 = arith.constant 0 : index
    %c24 = arith.constant 24 : index
    %165 = vector.load %arg18[%c0_158, %c24] : memref<16x32xf32, #tpu.memory_space<vmem>>, vector<16x8xf32>
    tpu.vector_store %arg18[%c0_158, %c24], %164 {strides = array<i32>} : memref<16x32xf32, #tpu.memory_space<vmem>>, vector<16x8xf32>,
    %c0_159 = arith.constant 0 : index
    %c0_160 = arith.constant 0 : index
    %166 = vector.load %arg18[%c0_159, %c0_160] : memref<16x32xf32, #tpu.memory_space<vmem>>, vector<16x32xf32>
    %c0_161 = arith.constant 0 : index
    %c0_162 = arith.constant 0 : index
    %c0_163 = arith.constant 0 : index
    %167 = vector.load %arg5[%c0_161, %c0_162, %c0_163] : memref<2x32x32xf32, #tpu.memory_space<vmem>>, vector<1x32x32xf32>
    %168 = vector.shape_cast %167 : vector<1x32x32xf32> to vector<32x32xf32>
    %cst_164 = arith.constant dense<0.000000e+00> : vector<16x32xf32>
    %169 = tpu.matmul %166, %168, %cst_164 {dimension_numbers = #tpu.dot_dimension_numbers<[1], [0], [0], [1], [0, 0, 1, 1], [], []>} : vector<16x32xf32>, vector<32x32xf32>, vector<16x32xf32> -> vector<16x32xf32>
    %c0_165 = arith.constant 0 : index
    %c0_166 = arith.constant 0 : index
    %c0_167 = arith.constant 0 : index
    %170 = vector.load %arg6[%c0_165, %c0_166, %c0_167] : memref<2x1x32xf32, #tpu.memory_space<vmem>>, vector<1x1x32xf32>
    %171 = vector.shape_cast %170 : vector<1x1x32xf32> to vector<1x32xf32>
    %172 = vector.broadcast %171 : vector<1x32xf32> to vector<16x32xf32>
    %173 = arith.addf %169, %172 : vector<16x32xf32>
    %174 = arith.addf %5, %173 : vector<16x32xf32>
    %c0_168 = arith.constant 0 : index
    %c0_169 = arith.constant 0 : index
    %c0_170 = arith.constant 0 : index
    %175 = vector.load %arg7[%c0_168, %c0_169, %c0_170] : memref<2x1x32xf32, #tpu.memory_space<vmem>>, vector<1x1x32xf32>
    %176 = vector.shape_cast %175 : vector<1x1x32xf32> to vector<1x32xf32>
    %c0_171 = arith.constant 0 : index
    %c0_172 = arith.constant 0 : index
    %c0_173 = arith.constant 0 : index
    %177 = vector.load %arg8[%c0_171, %c0_172, %c0_173] : memref<2x1x32xf32, #tpu.memory_space<vmem>>, vector<1x1x32xf32>
    %178 = vector.shape_cast %177 : vector<1x1x32xf32> to vector<1x32xf32>
    %cst_174 = arith.constant dense<0.000000e+00> : vector<16xf32>
    %179 = vector.multi_reduction <add>, %174, %cst_174 [1] : vector<16x32xf32> to vector<16xf32>
    %180 = vector.shape_cast %179 : vector<16xf32> to vector<16x1xf32>
    %cst_175 = arith.constant 3.200000e+01 : f32
    %181 = vector.broadcast %cst_175 : f32 to vector<16x1xf32>
    %182 = arith.divf %180, %181 : vector<16x1xf32>
    %183 = vector.broadcast %182 : vector<16x1xf32> to vector<16x32xf32>
    %184 = arith.subf %174, %183 : vector<16x32xf32>
    %185 = arith.mulf %184, %184 : vector<16x32xf32>
    %cst_176 = arith.constant dense<0.000000e+00> : vector<16xf32>
    %186 = vector.multi_reduction <add>, %185, %cst_176 [1] : vector<16x32xf32> to vector<16xf32>
    %187 = vector.shape_cast %186 : vector<16xf32> to vector<16x1xf32>
    %cst_177 = arith.constant 3.200000e+01 : f32
    %188 = vector.broadcast %cst_177 : f32 to vector<16x1xf32>
    %189 = arith.divf %187, %188 : vector<16x1xf32>
    %190 = vector.broadcast %182 : vector<16x1xf32> to vector<16x32xf32>
    %191 = arith.subf %174, %190 : vector<16x32xf32>
    %cst_178 = arith.constant 9.99999974E-6 : f32
    %192 = vector.broadcast %cst_178 : f32 to vector<16x1xf32>
    %193 = arith.addf %189, %192 : vector<16x1xf32>
    %194 = math.rsqrt %193 : vector<16x1xf32>
    %195 = vector.broadcast %194 : vector<16x1xf32> to vector<16x32xf32>
    %196 = arith.mulf %191, %195 : vector<16x32xf32>
    %197 = vector.broadcast %176 : vector<1x32xf32> to vector<16x32xf32>
    %198 = arith.mulf %196, %197 : vector<16x32xf32>
    %199 = vector.broadcast %178 : vector<1x32xf32> to vector<16x32xf32>
    %200 = arith.addf %198, %199 : vector<16x32xf32>
    %c0_179 = arith.constant 0 : index
    %c0_180 = arith.constant 0 : index
    %c0_181 = arith.constant 0 : index
    %201 = vector.load %arg9[%c0_179, %c0_180, %c0_181] : memref<2x32x128xf32, #tpu.memory_space<vmem>>, vector<1x32x128xf32>
    %202 = vector.shape_cast %201 : vector<1x32x128xf32> to vector<32x128xf32>
    %cst_182 = arith.constant dense<0.000000e+00> : vector<16x128xf32>
    %203 = tpu.matmul %200, %202, %cst_182 {dimension_numbers = #tpu.dot_dimension_numbers<[1], [0], [0], [1], [0, 0, 1, 1], [], []>} : vector<16x32xf32>, vector<32x128xf32>, vector<16x128xf32> -> vector<16x128xf32>
    %c0_183 = arith.constant 0 : index
    %c0_184 = arith.constant 0 : index
    %c0_185 = arith.constant 0 : index
    %204 = vector.load %arg10[%c0_183, %c0_184, %c0_185] : memref<2x1x128xf32, #tpu.memory_space<vmem>>, vector<1x1x128xf32>
    %205 = vector.shape_cast %204 : vector<1x1x128xf32> to vector<1x128xf32>
    %206 = vector.broadcast %205 : vector<1x128xf32> to vector<16x128xf32>
    %207 = arith.addf %203, %206 : vector<16x128xf32>
    %cst_186 = arith.constant 0.000000e+00 : f32
    %208 = vector.broadcast %cst_186 : f32 to vector<16x128xf32>
    %209 = arith.maximumf %207, %208 : vector<16x128xf32>
    %c0_187 = arith.constant 0 : index
    %c0_188 = arith.constant 0 : index
    %c0_189 = arith.constant 0 : index
    %210 = vector.load %arg11[%c0_187, %c0_188, %c0_189] : memref<2x128x32xf32, #tpu.memory_space<vmem>>, vector<1x128x32xf32>
    %211 = vector.shape_cast %210 : vector<1x128x32xf32> to vector<128x32xf32>
    %cst_190 = arith.constant dense<0.000000e+00> : vector<16x32xf32>
    %212 = tpu.matmul %209, %211, %cst_190 {dimension_numbers = #tpu.dot_dimension_numbers<[1], [0], [0], [1], [0, 0, 1, 1], [], []>} : vector<16x128xf32>, vector<128x32xf32>, vector<16x32xf32> -> vector<16x32xf32>
    %c0_191 = arith.constant 0 : index
    %c0_192 = arith.constant 0 : index
    %c0_193 = arith.constant 0 : index
    %213 = vector.load %arg12[%c0_191, %c0_192, %c0_193] : memref<2x1x32xf32, #tpu.memory_space<vmem>>, vector<1x1x32xf32>
    %214 = vector.shape_cast %213 : vector<1x1x32xf32> to vector<1x32xf32>
    %215 = vector.broadcast %214 : vector<1x32xf32> to vector<16x32xf32>
    %216 = arith.addf %212, %215 : vector<16x32xf32>
    %217 = arith.addf %200, %216 : vector<16x32xf32>
    %c0_194 = arith.constant 0 : index
    %c0_195 = arith.constant 0 : index
    %c0_196 = arith.constant 0 : index
    %218 = vector.load %arg13[%c0_194, %c0_195, %c0_196] : memref<2x1x32xf32, #tpu.memory_space<vmem>>, vector<1x1x32xf32>
    %219 = vector.shape_cast %218 : vector<1x1x32xf32> to vector<1x32xf32>
    %c0_197 = arith.constant 0 : index
    %c0_198 = arith.constant 0 : index
    %c0_199 = arith.constant 0 : index
    %220 = vector.load %arg14[%c0_197, %c0_198, %c0_199] : memref<2x1x32xf32, #tpu.memory_space<vmem>>, vector<1x1x32xf32>
    %221 = vector.shape_cast %220 : vector<1x1x32xf32> to vector<1x32xf32>
    %cst_200 = arith.constant dense<0.000000e+00> : vector<16xf32>
    %222 = vector.multi_reduction <add>, %217, %cst_200 [1] : vector<16x32xf32> to vector<16xf32>
    %223 = vector.shape_cast %222 : vector<16xf32> to vector<16x1xf32>
    %cst_201 = arith.constant 3.200000e+01 : f32
    %224 = vector.broadcast %cst_201 : f32 to vector<16x1xf32>
    %225 = arith.divf %223, %224 : vector<16x1xf32>
    %226 = vector.broadcast %225 : vector<16x1xf32> to vector<16x32xf32>
    %227 = arith.subf %217, %226 : vector<16x32xf32>
    %228 = arith.mulf %227, %227 : vector<16x32xf32>
    %cst_202 = arith.constant dense<0.000000e+00> : vector<16xf32>
    %229 = vector.multi_reduction <add>, %228, %cst_202 [1] : vector<16x32xf32> to vector<16xf32>
    %230 = vector.shape_cast %229 : vector<16xf32> to vector<16x1xf32>
    %cst_203 = arith.constant 3.200000e+01 : f32
    %231 = vector.broadcast %cst_203 : f32 to vector<16x1xf32>
    %232 = arith.divf %230, %231 : vector<16x1xf32>
    %233 = vector.broadcast %225 : vector<16x1xf32> to vector<16x32xf32>
    %234 = arith.subf %217, %233 : vector<16x32xf32>
    %cst_204 = arith.constant 9.99999974E-6 : f32
    %235 = vector.broadcast %cst_204 : f32 to vector<16x1xf32>
    %236 = arith.addf %232, %235 : vector<16x1xf32>
    %237 = math.rsqrt %236 : vector<16x1xf32>
    %238 = vector.broadcast %237 : vector<16x1xf32> to vector<16x32xf32>
    %239 = arith.mulf %234, %238 : vector<16x32xf32>
    %240 = vector.broadcast %219 : vector<1x32xf32> to vector<16x32xf32>
    %241 = arith.mulf %239, %240 : vector<16x32xf32>
    %242 = vector.broadcast %221 : vector<1x32xf32> to vector<16x32xf32>
    %243 = arith.addf %241, %242 : vector<16x32xf32>
    %c1_205 = arith.constant 1 : index
    %c0_206 = arith.constant 0 : index
    %c0_207 = arith.constant 0 : index
    %c0_208 = arith.constant 0 : index
    %c0_209 = arith.constant 0 : index
    %244 = vector.load %arg3[%c1_205, %c0_206, %c0_207, %c0_208, %c0_209] : memref<2x3x4x32x8xf32, #tpu.memory_space<vmem>>, vector<1x1x1x32x8xf32>
    %245 = vector.shape_cast %244 : vector<1x1x1x32x8xf32> to vector<32x8xf32>
    %cst_210 = arith.constant dense<0.000000e+00> : vector<16x8xf32>
    %246 = tpu.matmul %243, %245, %cst_210 {dimension_numbers = #tpu.dot_dimension_numbers<[1], [0], [0], [1], [0, 0, 1, 1], [], []>} : vector<16x32xf32>, vector<32x8xf32>, vector<16x8xf32> -> vector<16x8xf32>
    %c1_211 = arith.constant 1 : index
    %c0_212 = arith.constant 0 : index
    %c0_213 = arith.constant 0 : index
    %c0_214 = arith.constant 0 : index
    %c0_215 = arith.constant 0 : index
    %247 = vector.load %arg4[%c1_211, %c0_212, %c0_213, %c0_214, %c0_215] : memref<2x3x4x1x8xf32, #tpu.memory_space<vmem>>, vector<1x1x1x1x8xf32>
    %248 = vector.shape_cast %247 : vector<1x1x1x1x8xf32> to vector<1x8xf32>
    %249 = vector.broadcast %248 : vector<1x8xf32> to vector<16x8xf32>
    %250 = arith.addf %246, %249 : vector<16x8xf32>
    %c1_216 = arith.constant 1 : index
    %c1_217 = arith.constant 1 : index
    %c0_218 = arith.constant 0 : index
    %c0_219 = arith.constant 0 : index
    %c0_220 = arith.constant 0 : index
    %251 = vector.load %arg3[%c1_216, %c1_217, %c0_218, %c0_219, %c0_220] : memref<2x3x4x32x8xf32, #tpu.memory_space<vmem>>, vector<1x1x1x32x8xf32>
    %252 = vector.shape_cast %251 : vector<1x1x1x32x8xf32> to vector<32x8xf32>
    %cst_221 = arith.constant dense<0.000000e+00> : vector<16x8xf32>
    %253 = tpu.matmul %243, %252, %cst_221 {dimension_numbers = #tpu.dot_dimension_numbers<[1], [0], [0], [1], [0, 0, 1, 1], [], []>} : vector<16x32xf32>, vector<32x8xf32>, vector<16x8xf32> -> vector<16x8xf32>
    %c1_222 = arith.constant 1 : index
    %c1_223 = arith.constant 1 : index
    %c0_224 = arith.constant 0 : index
    %c0_225 = arith.constant 0 : index
    %c0_226 = arith.constant 0 : index
    %254 = vector.load %arg4[%c1_222, %c1_223, %c0_224, %c0_225, %c0_226] : memref<2x3x4x1x8xf32, #tpu.memory_space<vmem>>, vector<1x1x1x1x8xf32>
    %255 = vector.shape_cast %254 : vector<1x1x1x1x8xf32> to vector<1x8xf32>
    %256 = vector.broadcast %255 : vector<1x8xf32> to vector<16x8xf32>
    %257 = arith.addf %253, %256 : vector<16x8xf32>
    %c1_227 = arith.constant 1 : index
    %c2_228 = arith.constant 2 : index
    %c0_229 = arith.constant 0 : index
    %c0_230 = arith.constant 0 : index
    %c0_231 = arith.constant 0 : index
    %258 = vector.load %arg3[%c1_227, %c2_228, %c0_229, %c0_230, %c0_231] : memref<2x3x4x32x8xf32, #tpu.memory_space<vmem>>, vector<1x1x1x32x8xf32>
    %259 = vector.shape_cast %258 : vector<1x1x1x32x8xf32> to vector<32x8xf32>
    %cst_232 = arith.constant dense<0.000000e+00> : vector<16x8xf32>
    %260 = tpu.matmul %243, %259, %cst_232 {dimension_numbers = #tpu.dot_dimension_numbers<[1], [0], [0], [1], [0, 0, 1, 1], [], []>} : vector<16x32xf32>, vector<32x8xf32>, vector<16x8xf32> -> vector<16x8xf32>
    %c1_233 = arith.constant 1 : index
    %c2_234 = arith.constant 2 : index
    %c0_235 = arith.constant 0 : index
    %c0_236 = arith.constant 0 : index
    %c0_237 = arith.constant 0 : index
    %261 = vector.load %arg4[%c1_233, %c2_234, %c0_235, %c0_236, %c0_237] : memref<2x3x4x1x8xf32, #tpu.memory_space<vmem>>, vector<1x1x1x1x8xf32>
    %262 = vector.shape_cast %261 : vector<1x1x1x1x8xf32> to vector<1x8xf32>
    %263 = vector.broadcast %262 : vector<1x8xf32> to vector<16x8xf32>
    %264 = arith.addf %260, %263 : vector<16x8xf32>
    %265 = vector.shape_cast %250 : vector<16x8xf32> to vector<2x8x8xf32>
    %266 = vector.shape_cast %257 : vector<16x8xf32> to vector<2x8x8xf32>
    %267 = vector.shape_cast %264 : vector<16x8xf32> to vector<2x8x8xf32>
    "tpu.trace_start"() <{level = 10 : i32, message = "bqd,bkd->bqk"}> : () -> ()
    %cst_238 = arith.constant dense<0.000000e+00> : vector<2x8x8xf32>
    %268 = tpu.matmul %265, %266, %cst_238 {dimension_numbers = #tpu.dot_dimension_numbers<[2], [2], [1], [1], [0, 0, 0, 1, 1, 1], [0], [0]>} : vector<2x8x8xf32>, vector<2x8x8xf32>, vector<2x8x8xf32> -> vector<2x8x8xf32>
    "tpu.trace_stop"() : () -> ()
    %cst_239 = arith.constant 0.353553385 : f32
    %269 = vector.broadcast %cst_239 : f32 to vector<2x8x8xf32>
    %270 = arith.mulf %268, %269 : vector<2x8x8xf32>
    %cst_240 = arith.constant dense<0xFF800000> : vector<2x8xf32>
    %271 = vector.multi_reduction <maximumf>, %270, %cst_240 [2] : vector<2x8x8xf32> to vector<2x8xf32>
    %272 = vector.shape_cast %271 : vector<2x8xf32> to vector<2x8x1xf32>
    %273 = vector.broadcast %272 : vector<2x8x1xf32> to vector<2x8x8xf32>
    %274 = arith.subf %270, %273 : vector<2x8x8xf32>
    %275 = math.exp %274 : vector<2x8x8xf32>
    %cst_241 = arith.constant dense<0.000000e+00> : vector<2x8xf32>
    %276 = vector.multi_reduction <add>, %275, %cst_241 [2] : vector<2x8x8xf32> to vector<2x8xf32>
    %277 = vector.shape_cast %276 : vector<2x8xf32> to vector<2x8x1xf32>
    %278 = tpu.reciprocal %277 {approx = true} : vector<2x8x1xf32> -> vector<2x8x1xf32>
    %279 = vector.broadcast %278 : vector<2x8x1xf32> to vector<2x8x8xf32>
    %280 = arith.mulf %275, %279 : vector<2x8x8xf32>
    "tpu.trace_start"() <{level = 10 : i32, message = "bqk,bkd->bqd"}> : () -> ()
    %cst_242 = arith.constant dense<0.000000e+00> : vector<2x8x8xf32>
    %281 = tpu.matmul %280, %267, %cst_242 {dimension_numbers = #tpu.dot_dimension_numbers<[2], [1], [1], [2], [0, 0, 0, 1, 1, 2], [0], [0]>} : vector<2x8x8xf32>, vector<2x8x8xf32>, vector<2x8x8xf32> -> vector<2x8x8xf32>
    "tpu.trace_stop"() : () -> ()
    %282 = vector.shape_cast %281 : vector<2x8x8xf32> to vector<16x8xf32>
    %c0_243 = arith.constant 0 : index
    %c0_244 = arith.constant 0 : index
    %283 = vector.load %arg18[%c0_243, %c0_244] : memref<16x32xf32, #tpu.memory_space<vmem>>, vector<16x8xf32>
    tpu.vector_store %arg18[%c0_243, %c0_244], %282 {strides = array<i32>} : memref<16x32xf32, #tpu.memory_space<vmem>>, vector<16x8xf32>,
    %c1_245 = arith.constant 1 : index
    %c0_246 = arith.constant 0 : index
    %c1_247 = arith.constant 1 : index
    %c0_248 = arith.constant 0 : index
    %c0_249 = arith.constant 0 : index
    %284 = vector.load %arg3[%c1_245, %c0_246, %c1_247, %c0_248, %c0_249] : memref<2x3x4x32x8xf32, #tpu.memory_space<vmem>>, vector<1x1x1x32x8xf32>
    %285 = vector.shape_cast %284 : vector<1x1x1x32x8xf32> to vector<32x8xf32>
    %cst_250 = arith.constant dense<0.000000e+00> : vector<16x8xf32>
    %286 = tpu.matmul %243, %285, %cst_250 {dimension_numbers = #tpu.dot_dimension_numbers<[1], [0], [0], [1], [0, 0, 1, 1], [], []>} : vector<16x32xf32>, vector<32x8xf32>, vector<16x8xf32> -> vector<16x8xf32>
    %c1_251 = arith.constant 1 : index
    %c0_252 = arith.constant 0 : index
    %c1_253 = arith.constant 1 : index
    %c0_254 = arith.constant 0 : index
    %c0_255 = arith.constant 0 : index
    %287 = vector.load %arg4[%c1_251, %c0_252, %c1_253, %c0_254, %c0_255] : memref<2x3x4x1x8xf32, #tpu.memory_space<vmem>>, vector<1x1x1x1x8xf32>
    %288 = vector.shape_cast %287 : vector<1x1x1x1x8xf32> to vector<1x8xf32>
    %289 = vector.broadcast %288 : vector<1x8xf32> to vector<16x8xf32>
    %290 = arith.addf %286, %289 : vector<16x8xf32>
    %c1_256 = arith.constant 1 : index
    %c1_257 = arith.constant 1 : index
    %c1_258 = arith.constant 1 : index
    %c0_259 = arith.constant 0 : index
    %c0_260 = arith.constant 0 : index
    %291 = vector.load %arg3[%c1_256, %c1_257, %c1_258, %c0_259, %c0_260] : memref<2x3x4x32x8xf32, #tpu.memory_space<vmem>>, vector<1x1x1x32x8xf32>
    %292 = vector.shape_cast %291 : vector<1x1x1x32x8xf32> to vector<32x8xf32>
    %cst_261 = arith.constant dense<0.000000e+00> : vector<16x8xf32>
    %293 = tpu.matmul %243, %292, %cst_261 {dimension_numbers = #tpu.dot_dimension_numbers<[1], [0], [0], [1], [0, 0, 1, 1], [], []>} : vector<16x32xf32>, vector<32x8xf32>, vector<16x8xf32> -> vector<16x8xf32>
    %c1_262 = arith.constant 1 : index
    %c1_263 = arith.constant 1 : index
    %c1_264 = arith.constant 1 : index
    %c0_265 = arith.constant 0 : index
    %c0_266 = arith.constant 0 : index
    %294 = vector.load %arg4[%c1_262, %c1_263, %c1_264, %c0_265, %c0_266] : memref<2x3x4x1x8xf32, #tpu.memory_space<vmem>>, vector<1x1x1x1x8xf32>
    %295 = vector.shape_cast %294 : vector<1x1x1x1x8xf32> to vector<1x8xf32>
    %296 = vector.broadcast %295 : vector<1x8xf32> to vector<16x8xf32>
    %297 = arith.addf %293, %296 : vector<16x8xf32>
    %c1_267 = arith.constant 1 : index
    %c2_268 = arith.constant 2 : index
    %c1_269 = arith.constant 1 : index
    %c0_270 = arith.constant 0 : index
    %c0_271 = arith.constant 0 : index
    %298 = vector.load %arg3[%c1_267, %c2_268, %c1_269, %c0_270, %c0_271] : memref<2x3x4x32x8xf32, #tpu.memory_space<vmem>>, vector<1x1x1x32x8xf32>
    %299 = vector.shape_cast %298 : vector<1x1x1x32x8xf32> to vector<32x8xf32>
    %cst_272 = arith.constant dense<0.000000e+00> : vector<16x8xf32>
    %300 = tpu.matmul %243, %299, %cst_272 {dimension_numbers = #tpu.dot_dimension_numbers<[1], [0], [0], [1], [0, 0, 1, 1], [], []>} : vector<16x32xf32>, vector<32x8xf32>, vector<16x8xf32> -> vector<16x8xf32>
    %c1_273 = arith.constant 1 : index
    %c2_274 = arith.constant 2 : index
    %c1_275 = arith.constant 1 : index
    %c0_276 = arith.constant 0 : index
    %c0_277 = arith.constant 0 : index
    %301 = vector.load %arg4[%c1_273, %c2_274, %c1_275, %c0_276, %c0_277] : memref<2x3x4x1x8xf32, #tpu.memory_space<vmem>>, vector<1x1x1x1x8xf32>
    %302 = vector.shape_cast %301 : vector<1x1x1x1x8xf32> to vector<1x8xf32>
    %303 = vector.broadcast %302 : vector<1x8xf32> to vector<16x8xf32>
    %304 = arith.addf %300, %303 : vector<16x8xf32>
    %305 = vector.shape_cast %290 : vector<16x8xf32> to vector<2x8x8xf32>
    %306 = vector.shape_cast %297 : vector<16x8xf32> to vector<2x8x8xf32>
    %307 = vector.shape_cast %304 : vector<16x8xf32> to vector<2x8x8xf32>
    "tpu.trace_start"() <{level = 10 : i32, message = "bqd,bkd->bqk"}> : () -> ()
    %cst_278 = arith.constant dense<0.000000e+00> : vector<2x8x8xf32>
    %308 = tpu.matmul %305, %306, %cst_278 {dimension_numbers = #tpu.dot_dimension_numbers<[2], [2], [1], [1], [0, 0, 0, 1, 1, 1], [0], [0]>} : vector<2x8x8xf32>, vector<2x8x8xf32>, vector<2x8x8xf32> -> vector<2x8x8xf32>
    "tpu.trace_stop"() : () -> ()
    %cst_279 = arith.constant 0.353553385 : f32
    %309 = vector.broadcast %cst_279 : f32 to vector<2x8x8xf32>
    %310 = arith.mulf %308, %309 : vector<2x8x8xf32>
    %cst_280 = arith.constant dense<0xFF800000> : vector<2x8xf32>
    %311 = vector.multi_reduction <maximumf>, %310, %cst_280 [2] : vector<2x8x8xf32> to vector<2x8xf32>
    %312 = vector.shape_cast %311 : vector<2x8xf32> to vector<2x8x1xf32>
    %313 = vector.broadcast %312 : vector<2x8x1xf32> to vector<2x8x8xf32>
    %314 = arith.subf %310, %313 : vector<2x8x8xf32>
    %315 = math.exp %314 : vector<2x8x8xf32>
    %cst_281 = arith.constant dense<0.000000e+00> : vector<2x8xf32>
    %316 = vector.multi_reduction <add>, %315, %cst_281 [2] : vector<2x8x8xf32> to vector<2x8xf32>
    %317 = vector.shape_cast %316 : vector<2x8xf32> to vector<2x8x1xf32>
    %318 = tpu.reciprocal %317 {approx = true} : vector<2x8x1xf32> -> vector<2x8x1xf32>
    %319 = vector.broadcast %318 : vector<2x8x1xf32> to vector<2x8x8xf32>
    %320 = arith.mulf %315, %319 : vector<2x8x8xf32>
    "tpu.trace_start"() <{level = 10 : i32, message = "bqk,bkd->bqd"}> : () -> ()
    %cst_282 = arith.constant dense<0.000000e+00> : vector<2x8x8xf32>
    %321 = tpu.matmul %320, %307, %cst_282 {dimension_numbers = #tpu.dot_dimension_numbers<[2], [1], [1], [2], [0, 0, 0, 1, 1, 2], [0], [0]>} : vector<2x8x8xf32>, vector<2x8x8xf32>, vector<2x8x8xf32> -> vector<2x8x8xf32>
    "tpu.trace_stop"() : () -> ()
    %322 = vector.shape_cast %321 : vector<2x8x8xf32> to vector<16x8xf32>
    %c0_283 = arith.constant 0 : index
    %c8_284 = arith.constant 8 : index
    %323 = vector.load %arg18[%c0_283, %c8_284] : memref<16x32xf32, #tpu.memory_space<vmem>>, vector<16x8xf32>
    tpu.vector_store %arg18[%c0_283, %c8_284], %322 {strides = array<i32>} : memref<16x32xf32, #tpu.memory_space<vmem>>, vector<16x8xf32>,
    %c1_285 = arith.constant 1 : index
    %c0_286 = arith.constant 0 : index
    %c2_287 = arith.constant 2 : index
    %c0_288 = arith.constant 0 : index
    %c0_289 = arith.constant 0 : index
    %324 = vector.load %arg3[%c1_285, %c0_286, %c2_287, %c0_288, %c0_289] : memref<2x3x4x32x8xf32, #tpu.memory_space<vmem>>, vector<1x1x1x32x8xf32>
    %325 = vector.shape_cast %324 : vector<1x1x1x32x8xf32> to vector<32x8xf32>
    %cst_290 = arith.constant dense<0.000000e+00> : vector<16x8xf32>
    %326 = tpu.matmul %243, %325, %cst_290 {dimension_numbers = #tpu.dot_dimension_numbers<[1], [0], [0], [1], [0, 0, 1, 1], [], []>} : vector<16x32xf32>, vector<32x8xf32>, vector<16x8xf32> -> vector<16x8xf32>
    %c1_291 = arith.constant 1 : index
    %c0_292 = arith.constant 0 : index
    %c2_293 = arith.constant 2 : index
    %c0_294 = arith.constant 0 : index
    %c0_295 = arith.constant 0 : index
    %327 = vector.load %arg4[%c1_291, %c0_292, %c2_293, %c0_294, %c0_295] : memref<2x3x4x1x8xf32, #tpu.memory_space<vmem>>, vector<1x1x1x1x8xf32>
    %328 = vector.shape_cast %327 : vector<1x1x1x1x8xf32> to vector<1x8xf32>
    %329 = vector.broadcast %328 : vector<1x8xf32> to vector<16x8xf32>
    %330 = arith.addf %326, %329 : vector<16x8xf32>
    %c1_296 = arith.constant 1 : index
    %c1_297 = arith.constant 1 : index
    %c2_298 = arith.constant 2 : index
    %c0_299 = arith.constant 0 : index
    %c0_300 = arith.constant 0 : index
    %331 = vector.load %arg3[%c1_296, %c1_297, %c2_298, %c0_299, %c0_300] : memref<2x3x4x32x8xf32, #tpu.memory_space<vmem>>, vector<1x1x1x32x8xf32>
    %332 = vector.shape_cast %331 : vector<1x1x1x32x8xf32> to vector<32x8xf32>
    %cst_301 = arith.constant dense<0.000000e+00> : vector<16x8xf32>
    %333 = tpu.matmul %243, %332, %cst_301 {dimension_numbers = #tpu.dot_dimension_numbers<[1], [0], [0], [1], [0, 0, 1, 1], [], []>} : vector<16x32xf32>, vector<32x8xf32>, vector<16x8xf32> -> vector<16x8xf32>
    %c1_302 = arith.constant 1 : index
    %c1_303 = arith.constant 1 : index
    %c2_304 = arith.constant 2 : index
    %c0_305 = arith.constant 0 : index
    %c0_306 = arith.constant 0 : index
    %334 = vector.load %arg4[%c1_302, %c1_303, %c2_304, %c0_305, %c0_306] : memref<2x3x4x1x8xf32, #tpu.memory_space<vmem>>, vector<1x1x1x1x8xf32>
    %335 = vector.shape_cast %334 : vector<1x1x1x1x8xf32> to vector<1x8xf32>
    %336 = vector.broadcast %335 : vector<1x8xf32> to vector<16x8xf32>
    %337 = arith.addf %333, %336 : vector<16x8xf32>
    %c1_307 = arith.constant 1 : index
    %c2_308 = arith.constant 2 : index
    %c2_309 = arith.constant 2 : index
    %c0_310 = arith.constant 0 : index
    %c0_311 = arith.constant 0 : index
    %338 = vector.load %arg3[%c1_307, %c2_308, %c2_309, %c0_310, %c0_311] : memref<2x3x4x32x8xf32, #tpu.memory_space<vmem>>, vector<1x1x1x32x8xf32>
    %339 = vector.shape_cast %338 : vector<1x1x1x32x8xf32> to vector<32x8xf32>
    %cst_312 = arith.constant dense<0.000000e+00> : vector<16x8xf32>
    %340 = tpu.matmul %243, %339, %cst_312 {dimension_numbers = #tpu.dot_dimension_numbers<[1], [0], [0], [1], [0, 0, 1, 1], [], []>} : vector<16x32xf32>, vector<32x8xf32>, vector<16x8xf32> -> vector<16x8xf32>
    %c1_313 = arith.constant 1 : index
    %c2_314 = arith.constant 2 : index
    %c2_315 = arith.constant 2 : index
    %c0_316 = arith.constant 0 : index
    %c0_317 = arith.constant 0 : index
    %341 = vector.load %arg4[%c1_313, %c2_314, %c2_315, %c0_316, %c0_317] : memref<2x3x4x1x8xf32, #tpu.memory_space<vmem>>, vector<1x1x1x1x8xf32>
    %342 = vector.shape_cast %341 : vector<1x1x1x1x8xf32> to vector<1x8xf32>
    %343 = vector.broadcast %342 : vector<1x8xf32> to vector<16x8xf32>
    %344 = arith.addf %340, %343 : vector<16x8xf32>
    %345 = vector.shape_cast %330 : vector<16x8xf32> to vector<2x8x8xf32>
    %346 = vector.shape_cast %337 : vector<16x8xf32> to vector<2x8x8xf32>
    %347 = vector.shape_cast %344 : vector<16x8xf32> to vector<2x8x8xf32>
    "tpu.trace_start"() <{level = 10 : i32, message = "bqd,bkd->bqk"}> : () -> ()
    %cst_318 = arith.constant dense<0.000000e+00> : vector<2x8x8xf32>
    %348 = tpu.matmul %345, %346, %cst_318 {dimension_numbers = #tpu.dot_dimension_numbers<[2], [2], [1], [1], [0, 0, 0, 1, 1, 1], [0], [0]>} : vector<2x8x8xf32>, vector<2x8x8xf32>, vector<2x8x8xf32> -> vector<2x8x8xf32>
    "tpu.trace_stop"() : () -> ()
    %cst_319 = arith.constant 0.353553385 : f32
    %349 = vector.broadcast %cst_319 : f32 to vector<2x8x8xf32>
    %350 = arith.mulf %348, %349 : vector<2x8x8xf32>
    %cst_320 = arith.constant dense<0xFF800000> : vector<2x8xf32>
    %351 = vector.multi_reduction <maximumf>, %350, %cst_320 [2] : vector<2x8x8xf32> to vector<2x8xf32>
    %352 = vector.shape_cast %351 : vector<2x8xf32> to vector<2x8x1xf32>
    %353 = vector.broadcast %352 : vector<2x8x1xf32> to vector<2x8x8xf32>
    %354 = arith.subf %350, %353 : vector<2x8x8xf32>
    %355 = math.exp %354 : vector<2x8x8xf32>
    %cst_321 = arith.constant dense<0.000000e+00> : vector<2x8xf32>
    %356 = vector.multi_reduction <add>, %355, %cst_321 [2] : vector<2x8x8xf32> to vector<2x8xf32>
    %357 = vector.shape_cast %356 : vector<2x8xf32> to vector<2x8x1xf32>
    %358 = tpu.reciprocal %357 {approx = true} : vector<2x8x1xf32> -> vector<2x8x1xf32>
    %359 = vector.broadcast %358 : vector<2x8x1xf32> to vector<2x8x8xf32>
    %360 = arith.mulf %355, %359 : vector<2x8x8xf32>
    "tpu.trace_start"() <{level = 10 : i32, message = "bqk,bkd->bqd"}> : () -> ()
    %cst_322 = arith.constant dense<0.000000e+00> : vector<2x8x8xf32>
    %361 = tpu.matmul %360, %347, %cst_322 {dimension_numbers = #tpu.dot_dimension_numbers<[2], [1], [1], [2], [0, 0, 0, 1, 1, 2], [0], [0]>} : vector<2x8x8xf32>, vector<2x8x8xf32>, vector<2x8x8xf32> -> vector<2x8x8xf32>
    "tpu.trace_stop"() : () -> ()
    %362 = vector.shape_cast %361 : vector<2x8x8xf32> to vector<16x8xf32>
    %c0_323 = arith.constant 0 : index
    %c16_324 = arith.constant 16 : index
    %363 = vector.load %arg18[%c0_323, %c16_324] : memref<16x32xf32, #tpu.memory_space<vmem>>, vector<16x8xf32>
    tpu.vector_store %arg18[%c0_323, %c16_324], %362 {strides = array<i32>} : memref<16x32xf32, #tpu.memory_space<vmem>>, vector<16x8xf32>,
    %c1_325 = arith.constant 1 : index
    %c0_326 = arith.constant 0 : index
    %c3_327 = arith.constant 3 : index
    %c0_328 = arith.constant 0 : index
    %c0_329 = arith.constant 0 : index
    %364 = vector.load %arg3[%c1_325, %c0_326, %c3_327, %c0_328, %c0_329] : memref<2x3x4x32x8xf32, #tpu.memory_space<vmem>>, vector<1x1x1x32x8xf32>
    %365 = vector.shape_cast %364 : vector<1x1x1x32x8xf32> to vector<32x8xf32>
    %cst_330 = arith.constant dense<0.000000e+00> : vector<16x8xf32>
    %366 = tpu.matmul %243, %365, %cst_330 {dimension_numbers = #tpu.dot_dimension_numbers<[1], [0], [0], [1], [0, 0, 1, 1], [], []>} : vector<16x32xf32>, vector<32x8xf32>, vector<16x8xf32> -> vector<16x8xf32>
    %c1_331 = arith.constant 1 : index
    %c0_332 = arith.constant 0 : index
    %c3_333 = arith.constant 3 : index
    %c0_334 = arith.constant 0 : index
    %c0_335 = arith.constant 0 : index
    %367 = vector.load %arg4[%c1_331, %c0_332, %c3_333, %c0_334, %c0_335] : memref<2x3x4x1x8xf32, #tpu.memory_space<vmem>>, vector<1x1x1x1x8xf32>
    %368 = vector.shape_cast %367 : vector<1x1x1x1x8xf32> to vector<1x8xf32>
    %369 = vector.broadcast %368 : vector<1x8xf32> to vector<16x8xf32>
    %370 = arith.addf %366, %369 : vector<16x8xf32>
    %c1_336 = arith.constant 1 : index
    %c1_337 = arith.constant 1 : index
    %c3_338 = arith.constant 3 : index
    %c0_339 = arith.constant 0 : index
    %c0_340 = arith.constant 0 : index
    %371 = vector.load %arg3[%c1_336, %c1_337, %c3_338, %c0_339, %c0_340] : memref<2x3x4x32x8xf32, #tpu.memory_space<vmem>>, vector<1x1x1x32x8xf32>
    %372 = vector.shape_cast %371 : vector<1x1x1x32x8xf32> to vector<32x8xf32>
    %cst_341 = arith.constant dense<0.000000e+00> : vector<16x8xf32>
    %373 = tpu.matmul %243, %372, %cst_341 {dimension_numbers = #tpu.dot_dimension_numbers<[1], [0], [0], [1], [0, 0, 1, 1], [], []>} : vector<16x32xf32>, vector<32x8xf32>, vector<16x8xf32> -> vector<16x8xf32>
    %c1_342 = arith.constant 1 : index
    %c1_343 = arith.constant 1 : index
    %c3_344 = arith.constant 3 : index
    %c0_345 = arith.constant 0 : index
    %c0_346 = arith.constant 0 : index
    %374 = vector.load %arg4[%c1_342, %c1_343, %c3_344, %c0_345, %c0_346] : memref<2x3x4x1x8xf32, #tpu.memory_space<vmem>>, vector<1x1x1x1x8xf32>
    %375 = vector.shape_cast %374 : vector<1x1x1x1x8xf32> to vector<1x8xf32>
    %376 = vector.broadcast %375 : vector<1x8xf32> to vector<16x8xf32>
    %377 = arith.addf %373, %376 : vector<16x8xf32>
    %c1_347 = arith.constant 1 : index
    %c2_348 = arith.constant 2 : index
    %c3_349 = arith.constant 3 : index
    %c0_350 = arith.constant 0 : index
    %c0_351 = arith.constant 0 : index
    %378 = vector.load %arg3[%c1_347, %c2_348, %c3_349, %c0_350, %c0_351] : memref<2x3x4x32x8xf32, #tpu.memory_space<vmem>>, vector<1x1x1x32x8xf32>
    %379 = vector.shape_cast %378 : vector<1x1x1x32x8xf32> to vector<32x8xf32>
    %cst_352 = arith.constant dense<0.000000e+00> : vector<16x8xf32>
    %380 = tpu.matmul %243, %379, %cst_352 {dimension_numbers = #tpu.dot_dimension_numbers<[1], [0], [0], [1], [0, 0, 1, 1], [], []>} : vector<16x32xf32>, vector<32x8xf32>, vector<16x8xf32> -> vector<16x8xf32>
    %c1_353 = arith.constant 1 : index
    %c2_354 = arith.constant 2 : index
    %c3_355 = arith.constant 3 : index
    %c0_356 = arith.constant 0 : index
    %c0_357 = arith.constant 0 : index
    %381 = vector.load %arg4[%c1_353, %c2_354, %c3_355, %c0_356, %c0_357] : memref<2x3x4x1x8xf32, #tpu.memory_space<vmem>>, vector<1x1x1x1x8xf32>
    %382 = vector.shape_cast %381 : vector<1x1x1x1x8xf32> to vector<1x8xf32>
    %383 = vector.broadcast %382 : vector<1x8xf32> to vector<16x8xf32>
    %384 = arith.addf %380, %383 : vector<16x8xf32>
    %385 = vector.shape_cast %370 : vector<16x8xf32> to vector<2x8x8xf32>
    %386 = vector.shape_cast %377 : vector<16x8xf32> to vector<2x8x8xf32>
    %387 = vector.shape_cast %384 : vector<16x8xf32> to vector<2x8x8xf32>
    "tpu.trace_start"() <{level = 10 : i32, message = "bqd,bkd->bqk"}> : () -> ()
    %cst_358 = arith.constant dense<0.000000e+00> : vector<2x8x8xf32>
    %388 = tpu.matmul %385, %386, %cst_358 {dimension_numbers = #tpu.dot_dimension_numbers<[2], [2], [1], [1], [0, 0, 0, 1, 1, 1], [0], [0]>} : vector<2x8x8xf32>, vector<2x8x8xf32>, vector<2x8x8xf32> -> vector<2x8x8xf32>
    "tpu.trace_stop"() : () -> ()
    %cst_359 = arith.constant 0.353553385 : f32
    %389 = vector.broadcast %cst_359 : f32 to vector<2x8x8xf32>
    %390 = arith.mulf %388, %389 : vector<2x8x8xf32>
    %cst_360 = arith.constant dense<0xFF800000> : vector<2x8xf32>
    %391 = vector.multi_reduction <maximumf>, %390, %cst_360 [2] : vector<2x8x8xf32> to vector<2x8xf32>
    %392 = vector.shape_cast %391 : vector<2x8xf32> to vector<2x8x1xf32>
    %393 = vector.broadcast %392 : vector<2x8x1xf32> to vector<2x8x8xf32>
    %394 = arith.subf %390, %393 : vector<2x8x8xf32>
    %395 = math.exp %394 : vector<2x8x8xf32>
    %cst_361 = arith.constant dense<0.000000e+00> : vector<2x8xf32>
    %396 = vector.multi_reduction <add>, %395, %cst_361 [2] : vector<2x8x8xf32> to vector<2x8xf32>
    %397 = vector.shape_cast %396 : vector<2x8xf32> to vector<2x8x1xf32>
    %398 = tpu.reciprocal %397 {approx = true} : vector<2x8x1xf32> -> vector<2x8x1xf32>
    %399 = vector.broadcast %398 : vector<2x8x1xf32> to vector<2x8x8xf32>
    %400 = arith.mulf %395, %399 : vector<2x8x8xf32>
    "tpu.trace_start"() <{level = 10 : i32, message = "bqk,bkd->bqd"}> : () -> ()
    %cst_362 = arith.constant dense<0.000000e+00> : vector<2x8x8xf32>
    %401 = tpu.matmul %400, %387, %cst_362 {dimension_numbers = #tpu.dot_dimension_numbers<[2], [1], [1], [2], [0, 0, 0, 1, 1, 2], [0], [0]>} : vector<2x8x8xf32>, vector<2x8x8xf32>, vector<2x8x8xf32> -> vector<2x8x8xf32>
    "tpu.trace_stop"() : () -> ()
    %402 = vector.shape_cast %401 : vector<2x8x8xf32> to vector<16x8xf32>
    %c0_363 = arith.constant 0 : index
    %c24_364 = arith.constant 24 : index
    %403 = vector.load %arg18[%c0_363, %c24_364] : memref<16x32xf32, #tpu.memory_space<vmem>>, vector<16x8xf32>
    tpu.vector_store %arg18[%c0_363, %c24_364], %402 {strides = array<i32>} : memref<16x32xf32, #tpu.memory_space<vmem>>, vector<16x8xf32>,
    %c0_365 = arith.constant 0 : index
    %c0_366 = arith.constant 0 : index
    %404 = vector.load %arg18[%c0_365, %c0_366] : memref<16x32xf32, #tpu.memory_space<vmem>>, vector<16x32xf32>
    %c1_367 = arith.constant 1 : index
    %c0_368 = arith.constant 0 : index
    %c0_369 = arith.constant 0 : index
    %405 = vector.load %arg5[%c1_367, %c0_368, %c0_369] : memref<2x32x32xf32, #tpu.memory_space<vmem>>, vector<1x32x32xf32>
    %406 = vector.shape_cast %405 : vector<1x32x32xf32> to vector<32x32xf32>
    %cst_370 = arith.constant dense<0.000000e+00> : vector<16x32xf32>
    %407 = tpu.matmul %404, %406, %cst_370 {dimension_numbers = #tpu.dot_dimension_numbers<[1], [0], [0], [1], [0, 0, 1, 1], [], []>} : vector<16x32xf32>, vector<32x32xf32>, vector<16x32xf32> -> vector<16x32xf32>
    %c1_371 = arith.constant 1 : index
    %c0_372 = arith.constant 0 : index
    %c0_373 = arith.constant 0 : index
    %408 = vector.load %arg6[%c1_371, %c0_372, %c0_373] : memref<2x1x32xf32, #tpu.memory_space<vmem>>, vector<1x1x32xf32>
    %409 = vector.shape_cast %408 : vector<1x1x32xf32> to vector<1x32xf32>
    %410 = vector.broadcast %409 : vector<1x32xf32> to vector<16x32xf32>
    %411 = arith.addf %407, %410 : vector<16x32xf32>
    %412 = arith.addf %243, %411 : vector<16x32xf32>
    %c1_374 = arith.constant 1 : index
    %c0_375 = arith.constant 0 : index
    %c0_376 = arith.constant 0 : index
    %413 = vector.load %arg7[%c1_374, %c0_375, %c0_376] : memref<2x1x32xf32, #tpu.memory_space<vmem>>, vector<1x1x32xf32>
    %414 = vector.shape_cast %413 : vector<1x1x32xf32> to vector<1x32xf32>
    %c1_377 = arith.constant 1 : index
    %c0_378 = arith.constant 0 : index
    %c0_379 = arith.constant 0 : index
    %415 = vector.load %arg8[%c1_377, %c0_378, %c0_379] : memref<2x1x32xf32, #tpu.memory_space<vmem>>, vector<1x1x32xf32>
    %416 = vector.shape_cast %415 : vector<1x1x32xf32> to vector<1x32xf32>
    %cst_380 = arith.constant dense<0.000000e+00> : vector<16xf32>
    %417 = vector.multi_reduction <add>, %412, %cst_380 [1] : vector<16x32xf32> to vector<16xf32>
    %418 = vector.shape_cast %417 : vector<16xf32> to vector<16x1xf32>
    %cst_381 = arith.constant 3.200000e+01 : f32
    %419 = vector.broadcast %cst_381 : f32 to vector<16x1xf32>
    %420 = arith.divf %418, %419 : vector<16x1xf32>
    %421 = vector.broadcast %420 : vector<16x1xf32> to vector<16x32xf32>
    %422 = arith.subf %412, %421 : vector<16x32xf32>
    %423 = arith.mulf %422, %422 : vector<16x32xf32>
    %cst_382 = arith.constant dense<0.000000e+00> : vector<16xf32>
    %424 = vector.multi_reduction <add>, %423, %cst_382 [1] : vector<16x32xf32> to vector<16xf32>
    %425 = vector.shape_cast %424 : vector<16xf32> to vector<16x1xf32>
    %cst_383 = arith.constant 3.200000e+01 : f32
    %426 = vector.broadcast %cst_383 : f32 to vector<16x1xf32>
    %427 = arith.divf %425, %426 : vector<16x1xf32>
    %428 = vector.broadcast %420 : vector<16x1xf32> to vector<16x32xf32>
    %429 = arith.subf %412, %428 : vector<16x32xf32>
    %cst_384 = arith.constant 9.99999974E-6 : f32
    %430 = vector.broadcast %cst_384 : f32 to vector<16x1xf32>
    %431 = arith.addf %427, %430 : vector<16x1xf32>
    %432 = math.rsqrt %431 : vector<16x1xf32>
    %433 = vector.broadcast %432 : vector<16x1xf32> to vector<16x32xf32>
    %434 = arith.mulf %429, %433 : vector<16x32xf32>
    %435 = vector.broadcast %414 : vector<1x32xf32> to vector<16x32xf32>
    %436 = arith.mulf %434, %435 : vector<16x32xf32>
    %437 = vector.broadcast %416 : vector<1x32xf32> to vector<16x32xf32>
    %438 = arith.addf %436, %437 : vector<16x32xf32>
    %c1_385 = arith.constant 1 : index
    %c0_386 = arith.constant 0 : index
    %c0_387 = arith.constant 0 : index
    %439 = vector.load %arg9[%c1_385, %c0_386, %c0_387] : memref<2x32x128xf32, #tpu.memory_space<vmem>>, vector<1x32x128xf32>
    %440 = vector.shape_cast %439 : vector<1x32x128xf32> to vector<32x128xf32>
    %cst_388 = arith.constant dense<0.000000e+00> : vector<16x128xf32>
    %441 = tpu.matmul %438, %440, %cst_388 {dimension_numbers = #tpu.dot_dimension_numbers<[1], [0], [0], [1], [0, 0, 1, 1], [], []>} : vector<16x32xf32>, vector<32x128xf32>, vector<16x128xf32> -> vector<16x128xf32>
    %c1_389 = arith.constant 1 : index
    %c0_390 = arith.constant 0 : index
    %c0_391 = arith.constant 0 : index
    %442 = vector.load %arg10[%c1_389, %c0_390, %c0_391] : memref<2x1x128xf32, #tpu.memory_space<vmem>>, vector<1x1x128xf32>
    %443 = vector.shape_cast %442 : vector<1x1x128xf32> to vector<1x128xf32>
    %444 = vector.broadcast %443 : vector<1x128xf32> to vector<16x128xf32>
    %445 = arith.addf %441, %444 : vector<16x128xf32>
    %cst_392 = arith.constant 0.000000e+00 : f32
    %446 = vector.broadcast %cst_392 : f32 to vector<16x128xf32>
    %447 = arith.maximumf %445, %446 : vector<16x128xf32>
    %c1_393 = arith.constant 1 : index
    %c0_394 = arith.constant 0 : index
    %c0_395 = arith.constant 0 : index
    %448 = vector.load %arg11[%c1_393, %c0_394, %c0_395] : memref<2x128x32xf32, #tpu.memory_space<vmem>>, vector<1x128x32xf32>
    %449 = vector.shape_cast %448 : vector<1x128x32xf32> to vector<128x32xf32>
    %cst_396 = arith.constant dense<0.000000e+00> : vector<16x32xf32>
    %450 = tpu.matmul %447, %449, %cst_396 {dimension_numbers = #tpu.dot_dimension_numbers<[1], [0], [0], [1], [0, 0, 1, 1], [], []>} : vector<16x128xf32>, vector<128x32xf32>, vector<16x32xf32> -> vector<16x32xf32>
    %c1_397 = arith.constant 1 : index
    %c0_398 = arith.constant 0 : index
    %c0_399 = arith.constant 0 : index
    %451 = vector.load %arg12[%c1_397, %c0_398, %c0_399] : memref<2x1x32xf32, #tpu.memory_space<vmem>>, vector<1x1x32xf32>
    %452 = vector.shape_cast %451 : vector<1x1x32xf32> to vector<1x32xf32>
    %453 = vector.broadcast %452 : vector<1x32xf32> to vector<16x32xf32>
    %454 = arith.addf %450, %453 : vector<16x32xf32>
    %455 = arith.addf %438, %454 : vector<16x32xf32>
    %c1_400 = arith.constant 1 : index
    %c0_401 = arith.constant 0 : index
    %c0_402 = arith.constant 0 : index
    %456 = vector.load %arg13[%c1_400, %c0_401, %c0_402] : memref<2x1x32xf32, #tpu.memory_space<vmem>>, vector<1x1x32xf32>
    %457 = vector.shape_cast %456 : vector<1x1x32xf32> to vector<1x32xf32>
    %c1_403 = arith.constant 1 : index
    %c0_404 = arith.constant 0 : index
    %c0_405 = arith.constant 0 : index
    %458 = vector.load %arg14[%c1_403, %c0_404, %c0_405] : memref<2x1x32xf32, #tpu.memory_space<vmem>>, vector<1x1x32xf32>
    %459 = vector.shape_cast %458 : vector<1x1x32xf32> to vector<1x32xf32>
    %cst_406 = arith.constant dense<0.000000e+00> : vector<16xf32>
    %460 = vector.multi_reduction <add>, %455, %cst_406 [1] : vector<16x32xf32> to vector<16xf32>
    %461 = vector.shape_cast %460 : vector<16xf32> to vector<16x1xf32>
    %cst_407 = arith.constant 3.200000e+01 : f32
    %462 = vector.broadcast %cst_407 : f32 to vector<16x1xf32>
    %463 = arith.divf %461, %462 : vector<16x1xf32>
    %464 = vector.broadcast %463 : vector<16x1xf32> to vector<16x32xf32>
    %465 = arith.subf %455, %464 : vector<16x32xf32>
    %466 = arith.mulf %465, %465 : vector<16x32xf32>
    %cst_408 = arith.constant dense<0.000000e+00> : vector<16xf32>
    %467 = vector.multi_reduction <add>, %466, %cst_408 [1] : vector<16x32xf32> to vector<16xf32>
    %468 = vector.shape_cast %467 : vector<16xf32> to vector<16x1xf32>
    %cst_409 = arith.constant 3.200000e+01 : f32
    %469 = vector.broadcast %cst_409 : f32 to vector<16x1xf32>
    %470 = arith.divf %468, %469 : vector<16x1xf32>
    %471 = vector.broadcast %463 : vector<16x1xf32> to vector<16x32xf32>
    %472 = arith.subf %455, %471 : vector<16x32xf32>
    %cst_410 = arith.constant 9.99999974E-6 : f32
    %473 = vector.broadcast %cst_410 : f32 to vector<16x1xf32>
    %474 = arith.addf %470, %473 : vector<16x1xf32>
    %475 = math.rsqrt %474 : vector<16x1xf32>
    %476 = vector.broadcast %475 : vector<16x1xf32> to vector<16x32xf32>
    %477 = arith.mulf %472, %476 : vector<16x32xf32>
    %478 = vector.broadcast %457 : vector<1x32xf32> to vector<16x32xf32>
    %479 = arith.mulf %477, %478 : vector<16x32xf32>
    %480 = vector.broadcast %459 : vector<1x32xf32> to vector<16x32xf32>
    %481 = arith.addf %479, %480 : vector<16x32xf32>
    %482 = vector.shape_cast %481 : vector<16x32xf32> to vector<2x8x32xf32>
    %483 = vector.extract_strided_slice %482 {offsets = [0, 7, 0], sizes = [2, 1, 32], strides = [1, 1, 1]} : vector<2x8x32xf32> to vector<2x1x32xf32>
    %484 = vector.shape_cast %483 : vector<2x1x32xf32> to vector<2x32xf32>
    %c0_411 = arith.constant 0 : index
    %c0_412 = arith.constant 0 : index
    %485 = vector.load %arg15[%c0_411, %c0_412] : memref<1x32xf32, #tpu.memory_space<vmem>>, vector<1x32xf32>
    %486 = vector.broadcast %485 : vector<1x32xf32> to vector<2x32xf32>
    %487 = arith.mulf %484, %486 : vector<2x32xf32>
    %cst_413 = arith.constant dense<0.000000e+00> : vector<2xf32>
    %488 = vector.multi_reduction <add>, %487, %cst_413 [1] : vector<2x32xf32> to vector<2xf32>
    %489 = vector.shape_cast %488 : vector<2xf32> to vector<2x1xf32>
    %c0_414 = arith.constant 0 : index
    %c0_415 = arith.constant 0 : index
    %490 = vector.load %arg16[%c0_414, %c0_415] : memref<1x1xf32, #tpu.memory_space<vmem>>, vector<1x1xf32>
    %491 = vector.broadcast %490 : vector<1x1xf32> to vector<2x1xf32>
    %492 = arith.addf %489, %491 : vector<2x1xf32>
    %c0_416 = arith.constant 0 : index
    %c0_417 = arith.constant 0 : index
    %493 = vector.load %arg17[%c0_416, %c0_417] : memref<2x1xf32, #tpu.memory_space<vmem>>, vector<2x1xf32>
    tpu.vector_store %arg17[%c0_416, %c0_417], %492 {strides = array<i32>} : memref<2x1xf32, #tpu.memory_space<vmem>>, vector<2x1xf32>,
    return
  }
}

</mosaic_0001>

<llo_original>
// kernel: tpu_custom_call.1
$region0: #{tpu_custom_call.1}
  #allocation0 [shape = 'u32[]', space=smem, size = 0x4, offset = 0x4, fixed_abs, tag = 'smem constant byte address 0x4 - core index']
  #allocation1 [shape = 'u32[144,128]{1,0:T(1,128)}', space=vmem, size = 0x12000, scoped, tag = 'internal scratch']
  #allocation2 [shape = 'f32[16,32]{1,0:T(8,128)}', space=vmem, size = 0x2000, scoped, tag = 'scratch operand']
  #allocation3 [shape = 'f32[1,1]{1,0:T(1,128)S(1)}', space=vmem, size = 0x200, scoped, tag = 'scoped memory for tpu_custom_call.1']
  %s0 = inlined_call_operand.vmem [shape: f32[16,12], index: 0, kind: input, shape index: {}]
  %s1 = inlined_call_operand.vmem [shape: f32[12,32], index: 1, kind: input, shape index: {}]
  %s2 = inlined_call_operand.vmem [shape: f32[1,32], index: 2, kind: input, shape index: {}]
  %s3 = inlined_call_operand.vmem [shape: f32[2,3,4,32,8], index: 3, kind: input, shape index: {}]
  %s4 = inlined_call_operand.vmem [shape: f32[2,3,4,1,8], index: 4, kind: input, shape index: {}]
  %s5 = inlined_call_operand.vmem [shape: f32[2,32,32], index: 5, kind: input, shape index: {}]
  %s6 = inlined_call_operand.vmem [shape: f32[2,1,32], index: 6, kind: input, shape index: {}]
  %s7 = inlined_call_operand.vmem [shape: f32[2,1,32], index: 7, kind: input, shape index: {}]
  %s8 = inlined_call_operand.vmem [shape: f32[2,1,32], index: 8, kind: input, shape index: {}]
  %s9 = inlined_call_operand.vmem [shape: f32[2,32,128], index: 9, kind: input, shape index: {}]
  %s10 = inlined_call_operand.vmem [shape: f32[2,1,128], index: 10, kind: input, shape index: {}]
  %s11 = inlined_call_operand.vmem [shape: f32[2,128,32], index: 11, kind: input, shape index: {}]
  %s12 = inlined_call_operand.vmem [shape: f32[2,1,32], index: 12, kind: input, shape index: {}]
  %s13 = inlined_call_operand.vmem [shape: f32[2,1,32], index: 13, kind: input, shape index: {}]
  %s14 = inlined_call_operand.vmem [shape: f32[2,1,32], index: 14, kind: input, shape index: {}]
  %s15 = inlined_call_operand.vmem [shape: f32[1,32], index: 15, kind: input, shape index: {}]
  %s16 = inlined_call_operand.<no memory space> [shape: f32[1,1], index: 16, kind: input, shape index: {}]
  %s17 = inlined_call_operand.vmem [shape: f32[2,1], index: 17, kind: output, shape index: {}]
  %s18 = sld [smem:[#allocation0]]
  $region78: #{tpu_custom_call.1} parent=0
    _
  %s20 = ssub.s32 1, %s18
  %s21 = scalar_select 0, %s20, %s18
  %v22 = vstv %s16
  %23 = vst [vmem:[#allocation3] sm:$0x1] %v22
  // Predicated region
  $region2: #{tpu_custom_call.1} parent=0 // pred_check
    _
  $region3: #{tpu_custom_call.1} parent=0 // pred_check_branch
    %25 = sbr.rel (0) target = $region5
  $region4: #{tpu_custom_call.1} parent=0 // pred_region
    _
  $region5: #{tpu_custom_call.1} parent=0 // pred_fallthru
    _
  // Predicated region
  $region6: #{tpu_custom_call.1} parent=0 // pred_check
    _
  $region7: #{tpu_custom_call.1} parent=0 // pred_check_branch
    %27 = sbr.rel (0) target = $region9
  $region8: #{tpu_custom_call.1} parent=0 // pred_region
    _
  $region9: #{tpu_custom_call.1} parent=0 // pred_fallthru
    _
  // Predicated region
  $region10: #{tpu_custom_call.1} parent=0 // pred_check
    _
  $region11: #{tpu_custom_call.1} parent=0 // pred_check_branch
    %29 = sbr.rel (0) target = $region13
  $region12: #{tpu_custom_call.1} parent=0 // pred_region
    _
  $region13: #{tpu_custom_call.1} parent=0 // pred_fallthru
    _
  // Predicated region
  $region14: #{tpu_custom_call.1} parent=0 // pred_check
    _
  $region15: #{tpu_custom_call.1} parent=0 // pred_check_branch
    %31 = sbr.rel (0) target = $region17
  $region16: #{tpu_custom_call.1} parent=0 // pred_region
    _
  $region17: #{tpu_custom_call.1} parent=0 // pred_fallthru
    _
  // Predicated region
  $region18: #{tpu_custom_call.1} parent=0 // pred_check
    _
  $region19: #{tpu_custom_call.1} parent=0 // pred_check_branch
    %33 = sbr.rel (0) target = $region21
  $region20: #{tpu_custom_call.1} parent=0 // pred_region
    _
  $region21: #{tpu_custom_call.1} parent=0 // pred_fallthru
    _
  // Predicated region
  $region22: #{tpu_custom_call.1} parent=0 // pred_check
    _
  $region23: #{tpu_custom_call.1} parent=0 // pred_check_branch
    %35 = sbr.rel (0) target = $region25
  $region24: #{tpu_custom_call.1} parent=0 // pred_region
    _
  $region25: #{tpu_custom_call.1} parent=0 // pred_fallthru
    _
  // Predicated region
  $region26: #{tpu_custom_call.1} parent=0 // pred_check
    _
  $region27: #{tpu_custom_call.1} parent=0 // pred_check_branch
    %37 = sbr.rel (0) target = $region29
  $region28: #{tpu_custom_call.1} parent=0 // pred_region
    _
  $region29: #{tpu_custom_call.1} parent=0 // pred_fallthru
    _
  // Predicated region
  $region30: #{tpu_custom_call.1} parent=0 // pred_check
    _
  $region31: #{tpu_custom_call.1} parent=0 // pred_check_branch
    %39 = sbr.rel (0) target = $region33
  $region32: #{tpu_custom_call.1} parent=0 // pred_region
    _
  $region33: #{tpu_custom_call.1} parent=0 // pred_fallthru
    _
  // Predicated region
  $region34: #{tpu_custom_call.1} parent=0 // pred_check
    _
  $region35: #{tpu_custom_call.1} parent=0 // pred_check_branch
    %41 = sbr.rel (0) target = $region37
  $region36: #{tpu_custom_call.1} parent=0 // pred_region
    _
  $region37: #{tpu_custom_call.1} parent=0 // pred_fallthru
    _
  // Predicated region
  $region38: #{tpu_custom_call.1} parent=0 // pred_check
    _
  $region39: #{tpu_custom_call.1} parent=0 // pred_check_branch
    %43 = sbr.rel (0) target = $region41
  $region40: #{tpu_custom_call.1} parent=0 // pred_region
    _
  $region41: #{tpu_custom_call.1} parent=0 // pred_fallthru
    _
  // Predicated region
  $region42: #{tpu_custom_call.1} parent=0 // pred_check
    _
  $region43: #{tpu_custom_call.1} parent=0 // pred_check_branch
    %45 = sbr.rel (0) target = $region45
  $region44: #{tpu_custom_call.1} parent=0 // pred_region
    _
  $region45: #{tpu_custom_call.1} parent=0 // pred_fallthru
    _
  // Predicated region
  $region46: #{tpu_custom_call.1} parent=0 // pred_check
    _
  $region47: #{tpu_custom_call.1} parent=0 // pred_check_branch
    %47 = sbr.rel (0) target = $region49
  $region48: #{tpu_custom_call.1} parent=0 // pred_region
    _
  $region49: #{tpu_custom_call.1} parent=0 // pred_fallthru
    _
  // Predicated region
  $region50: #{tpu_custom_call.1} parent=0 // pred_check
    _
  $region51: #{tpu_custom_call.1} parent=0 // pred_check_branch
    %49 = sbr.rel (0) target = $region53
  $region52: #{tpu_custom_call.1} parent=0 // pred_region
    _
  $region53: #{tpu_custom_call.1} parent=0 // pred_fallthru
    _
  // Predicated region
  $region54: #{tpu_custom_call.1} parent=0 // pred_check
    _
  $region55: #{tpu_custom_call.1} parent=0 // pred_check_branch
    %51 = sbr.rel (0) target = $region57
  $region56: #{tpu_custom_call.1} parent=0 // pred_region
    _
  $region57: #{tpu_custom_call.1} parent=0 // pred_fallthru
    _
  // Predicated region
  $region58: #{tpu_custom_call.1} parent=0 // pred_check
    _
  $region59: #{tpu_custom_call.1} parent=0 // pred_check_branch
    %53 = sbr.rel (0) target = $region61
  $region60: #{tpu_custom_call.1} parent=0 // pred_region
    _
  $region61: #{tpu_custom_call.1} parent=0 // pred_fallthru
    _
  // Predicated region
  $region62: #{tpu_custom_call.1} parent=0 // pred_check
    _
  $region63: #{tpu_custom_call.1} parent=0 // pred_check_branch
    %55 = sbr.rel (0) target = $region65
  $region64: #{tpu_custom_call.1} parent=0 // pred_region
    _
  $region65: #{tpu_custom_call.1} parent=0 // pred_fallthru
    _
  // Predicated region
  $region66: #{tpu_custom_call.1} parent=0 // pred_check
    _
  $region67: #{tpu_custom_call.1} parent=0 // pred_check_branch
    %57 = sbr.rel (0) target = $region69
  $region68: #{tpu_custom_call.1} parent=0 // pred_region
    _
  $region69: #{tpu_custom_call.1} parent=0 // pred_fallthru
    _
  %v58 = vld [vmem:[%s0] sm:$0xff]
  %v59 = vld [vmem:[%s0 + $0x8] sm:$0xff]
  %v60 = vld [vmem:[%s1] sm:$0xff]
  %v61 = vld [vmem:[%s1 + $0x8] sm:$0xf]
  %v62 = vld [vmem:[%s2] sm:$0x1]
  %v64 = vlaneseq
  %v65 = vshrl.u32 %v64, 7
  %v66 = vsub.s32 0, %v65
  %v67 = vrot.slane %v62, %v66
  %vm69 = vcmask 97280
  %v71 = vsel %vm69, %v58, 0
  %v74 = vsel %vm69, %v59, 0
  %vm76 = vcmask 1043456
  %v78 = vsel %vm76, %v61, 0
  %80 = vmatprep.subr.mxu0 0.0
  %81 = vmatpush1.msra.mxu0 %v60
  %82 = vmatprep.subr.mxu0 0.0
  %83 = vmatpush1.msra.mxu0 %v78
  %84 = vmatprep.subr.mxu0 0.0
  %85 = vmatpush1.msra.mxu0 0.0
  %86 = vmatprep.subr.mxu0 0.0
  %87 = vmatpush1.msra.mxu0 0.0
  %88 = vmatprep.subr.mxu0 0.0
  %89 = vmatpush1.msra.mxu0 0.0
  %90 = vmatprep.subr.mxu0 0.0
  %91 = vmatpush1.msra.mxu0 0.0
  %92 = vmatprep.subr.mxu0 0.0
  %93 = vmatpush1.msra.mxu0 0.0
  %94 = vmatprep.subr.mxu0 0.0
  %95 = vmatpush1.msra.mxu0 0.0
  %96 = vmatprep.subr.mxu0 0.0
  %97 = vmatpush1.msra.mxu0 0.0
  %98 = vmatprep.subr.mxu0 0.0
  %99 = vmatpush1.msra.mxu0 0.0
  %100 = vmatprep.subr.mxu0 0.0
  %101 = vmatpush1.msra.mxu0 0.0
  %102 = vmatprep.subr.mxu0 0.0
  %103 = vmatpush1.msra.mxu0 0.0
  %104 = vmatprep.subr.mxu0 0.0
  %105 = vmatpush1.msra.mxu0 0.0
  %106 = vmatprep.subr.mxu0 0.0
  %107 = vmatpush1.msra.mxu0 0.0
  %108 = vmatprep.subr.mxu0 0.0
  %109 = vmatpush1.msra.mxu0 0.0
  %110 = vmatprep.subr.mxu0 0.0
  %111 = vmatpush1.msra.mxu0 0.0
  %112 = vmatprep.subr.mxu0 0.0
  %113 = vmatpush1.msra.mxu0 0.0
  %114 = vmatprep.subr.mxu0 0.0
  %115 = vmatpush1.msra.mxu0 0.0
  %116 = vmatprep.subr.mxu0 0.0
  %117 = vmatpush1.msra.mxu0 0.0
  %118 = vmatprep.subr.mxu0 0.0
  %119 = vmatpush1.msra.mxu0 0.0
  %120 = vmatprep.subr.mxu0 0.0
  %121 = vmatpush1.msra.mxu0 0.0
  %122 = vmatprep.subr.mxu0 0.0
  %123 = vmatpush1.msra.mxu0 0.0
  %124 = vmatprep.subr.mxu0 0.0
  %125 = vmatpush1.msra.mxu0 0.0
  %126 = vmatprep.subr.mxu0 0.0
  %127 = vmatpush1.msra.mxu0 0.0
  %128 = vmatprep.subr.mxu0 0.0
  %129 = vmatpush1.msra.mxu0 0.0
  %130 = vmatprep.subr.mxu0 0.0
  %131 = vmatpush1.msra.mxu0 0.0
  %132 = vmatprep.subr.mxu0 0.0
  %133 = vmatpush1.msra.mxu0 0.0
  %134 = vmatprep.subr.mxu0 0.0
  %135 = vmatpush1.msra.mxu0 0.0
  %136 = vmatprep.subr.mxu0 0.0
  %137 = vmatpush1.msra.mxu0 0.0
  %138 = vmatprep.subr.mxu0 0.0
  %139 = vmatpush1.msra.mxu0 0.0
  %140 = vmatprep.subr.mxu0 0.0
  %141 = vmatpush1.msra.mxu0 0.0
  %142 = vmatprep.subr.mxu0 0.0
  %143 = vmatpush1.msra.mxu0 0.0
  %144 = vmatprep.mubr.f32.mxu0 0.0
  %145 = vmatmul.mubr.f32.gmra.mrb[0].mxu0 %v71
  %v146 = vpop.f32.mrb[0].mxu0
  %v147 = vadd.f32 %v67, %v146
  %v148 = vpop.f32.mrb[0].mxu0
  %149 = vmatprep.mubr.f32.mxu0 0.0
  %150 = vmatmul.mubr.f32.gmra.mrb[0].mxu0 %v74
  %v151 = vpop.f32.mrb[0].mxu0
  %v152 = vadd.f32 %v67, %v151
  %v153 = vpop.f32.mrb[0].mxu0
  %154 = vdwg.mxu0
  %v155 = vld [vmem:[%s3] sm:$0xff]
  %v156 = vld [vmem:[%s3 + $0x8] sm:$0xff]
  %v157 = vld [vmem:[%s3 + $0x10] sm:$0xff]
  %v158 = vld [vmem:[%s3 + $0x18] sm:$0xff]
  %v159 = vld [vmem:[%s4] sm:$0x1]
  %v161 = vlaneseq
  %v162 = vshrl.u32 %v161, 7
  %v163 = vsub.s32 0, %v162
  %v164 = vrot.slane %v159, %v163
  %vm166 = vcmask 261120
  %v168 = vsel %vm166, %v147, 0
  %v171 = vsel %vm166, %v152, 0
  %173 = vmatprep.subr.mxu0 0.0
  %174 = vmatpush1.msra.mxu0 %v155
  %175 = vmatprep.subr.mxu0 0.0
  %176 = vmatpush1.msra.mxu0 %v156
  %177 = vmatprep.subr.mxu0 0.0
  %178 = vmatpush1.msra.mxu0 %v157
  %179 = vmatprep.subr.mxu0 0.0
  %180 = vmatpush1.msra.mxu0 %v158
  %181 = vmatprep.subr.mxu0 0.0
  %182 = vmatpush1.msra.mxu0 0.0
  %183 = vmatprep.subr.mxu0 0.0
  %184 = vmatpush1.msra.mxu0 0.0
  %185 = vmatprep.subr.mxu0 0.0
  %186 = vmatpush1.msra.mxu0 0.0
  %187 = vmatprep.subr.mxu0 0.0
  %188 = vmatpush1.msra.mxu0 0.0
  %189 = vmatprep.subr.mxu0 0.0
  %190 = vmatpush1.msra.mxu0 0.0
  %191 = vmatprep.subr.mxu0 0.0
  %192 = vmatpush1.msra.mxu0 0.0
  %193 = vmatprep.subr.mxu0 0.0
  %194 = vmatpush1.msra.mxu0 0.0
  %195 = vmatprep.subr.mxu0 0.0
  %196 = vmatpush1.msra.mxu0 0.0
  %197 = vmatprep.subr.mxu0 0.0
  %198 = vmatpush1.msra.mxu0 0.0
  %199 = vmatprep.subr.mxu0 0.0
  %200 = vmatpush1.msra.mxu0 0.0
  %201 = vmatprep.subr.mxu0 0.0
  %202 = vmatpush1.msra.mxu0 0.0
  %203 = vmatprep.subr.mxu0 0.0
  %204 = vmatpush1.msra.mxu0 0.0
  %205 = vmatprep.subr.mxu0 0.0
  %206 = vmatpush1.msra.mxu0 0.0
  %207 = vmatprep.subr.mxu0 0.0
  %208 = vmatpush1.msra.mxu0 0.0
  %209 = vmatprep.subr.mxu0 0.0
  %210 = vmatpush1.msra.mxu0 0.0
  %211 = vmatprep.subr.mxu0 0.0
  %212 = vmatpush1.msra.mxu0 0.0
  %213 = vmatprep.subr.mxu0 0.0
  %214 = vmatpush1.msra.mxu0 0.0
  %215 = vmatprep.subr.mxu0 0.0
  %216 = vmatpush1.msra.mxu0 0.0
  %217 = vmatprep.subr.mxu0 0.0
  %218 = vmatpush1.msra.mxu0 0.0
  %219 = vmatprep.subr.mxu0 0.0
  %220 = vmatpush1.msra.mxu0 0.0
  %221 = vmatprep.subr.mxu0 0.0
  %222 = vmatpush1.msra.mxu0 0.0
  %223 = vmatprep.subr.mxu0 0.0
  %224 = vmatpush1.msra.mxu0 0.0
  %225 = vmatprep.subr.mxu0 0.0
  %226 = vmatpush1.msra.mxu0 0.0
  %227 = vmatprep.subr.mxu0 0.0
  %228 = vmatpush1.msra.mxu0 0.0
  %229 = vmatprep.subr.mxu0 0.0
  %230 = vmatpush1.msra.mxu0 0.0
  %231 = vmatprep.subr.mxu0 0.0
  %232 = vmatpush1.msra.mxu0 0.0
  %233 = vmatprep.subr.mxu0 0.0
  %234 = vmatpush1.msra.mxu0 0.0
  %235 = vmatprep.subr.mxu0 0.0
  %236 = vmatpush1.msra.mxu0 0.0
  %237 = vmatprep.mubr.f32.mxu0 0.0
  %238 = vmatmul.mubr.f32.gmra.mrb[0].mxu0 %v168
  %v239 = vpop.f32.mrb[0].mxu0
  %v240 = vadd.f32 %v164, %v239
  %v241 = vpop.f32.mrb[0].mxu0
  %242 = vmatprep.mubr.f32.mxu0 0.0
  %243 = vmatmul.mubr.f32.gmra.mrb[0].mxu0 %v171
  %v244 = vpop.f32.mrb[0].mxu0
  %v245 = vadd.f32 %v164, %v244
  %v246 = vpop.f32.mrb[0].mxu0
  %247 = vdwg.mxu0
  %s248 = scalar_lea.vmem %s3, 128
  %v249 = vld [vmem:[%s248] sm:$0xff]
  %v250 = vld [vmem:[%s248 + $0x8] sm:$0xff]
  %v251 = vld [vmem:[%s248 + $0x10] sm:$0xff]
  %v252 = vld [vmem:[%s248 + $0x18] sm:$0xff]
  %s253 = scalar_lea.vmem %s4, 4
  %v254 = vld [vmem:[%s253] sm:$0x1]
  %v256 = vlaneseq
  %v257 = vshrl.u32 %v256, 7
  %v258 = vsub.s32 0, %v257
  %v259 = vrot.slane %v254, %v258
  %261 = vmatprep.subr.mxu0 0.0
  %262 = vmatpush1.msra.mxu0 %v249
  %263 = vmatprep.subr.mxu0 0.0
  %264 = vmatpush1.msra.mxu0 %v250
  %265 = vmatprep.subr.mxu0 0.0
  %266 = vmatpush1.msra.mxu0 %v251
  %267 = vmatprep.subr.mxu0 0.0
  %268 = vmatpush1.msra.mxu0 %v252
  %269 = vmatprep.subr.mxu0 0.0
  %270 = vmatpush1.msra.mxu0 0.0
  %271 = vmatprep.subr.mxu0 0.0
  %272 = vmatpush1.msra.mxu0 0.0
  %273 = vmatprep.subr.mxu0 0.0
  %274 = vmatpush1.msra.mxu0 0.0
  %275 = vmatprep.subr.mxu0 0.0
  %276 = vmatpush1.msra.mxu0 0.0
  %277 = vmatprep.subr.mxu0 0.0
  %278 = vmatpush1.msra.mxu0 0.0
  %279 = vmatprep.subr.mxu0 0.0
  %280 = vmatpush1.msra.mxu0 0.0
  %281 = vmatprep.subr.mxu0 0.0
  %282 = vmatpush1.msra.mxu0 0.0
  %283 = vmatprep.subr.mxu0 0.0
  %284 = vmatpush1.msra.mxu0 0.0
  %285 = vmatprep.subr.mxu0 0.0
  %286 = vmatpush1.msra.mxu0 0.0
  %287 = vmatprep.subr.mxu0 0.0
  %288 = vmatpush1.msra.mxu0 0.0
  %289 = vmatprep.subr.mxu0 0.0
  %290 = vmatpush1.msra.mxu0 0.0
  %291 = vmatprep.subr.mxu0 0.0
  %292 = vmatpush1.msra.mxu0 0.0
  %293 = vmatprep.subr.mxu0 0.0
  %294 = vmatpush1.msra.mxu0 0.0
  %295 = vmatprep.subr.mxu0 0.0
  %296 = vmatpush1.msra.mxu0 0.0
  %297 = vmatprep.subr.mxu0 0.0
  %298 = vmatpush1.msra.mxu0 0.0
  %299 = vmatprep.subr.mxu0 0.0
  %300 = vmatpush1.msra.mxu0 0.0
  %301 = vmatprep.subr.mxu0 0.0
  %302 = vmatpush1.msra.mxu0 0.0
  %303 = vmatprep.subr.mxu0 0.0
  %304 = vmatpush1.msra.mxu0 0.0
  %305 = vmatprep.subr.mxu0 0.0
  %306 = vmatpush1.msra.mxu0 0.0
  %307 = vmatprep.subr.mxu0 0.0
  %308 = vmatpush1.msra.mxu0 0.0
  %309 = vmatprep.subr.mxu0 0.0
  %310 = vmatpush1.msra.mxu0 0.0
  %311 = vmatprep.subr.mxu0 0.0
  %312 = vmatpush1.msra.mxu0 0.0
  %313 = vmatprep.subr.mxu0 0.0
  %314 = vmatpush1.msra.mxu0 0.0
  %315 = vmatprep.subr.mxu0 0.0
  %316 = vmatpush1.msra.mxu0 0.0
  %317 = vmatprep.subr.mxu0 0.0
  %318 = vmatpush1.msra.mxu0 0.0
  %319 = vmatprep.subr.mxu0 0.0
  %320 = vmatpush1.msra.mxu0 0.0
  %321 = vmatprep.subr.mxu0 0.0
  %322 = vmatpush1.msra.mxu0 0.0
  %323 = vmatprep.subr.mxu0 0.0
  %324 = vmatpush1.msra.mxu0 0.0
  %325 = vmatprep.mubr.f32.mxu0 0.0
  %326 = vmatmul.mubr.f32.gmra.mrb[0].mxu0 %v168
  %v327 = vpop.f32.mrb[0].mxu0
  %v328 = vadd.f32 %v259, %v327
  %v329 = vpop.f32.mrb[0].mxu0
  %330 = vmatprep.mubr.f32.mxu0 0.0
  %331 = vmatmul.mubr.f32.gmra.mrb[0].mxu0 %v171
  %v332 = vpop.f32.mrb[0].mxu0
  %v333 = vadd.f32 %v259, %v332
  %v334 = vpop.f32.mrb[0].mxu0
  %335 = vdwg.mxu0
  %s336 = scalar_lea.vmem %s3, 256
  %v337 = vld [vmem:[%s336] sm:$0xff]
  %v338 = vld [vmem:[%s336 + $0x8] sm:$0xff]
  %v339 = vld [vmem:[%s336 + $0x10] sm:$0xff]
  %v340 = vld [vmem:[%s336 + $0x18] sm:$0xff]
  %s341 = scalar_lea.vmem %s4, 8
  %v342 = vld [vmem:[%s341] sm:$0x1]
  %v344 = vlaneseq
  %v345 = vshrl.u32 %v344, 7
  %v346 = vsub.s32 0, %v345
  %v347 = vrot.slane %v342, %v346
  %349 = vmatprep.subr.mxu0 0.0
  %350 = vmatpush1.msra.mxu0 %v337
  %351 = vmatprep.subr.mxu0 0.0
  %352 = vmatpush1.msra.mxu0 %v338
  %353 = vmatprep.subr.mxu0 0.0
  %354 = vmatpush1.msra.mxu0 %v339
  %355 = vmatprep.subr.mxu0 0.0
  %356 = vmatpush1.msra.mxu0 %v340
  %357 = vmatprep.subr.mxu0 0.0
  %358 = vmatpush1.msra.mxu0 0.0
  %359 = vmatprep.subr.mxu0 0.0
  %360 = vmatpush1.msra.mxu0 0.0
  %361 = vmatprep.subr.mxu0 0.0
  %362 = vmatpush1.msra.mxu0 0.0
  %363 = vmatprep.subr.mxu0 0.0
  %364 = vmatpush1.msra.mxu0 0.0
  %365 = vmatprep.subr.mxu0 0.0
  %366 = vmatpush1.msra.mxu0 0.0
  %367 = vmatprep.subr.mxu0 0.0
  %368 = vmatpush1.msra.mxu0 0.0
  %369 = vmatprep.subr.mxu0 0.0
  %370 = vmatpush1.msra.mxu0 0.0
  %371 = vmatprep.subr.mxu0 0.0
  %372 = vmatpush1.msra.mxu0 0.0
  %373 = vmatprep.subr.mxu0 0.0
  %374 = vmatpush1.msra.mxu0 0.0
  %375 = vmatprep.subr.mxu0 0.0
  %376 = vmatpush1.msra.mxu0 0.0
  %377 = vmatprep.subr.mxu0 0.0
  %378 = vmatpush1.msra.mxu0 0.0
  %379 = vmatprep.subr.mxu0 0.0
  %380 = vmatpush1.msra.mxu0 0.0
  %381 = vmatprep.subr.mxu0 0.0
  %382 = vmatpush1.msra.mxu0 0.0
  %383 = vmatprep.subr.mxu0 0.0
  %384 = vmatpush1.msra.mxu0 0.0
  %385 = vmatprep.subr.mxu0 0.0
  %386 = vmatpush1.msra.mxu0 0.0
  %387 = vmatprep.subr.mxu0 0.0
  %388 = vmatpush1.msra.mxu0 0.0
  %389 = vmatprep.subr.mxu0 0.0
  %390 = vmatpush1.msra.mxu0 0.0
  %391 = vmatprep.subr.mxu0 0.0
  %392 = vmatpush1.msra.mxu0 0.0
  %393 = vmatprep.subr.mxu0 0.0
  %394 = vmatpush1.msra.mxu0 0.0
  %395 = vmatprep.subr.mxu0 0.0
  %396 = vmatpush1.msra.mxu0 0.0
  %397 = vmatprep.subr.mxu0 0.0
  %398 = vmatpush1.msra.mxu0 0.0
  %399 = vmatprep.subr.mxu0 0.0
  %400 = vmatpush1.msra.mxu0 0.0
  %401 = vmatprep.subr.mxu0 0.0
  %402 = vmatpush1.msra.mxu0 0.0
  %403 = vmatprep.subr.mxu0 0.0
  %404 = vmatpush1.msra.mxu0 0.0
  %405 = vmatprep.subr.mxu0 0.0
  %406 = vmatpush1.msra.mxu0 0.0
  %407 = vmatprep.subr.mxu0 0.0
  %408 = vmatpush1.msra.mxu0 0.0
  %409 = vmatprep.subr.mxu0 0.0
  %410 = vmatpush1.msra.mxu0 0.0
  %411 = vmatprep.subr.mxu0 0.0
  %412 = vmatpush1.msra.mxu0 0.0
  %413 = vmatprep.mubr.f32.mxu0 0.0
  %414 = vmatmul.mubr.f32.gmra.mrb[0].mxu0 %v168
  %v415 = vpop.f32.mrb[0].mxu0
  %v416 = vadd.f32 %v347, %v415
  %v417 = vpop.f32.mrb[0].mxu0
  %418 = vmatprep.mubr.f32.mxu0 0.0
  %419 = vmatmul.mubr.f32.gmra.mrb[0].mxu0 %v171
  %v420 = vpop.f32.mrb[0].mxu0
  %v421 = vadd.f32 %v347, %v420
  %v422 = vpop.f32.mrb[0].mxu0
  %423 = vdwg.mxu0
  %vm424 = vcmask 64512
  %v426 = vsel %vm424, %v240, 0
  %v429 = vsel %vm424, %v328, 0
  %431 = vmatprep.subr.mxu0 0.0
  %432 = vmatpush1.xpose.msra.mxu0 %v429
  %433 = vmatprep.subr.mxu0 0.0
  %434 = vmatpush1.xpose.msra.mxu0 0.0
  %435 = vmatprep.subr.mxu0 0.0
  %436 = vmatpush1.xpose.msra.mxu0 0.0
  %437 = vmatprep.subr.mxu0 0.0
  %438 = vmatpush1.xpose.msra.mxu0 0.0
  %439 = vmatprep.subr.mxu0 0.0
  %440 = vmatpush1.xpose.msra.mxu0 0.0
  %441 = vmatprep.subr.mxu0 0.0
  %442 = vmatpush1.xpose.msra.mxu0 0.0
  %443 = vmatprep.subr.mxu0 0.0
  %444 = vmatpush1.xpose.msra.mxu0 0.0
  %445 = vmatprep.subr.mxu0 0.0
  %446 = vmatpush1.xpose.msra.mxu0 0.0
  %447 = vmatprep.subr.mxu0 0.0
  %448 = vmatpush1.xpose.msra.mxu0 0.0
  %449 = vmatprep.subr.mxu0 0.0
  %450 = vmatpush1.xpose.msra.mxu0 0.0
  %451 = vmatprep.subr.mxu0 0.0
  %452 = vmatpush1.xpose.msra.mxu0 0.0
  %453 = vmatprep.subr.mxu0 0.0
  %454 = vmatpush1.xpose.msra.mxu0 0.0
  %455 = vmatprep.subr.mxu0 0.0
  %456 = vmatpush1.xpose.msra.mxu0 0.0
  %457 = vmatprep.subr.mxu0 0.0
  %458 = vmatpush1.xpose.msra.mxu0 0.0
  %459 = vmatprep.subr.mxu0 0.0
  %460 = vmatpush1.xpose.msra.mxu0 0.0
  %461 = vmatprep.subr.mxu0 0.0
  %462 = vmatpush1.xpose.msra.mxu0 0.0
  %463 = vmatprep.subr.mxu0 0.0
  %464 = vmatpush1.xpose.msra.mxu0 0.0
  %465 = vmatprep.subr.mxu0 0.0
  %466 = vmatpush1.xpose.msra.mxu0 0.0
  %467 = vmatprep.subr.mxu0 0.0
  %468 = vmatpush1.xpose.msra.mxu0 0.0
  %469 = vmatprep.subr.mxu0 0.0
  %470 = vmatpush1.xpose.msra.mxu0 0.0
  %471 = vmatprep.subr.mxu0 0.0
  %472 = vmatpush1.xpose.msra.mxu0 0.0
  %473 = vmatprep.subr.mxu0 0.0
  %474 = vmatpush1.xpose.msra.mxu0 0.0
  %475 = vmatprep.subr.mxu0 0.0
  %476 = vmatpush1.xpose.msra.mxu0 0.0
  %477 = vmatprep.subr.mxu0 0.0
  %478 = vmatpush1.xpose.msra.mxu0 0.0
  %479 = vmatprep.subr.mxu0 0.0
  %480 = vmatpush1.xpose.msra.mxu0 0.0
  %481 = vmatprep.subr.mxu0 0.0
  %482 = vmatpush1.xpose.msra.mxu0 0.0
  %483 = vmatprep.subr.mxu0 0.0
  %484 = vmatpush1.xpose.msra.mxu0 0.0
  %485 = vmatprep.subr.mxu0 0.0
  %486 = vmatpush1.xpose.msra.mxu0 0.0
  %487 = vmatprep.subr.mxu0 0.0
  %488 = vmatpush1.xpose.msra.mxu0 0.0
  %489 = vmatprep.subr.mxu0 0.0
  %490 = vmatpush1.xpose.msra.mxu0 0.0
  %491 = vmatprep.subr.mxu0 0.0
  %492 = vmatpush1.xpose.msra.mxu0 0.0
  %493 = vmatprep.subr.mxu0 0.0
  %494 = vmatpush1.xpose.msra.mxu0 0.0
  %495 = vmatprep.mubr.f32.mxu0 0.0
  %496 = vmatmul.mubr.f32.gmra.mrb[0].mxu0 %v426
  %v497 = vpop.f32.mrb[0].mxu0
  %v498 = vadd.f32 0.0, %v497
  %v499 = vpop.f32.mrb[0].mxu0
  %500 = vdwg.mxu0
  %v502 = vsel %vm424, %v245, 0
  %v505 = vsel %vm424, %v333, 0
  %507 = vmatprep.subr.mxu0 0.0
  %508 = vmatpush1.xpose.msra.mxu0 %v505
  %509 = vmatprep.subr.mxu0 0.0
  %510 = vmatpush1.xpose.msra.mxu0 0.0
  %511 = vmatprep.subr.mxu0 0.0
  %512 = vmatpush1.xpose.msra.mxu0 0.0
  %513 = vmatprep.subr.mxu0 0.0
  %514 = vmatpush1.xpose.msra.mxu0 0.0
  %515 = vmatprep.subr.mxu0 0.0
  %516 = vmatpush1.xpose.msra.mxu0 0.0
  %517 = vmatprep.subr.mxu0 0.0
  %518 = vmatpush1.xpose.msra.mxu0 0.0
  %519 = vmatprep.subr.mxu0 0.0
  %520 = vmatpush1.xpose.msra.mxu0 0.0
  %521 = vmatprep.subr.mxu0 0.0
  %522 = vmatpush1.xpose.msra.mxu0 0.0
  %523 = vmatprep.subr.mxu0 0.0
  %524 = vmatpush1.xpose.msra.mxu0 0.0
  %525 = vmatprep.subr.mxu0 0.0
  %526 = vmatpush1.xpose.msra.mxu0 0.0
  %527 = vmatprep.subr.mxu0 0.0
  %528 = vmatpush1.xpose.msra.mxu0 0.0
  %529 = vmatprep.subr.mxu0 0.0
  %530 = vmatpush1.xpose.msra.mxu0 0.0
  %531 = vmatprep.subr.mxu0 0.0
  %532 = vmatpush1.xpose.msra.mxu0 0.0
  %533 = vmatprep.subr.mxu0 0.0
  %534 = vmatpush1.xpose.msra.mxu0 0.0
  %535 = vmatprep.subr.mxu0 0.0
  %536 = vmatpush1.xpose.msra.mxu0 0.0
  %537 = vmatprep.subr.mxu0 0.0
  %538 = vmatpush1.xpose.msra.mxu0 0.0
  %539 = vmatprep.subr.mxu0 0.0
  %540 = vmatpush1.xpose.msra.mxu0 0.0
  %541 = vmatprep.subr.mxu0 0.0
  %542 = vmatpush1.xpose.msra.mxu0 0.0
  %543 = vmatprep.subr.mxu0 0.0
  %544 = vmatpush1.xpose.msra.mxu0 0.0
  %545 = vmatprep.subr.mxu0 0.0
  %546 = vmatpush1.xpose.msra.mxu0 0.0
  %547 = vmatprep.subr.mxu0 0.0
  %548 = vmatpush1.xpose.msra.mxu0 0.0
  %549 = vmatprep.subr.mxu0 0.0
  %550 = vmatpush1.xpose.msra.mxu0 0.0
  %551 = vmatprep.subr.mxu0 0.0
  %552 = vmatpush1.xpose.msra.mxu0 0.0
  %553 = vmatprep.subr.mxu0 0.0
  %554 = vmatpush1.xpose.msra.mxu0 0.0
  %555 = vmatprep.subr.mxu0 0.0
  %556 = vmatpush1.xpose.msra.mxu0 0.0
  %557 = vmatprep.subr.mxu0 0.0
  %558 = vmatpush1.xpose.msra.mxu0 0.0
  %559 = vmatprep.subr.mxu0 0.0
  %560 = vmatpush1.xpose.msra.mxu0 0.0
  %561 = vmatprep.subr.mxu0 0.0
  %562 = vmatpush1.xpose.msra.mxu0 0.0
  %563 = vmatprep.subr.mxu0 0.0
  %564 = vmatpush1.xpose.msra.mxu0 0.0
  %565 = vmatprep.subr.mxu0 0.0
  %566 = vmatpush1.xpose.msra.mxu0 0.0
  %567 = vmatprep.subr.mxu0 0.0
  %568 = vmatpush1.xpose.msra.mxu0 0.0
  %569 = vmatprep.subr.mxu0 0.0
  %570 = vmatpush1.xpose.msra.mxu0 0.0
  %571 = vmatprep.mubr.f32.mxu0 0.0
  %572 = vmatmul.mubr.f32.gmra.mrb[0].mxu0 %v502
  %v573 = vpop.f32.mrb[0].mxu0
  %v574 = vadd.f32 0.0, %v573
  %v575 = vpop.f32.mrb[0].mxu0
  %576 = vdwg.mxu0
  %v577 = vmul.f32 %v498, 0.35355338
  %v578 = vmul.f32 %v574, 0.35355338
  %v579 = vsel %vm424, %v577, -inf
  %580 = vmax.xlane.f32.xlu0 %v579
  %v581 = vpop.xlane.xlu0 %580
  %v582 = vsel %vm424, %v578, -inf
  %583 = vmax.xlane.f32.xlu0 %v582
  %v584 = vpop.xlane.xlu0 %583
  %v585 = vsub.f32 %v577, %v581
  %v586 = vsub.f32 %v578, %v584
  %v587 = vmul.f32 %v585, 1.442695
  %v588 = vpow.pop %v587
  %v589 = vmul.f32 %v586, 1.442695
  %v590 = vpow.pop %v589
  %v591 = vsel %vm424, %v588, 0.0
  %592 = vadd.xlane.f32.xlu0 %v591
  %v593 = vpop.xlane.xlu0 %592
  %v594 = vsel %vm424, %v590, 0.0
  %595 = vadd.xlane.f32.xlu0 %v594
  %v596 = vpop.xlane.xlu0 %595
  %v597 = vrcp.pop %v593
  %v598 = vrcp.pop %v596
  %v599 = vmul.f32 %v588, %v597
  %v600 = vmul.f32 %v590, %v598
  %v602 = vsel %vm424, %v599, 0
  %604 = vmatprep.subr.mxu0 0.0
  %605 = vmatpush1.msra.mxu0 %v416
  %606 = vmatprep.subr.mxu0 0.0
  %607 = vmatpush1.msra.mxu0 0.0
  %608 = vmatprep.subr.mxu0 0.0
  %609 = vmatpush1.msra.mxu0 0.0
  %610 = vmatprep.subr.mxu0 0.0
  %611 = vmatpush1.msra.mxu0 0.0
  %612 = vmatprep.subr.mxu0 0.0
  %613 = vmatpush1.msra.mxu0 0.0
  %614 = vmatprep.subr.mxu0 0.0
  %615 = vmatpush1.msra.mxu0 0.0
  %616 = vmatprep.subr.mxu0 0.0
  %617 = vmatpush1.msra.mxu0 0.0
  %618 = vmatprep.subr.mxu0 0.0
  %619 = vmatpush1.msra.mxu0 0.0
  %620 = vmatprep.subr.mxu0 0.0
  %621 = vmatpush1.msra.mxu0 0.0
  %622 = vmatprep.subr.mxu0 0.0
  %623 = vmatpush1.msra.mxu0 0.0
  %624 = vmatprep.subr.mxu0 0.0
  %625 = vmatpush1.msra.mxu0 0.0
  %626 = vmatprep.subr.mxu0 0.0
  %627 = vmatpush1.msra.mxu0 0.0
  %628 = vmatprep.subr.mxu0 0.0
  %629 = vmatpush1.msra.mxu0 0.0
  %630 = vmatprep.subr.mxu0 0.0
  %631 = vmatpush1.msra.mxu0 0.0
  %632 = vmatprep.subr.mxu0 0.0
  %633 = vmatpush1.msra.mxu0 0.0
  %634 = vmatprep.subr.mxu0 0.0
  %635 = vmatpush1.msra.mxu0 0.0
  %636 = vmatprep.subr.mxu0 0.0
  %637 = vmatpush1.msra.mxu0 0.0
  %638 = vmatprep.subr.mxu0 0.0
  %639 = vmatpush1.msra.mxu0 0.0
  %640 = vmatprep.subr.mxu0 0.0
  %641 = vmatpush1.msra.mxu0 0.0
  %642 = vmatprep.subr.mxu0 0.0
  %643 = vmatpush1.msra.mxu0 0.0
  %644 = vmatprep.subr.mxu0 0.0
  %645 = vmatpush1.msra.mxu0 0.0
  %646 = vmatprep.subr.mxu0 0.0
  %647 = vmatpush1.msra.mxu0 0.0
  %648 = vmatprep.subr.mxu0 0.0
  %649 = vmatpush1.msra.mxu0 0.0
  %650 = vmatprep.subr.mxu0 0.0
  %651 = vmatpush1.msra.mxu0 0.0
  %652 = vmatprep.subr.mxu0 0.0
  %653 = vmatpush1.msra.mxu0 0.0
  %654 = vmatprep.subr.mxu0 0.0
  %655 = vmatpush1.msra.mxu0 0.0
  %656 = vmatprep.subr.mxu0 0.0
  %657 = vmatpush1.msra.mxu0 0.0
  %658 = vmatprep.subr.mxu0 0.0
  %659 = vmatpush1.msra.mxu0 0.0
  %660 = vmatprep.subr.mxu0 0.0
  %661 = vmatpush1.msra.mxu0 0.0
  %662 = vmatprep.subr.mxu0 0.0
  %663 = vmatpush1.msra.mxu0 0.0
  %664 = vmatprep.subr.mxu0 0.0
  %665 = vmatpush1.msra.mxu0 0.0
  %666 = vmatprep.subr.mxu0 0.0
  %667 = vmatpush1.msra.mxu0 0.0
  %668 = vmatprep.mubr.f32.mxu0 0.0
  %669 = vmatmul.mubr.f32.gmra.mrb[0].mxu0 %v602
  %v670 = vpop.f32.mrb[0].mxu0
  %v671 = vadd.f32 0.0, %v670
  %v672 = vpop.f32.mrb[0].mxu0
  %673 = vdwg.mxu0
  %v675 = vsel %vm424, %v600, 0
  %677 = vmatprep.subr.mxu0 0.0
  %678 = vmatpush1.msra.mxu0 %v421
  %679 = vmatprep.subr.mxu0 0.0
  %680 = vmatpush1.msra.mxu0 0.0
  %681 = vmatprep.subr.mxu0 0.0
  %682 = vmatpush1.msra.mxu0 0.0
  %683 = vmatprep.subr.mxu0 0.0
  %684 = vmatpush1.msra.mxu0 0.0
  %685 = vmatprep.subr.mxu0 0.0
  %686 = vmatpush1.msra.mxu0 0.0
  %687 = vmatprep.subr.mxu0 0.0
  %688 = vmatpush1.msra.mxu0 0.0
  %689 = vmatprep.subr.mxu0 0.0
  %690 = vmatpush1.msra.mxu0 0.0
  %691 = vmatprep.subr.mxu0 0.0
  %692 = vmatpush1.msra.mxu0 0.0
  %693 = vmatprep.subr.mxu0 0.0
  %694 = vmatpush1.msra.mxu0 0.0
  %695 = vmatprep.subr.mxu0 0.0
  %696 = vmatpush1.msra.mxu0 0.0
  %697 = vmatprep.subr.mxu0 0.0
  %698 = vmatpush1.msra.mxu0 0.0
  %699 = vmatprep.subr.mxu0 0.0
  %700 = vmatpush1.msra.mxu0 0.0
  %701 = vmatprep.subr.mxu0 0.0
  %702 = vmatpush1.msra.mxu0 0.0
  %703 = vmatprep.subr.mxu0 0.0
  %704 = vmatpush1.msra.mxu0 0.0
  %705 = vmatprep.subr.mxu0 0.0
  %706 = vmatpush1.msra.mxu0 0.0
  %707 = vmatprep.subr.mxu0 0.0
  %708 = vmatpush1.msra.mxu0 0.0
  %709 = vmatprep.subr.mxu0 0.0
  %710 = vmatpush1.msra.mxu0 0.0
  %711 = vmatprep.subr.mxu0 0.0
  %712 = vmatpush1.msra.mxu0 0.0
  %713 = vmatprep.subr.mxu0 0.0
  %714 = vmatpush1.msra.mxu0 0.0
  %715 = vmatprep.subr.mxu0 0.0
  %716 = vmatpush1.msra.mxu0 0.0
  %717 = vmatprep.subr.mxu0 0.0
  %718 = vmatpush1.msra.mxu0 0.0
  %719 = vmatprep.subr.mxu0 0.0
  %720 = vmatpush1.msra.mxu0 0.0
  %721 = vmatprep.subr.mxu0 0.0
  %722 = vmatpush1.msra.mxu0 0.0
  %723 = vmatprep.subr.mxu0 0.0
  %724 = vmatpush1.msra.mxu0 0.0
  %725 = vmatprep.subr.mxu0 0.0
  %726 = vmatpush1.msra.mxu0 0.0
  %727 = vmatprep.subr.mxu0 0.0
  %728 = vmatpush1.msra.mxu0 0.0
  %729 = vmatprep.subr.mxu0 0.0
  %730 = vmatpush1.msra.mxu0 0.0
  %731 = vmatprep.subr.mxu0 0.0
  %732 = vmatpush1.msra.mxu0 0.0
  %733 = vmatprep.subr.mxu0 0.0
  %734 = vmatpush1.msra.mxu0 0.0
  %735 = vmatprep.subr.mxu0 0.0
  %736 = vmatpush1.msra.mxu0 0.0
  %737 = vmatprep.subr.mxu0 0.0
  %738 = vmatpush1.msra.mxu0 0.0
  %739 = vmatprep.subr.mxu0 0.0
  %740 = vmatpush1.msra.mxu0 0.0
  %741 = vmatprep.mubr.f32.mxu0 0.0
  %742 = vmatmul.mubr.f32.gmra.mrb[0].mxu0 %v675
  %v743 = vpop.f32.mrb[0].mxu0
  %v744 = vadd.f32 0.0, %v743
  %v745 = vpop.f32.mrb[0].mxu0
  %746 = vdwg.mxu0
  %747 = vst.msk [vmem:[#allocation2] sm:$0xff] %vm424, %v671
  %748 = vst.msk [vmem:[#allocation2 + $0x8] sm:$0xff] %vm424, %v744
  %s749 = scalar_lea.vmem %s3, 32
  %v750 = vld [vmem:[%s749] sm:$0xff]
  %v751 = vld [vmem:[%s749 + $0x8] sm:$0xff]
  %v752 = vld [vmem:[%s749 + $0x10] sm:$0xff]
  %v753 = vld [vmem:[%s749 + $0x18] sm:$0xff]
  %s754 = scalar_lea.vmem %s4, 1
  %v755 = vld [vmem:[%s754] sm:$0x1]
  %v757 = vlaneseq
  %v758 = vshrl.u32 %v757, 7
  %v759 = vsub.s32 0, %v758
  %v760 = vrot.slane %v755, %v759
  %762 = vmatprep.subr.mxu0 0.0
  %763 = vmatpush1.msra.mxu0 %v750
  %764 = vmatprep.subr.mxu0 0.0
  %765 = vmatpush1.msra.mxu0 %v751
  %766 = vmatprep.subr.mxu0 0.0
  %767 = vmatpush1.msra.mxu0 %v752
  %768 = vmatprep.subr.mxu0 0.0
  %769 = vmatpush1.msra.mxu0 %v753
  %770 = vmatprep.subr.mxu0 0.0
  %771 = vmatpush1.msra.mxu0 0.0
  %772 = vmatprep.subr.mxu0 0.0
  %773 = vmatpush1.msra.mxu0 0.0
  %774 = vmatprep.subr.mxu0 0.0
  %775 = vmatpush1.msra.mxu0 0.0
  %776 = vmatprep.subr.mxu0 0.0
  %777 = vmatpush1.msra.mxu0 0.0
  %778 = vmatprep.subr.mxu0 0.0
  %779 = vmatpush1.msra.mxu0 0.0
  %780 = vmatprep.subr.mxu0 0.0
  %781 = vmatpush1.msra.mxu0 0.0
  %782 = vmatprep.subr.mxu0 0.0
  %783 = vmatpush1.msra.mxu0 0.0
  %784 = vmatprep.subr.mxu0 0.0
  %785 = vmatpush1.msra.mxu0 0.0
  %786 = vmatprep.subr.mxu0 0.0
  %787 = vmatpush1.msra.mxu0 0.0
  %788 = vmatprep.subr.mxu0 0.0
  %789 = vmatpush1.msra.mxu0 0.0
  %790 = vmatprep.subr.mxu0 0.0
  %791 = vmatpush1.msra.mxu0 0.0
  %792 = vmatprep.subr.mxu0 0.0
  %793 = vmatpush1.msra.mxu0 0.0
  %794 = vmatprep.subr.mxu0 0.0
  %795 = vmatpush1.msra.mxu0 0.0
  %796 = vmatprep.subr.mxu0 0.0
  %797 = vmatpush1.msra.mxu0 0.0
  %798 = vmatprep.subr.mxu0 0.0
  %799 = vmatpush1.msra.mxu0 0.0
  %800 = vmatprep.subr.mxu0 0.0
  %801 = vmatpush1.msra.mxu0 0.0
  %802 = vmatprep.subr.mxu0 0.0
  %803 = vmatpush1.msra.mxu0 0.0
  %804 = vmatprep.subr.mxu0 0.0
  %805 = vmatpush1.msra.mxu0 0.0
  %806 = vmatprep.subr.mxu0 0.0
  %807 = vmatpush1.msra.mxu0 0.0
  %808 = vmatprep.subr.mxu0 0.0
  %809 = vmatpush1.msra.mxu0 0.0
  %810 = vmatprep.subr.mxu0 0.0
  %811 = vmatpush1.msra.mxu0 0.0
  %812 = vmatprep.subr.mxu0 0.0
  %813 = vmatpush1.msra.mxu0 0.0
  %814 = vmatprep.subr.mxu0 0.0
  %815 = vmatpush1.msra.mxu0 0.0
  %816 = vmatprep.subr.mxu0 0.0
  %817 = vmatpush1.msra.mxu0 0.0
  %818 = vmatprep.subr.mxu0 0.0
  %819 = vmatpush1.msra.mxu0 0.0
  %820 = vmatprep.subr.mxu0 0.0
  %821 = vmatpush1.msra.mxu0 0.0
  %822 = vmatprep.subr.mxu0 0.0
  %823 = vmatpush1.msra.mxu0 0.0
  %824 = vmatprep.subr.mxu0 0.0
  %825 = vmatpush1.msra.mxu0 0.0
  %826 = vmatprep.mubr.f32.mxu0 0.0
  %827 = vmatmul.mubr.f32.gmra.mrb[0].mxu0 %v168
  %v828 = vpop.f32.mrb[0].mxu0
  %v829 = vadd.f32 %v760, %v828
  %v830 = vpop.f32.mrb[0].mxu0
  %831 = vmatprep.mubr.f32.mxu0 0.0
  %832 = vmatmul.mubr.f32.gmra.mrb[0].mxu0 %v171
  %v833 = vpop.f32.mrb[0].mxu0
  %v834 = vadd.f32 %v760, %v833
  %v835 = vpop.f32.mrb[0].mxu0
  %836 = vdwg.mxu0
  %s837 = scalar_lea.vmem %s3, 160
  %v838 = vld [vmem:[%s837] sm:$0xff]
  %v839 = vld [vmem:[%s837 + $0x8] sm:$0xff]
  %v840 = vld [vmem:[%s837 + $0x10] sm:$0xff]
  %v841 = vld [vmem:[%s837 + $0x18] sm:$0xff]
  %s842 = scalar_lea.vmem %s4, 5
  %v843 = vld [vmem:[%s842] sm:$0x1]
  %v845 = vlaneseq
  %v846 = vshrl.u32 %v845, 7
  %v847 = vsub.s32 0, %v846
  %v848 = vrot.slane %v843, %v847
  %850 = vmatprep.subr.mxu0 0.0
  %851 = vmatpush1.msra.mxu0 %v838
  %852 = vmatprep.subr.mxu0 0.0
  %853 = vmatpush1.msra.mxu0 %v839
  %854 = vmatprep.subr.mxu0 0.0
  %855 = vmatpush1.msra.mxu0 %v840
  %856 = vmatprep.subr.mxu0 0.0
  %857 = vmatpush1.msra.mxu0 %v841
  %858 = vmatprep.subr.mxu0 0.0
  %859 = vmatpush1.msra.mxu0 0.0
  %860 = vmatprep.subr.mxu0 0.0
  %861 = vmatpush1.msra.mxu0 0.0
  %862 = vmatprep.subr.mxu0 0.0
  %863 = vmatpush1.msra.mxu0 0.0
  %864 = vmatprep.subr.mxu0 0.0
  %865 = vmatpush1.msra.mxu0 0.0
  %866 = vmatprep.subr.mxu0 0.0
  %867 = vmatpush1.msra.mxu0 0.0
  %868 = vmatprep.subr.mxu0 0.0
  %869 = vmatpush1.msra.mxu0 0.0
  %870 = vmatprep.subr.mxu0 0.0
  %871 = vmatpush1.msra.mxu0 0.0
  %872 = vmatprep.subr.mxu0 0.0
  %873 = vmatpush1.msra.mxu0 0.0
  %874 = vmatprep.subr.mxu0 0.0
  %875 = vmatpush1.msra.mxu0 0.0
  %876 = vmatprep.subr.mxu0 0.0
  %877 = vmatpush1.msra.mxu0 0.0
  %878 = vmatprep.subr.mxu0 0.0
  %879 = vmatpush1.msra.mxu0 0.0
  %880 = vmatprep.subr.mxu0 0.0
  %881 = vmatpush1.msra.mxu0 0.0
  %882 = vmatprep.subr.mxu0 0.0
  %883 = vmatpush1.msra.mxu0 0.0
  %884 = vmatprep.subr.mxu0 0.0
  %885 = vmatpush1.msra.mxu0 0.0
  %886 = vmatprep.subr.mxu0 0.0
  %887 = vmatpush1.msra.mxu0 0.0
  %888 = vmatprep.subr.mxu0 0.0
  %889 = vmatpush1.msra.mxu0 0.0
  %890 = vmatprep.subr.mxu0 0.0
  %891 = vmatpush1.msra.mxu0 0.0
  %892 = vmatprep.subr.mxu0 0.0
  %893 = vmatpush1.msra.mxu0 0.0
  %894 = vmatprep.subr.mxu0 0.0
  %895 = vmatpush1.msra.mxu0 0.0
  %896 = vmatprep.subr.mxu0 0.0
  %897 = vmatpush1.msra.mxu0 0.0
  %898 = vmatprep.subr.mxu0 0.0
  %899 = vmatpush1.msra.mxu0 0.0
  %900 = vmatprep.subr.mxu0 0.0
  %901 = vmatpush1.msra.mxu0 0.0
  %902 = vmatprep.subr.mxu0 0.0
  %903 = vmatpush1.msra.mxu0 0.0
  %904 = vmatprep.subr.mxu0 0.0
  %905 = vmatpush1.msra.mxu0 0.0
  %906 = vmatprep.subr.mxu0 0.0
  %907 = vmatpush1.msra.mxu0 0.0
  %908 = vmatprep.subr.mxu0 0.0
  %909 = vmatpush1.msra.mxu0 0.0
  %910 = vmatprep.subr.mxu0 0.0
  %911 = vmatpush1.msra.mxu0 0.0
  %912 = vmatprep.subr.mxu0 0.0
  %913 = vmatpush1.msra.mxu0 0.0
  %914 = vmatprep.mubr.f32.mxu0 0.0
  %915 = vmatmul.mubr.f32.gmra.mrb[0].mxu0 %v168
  %v916 = vpop.f32.mrb[0].mxu0
  %v917 = vadd.f32 %v848, %v916
  %v918 = vpop.f32.mrb[0].mxu0
  %919 = vmatprep.mubr.f32.mxu0 0.0
  %920 = vmatmul.mubr.f32.gmra.mrb[0].mxu0 %v171
  %v921 = vpop.f32.mrb[0].mxu0
  %v922 = vadd.f32 %v848, %v921
  %v923 = vpop.f32.mrb[0].mxu0
  %924 = vdwg.mxu0
  %s925 = scalar_lea.vmem %s3, 288
  %v926 = vld [vmem:[%s925] sm:$0xff]
  %v927 = vld [vmem:[%s925 + $0x8] sm:$0xff]
  %v928 = vld [vmem:[%s925 + $0x10] sm:$0xff]
  %v929 = vld [vmem:[%s925 + $0x18] sm:$0xff]
  %s930 = scalar_lea.vmem %s4, 9
  %v931 = vld [vmem:[%s930] sm:$0x1]
  %v933 = vlaneseq
  %v934 = vshrl.u32 %v933, 7
  %v935 = vsub.s32 0, %v934
  %v936 = vrot.slane %v931, %v935
  %938 = vmatprep.subr.mxu0 0.0
  %939 = vmatpush1.msra.mxu0 %v926
  %940 = vmatprep.subr.mxu0 0.0
  %941 = vmatpush1.msra.mxu0 %v927
  %942 = vmatprep.subr.mxu0 0.0
  %943 = vmatpush1.msra.mxu0 %v928
  %944 = vmatprep.subr.mxu0 0.0
  %945 = vmatpush1.msra.mxu0 %v929
  %946 = vmatprep.subr.mxu0 0.0
  %947 = vmatpush1.msra.mxu0 0.0
  %948 = vmatprep.subr.mxu0 0.0
  %949 = vmatpush1.msra.mxu0 0.0
  %950 = vmatprep.subr.mxu0 0.0
  %951 = vmatpush1.msra.mxu0 0.0
  %952 = vmatprep.subr.mxu0 0.0
  %953 = vmatpush1.msra.mxu0 0.0
  %954 = vmatprep.subr.mxu0 0.0
  %955 = vmatpush1.msra.mxu0 0.0
  %956 = vmatprep.subr.mxu0 0.0
  %957 = vmatpush1.msra.mxu0 0.0
  %958 = vmatprep.subr.mxu0 0.0
  %959 = vmatpush1.msra.mxu0 0.0
  %960 = vmatprep.subr.mxu0 0.0
  %961 = vmatpush1.msra.mxu0 0.0
  %962 = vmatprep.subr.mxu0 0.0
  %963 = vmatpush1.msra.mxu0 0.0
  %964 = vmatprep.subr.mxu0 0.0
  %965 = vmatpush1.msra.mxu0 0.0
  %966 = vmatprep.subr.mxu0 0.0
  %967 = vmatpush1.msra.mxu0 0.0
  %968 = vmatprep.subr.mxu0 0.0
  %969 = vmatpush1.msra.mxu0 0.0
  %970 = vmatprep.subr.mxu0 0.0
  %971 = vmatpush1.msra.mxu0 0.0
  %972 = vmatprep.subr.mxu0 0.0
  %973 = vmatpush1.msra.mxu0 0.0
  %974 = vmatprep.subr.mxu0 0.0
  %975 = vmatpush1.msra.mxu0 0.0
  %976 = vmatprep.subr.mxu0 0.0
  %977 = vmatpush1.msra.mxu0 0.0
  %978 = vmatprep.subr.mxu0 0.0
  %979 = vmatpush1.msra.mxu0 0.0
  %980 = vmatprep.subr.mxu0 0.0
  %981 = vmatpush1.msra.mxu0 0.0
  %982 = vmatprep.subr.mxu0 0.0
  %983 = vmatpush1.msra.mxu0 0.0
  %984 = vmatprep.subr.mxu0 0.0
  %985 = vmatpush1.msra.mxu0 0.0
  %986 = vmatprep.subr.mxu0 0.0
  %987 = vmatpush1.msra.mxu0 0.0
  %988 = vmatprep.subr.mxu0 0.0
  %989 = vmatpush1.msra.mxu0 0.0
  %990 = vmatprep.subr.mxu0 0.0
  %991 = vmatpush1.msra.mxu0 0.0
  %992 = vmatprep.subr.mxu0 0.0
  %993 = vmatpush1.msra.mxu0 0.0
  %994 = vmatprep.subr.mxu0 0.0
  %995 = vmatpush1.msra.mxu0 0.0
  %996 = vmatprep.subr.mxu0 0.0
  %997 = vmatpush1.msra.mxu0 0.0
  %998 = vmatprep.subr.mxu0 0.0
  %999 = vmatpush1.msra.mxu0 0.0
  %1000 = vmatprep.subr.mxu0 0.0
  %1001 = vmatpush1.msra.mxu0 0.0
  %1002 = vmatprep.mubr.f32.mxu0 0.0
  %1003 = vmatmul.mubr.f32.gmra.mrb[0].mxu0 %v168
  %v1004 = vpop.f32.mrb[0].mxu0
  %v1005 = vadd.f32 %v936, %v1004
  %v1006 = vpop.f32.mrb[0].mxu0
  %1007 = vmatprep.mubr.f32.mxu0 0.0
  %1008 = vmatmul.mubr.f32.gmra.mrb[0].mxu0 %v171
  %v1009 = vpop.f32.mrb[0].mxu0
  %v1010 = vadd.f32 %v936, %v1009
  %v1011 = vpop.f32.mrb[0].mxu0
  %1012 = vdwg.mxu0
  %v1014 = vsel %vm424, %v829, 0
  %v1017 = vsel %vm424, %v917, 0
  %1019 = vmatprep.subr.mxu0 0.0
  %1020 = vmatpush1.xpose.msra.mxu0 %v1017
  %1021 = vmatprep.subr.mxu0 0.0
  %1022 = vmatpush1.xpose.msra.mxu0 0.0
  %1023 = vmatprep.subr.mxu0 0.0
  %1024 = vmatpush1.xpose.msra.mxu0 0.0
  %1025 = vmatprep.subr.mxu0 0.0
  %1026 = vmatpush1.xpose.msra.mxu0 0.0
  %1027 = vmatprep.subr.mxu0 0.0
  %1028 = vmatpush1.xpose.msra.mxu0 0.0
  %1029 = vmatprep.subr.mxu0 0.0
  %1030 = vmatpush1.xpose.msra.mxu0 0.0
  %1031 = vmatprep.subr.mxu0 0.0
  %1032 = vmatpush1.xpose.msra.mxu0 0.0
  %1033 = vmatprep.subr.mxu0 0.0
  %1034 = vmatpush1.xpose.msra.mxu0 0.0
  %1035 = vmatprep.subr.mxu0 0.0
  %1036 = vmatpush1.xpose.msra.mxu0 0.0
  %1037 = vmatprep.subr.mxu0 0.0
  %1038 = vmatpush1.xpose.msra.mxu0 0.0
  %1039 = vmatprep.subr.mxu0 0.0
  %1040 = vmatpush1.xpose.msra.mxu0 0.0
  %1041 = vmatprep.subr.mxu0 0.0
  %1042 = vmatpush1.xpose.msra.mxu0 0.0
  %1043 = vmatprep.subr.mxu0 0.0
  %1044 = vmatpush1.xpose.msra.mxu0 0.0
  %1045 = vmatprep.subr.mxu0 0.0
  %1046 = vmatpush1.xpose.msra.mxu0 0.0
  %1047 = vmatprep.subr.mxu0 0.0
  %1048 = vmatpush1.xpose.msra.mxu0 0.0
  %1049 = vmatprep.subr.mxu0 0.0
  %1050 = vmatpush1.xpose.msra.mxu0 0.0
  %1051 = vmatprep.subr.mxu0 0.0
  %1052 = vmatpush1.xpose.msra.mxu0 0.0
  %1053 = vmatprep.subr.mxu0 0.0
  %1054 = vmatpush1.xpose.msra.mxu0 0.0
  %1055 = vmatprep.subr.mxu0 0.0
  %1056 = vmatpush1.xpose.msra.mxu0 0.0
  %1057 = vmatprep.subr.mxu0 0.0
  %1058 = vmatpush1.xpose.msra.mxu0 0.0
  %1059 = vmatprep.subr.mxu0 0.0
  %1060 = vmatpush1.xpose.msra.mxu0 0.0
  %1061 = vmatprep.subr.mxu0 0.0
  %1062 = vmatpush1.xpose.msra.mxu0 0.0
  %1063 = vmatprep.subr.mxu0 0.0
  %1064 = vmatpush1.xpose.msra.mxu0 0.0
  %1065 = vmatprep.subr.mxu0 0.0
  %1066 = vmatpush1.xpose.msra.mxu0 0.0
  %1067 = vmatprep.subr.mxu0 0.0
  %1068 = vmatpush1.xpose.msra.mxu0 0.0
  %1069 = vmatprep.subr.mxu0 0.0
  %1070 = vmatpush1.xpose.msra.mxu0 0.0
  %1071 = vmatprep.subr.mxu0 0.0
  %1072 = vmatpush1.xpose.msra.mxu0 0.0
  %1073 = vmatprep.subr.mxu0 0.0
  %1074 = vmatpush1.xpose.msra.mxu0 0.0
  %1075 = vmatprep.subr.mxu0 0.0
  %1076 = vmatpush1.xpose.msra.mxu0 0.0
  %1077 = vmatprep.subr.mxu0 0.0
  %1078 = vmatpush1.xpose.msra.mxu0 0.0
  %1079 = vmatprep.subr.mxu0 0.0
  %1080 = vmatpush1.xpose.msra.mxu0 0.0
  %1081 = vmatprep.subr.mxu0 0.0
  %1082 = vmatpush1.xpose.msra.mxu0 0.0
  %1083 = vmatprep.mubr.f32.mxu0 0.0
  %1084 = vmatmul.mubr.f32.gmra.mrb[0].mxu0 %v1014
  %v1085 = vpop.f32.mrb[0].mxu0
  %v1086 = vadd.f32 0.0, %v1085
  %v1087 = vpop.f32.mrb[0].mxu0
  %1088 = vdwg.mxu0
  %v1090 = vsel %vm424, %v834, 0
  %v1093 = vsel %vm424, %v922, 0
  %1095 = vmatprep.subr.mxu0 0.0
  %1096 = vmatpush1.xpose.msra.mxu0 %v1093
  %1097 = vmatprep.subr.mxu0 0.0
  %1098 = vmatpush1.xpose.msra.mxu0 0.0
  %1099 = vmatprep.subr.mxu0 0.0
  %1100 = vmatpush1.xpose.msra.mxu0 0.0
  %1101 = vmatprep.subr.mxu0 0.0
  %1102 = vmatpush1.xpose.msra.mxu0 0.0
  %1103 = vmatprep.subr.mxu0 0.0
  %1104 = vmatpush1.xpose.msra.mxu0 0.0
  %1105 = vmatprep.subr.mxu0 0.0
  %1106 = vmatpush1.xpose.msra.mxu0 0.0
  %1107 = vmatprep.subr.mxu0 0.0
  %1108 = vmatpush1.xpose.msra.mxu0 0.0
  %1109 = vmatprep.subr.mxu0 0.0
  %1110 = vmatpush1.xpose.msra.mxu0 0.0
  %1111 = vmatprep.subr.mxu0 0.0
  %1112 = vmatpush1.xpose.msra.mxu0 0.0
  %1113 = vmatprep.subr.mxu0 0.0
  %1114 = vmatpush1.xpose.msra.mxu0 0.0
  %1115 = vmatprep.subr.mxu0 0.0
  %1116 = vmatpush1.xpose.msra.mxu0 0.0
  %1117 = vmatprep.subr.mxu0 0.0
  %1118 = vmatpush1.xpose.msra.mxu0 0.0
  %1119 = vmatprep.subr.mxu0 0.0
  %1120 = vmatpush1.xpose.msra.mxu0 0.0
  %1121 = vmatprep.subr.mxu0 0.0
  %1122 = vmatpush1.xpose.msra.mxu0 0.0
  %1123 = vmatprep.subr.mxu0 0.0
  %1124 = vmatpush1.xpose.msra.mxu0 0.0
  %1125 = vmatprep.subr.mxu0 0.0
  %1126 = vmatpush1.xpose.msra.mxu0 0.0
  %1127 = vmatprep.subr.mxu0 0.0
  %1128 = vmatpush1.xpose.msra.mxu0 0.0
  %1129 = vmatprep.subr.mxu0 0.0
  %1130 = vmatpush1.xpose.msra.mxu0 0.0
  %1131 = vmatprep.subr.mxu0 0.0
  %1132 = vmatpush1.xpose.msra.mxu0 0.0
  %1133 = vmatprep.subr.mxu0 0.0
  %1134 = vmatpush1.xpose.msra.mxu0 0.0
  %1135 = vmatprep.subr.mxu0 0.0
  %1136 = vmatpush1.xpose.msra.mxu0 0.0
  %1137 = vmatprep.subr.mxu0 0.0
  %1138 = vmatpush1.xpose.msra.mxu0 0.0
  %1139 = vmatprep.subr.mxu0 0.0
  %1140 = vmatpush1.xpose.msra.mxu0 0.0
  %1141 = vmatprep.subr.mxu0 0.0
  %1142 = vmatpush1.xpose.msra.mxu0 0.0
  %1143 = vmatprep.subr.mxu0 0.0
  %1144 = vmatpush1.xpose.msra.mxu0 0.0
  %1145 = vmatprep.subr.mxu0 0.0
  %1146 = vmatpush1.xpose.msra.mxu0 0.0
  %1147 = vmatprep.subr.mxu0 0.0
  %1148 = vmatpush1.xpose.msra.mxu0 0.0
  %1149 = vmatprep.subr.mxu0 0.0
  %1150 = vmatpush1.xpose.msra.mxu0 0.0
  %1151 = vmatprep.subr.mxu0 0.0
  %1152 = vmatpush1.xpose.msra.mxu0 0.0
  %1153 = vmatprep.subr.mxu0 0.0
  %1154 = vmatpush1.xpose.msra.mxu0 0.0
  %1155 = vmatprep.subr.mxu0 0.0
  %1156 = vmatpush1.xpose.msra.mxu0 0.0
  %1157 = vmatprep.subr.mxu0 0.0
  %1158 = vmatpush1.xpose.msra.mxu0 0.0
  %1159 = vmatprep.mubr.f32.mxu0 0.0
  %1160 = vmatmul.mubr.f32.gmra.mrb[0].mxu0 %v1090
  %v1161 = vpop.f32.mrb[0].mxu0
  %v1162 = vadd.f32 0.0, %v1161
  %v1163 = vpop.f32.mrb[0].mxu0
  %1164 = vdwg.mxu0
  %v1165 = vmul.f32 %v1086, 0.35355338
  %v1166 = vmul.f32 %v1162, 0.35355338
  %v1167 = vsel %vm424, %v1165, -inf
  %1168 = vmax.xlane.f32.xlu0 %v1167
  %v1169 = vpop.xlane.xlu0 %1168
  %v1170 = vsel %vm424, %v1166, -inf
  %1171 = vmax.xlane.f32.xlu0 %v1170
  %v1172 = vpop.xlane.xlu0 %1171
  %v1173 = vsub.f32 %v1165, %v1169
  %v1174 = vsub.f32 %v1166, %v1172
  %v1175 = vmul.f32 %v1173, 1.442695
  %v1176 = vpow.pop %v1175
  %v1177 = vmul.f32 %v1174, 1.442695
  %v1178 = vpow.pop %v1177
  %v1179 = vsel %vm424, %v1176, 0.0
  %1180 = vadd.xlane.f32.xlu0 %v1179
  %v1181 = vpop.xlane.xlu0 %1180
  %v1182 = vsel %vm424, %v1178, 0.0
  %1183 = vadd.xlane.f32.xlu0 %v1182
  %v1184 = vpop.xlane.xlu0 %1183
  %v1185 = vrcp.pop %v1181
  %v1186 = vrcp.pop %v1184
  %v1187 = vmul.f32 %v1176, %v1185
  %v1188 = vmul.f32 %v1178, %v1186
  %v1190 = vsel %vm424, %v1187, 0
  %1192 = vmatprep.subr.mxu0 0.0
  %1193 = vmatpush1.msra.mxu0 %v1005
  %1194 = vmatprep.subr.mxu0 0.0
  %1195 = vmatpush1.msra.mxu0 0.0
  %1196 = vmatprep.subr.mxu0 0.0
  %1197 = vmatpush1.msra.mxu0 0.0
  %1198 = vmatprep.subr.mxu0 0.0
  %1199 = vmatpush1.msra.mxu0 0.0
  %1200 = vmatprep.subr.mxu0 0.0
  %1201 = vmatpush1.msra.mxu0 0.0
  %1202 = vmatprep.subr.mxu0 0.0
  %1203 = vmatpush1.msra.mxu0 0.0
  %1204 = vmatprep.subr.mxu0 0.0
  %1205 = vmatpush1.msra.mxu0 0.0
  %1206 = vmatprep.subr.mxu0 0.0
  %1207 = vmatpush1.msra.mxu0 0.0
  %1208 = vmatprep.subr.mxu0 0.0
  %1209 = vmatpush1.msra.mxu0 0.0
  %1210 = vmatprep.subr.mxu0 0.0
  %1211 = vmatpush1.msra.mxu0 0.0
  %1212 = vmatprep.subr.mxu0 0.0
  %1213 = vmatpush1.msra.mxu0 0.0
  %1214 = vmatprep.subr.mxu0 0.0
  %1215 = vmatpush1.msra.mxu0 0.0
  %1216 = vmatprep.subr.mxu0 0.0
  %1217 = vmatpush1.msra.mxu0 0.0
  %1218 = vmatprep.subr.mxu0 0.0
  %1219 = vmatpush1.msra.mxu0 0.0
  %1220 = vmatprep.subr.mxu0 0.0
  %1221 = vmatpush1.msra.mxu0 0.0
  %1222 = vmatprep.subr.mxu0 0.0
  %1223 = vmatpush1.msra.mxu0 0.0
  %1224 = vmatprep.subr.mxu0 0.0
  %1225 = vmatpush1.msra.mxu0 0.0
  %1226 = vmatprep.subr.mxu0 0.0
  %1227 = vmatpush1.msra.mxu0 0.0
  %1228 = vmatprep.subr.mxu0 0.0
  %1229 = vmatpush1.msra.mxu0 0.0
  %1230 = vmatprep.subr.mxu0 0.0
  %1231 = vmatpush1.msra.mxu0 0.0
  %1232 = vmatprep.subr.mxu0 0.0
  %1233 = vmatpush1.msra.mxu0 0.0
  %1234 = vmatprep.subr.mxu0 0.0
  %1235 = vmatpush1.msra.mxu0 0.0
  %1236 = vmatprep.subr.mxu0 0.0
  %1237 = vmatpush1.msra.mxu0 0.0
  %1238 = vmatprep.subr.mxu0 0.0
  %1239 = vmatpush1.msra.mxu0 0.0
  %1240 = vmatprep.subr.mxu0 0.0
  %1241 = vmatpush1.msra.mxu0 0.0
  %1242 = vmatprep.subr.mxu0 0.0
  %1243 = vmatpush1.msra.mxu0 0.0
  %1244 = vmatprep.subr.mxu0 0.0
  %1245 = vmatpush1.msra.mxu0 0.0
  %1246 = vmatprep.subr.mxu0 0.0
  %1247 = vmatpush1.msra.mxu0 0.0
  %1248 = vmatprep.subr.mxu0 0.0
  %1249 = vmatpush1.msra.mxu0 0.0
  %1250 = vmatprep.subr.mxu0 0.0
  %1251 = vmatpush1.msra.mxu0 0.0
  %1252 = vmatprep.subr.mxu0 0.0
  %1253 = vmatpush1.msra.mxu0 0.0
  %1254 = vmatprep.subr.mxu0 0.0
  %1255 = vmatpush1.msra.mxu0 0.0
  %1256 = vmatprep.mubr.f32.mxu0 0.0
  %1257 = vmatmul.mubr.f32.gmra.mrb[0].mxu0 %v1190
  %v1258 = vpop.f32.mrb[0].mxu0
  %v1259 = vadd.f32 0.0, %v1258
  %v1260 = vpop.f32.mrb[0].mxu0
  %1261 = vdwg.mxu0
  %v1263 = vsel %vm424, %v1188, 0
  %1265 = vmatprep.subr.mxu0 0.0
  %1266 = vmatpush1.msra.mxu0 %v1010
  %1267 = vmatprep.subr.mxu0 0.0
  %1268 = vmatpush1.msra.mxu0 0.0
  %1269 = vmatprep.subr.mxu0 0.0
  %1270 = vmatpush1.msra.mxu0 0.0
  %1271 = vmatprep.subr.mxu0 0.0
  %1272 = vmatpush1.msra.mxu0 0.0
  %1273 = vmatprep.subr.mxu0 0.0
  %1274 = vmatpush1.msra.mxu0 0.0
  %1275 = vmatprep.subr.mxu0 0.0
  %1276 = vmatpush1.msra.mxu0 0.0
  %1277 = vmatprep.subr.mxu0 0.0
  %1278 = vmatpush1.msra.mxu0 0.0
  %1279 = vmatprep.subr.mxu0 0.0
  %1280 = vmatpush1.msra.mxu0 0.0
  %1281 = vmatprep.subr.mxu0 0.0
  %1282 = vmatpush1.msra.mxu0 0.0
  %1283 = vmatprep.subr.mxu0 0.0
  %1284 = vmatpush1.msra.mxu0 0.0
  %1285 = vmatprep.subr.mxu0 0.0
  %1286 = vmatpush1.msra.mxu0 0.0
  %1287 = vmatprep.subr.mxu0 0.0
  %1288 = vmatpush1.msra.mxu0 0.0
  %1289 = vmatprep.subr.mxu0 0.0
  %1290 = vmatpush1.msra.mxu0 0.0
  %1291 = vmatprep.subr.mxu0 0.0
  %1292 = vmatpush1.msra.mxu0 0.0
  %1293 = vmatprep.subr.mxu0 0.0
  %1294 = vmatpush1.msra.mxu0 0.0
  %1295 = vmatprep.subr.mxu0 0.0
  %1296 = vmatpush1.msra.mxu0 0.0
  %1297 = vmatprep.subr.mxu0 0.0
  %1298 = vmatpush1.msra.mxu0 0.0
  %1299 = vmatprep.subr.mxu0 0.0
  %1300 = vmatpush1.msra.mxu0 0.0
  %1301 = vmatprep.subr.mxu0 0.0
  %1302 = vmatpush1.msra.mxu0 0.0
  %1303 = vmatprep.subr.mxu0 0.0
  %1304 = vmatpush1.msra.mxu0 0.0
  %1305 = vmatprep.subr.mxu0 0.0
  %1306 = vmatpush1.msra.mxu0 0.0
  %1307 = vmatprep.subr.mxu0 0.0
  %1308 = vmatpush1.msra.mxu0 0.0
  %1309 = vmatprep.subr.mxu0 0.0
  %1310 = vmatpush1.msra.mxu0 0.0
  %1311 = vmatprep.subr.mxu0 0.0
  %1312 = vmatpush1.msra.mxu0 0.0
  %1313 = vmatprep.subr.mxu0 0.0
  %1314 = vmatpush1.msra.mxu0 0.0
  %1315 = vmatprep.subr.mxu0 0.0
  %1316 = vmatpush1.msra.mxu0 0.0
  %1317 = vmatprep.subr.mxu0 0.0
  %1318 = vmatpush1.msra.mxu0 0.0
  %1319 = vmatprep.subr.mxu0 0.0
  %1320 = vmatpush1.msra.mxu0 0.0
  %1321 = vmatprep.subr.mxu0 0.0
  %1322 = vmatpush1.msra.mxu0 0.0
  %1323 = vmatprep.subr.mxu0 0.0
  %1324 = vmatpush1.msra.mxu0 0.0
  %1325 = vmatprep.subr.mxu0 0.0
  %1326 = vmatpush1.msra.mxu0 0.0
  %1327 = vmatprep.subr.mxu0 0.0
  %1328 = vmatpush1.msra.mxu0 0.0
  %1329 = vmatprep.mubr.f32.mxu0 0.0
  %1330 = vmatmul.mubr.f32.gmra.mrb[0].mxu0 %v1263
  %v1331 = vpop.f32.mrb[0].mxu0
  %v1332 = vadd.f32 0.0, %v1331
  %v1333 = vpop.f32.mrb[0].mxu0
  %1334 = vdwg.mxu0
  %1337 = vrot.lane.b32.xlu0 %v1259, 8
  %v1338 = vpop.permute.xlu0 %1337
  %1339 = vrot.lane.b32.xlu0 %v1332, 8
  %v1340 = vpop.permute.xlu0 %1339
  %vm1343 = vcmask 130112
  %1344 = vst.msk [vmem:[#allocation2] sm:$0xff] %vm1343, %v1338
  %1345 = vst.msk [vmem:[#allocation2 + $0x8] sm:$0xff] %vm1343, %v1340
  %s1346 = scalar_lea.vmem %s3, 64
  %v1347 = vld [vmem:[%s1346] sm:$0xff]
  %v1348 = vld [vmem:[%s1346 + $0x8] sm:$0xff]
  %v1349 = vld [vmem:[%s1346 + $0x10] sm:$0xff]
  %v1350 = vld [vmem:[%s1346 + $0x18] sm:$0xff]
  %s1351 = scalar_lea.vmem %s4, 2
  %v1352 = vld [vmem:[%s1351] sm:$0x1]
  %v1354 = vlaneseq
  %v1355 = vshrl.u32 %v1354, 7
  %v1356 = vsub.s32 0, %v1355
  %v1357 = vrot.slane %v1352, %v1356
  %1359 = vmatprep.subr.mxu0 0.0
  %1360 = vmatpush1.msra.mxu0 %v1347
  %1361 = vmatprep.subr.mxu0 0.0
  %1362 = vmatpush1.msra.mxu0 %v1348
  %1363 = vmatprep.subr.mxu0 0.0
  %1364 = vmatpush1.msra.mxu0 %v1349
  %1365 = vmatprep.subr.mxu0 0.0
  %1366 = vmatpush1.msra.mxu0 %v1350
  %1367 = vmatprep.subr.mxu0 0.0
  %1368 = vmatpush1.msra.mxu0 0.0
  %1369 = vmatprep.subr.mxu0 0.0
  %1370 = vmatpush1.msra.mxu0 0.0
  %1371 = vmatprep.subr.mxu0 0.0
  %1372 = vmatpush1.msra.mxu0 0.0
  %1373 = vmatprep.subr.mxu0 0.0
  %1374 = vmatpush1.msra.mxu0 0.0
  %1375 = vmatprep.subr.mxu0 0.0
  %1376 = vmatpush1.msra.mxu0 0.0
  %1377 = vmatprep.subr.mxu0 0.0
  %1378 = vmatpush1.msra.mxu0 0.0
  %1379 = vmatprep.subr.mxu0 0.0
  %1380 = vmatpush1.msra.mxu0 0.0
  %1381 = vmatprep.subr.mxu0 0.0
  %1382 = vmatpush1.msra.mxu0 0.0
  %1383 = vmatprep.subr.mxu0 0.0
  %1384 = vmatpush1.msra.mxu0 0.0
  %1385 = vmatprep.subr.mxu0 0.0
  %1386 = vmatpush1.msra.mxu0 0.0
  %1387 = vmatprep.subr.mxu0 0.0
  %1388 = vmatpush1.msra.mxu0 0.0
  %1389 = vmatprep.subr.mxu0 0.0
  %1390 = vmatpush1.msra.mxu0 0.0
  %1391 = vmatprep.subr.mxu0 0.0
  %1392 = vmatpush1.msra.mxu0 0.0
  %1393 = vmatprep.subr.mxu0 0.0
  %1394 = vmatpush1.msra.mxu0 0.0
  %1395 = vmatprep.subr.mxu0 0.0
  %1396 = vmatpush1.msra.mxu0 0.0
  %1397 = vmatprep.subr.mxu0 0.0
  %1398 = vmatpush1.msra.mxu0 0.0
  %1399 = vmatprep.subr.mxu0 0.0
  %1400 = vmatpush1.msra.mxu0 0.0
  %1401 = vmatprep.subr.mxu0 0.0
  %1402 = vmatpush1.msra.mxu0 0.0
  %1403 = vmatprep.subr.mxu0 0.0
  %1404 = vmatpush1.msra.mxu0 0.0
  %1405 = vmatprep.subr.mxu0 0.0
  %1406 = vmatpush1.msra.mxu0 0.0
  %1407 = vmatprep.subr.mxu0 0.0
  %1408 = vmatpush1.msra.mxu0 0.0
  %1409 = vmatprep.subr.mxu0 0.0
  %1410 = vmatpush1.msra.mxu0 0.0
  %1411 = vmatprep.subr.mxu0 0.0
  %1412 = vmatpush1.msra.mxu0 0.0
  %1413 = vmatprep.subr.mxu0 0.0
  %1414 = vmatpush1.msra.mxu0 0.0
  %1415 = vmatprep.subr.mxu0 0.0
  %1416 = vmatpush1.msra.mxu0 0.0
  %1417 = vmatprep.subr.mxu0 0.0
  %1418 = vmatpush1.msra.mxu0 0.0
  %1419 = vmatprep.subr.mxu0 0.0
  %1420 = vmatpush1.msra.mxu0 0.0
  %1421 = vmatprep.subr.mxu0 0.0
  %1422 = vmatpush1.msra.mxu0 0.0
  %1423 = vmatprep.mubr.f32.mxu0 0.0
  %1424 = vmatmul.mubr.f32.gmra.mrb[0].mxu0 %v168
  %v1425 = vpop.f32.mrb[0].mxu0
  %v1426 = vadd.f32 %v1357, %v1425
  %v1427 = vpop.f32.mrb[0].mxu0
  %1428 = vmatprep.mubr.f32.mxu0 0.0
  %1429 = vmatmul.mubr.f32.gmra.mrb[0].mxu0 %v171
  %v1430 = vpop.f32.mrb[0].mxu0
  %v1431 = vadd.f32 %v1357, %v1430
  %v1432 = vpop.f32.mrb[0].mxu0
  %1433 = vdwg.mxu0
  %s1434 = scalar_lea.vmem %s3, 192
  %v1435 = vld [vmem:[%s1434] sm:$0xff]
  %v1436 = vld [vmem:[%s1434 + $0x8] sm:$0xff]
  %v1437 = vld [vmem:[%s1434 + $0x10] sm:$0xff]
  %v1438 = vld [vmem:[%s1434 + $0x18] sm:$0xff]
  %s1439 = scalar_lea.vmem %s4, 6
  %v1440 = vld [vmem:[%s1439] sm:$0x1]
  %v1442 = vlaneseq
  %v1443 = vshrl.u32 %v1442, 7
  %v1444 = vsub.s32 0, %v1443
  %v1445 = vrot.slane %v1440, %v1444
  %1447 = vmatprep.subr.mxu0 0.0
  %1448 = vmatpush1.msra.mxu0 %v1435
  %1449 = vmatprep.subr.mxu0 0.0
  %1450 = vmatpush1.msra.mxu0 %v1436
  %1451 = vmatprep.subr.mxu0 0.0
  %1452 = vmatpush1.msra.mxu0 %v1437
  %1453 = vmatprep.subr.mxu0 0.0
  %1454 = vmatpush1.msra.mxu0 %v1438
  %1455 = vmatprep.subr.mxu0 0.0
  %1456 = vmatpush1.msra.mxu0 0.0
  %1457 = vmatprep.subr.mxu0 0.0
  %1458 = vmatpush1.msra.mxu0 0.0
  %1459 = vmatprep.subr.mxu0 0.0
  %1460 = vmatpush1.msra.mxu0 0.0
  %1461 = vmatprep.subr.mxu0 0.0
  %1462 = vmatpush1.msra.mxu0 0.0
  %1463 = vmatprep.subr.mxu0 0.0
  %1464 = vmatpush1.msra.mxu0 0.0
  %1465 = vmatprep.subr.mxu0 0.0
  %1466 = vmatpush1.msra.mxu0 0.0
  %1467 = vmatprep.subr.mxu0 0.0
  %1468 = vmatpush1.msra.mxu0 0.0
  %1469 = vmatprep.subr.mxu0 0.0
  %1470 = vmatpush1.msra.mxu0 0.0
  %1471 = vmatprep.subr.mxu0 0.0
  %1472 = vmatpush1.msra.mxu0 0.0
  %1473 = vmatprep.subr.mxu0 0.0
  %1474 = vmatpush1.msra.mxu0 0.0
  %1475 = vmatprep.subr.mxu0 0.0
  %1476 = vmatpush1.msra.mxu0 0.0
  %1477 = vmatprep.subr.mxu0 0.0
  %1478 = vmatpush1.msra.mxu0 0.0
  %1479 = vmatprep.subr.mxu0 0.0
  %1480 = vmatpush1.msra.mxu0 0.0
  %1481 = vmatprep.subr.mxu0 0.0
  %1482 = vmatpush1.msra.mxu0 0.0
  %1483 = vmatprep.subr.mxu0 0.0
  %1484 = vmatpush1.msra.mxu0 0.0
  %1485 = vmatprep.subr.mxu0 0.0
  %1486 = vmatpush1.msra.mxu0 0.0
  %1487 = vmatprep.subr.mxu0 0.0
  %1488 = vmatpush1.msra.mxu0 0.0
  %1489 = vmatprep.subr.mxu0 0.0
  %1490 = vmatpush1.msra.mxu0 0.0
  %1491 = vmatprep.subr.mxu0 0.0
  %1492 = vmatpush1.msra.mxu0 0.0
  %1493 = vmatprep.subr.mxu0 0.0
  %1494 = vmatpush1.msra.mxu0 0.0
  %1495 = vmatprep.subr.mxu0 0.0
  %1496 = vmatpush1.msra.mxu0 0.0
  %1497 = vmatprep.subr.mxu0 0.0
  %1498 = vmatpush1.msra.mxu0 0.0
  %1499 = vmatprep.subr.mxu0 0.0
  %1500 = vmatpush1.msra.mxu0 0.0
  %1501 = vmatprep.subr.mxu0 0.0
  %1502 = vmatpush1.msra.mxu0 0.0
  %1503 = vmatprep.subr.mxu0 0.0
  %1504 = vmatpush1.msra.mxu0 0.0
  %1505 = vmatprep.subr.mxu0 0.0
  %1506 = vmatpush1.msra.mxu0 0.0
  %1507 = vmatprep.subr.mxu0 0.0
  %1508 = vmatpush1.msra.mxu0 0.0
  %1509 = vmatprep.subr.mxu0 0.0
  %1510 = vmatpush1.msra.mxu0 0.0
  %1511 = vmatprep.mubr.f32.mxu0 0.0
  %1512 = vmatmul.mubr.f32.gmra.mrb[0].mxu0 %v168
  %v1513 = vpop.f32.mrb[0].mxu0
  %v1514 = vadd.f32 %v1445, %v1513
  %v1515 = vpop.f32.mrb[0].mxu0
  %1516 = vmatprep.mubr.f32.mxu0 0.0
  %1517 = vmatmul.mubr.f32.gmra.mrb[0].mxu0 %v171
  %v1518 = vpop.f32.mrb[0].mxu0
  %v1519 = vadd.f32 %v1445, %v1518
  %v1520 = vpop.f32.mrb[0].mxu0
  %1521 = vdwg.mxu0
  %s1522 = scalar_lea.vmem %s3, 320
  %v1523 = vld [vmem:[%s1522] sm:$0xff]
  %v1524 = vld [vmem:[%s1522 + $0x8] sm:$0xff]
  %v1525 = vld [vmem:[%s1522 + $0x10] sm:$0xff]
  %v1526 = vld [vmem:[%s1522 + $0x18] sm:$0xff]
  %s1527 = scalar_lea.vmem %s4, 10
  %v1528 = vld [vmem:[%s1527] sm:$0x1]
  %v1530 = vlaneseq
  %v1531 = vshrl.u32 %v1530, 7
  %v1532 = vsub.s32 0, %v1531
  %v1533 = vrot.slane %v1528, %v1532
  %1535 = vmatprep.subr.mxu0 0.0
  %1536 = vmatpush1.msra.mxu0 %v1523
  %1537 = vmatprep.subr.mxu0 0.0
  %1538 = vmatpush1.msra.mxu0 %v1524
  %1539 = vmatprep.subr.mxu0 0.0
  %1540 = vmatpush1.msra.mxu0 %v1525
  %1541 = vmatprep.subr.mxu0 0.0
  %1542 = vmatpush1.msra.mxu0 %v1526
  %1543 = vmatprep.subr.mxu0 0.0
  %1544 = vmatpush1.msra.mxu0 0.0
  %1545 = vmatprep.subr.mxu0 0.0
  %1546 = vmatpush1.msra.mxu0 0.0
  %1547 = vmatprep.subr.mxu0 0.0
  %1548 = vmatpush1.msra.mxu0 0.0
  %1549 = vmatprep.subr.mxu0 0.0
  %1550 = vmatpush1.msra.mxu0 0.0
  %1551 = vmatprep.subr.mxu0 0.0
  %1552 = vmatpush1.msra.mxu0 0.0
  %1553 = vmatprep.subr.mxu0 0.0
  %1554 = vmatpush1.msra.mxu0 0.0
  %1555 = vmatprep.subr.mxu0 0.0
  %1556 = vmatpush1.msra.mxu0 0.0
  %1557 = vmatprep.subr.mxu0 0.0
  %1558 = vmatpush1.msra.mxu0 0.0
  %1559 = vmatprep.subr.mxu0 0.0
  %1560 = vmatpush1.msra.mxu0 0.0
  %1561 = vmatprep.subr.mxu0 0.0
  %1562 = vmatpush1.msra.mxu0 0.0
  %1563 = vmatprep.subr.mxu0 0.0
  %1564 = vmatpush1.msra.mxu0 0.0
  %1565 = vmatprep.subr.mxu0 0.0
  %1566 = vmatpush1.msra.mxu0 0.0
  %1567 = vmatprep.subr.mxu0 0.0
  %1568 = vmatpush1.msra.mxu0 0.0
  %1569 = vmatprep.subr.mxu0 0.0
  %1570 = vmatpush1.msra.mxu0 0.0
  %1571 = vmatprep.subr.mxu0 0.0
  %1572 = vmatpush1.msra.mxu0 0.0
  %1573 = vmatprep.subr.mxu0 0.0
  %1574 = vmatpush1.msra.mxu0 0.0
  %1575 = vmatprep.subr.mxu0 0.0
  %1576 = vmatpush1.msra.mxu0 0.0
  %1577 = vmatprep.subr.mxu0 0.0
  %1578 = vmatpush1.msra.mxu0 0.0
  %1579 = vmatprep.subr.mxu0 0.0
  %1580 = vmatpush1.msra.mxu0 0.0
  %1581 = vmatprep.subr.mxu0 0.0
  %1582 = vmatpush1.msra.mxu0 0.0
  %1583 = vmatprep.subr.mxu0 0.0
  %1584 = vmatpush1.msra.mxu0 0.0
  %1585 = vmatprep.subr.mxu0 0.0
  %1586 = vmatpush1.msra.mxu0 0.0
  %1587 = vmatprep.subr.mxu0 0.0
  %1588 = vmatpush1.msra.mxu0 0.0
  %1589 = vmatprep.subr.mxu0 0.0
  %1590 = vmatpush1.msra.mxu0 0.0
  %1591 = vmatprep.subr.mxu0 0.0
  %1592 = vmatpush1.msra.mxu0 0.0
  %1593 = vmatprep.subr.mxu0 0.0
  %1594 = vmatpush1.msra.mxu0 0.0
  %1595 = vmatprep.subr.mxu0 0.0
  %1596 = vmatpush1.msra.mxu0 0.0
  %1597 = vmatprep.subr.mxu0 0.0
  %1598 = vmatpush1.msra.mxu0 0.0
  %1599 = vmatprep.mubr.f32.mxu0 0.0
  %1600 = vmatmul.mubr.f32.gmra.mrb[0].mxu0 %v168
  %v1601 = vpop.f32.mrb[0].mxu0
  %v1602 = vadd.f32 %v1533, %v1601
  %v1603 = vpop.f32.mrb[0].mxu0
  %1604 = vmatprep.mubr.f32.mxu0 0.0
  %1605 = vmatmul.mubr.f32.gmra.mrb[0].mxu0 %v171
  %v1606 = vpop.f32.mrb[0].mxu0
  %v1607 = vadd.f32 %v1533, %v1606
  %v1608 = vpop.f32.mrb[0].mxu0
  %1609 = vdwg.mxu0
  %v1611 = vsel %vm424, %v1426, 0
  %v1614 = vsel %vm424, %v1514, 0
  %1616 = vmatprep.subr.mxu0 0.0
  %1617 = vmatpush1.xpose.msra.mxu0 %v1614
  %1618 = vmatprep.subr.mxu0 0.0
  %1619 = vmatpush1.xpose.msra.mxu0 0.0
  %1620 = vmatprep.subr.mxu0 0.0
  %1621 = vmatpush1.xpose.msra.mxu0 0.0
  %1622 = vmatprep.subr.mxu0 0.0
  %1623 = vmatpush1.xpose.msra.mxu0 0.0
  %1624 = vmatprep.subr.mxu0 0.0
  %1625 = vmatpush1.xpose.msra.mxu0 0.0
  %1626 = vmatprep.subr.mxu0 0.0
  %1627 = vmatpush1.xpose.msra.mxu0 0.0
  %1628 = vmatprep.subr.mxu0 0.0
  %1629 = vmatpush1.xpose.msra.mxu0 0.0
  %1630 = vmatprep.subr.mxu0 0.0
  %1631 = vmatpush1.xpose.msra.mxu0 0.0
  %1632 = vmatprep.subr.mxu0 0.0
  %1633 = vmatpush1.xpose.msra.mxu0 0.0
  %1634 = vmatprep.subr.mxu0 0.0
  %1635 = vmatpush1.xpose.msra.mxu0 0.0
  %1636 = vmatprep.subr.mxu0 0.0
  %1637 = vmatpush1.xpose.msra.mxu0 0.0
  %1638 = vmatprep.subr.mxu0 0.0
  %1639 = vmatpush1.xpose.msra.mxu0 0.0
  %1640 = vmatprep.subr.mxu0 0.0
  %1641 = vmatpush1.xpose.msra.mxu0 0.0
  %1642 = vmatprep.subr.mxu0 0.0
  %1643 = vmatpush1.xpose.msra.mxu0 0.0
  %1644 = vmatprep.subr.mxu0 0.0
  %1645 = vmatpush1.xpose.msra.mxu0 0.0
  %1646 = vmatprep.subr.mxu0 0.0
  %1647 = vmatpush1.xpose.msra.mxu0 0.0
  %1648 = vmatprep.subr.mxu0 0.0
  %1649 = vmatpush1.xpose.msra.mxu0 0.0
  %1650 = vmatprep.subr.mxu0 0.0
  %1651 = vmatpush1.xpose.msra.mxu0 0.0
  %1652 = vmatprep.subr.mxu0 0.0
  %1653 = vmatpush1.xpose.msra.mxu0 0.0
  %1654 = vmatprep.subr.mxu0 0.0
  %1655 = vmatpush1.xpose.msra.mxu0 0.0
  %1656 = vmatprep.subr.mxu0 0.0
  %1657 = vmatpush1.xpose.msra.mxu0 0.0
  %1658 = vmatprep.subr.mxu0 0.0
  %1659 = vmatpush1.xpose.msra.mxu0 0.0
  %1660 = vmatprep.subr.mxu0 0.0
  %1661 = vmatpush1.xpose.msra.mxu0 0.0
  %1662 = vmatprep.subr.mxu0 0.0
  %1663 = vmatpush1.xpose.msra.mxu0 0.0
  %1664 = vmatprep.subr.mxu0 0.0
  %1665 = vmatpush1.xpose.msra.mxu0 0.0
  %1666 = vmatprep.subr.mxu0 0.0
  %1667 = vmatpush1.xpose.msra.mxu0 0.0
  %1668 = vmatprep.subr.mxu0 0.0
  %1669 = vmatpush1.xpose.msra.mxu0 0.0
  %1670 = vmatprep.subr.mxu0 0.0
  %1671 = vmatpush1.xpose.msra.mxu0 0.0
  %1672 = vmatprep.subr.mxu0 0.0
  %1673 = vmatpush1.xpose.msra.mxu0 0.0
  %1674 = vmatprep.subr.mxu0 0.0
  %1675 = vmatpush1.xpose.msra.mxu0 0.0
  %1676 = vmatprep.subr.mxu0 0.0
  %1677 = vmatpush1.xpose.msra.mxu0 0.0
  %1678 = vmatprep.subr.mxu0 0.0
  %1679 = vmatpush1.xpose.msra.mxu0 0.0
  %1680 = vmatprep.mubr.f32.mxu0 0.0
  %1681 = vmatmul.mubr.f32.gmra.mrb[0].mxu0 %v1611
  %v1682 = vpop.f32.mrb[0].mxu0
  %v1683 = vadd.f32 0.0, %v1682
  %v1684 = vpop.f32.mrb[0].mxu0
  %1685 = vdwg.mxu0
  %v1687 = vsel %vm424, %v1431, 0
  %v1690 = vsel %vm424, %v1519, 0
  %1692 = vmatprep.subr.mxu0 0.0
  %1693 = vmatpush1.xpose.msra.mxu0 %v1690
  %1694 = vmatprep.subr.mxu0 0.0
  %1695 = vmatpush1.xpose.msra.mxu0 0.0
  %1696 = vmatprep.subr.mxu0 0.0
  %1697 = vmatpush1.xpose.msra.mxu0 0.0
  %1698 = vmatprep.subr.mxu0 0.0
  %1699 = vmatpush1.xpose.msra.mxu0 0.0
  %1700 = vmatprep.subr.mxu0 0.0
  %1701 = vmatpush1.xpose.msra.mxu0 0.0
  %1702 = vmatprep.subr.mxu0 0.0
  %1703 = vmatpush1.xpose.msra.mxu0 0.0
  %1704 = vmatprep.subr.mxu0 0.0
  %1705 = vmatpush1.xpose.msra.mxu0 0.0
  %1706 = vmatprep.subr.mxu0 0.0
  %1707 = vmatpush1.xpose.msra.mxu0 0.0
  %1708 = vmatprep.subr.mxu0 0.0
  %1709 = vmatpush1.xpose.msra.mxu0 0.0
  %1710 = vmatprep.subr.mxu0 0.0
  %1711 = vmatpush1.xpose.msra.mxu0 0.0
  %1712 = vmatprep.subr.mxu0 0.0
  %1713 = vmatpush1.xpose.msra.mxu0 0.0
  %1714 = vmatprep.subr.mxu0 0.0
  %1715 = vmatpush1.xpose.msra.mxu0 0.0
  %1716 = vmatprep.subr.mxu0 0.0
  %1717 = vmatpush1.xpose.msra.mxu0 0.0
  %1718 = vmatprep.subr.mxu0 0.0
  %1719 = vmatpush1.xpose.msra.mxu0 0.0
  %1720 = vmatprep.subr.mxu0 0.0
  %1721 = vmatpush1.xpose.msra.mxu0 0.0
  %1722 = vmatprep.subr.mxu0 0.0
  %1723 = vmatpush1.xpose.msra.mxu0 0.0
  %1724 = vmatprep.subr.mxu0 0.0
  %1725 = vmatpush1.xpose.msra.mxu0 0.0
  %1726 = vmatprep.subr.mxu0 0.0
  %1727 = vmatpush1.xpose.msra.mxu0 0.0
  %1728 = vmatprep.subr.mxu0 0.0
  %1729 = vmatpush1.xpose.msra.mxu0 0.0
  %1730 = vmatprep.subr.mxu0 0.0
  %1731 = vmatpush1.xpose.msra.mxu0 0.0
  %1732 = vmatprep.subr.mxu0 0.0
  %1733 = vmatpush1.xpose.msra.mxu0 0.0
  %1734 = vmatprep.subr.mxu0 0.0
  %1735 = vmatpush1.xpose.msra.mxu0 0.0
  %1736 = vmatprep.subr.mxu0 0.0
  %1737 = vmatpush1.xpose.msra.mxu0 0.0
  %1738 = vmatprep.subr.mxu0 0.0
  %1739 = vmatpush1.xpose.msra.mxu0 0.0
  %1740 = vmatprep.subr.mxu0 0.0
  %1741 = vmatpush1.xpose.msra.mxu0 0.0
  %1742 = vmatprep.subr.mxu0 0.0
  %1743 = vmatpush1.xpose.msra.mxu0 0.0
  %1744 = vmatprep.subr.mxu0 0.0
  %1745 = vmatpush1.xpose.msra.mxu0 0.0
  %1746 = vmatprep.subr.mxu0 0.0
  %1747 = vmatpush1.xpose.msra.mxu0 0.0
  %1748 = vmatprep.subr.mxu0 0.0
  %1749 = vmatpush1.xpose.msra.mxu0 0.0
  %1750 = vmatprep.subr.mxu0 0.0
  %1751 = vmatpush1.xpose.msra.mxu0 0.0
  %1752 = vmatprep.subr.mxu0 0.0
  %1753 = vmatpush1.xpose.msra.mxu0 0.0
  %1754 = vmatprep.subr.mxu0 0.0
  %1755 = vmatpush1.xpose.msra.mxu0 0.0
  %1756 = vmatprep.mubr.f32.mxu0 0.0
  %1757 = vmatmul.mubr.f32.gmra.mrb[0].mxu0 %v1687
  %v1758 = vpop.f32.mrb[0].mxu0
  %v1759 = vadd.f32 0.0, %v1758
  %v1760 = vpop.f32.mrb[0].mxu0
  %1761 = vdwg.mxu0
  %v1762 = vmul.f32 %v1683, 0.35355338
  %v1763 = vmul.f32 %v1759, 0.35355338
  %v1764 = vsel %vm424, %v1762, -inf
  %1765 = vmax.xlane.f32.xlu0 %v1764
  %v1766 = vpop.xlane.xlu0 %1765
  %v1767 = vsel %vm424, %v1763, -inf
  %1768 = vmax.xlane.f32.xlu0 %v1767
  %v1769 = vpop.xlane.xlu0 %1768
  %v1770 = vsub.f32 %v1762, %v1766
  %v1771 = vsub.f32 %v1763, %v1769
  %v1772 = vmul.f32 %v1770, 1.442695
  %v1773 = vpow.pop %v1772
  %v1774 = vmul.f32 %v1771, 1.442695
  %v1775 = vpow.pop %v1774
  %v1776 = vsel %vm424, %v1773, 0.0
  %1777 = vadd.xlane.f32.xlu0 %v1776
  %v1778 = vpop.xlane.xlu0 %1777
  %v1779 = vsel %vm424, %v1775, 0.0
  %1780 = vadd.xlane.f32.xlu0 %v1779
  %v1781 = vpop.xlane.xlu0 %1780
  %v1782 = vrcp.pop %v1778
  %v1783 = vrcp.pop %v1781
  %v1784 = vmul.f32 %v1773, %v1782
  %v1785 = vmul.f32 %v1775, %v1783
  %v1787 = vsel %vm424, %v1784, 0
  %1789 = vmatprep.subr.mxu0 0.0
  %1790 = vmatpush1.msra.mxu0 %v1602
  %1791 = vmatprep.subr.mxu0 0.0
  %1792 = vmatpush1.msra.mxu0 0.0
  %1793 = vmatprep.subr.mxu0 0.0
  %1794 = vmatpush1.msra.mxu0 0.0
  %1795 = vmatprep.subr.mxu0 0.0
  %1796 = vmatpush1.msra.mxu0 0.0
  %1797 = vmatprep.subr.mxu0 0.0
  %1798 = vmatpush1.msra.mxu0 0.0
  %1799 = vmatprep.subr.mxu0 0.0
  %1800 = vmatpush1.msra.mxu0 0.0
  %1801 = vmatprep.subr.mxu0 0.0
  %1802 = vmatpush1.msra.mxu0 0.0
  %1803 = vmatprep.subr.mxu0 0.0
  %1804 = vmatpush1.msra.mxu0 0.0
  %1805 = vmatprep.subr.mxu0 0.0
  %1806 = vmatpush1.msra.mxu0 0.0
  %1807 = vmatprep.subr.mxu0 0.0
  %1808 = vmatpush1.msra.mxu0 0.0
  %1809 = vmatprep.subr.mxu0 0.0
  %1810 = vmatpush1.msra.mxu0 0.0
  %1811 = vmatprep.subr.mxu0 0.0
  %1812 = vmatpush1.msra.mxu0 0.0
  %1813 = vmatprep.subr.mxu0 0.0
  %1814 = vmatpush1.msra.mxu0 0.0
  %1815 = vmatprep.subr.mxu0 0.0
  %1816 = vmatpush1.msra.mxu0 0.0
  %1817 = vmatprep.subr.mxu0 0.0
  %1818 = vmatpush1.msra.mxu0 0.0
  %1819 = vmatprep.subr.mxu0 0.0
  %1820 = vmatpush1.msra.mxu0 0.0
  %1821 = vmatprep.subr.mxu0 0.0
  %1822 = vmatpush1.msra.mxu0 0.0
  %1823 = vmatprep.subr.mxu0 0.0
  %1824 = vmatpush1.msra.mxu0 0.0
  %1825 = vmatprep.subr.mxu0 0.0
  %1826 = vmatpush1.msra.mxu0 0.0
  %1827 = vmatprep.subr.mxu0 0.0
  %1828 = vmatpush1.msra.mxu0 0.0
  %1829 = vmatprep.subr.mxu0 0.0
  %1830 = vmatpush1.msra.mxu0 0.0
  %1831 = vmatprep.subr.mxu0 0.0
  %1832 = vmatpush1.msra.mxu0 0.0
  %1833 = vmatprep.subr.mxu0 0.0
  %1834 = vmatpush1.msra.mxu0 0.0
  %1835 = vmatprep.subr.mxu0 0.0
  %1836 = vmatpush1.msra.mxu0 0.0
  %1837 = vmatprep.subr.mxu0 0.0
  %1838 = vmatpush1.msra.mxu0 0.0
  %1839 = vmatprep.subr.mxu0 0.0
  %1840 = vmatpush1.msra.mxu0 0.0
  %1841 = vmatprep.subr.mxu0 0.0
  %1842 = vmatpush1.msra.mxu0 0.0
  %1843 = vmatprep.subr.mxu0 0.0
  %1844 = vmatpush1.msra.mxu0 0.0
  %1845 = vmatprep.subr.mxu0 0.0
  %1846 = vmatpush1.msra.mxu0 0.0
  %1847 = vmatprep.subr.mxu0 0.0
  %1848 = vmatpush1.msra.mxu0 0.0
  %1849 = vmatprep.subr.mxu0 0.0
  %1850 = vmatpush1.msra.mxu0 0.0
  %1851 = vmatprep.subr.mxu0 0.0
  %1852 = vmatpush1.msra.mxu0 0.0
  %1853 = vmatprep.mubr.f32.mxu0 0.0
  %1854 = vmatmul.mubr.f32.gmra.mrb[0].mxu0 %v1787
  %v1855 = vpop.f32.mrb[0].mxu0
  %v1856 = vadd.f32 0.0, %v1855
  %v1857 = vpop.f32.mrb[0].mxu0
  %1858 = vdwg.mxu0
  %v1860 = vsel %vm424, %v1785, 0
  %1862 = vmatprep.subr.mxu0 0.0
  %1863 = vmatpush1.msra.mxu0 %v1607
  %1864 = vmatprep.subr.mxu0 0.0
  %1865 = vmatpush1.msra.mxu0 0.0
  %1866 = vmatprep.subr.mxu0 0.0
  %1867 = vmatpush1.msra.mxu0 0.0
  %1868 = vmatprep.subr.mxu0 0.0
  %1869 = vmatpush1.msra.mxu0 0.0
  %1870 = vmatprep.subr.mxu0 0.0
  %1871 = vmatpush1.msra.mxu0 0.0
  %1872 = vmatprep.subr.mxu0 0.0
  %1873 = vmatpush1.msra.mxu0 0.0
  %1874 = vmatprep.subr.mxu0 0.0
  %1875 = vmatpush1.msra.mxu0 0.0
  %1876 = vmatprep.subr.mxu0 0.0
  %1877 = vmatpush1.msra.mxu0 0.0
  %1878 = vmatprep.subr.mxu0 0.0
  %1879 = vmatpush1.msra.mxu0 0.0
  %1880 = vmatprep.subr.mxu0 0.0
  %1881 = vmatpush1.msra.mxu0 0.0
  %1882 = vmatprep.subr.mxu0 0.0
  %1883 = vmatpush1.msra.mxu0 0.0
  %1884 = vmatprep.subr.mxu0 0.0
  %1885 = vmatpush1.msra.mxu0 0.0
  %1886 = vmatprep.subr.mxu0 0.0
  %1887 = vmatpush1.msra.mxu0 0.0
  %1888 = vmatprep.subr.mxu0 0.0
  %1889 = vmatpush1.msra.mxu0 0.0
  %1890 = vmatprep.subr.mxu0 0.0
  %1891 = vmatpush1.msra.mxu0 0.0
  %1892 = vmatprep.subr.mxu0 0.0
  %1893 = vmatpush1.msra.mxu0 0.0
  %1894 = vmatprep.subr.mxu0 0.0
  %1895 = vmatpush1.msra.mxu0 0.0
  %1896 = vmatprep.subr.mxu0 0.0
  %1897 = vmatpush1.msra.mxu0 0.0
  %1898 = vmatprep.subr.mxu0 0.0
  %1899 = vmatpush1.msra.mxu0 0.0
  %1900 = vmatprep.subr.mxu0 0.0
  %1901 = vmatpush1.msra.mxu0 0.0
  %1902 = vmatprep.subr.mxu0 0.0
  %1903 = vmatpush1.msra.mxu0 0.0
  %1904 = vmatprep.subr.mxu0 0.0
  %1905 = vmatpush1.msra.mxu0 0.0
  %1906 = vmatprep.subr.mxu0 0.0
  %1907 = vmatpush1.msra.mxu0 0.0
  %1908 = vmatprep.subr.mxu0 0.0
  %1909 = vmatpush1.msra.mxu0 0.0
  %1910 = vmatprep.subr.mxu0 0.0
  %1911 = vmatpush1.msra.mxu0 0.0
  %1912 = vmatprep.subr.mxu0 0.0
  %1913 = vmatpush1.msra.mxu0 0.0
  %1914 = vmatprep.subr.mxu0 0.0
  %1915 = vmatpush1.msra.mxu0 0.0
  %1916 = vmatprep.subr.mxu0 0.0
  %1917 = vmatpush1.msra.mxu0 0.0
  %1918 = vmatprep.subr.mxu0 0.0
  %1919 = vmatpush1.msra.mxu0 0.0
  %1920 = vmatprep.subr.mxu0 0.0
  %1921 = vmatpush1.msra.mxu0 0.0
  %1922 = vmatprep.subr.mxu0 0.0
  %1923 = vmatpush1.msra.mxu0 0.0
  %1924 = vmatprep.subr.mxu0 0.0
  %1925 = vmatpush1.msra.mxu0 0.0
  %1926 = vmatprep.mubr.f32.mxu0 0.0
  %1927 = vmatmul.mubr.f32.gmra.mrb[0].mxu0 %v1860
  %v1928 = vpop.f32.mrb[0].mxu0
  %v1929 = vadd.f32 0.0, %v1928
  %v1930 = vpop.f32.mrb[0].mxu0
  %1931 = vdwg.mxu0
  %1934 = vrot.lane.b32.xlu0 %v1856, 16
  %v1935 = vpop.permute.xlu0 %1934
  %1936 = vrot.lane.b32.xlu0 %v1929, 16
  %v1937 = vpop.permute.xlu0 %1936
  %vm1940 = vcmask 195712
  %1941 = vst.msk [vmem:[#allocation2] sm:$0xff] %vm1940, %v1935
  %1942 = vst.msk [vmem:[#allocation2 + $0x8] sm:$0xff] %vm1940, %v1937
  %s1943 = scalar_lea.vmem %s3, 96
  %v1944 = vld [vmem:[%s1943] sm:$0xff]
  %v1945 = vld [vmem:[%s1943 + $0x8] sm:$0xff]
  %v1946 = vld [vmem:[%s1943 + $0x10] sm:$0xff]
  %v1947 = vld [vmem:[%s1943 + $0x18] sm:$0xff]
  %s1948 = scalar_lea.vmem %s4, 3
  %v1949 = vld [vmem:[%s1948] sm:$0x1]
  %v1951 = vlaneseq
  %v1952 = vshrl.u32 %v1951, 7
  %v1953 = vsub.s32 0, %v1952
  %v1954 = vrot.slane %v1949, %v1953
  %1956 = vmatprep.subr.mxu0 0.0
  %1957 = vmatpush1.msra.mxu0 %v1944
  %1958 = vmatprep.subr.mxu0 0.0
  %1959 = vmatpush1.msra.mxu0 %v1945
  %1960 = vmatprep.subr.mxu0 0.0
  %1961 = vmatpush1.msra.mxu0 %v1946
  %1962 = vmatprep.subr.mxu0 0.0
  %1963 = vmatpush1.msra.mxu0 %v1947
  %1964 = vmatprep.subr.mxu0 0.0
  %1965 = vmatpush1.msra.mxu0 0.0
  %1966 = vmatprep.subr.mxu0 0.0
  %1967 = vmatpush1.msra.mxu0 0.0
  %1968 = vmatprep.subr.mxu0 0.0
  %1969 = vmatpush1.msra.mxu0 0.0
  %1970 = vmatprep.subr.mxu0 0.0
  %1971 = vmatpush1.msra.mxu0 0.0
  %1972 = vmatprep.subr.mxu0 0.0
  %1973 = vmatpush1.msra.mxu0 0.0
  %1974 = vmatprep.subr.mxu0 0.0
  %1975 = vmatpush1.msra.mxu0 0.0
  %1976 = vmatprep.subr.mxu0 0.0
  %1977 = vmatpush1.msra.mxu0 0.0
  %1978 = vmatprep.subr.mxu0 0.0
  %1979 = vmatpush1.msra.mxu0 0.0
  %1980 = vmatprep.subr.mxu0 0.0
  %1981 = vmatpush1.msra.mxu0 0.0
  %1982 = vmatprep.subr.mxu0 0.0
  %1983 = vmatpush1.msra.mxu0 0.0
  %1984 = vmatprep.subr.mxu0 0.0
  %1985 = vmatpush1.msra.mxu0 0.0
  %1986 = vmatprep.subr.mxu0 0.0
  %1987 = vmatpush1.msra.mxu0 0.0
  %1988 = vmatprep.subr.mxu0 0.0
  %1989 = vmatpush1.msra.mxu0 0.0
  %1990 = vmatprep.subr.mxu0 0.0
  %1991 = vmatpush1.msra.mxu0 0.0
  %1992 = vmatprep.subr.mxu0 0.0
  %1993 = vmatpush1.msra.mxu0 0.0
  %1994 = vmatprep.subr.mxu0 0.0
  %1995 = vmatpush1.msra.mxu0 0.0
  %1996 = vmatprep.subr.mxu0 0.0
  %1997 = vmatpush1.msra.mxu0 0.0
  %1998 = vmatprep.subr.mxu0 0.0
  %1999 = vmatpush1.msra.mxu0 0.0
  %2000 = vmatprep.subr.mxu0 0.0
  %2001 = vmatpush1.msra.mxu0 0.0
  %2002 = vmatprep.subr.mxu0 0.0
  %2003 = vmatpush1.msra.mxu0 0.0
  %2004 = vmatprep.subr.mxu0 0.0
  %2005 = vmatpush1.msra.mxu0 0.0
  %2006 = vmatprep.subr.mxu0 0.0
  %2007 = vmatpush1.msra.mxu0 0.0
  %2008 = vmatprep.subr.mxu0 0.0
  %2009 = vmatpush1.msra.mxu0 0.0
  %2010 = vmatprep.subr.mxu0 0.0
  %2011 = vmatpush1.msra.mxu0 0.0
  %2012 = vmatprep.subr.mxu0 0.0
  %2013 = vmatpush1.msra.mxu0 0.0
  %2014 = vmatprep.subr.mxu0 0.0
  %2015 = vmatpush1.msra.mxu0 0.0
  %2016 = vmatprep.subr.mxu0 0.0
  %2017 = vmatpush1.msra.mxu0 0.0
  %2018 = vmatprep.subr.mxu0 0.0
  %2019 = vmatpush1.msra.mxu0 0.0
  %2020 = vmatprep.mubr.f32.mxu0 0.0
  %2021 = vmatmul.mubr.f32.gmra.mrb[0].mxu0 %v168
  %v2022 = vpop.f32.mrb[0].mxu0
  %v2023 = vadd.f32 %v1954, %v2022
  %v2024 = vpop.f32.mrb[0].mxu0
  %2025 = vmatprep.mubr.f32.mxu0 0.0
  %2026 = vmatmul.mubr.f32.gmra.mrb[0].mxu0 %v171
  %v2027 = vpop.f32.mrb[0].mxu0
  %v2028 = vadd.f32 %v1954, %v2027
  %v2029 = vpop.f32.mrb[0].mxu0
  %2030 = vdwg.mxu0
  %s2031 = scalar_lea.vmem %s3, 224
  %v2032 = vld [vmem:[%s2031] sm:$0xff]
  %v2033 = vld [vmem:[%s2031 + $0x8] sm:$0xff]
  %v2034 = vld [vmem:[%s2031 + $0x10] sm:$0xff]
  %v2035 = vld [vmem:[%s2031 + $0x18] sm:$0xff]
  %s2036 = scalar_lea.vmem %s4, 7
  %v2037 = vld [vmem:[%s2036] sm:$0x1]
  %v2039 = vlaneseq
  %v2040 = vshrl.u32 %v2039, 7
  %v2041 = vsub.s32 0, %v2040
  %v2042 = vrot.slane %v2037, %v2041
  %2044 = vmatprep.subr.mxu0 0.0
  %2045 = vmatpush1.msra.mxu0 %v2032
  %2046 = vmatprep.subr.mxu0 0.0
  %2047 = vmatpush1.msra.mxu0 %v2033
  %2048 = vmatprep.subr.mxu0 0.0
  %2049 = vmatpush1.msra.mxu0 %v2034
  %2050 = vmatprep.subr.mxu0 0.0
  %2051 = vmatpush1.msra.mxu0 %v2035
  %2052 = vmatprep.subr.mxu0 0.0
  %2053 = vmatpush1.msra.mxu0 0.0
  %2054 = vmatprep.subr.mxu0 0.0
  %2055 = vmatpush1.msra.mxu0 0.0
  %2056 = vmatprep.subr.mxu0 0.0
  %2057 = vmatpush1.msra.mxu0 0.0
  %2058 = vmatprep.subr.mxu0 0.0
  %2059 = vmatpush1.msra.mxu0 0.0
  %2060 = vmatprep.subr.mxu0 0.0
  %2061 = vmatpush1.msra.mxu0 0.0
  %2062 = vmatprep.subr.mxu0 0.0
  %2063 = vmatpush1.msra.mxu0 0.0
  %2064 = vmatprep.subr.mxu0 0.0
  %2065 = vmatpush1.msra.mxu0 0.0
  %2066 = vmatprep.subr.mxu0 0.0
  %2067 = vmatpush1.msra.mxu0 0.0
  %2068 = vmatprep.subr.mxu0 0.0
  %2069 = vmatpush1.msra.mxu0 0.0
  %2070 = vmatprep.subr.mxu0 0.0
  %2071 = vmatpush1.msra.mxu0 0.0
  %2072 = vmatprep.subr.mxu0 0.0
  %2073 = vmatpush1.msra.mxu0 0.0
  %2074 = vmatprep.subr.mxu0 0.0
  %2075 = vmatpush1.msra.mxu0 0.0
  %2076 = vmatprep.subr.mxu0 0.0
  %2077 = vmatpush1.msra.mxu0 0.0
  %2078 = vmatprep.subr.mxu0 0.0
  %2079 = vmatpush1.msra.mxu0 0.0
  %2080 = vmatprep.subr.mxu0 0.0
  %2081 = vmatpush1.msra.mxu0 0.0
  %2082 = vmatprep.subr.mxu0 0.0
  %2083 = vmatpush1.msra.mxu0 0.0
  %2084 = vmatprep.subr.mxu0 0.0
  %2085 = vmatpush1.msra.mxu0 0.0
  %2086 = vmatprep.subr.mxu0 0.0
  %2087 = vmatpush1.msra.mxu0 0.0
  %2088 = vmatprep.subr.mxu0 0.0
  %2089 = vmatpush1.msra.mxu0 0.0
  %2090 = vmatprep.subr.mxu0 0.0
  %2091 = vmatpush1.msra.mxu0 0.0
  %2092 = vmatprep.subr.mxu0 0.0
  %2093 = vmatpush1.msra.mxu0 0.0
  %2094 = vmatprep.subr.mxu0 0.0
  %2095 = vmatpush1.msra.mxu0 0.0
  %2096 = vmatprep.subr.mxu0 0.0
  %2097 = vmatpush1.msra.mxu0 0.0
  %2098 = vmatprep.subr.mxu0 0.0
  %2099 = vmatpush1.msra.mxu0 0.0
  %2100 = vmatprep.subr.mxu0 0.0
  %2101 = vmatpush1.msra.mxu0 0.0
  %2102 = vmatprep.subr.mxu0 0.0
  %2103 = vmatpush1.msra.mxu0 0.0
  %2104 = vmatprep.subr.mxu0 0.0
  %2105 = vmatpush1.msra.mxu0 0.0
  %2106 = vmatprep.subr.mxu0 0.0
  %2107 = vmatpush1.msra.mxu0 0.0
  %2108 = vmatprep.mubr.f32.mxu0 0.0
  %2109 = vmatmul.mubr.f32.gmra.mrb[0].mxu0 %v168
  %v2110 = vpop.f32.mrb[0].mxu0
  %v2111 = vadd.f32 %v2042, %v2110
  %v2112 = vpop.f32.mrb[0].mxu0
  %2113 = vmatprep.mubr.f32.mxu0 0.0
  %2114 = vmatmul.mubr.f32.gmra.mrb[0].mxu0 %v171
  %v2115 = vpop.f32.mrb[0].mxu0
  %v2116 = vadd.f32 %v2042, %v2115
  %v2117 = vpop.f32.mrb[0].mxu0
  %2118 = vdwg.mxu0
  %s2119 = scalar_lea.vmem %s3, 352
  %v2120 = vld [vmem:[%s2119] sm:$0xff]
  %v2121 = vld [vmem:[%s2119 + $0x8] sm:$0xff]
  %v2122 = vld [vmem:[%s2119 + $0x10] sm:$0xff]
  %v2123 = vld [vmem:[%s2119 + $0x18] sm:$0xff]
  %s2124 = scalar_lea.vmem %s4, 11
  %v2125 = vld [vmem:[%s2124] sm:$0x1]
  %v2127 = vlaneseq
  %v2128 = vshrl.u32 %v2127, 7
  %v2129 = vsub.s32 0, %v2128
  %v2130 = vrot.slane %v2125, %v2129
  %2132 = vmatprep.subr.mxu0 0.0
  %2133 = vmatpush1.msra.mxu0 %v2120
  %2134 = vmatprep.subr.mxu0 0.0
  %2135 = vmatpush1.msra.mxu0 %v2121
  %2136 = vmatprep.subr.mxu0 0.0
  %2137 = vmatpush1.msra.mxu0 %v2122
  %2138 = vmatprep.subr.mxu0 0.0
  %2139 = vmatpush1.msra.mxu0 %v2123
  %2140 = vmatprep.subr.mxu0 0.0
  %2141 = vmatpush1.msra.mxu0 0.0
  %2142 = vmatprep.subr.mxu0 0.0
  %2143 = vmatpush1.msra.mxu0 0.0
  %2144 = vmatprep.subr.mxu0 0.0
  %2145 = vmatpush1.msra.mxu0 0.0
  %2146 = vmatprep.subr.mxu0 0.0
  %2147 = vmatpush1.msra.mxu0 0.0
  %2148 = vmatprep.subr.mxu0 0.0
  %2149 = vmatpush1.msra.mxu0 0.0
  %2150 = vmatprep.subr.mxu0 0.0
  %2151 = vmatpush1.msra.mxu0 0.0
  %2152 = vmatprep.subr.mxu0 0.0
  %2153 = vmatpush1.msra.mxu0 0.0
  %2154 = vmatprep.subr.mxu0 0.0
  %2155 = vmatpush1.msra.mxu0 0.0
  %2156 = vmatprep.subr.mxu0 0.0
  %2157 = vmatpush1.msra.mxu0 0.0
  %2158 = vmatprep.subr.mxu0 0.0
  %2159 = vmatpush1.msra.mxu0 0.0
  %2160 = vmatprep.subr.mxu0 0.0
  %2161 = vmatpush1.msra.mxu0 0.0
  %2162 = vmatprep.subr.mxu0 0.0
  %2163 = vmatpush1.msra.mxu0 0.0
  %2164 = vmatprep.subr.mxu0 0.0
  %2165 = vmatpush1.msra.mxu0 0.0
  %2166 = vmatprep.subr.mxu0 0.0
  %2167 = vmatpush1.msra.mxu0 0.0
  %2168 = vmatprep.subr.mxu0 0.0
  %2169 = vmatpush1.msra.mxu0 0.0
  %2170 = vmatprep.subr.mxu0 0.0
  %2171 = vmatpush1.msra.mxu0 0.0
  %2172 = vmatprep.subr.mxu0 0.0
  %2173 = vmatpush1.msra.mxu0 0.0
  %2174 = vmatprep.subr.mxu0 0.0
  %2175 = vmatpush1.msra.mxu0 0.0
  %2176 = vmatprep.subr.mxu0 0.0
  %2177 = vmatpush1.msra.mxu0 0.0
  %2178 = vmatprep.subr.mxu0 0.0
  %2179 = vmatpush1.msra.mxu0 0.0
  %2180 = vmatprep.subr.mxu0 0.0
  %2181 = vmatpush1.msra.mxu0 0.0
  %2182 = vmatprep.subr.mxu0 0.0
  %2183 = vmatpush1.msra.mxu0 0.0
  %2184 = vmatprep.subr.mxu0 0.0
  %2185 = vmatpush1.msra.mxu0 0.0
  %2186 = vmatprep.subr.mxu0 0.0
  %2187 = vmatpush1.msra.mxu0 0.0
  %2188 = vmatprep.subr.mxu0 0.0
  %2189 = vmatpush1.msra.mxu0 0.0
  %2190 = vmatprep.subr.mxu0 0.0
  %2191 = vmatpush1.msra.mxu0 0.0
  %2192 = vmatprep.subr.mxu0 0.0
  %2193 = vmatpush1.msra.mxu0 0.0
  %2194 = vmatprep.subr.mxu0 0.0
  %2195 = vmatpush1.msra.mxu0 0.0
  %2196 = vmatprep.mubr.f32.mxu0 0.0
  %2197 = vmatmul.mubr.f32.gmra.mrb[0].mxu0 %v168
  %v2198 = vpop.f32.mrb[0].mxu0
  %v2199 = vadd.f32 %v2130, %v2198
  %v2200 = vpop.f32.mrb[0].mxu0
  %2201 = vmatprep.mubr.f32.mxu0 0.0
  %2202 = vmatmul.mubr.f32.gmra.mrb[0].mxu0 %v171
  %v2203 = vpop.f32.mrb[0].mxu0
  %v2204 = vadd.f32 %v2130, %v2203
  %v2205 = vpop.f32.mrb[0].mxu0
  %2206 = vdwg.mxu0
  %v2208 = vsel %vm424, %v2023, 0
  %v2211 = vsel %vm424, %v2111, 0
  %2213 = vmatprep.subr.mxu0 0.0
  %2214 = vmatpush1.xpose.msra.mxu0 %v2211
  %2215 = vmatprep.subr.mxu0 0.0
  %2216 = vmatpush1.xpose.msra.mxu0 0.0
  %2217 = vmatprep.subr.mxu0 0.0
  %2218 = vmatpush1.xpose.msra.mxu0 0.0
  %2219 = vmatprep.subr.mxu0 0.0
  %2220 = vmatpush1.xpose.msra.mxu0 0.0
  %2221 = vmatprep.subr.mxu0 0.0
  %2222 = vmatpush1.xpose.msra.mxu0 0.0
  %2223 = vmatprep.subr.mxu0 0.0
  %2224 = vmatpush1.xpose.msra.mxu0 0.0
  %2225 = vmatprep.subr.mxu0 0.0
  %2226 = vmatpush1.xpose.msra.mxu0 0.0
  %2227 = vmatprep.subr.mxu0 0.0
  %2228 = vmatpush1.xpose.msra.mxu0 0.0
  %2229 = vmatprep.subr.mxu0 0.0
  %2230 = vmatpush1.xpose.msra.mxu0 0.0
  %2231 = vmatprep.subr.mxu0 0.0
  %2232 = vmatpush1.xpose.msra.mxu0 0.0
  %2233 = vmatprep.subr.mxu0 0.0
  %2234 = vmatpush1.xpose.msra.mxu0 0.0
  %2235 = vmatprep.subr.mxu0 0.0
  %2236 = vmatpush1.xpose.msra.mxu0 0.0
  %2237 = vmatprep.subr.mxu0 0.0
  %2238 = vmatpush1.xpose.msra.mxu0 0.0
  %2239 = vmatprep.subr.mxu0 0.0
  %2240 = vmatpush1.xpose.msra.mxu0 0.0
  %2241 = vmatprep.subr.mxu0 0.0
  %2242 = vmatpush1.xpose.msra.mxu0 0.0
  %2243 = vmatprep.subr.mxu0 0.0
  %2244 = vmatpush1.xpose.msra.mxu0 0.0
  %2245 = vmatprep.subr.mxu0 0.0
  %2246 = vmatpush1.xpose.msra.mxu0 0.0
  %2247 = vmatprep.subr.mxu0 0.0
  %2248 = vmatpush1.xpose.msra.mxu0 0.0
  %2249 = vmatprep.subr.mxu0 0.0
  %2250 = vmatpush1.xpose.msra.mxu0 0.0
  %2251 = vmatprep.subr.mxu0 0.0
  %2252 = vmatpush1.xpose.msra.mxu0 0.0
  %2253 = vmatprep.subr.mxu0 0.0
  %2254 = vmatpush1.xpose.msra.mxu0 0.0
  %2255 = vmatprep.subr.mxu0 0.0
  %2256 = vmatpush1.xpose.msra.mxu0 0.0
  %2257 = vmatprep.subr.mxu0 0.0
  %2258 = vmatpush1.xpose.msra.mxu0 0.0
  %2259 = vmatprep.subr.mxu0 0.0
  %2260 = vmatpush1.xpose.msra.mxu0 0.0
  %2261 = vmatprep.subr.mxu0 0.0
  %2262 = vmatpush1.xpose.msra.mxu0 0.0
  %2263 = vmatprep.subr.mxu0 0.0
  %2264 = vmatpush1.xpose.msra.mxu0 0.0
  %2265 = vmatprep.subr.mxu0 0.0
  %2266 = vmatpush1.xpose.msra.mxu0 0.0
  %2267 = vmatprep.subr.mxu0 0.0
  %2268 = vmatpush1.xpose.msra.mxu0 0.0
  %2269 = vmatprep.subr.mxu0 0.0
  %2270 = vmatpush1.xpose.msra.mxu0 0.0
  %2271 = vmatprep.subr.mxu0 0.0
  %2272 = vmatpush1.xpose.msra.mxu0 0.0
  %2273 = vmatprep.subr.mxu0 0.0
  %2274 = vmatpush1.xpose.msra.mxu0 0.0
  %2275 = vmatprep.subr.mxu0 0.0
  %2276 = vmatpush1.xpose.msra.mxu0 0.0
  %2277 = vmatprep.mubr.f32.mxu0 0.0
  %2278 = vmatmul.mubr.f32.gmra.mrb[0].mxu0 %v2208
  %v2279 = vpop.f32.mrb[0].mxu0
  %v2280 = vadd.f32 0.0, %v2279
  %v2281 = vpop.f32.mrb[0].mxu0
  %2282 = vdwg.mxu0
  %v2284 = vsel %vm424, %v2028, 0
  %v2287 = vsel %vm424, %v2116, 0
  %2289 = vmatprep.subr.mxu0 0.0
  %2290 = vmatpush1.xpose.msra.mxu0 %v2287
  %2291 = vmatprep.subr.mxu0 0.0
  %2292 = vmatpush1.xpose.msra.mxu0 0.0
  %2293 = vmatprep.subr.mxu0 0.0
  %2294 = vmatpush1.xpose.msra.mxu0 0.0
  %2295 = vmatprep.subr.mxu0 0.0
  %2296 = vmatpush1.xpose.msra.mxu0 0.0
  %2297 = vmatprep.subr.mxu0 0.0
  %2298 = vmatpush1.xpose.msra.mxu0 0.0
  %2299 = vmatprep.subr.mxu0 0.0
  %2300 = vmatpush1.xpose.msra.mxu0 0.0
  %2301 = vmatprep.subr.mxu0 0.0
  %2302 = vmatpush1.xpose.msra.mxu0 0.0
  %2303 = vmatprep.subr.mxu0 0.0
  %2304 = vmatpush1.xpose.msra.mxu0 0.0
  %2305 = vmatprep.subr.mxu0 0.0
  %2306 = vmatpush1.xpose.msra.mxu0 0.0
  %2307 = vmatprep.subr.mxu0 0.0
  %2308 = vmatpush1.xpose.msra.mxu0 0.0
  %2309 = vmatprep.subr.mxu0 0.0
  %2310 = vmatpush1.xpose.msra.mxu0 0.0
  %2311 = vmatprep.subr.mxu0 0.0
  %2312 = vmatpush1.xpose.msra.mxu0 0.0
  %2313 = vmatprep.subr.mxu0 0.0
  %2314 = vmatpush1.xpose.msra.mxu0 0.0
  %2315 = vmatprep.subr.mxu0 0.0
  %2316 = vmatpush1.xpose.msra.mxu0 0.0
  %2317 = vmatprep.subr.mxu0 0.0
  %2318 = vmatpush1.xpose.msra.mxu0 0.0
  %2319 = vmatprep.subr.mxu0 0.0
  %2320 = vmatpush1.xpose.msra.mxu0 0.0
  %2321 = vmatprep.subr.mxu0 0.0
  %2322 = vmatpush1.xpose.msra.mxu0 0.0
  %2323 = vmatprep.subr.mxu0 0.0
  %2324 = vmatpush1.xpose.msra.mxu0 0.0
  %2325 = vmatprep.subr.mxu0 0.0
  %2326 = vmatpush1.xpose.msra.mxu0 0.0
  %2327 = vmatprep.subr.mxu0 0.0
  %2328 = vmatpush1.xpose.msra.mxu0 0.0
  %2329 = vmatprep.subr.mxu0 0.0
  %2330 = vmatpush1.xpose.msra.mxu0 0.0
  %2331 = vmatprep.subr.mxu0 0.0
  %2332 = vmatpush1.xpose.msra.mxu0 0.0
  %2333 = vmatprep.subr.mxu0 0.0
  %2334 = vmatpush1.xpose.msra.mxu0 0.0
  %2335 = vmatprep.subr.mxu0 0.0
  %2336 = vmatpush1.xpose.msra.mxu0 0.0
  %2337 = vmatprep.subr.mxu0 0.0
  %2338 = vmatpush1.xpose.msra.mxu0 0.0
  %2339 = vmatprep.subr.mxu0 0.0
  %2340 = vmatpush1.xpose.msra.mxu0 0.0
  %2341 = vmatprep.subr.mxu0 0.0
  %2342 = vmatpush1.xpose.msra.mxu0 0.0
  %2343 = vmatprep.subr.mxu0 0.0
  %2344 = vmatpush1.xpose.msra.mxu0 0.0
  %2345 = vmatprep.subr.mxu0 0.0
  %2346 = vmatpush1.xpose.msra.mxu0 0.0
  %2347 = vmatprep.subr.mxu0 0.0
  %2348 = vmatpush1.xpose.msra.mxu0 0.0
  %2349 = vmatprep.subr.mxu0 0.0
  %2350 = vmatpush1.xpose.msra.mxu0 0.0
  %2351 = vmatprep.subr.mxu0 0.0
  %2352 = vmatpush1.xpose.msra.mxu0 0.0
  %2353 = vmatprep.mubr.f32.mxu0 0.0
  %2354 = vmatmul.mubr.f32.gmra.mrb[0].mxu0 %v2284
  %v2355 = vpop.f32.mrb[0].mxu0
  %v2356 = vadd.f32 0.0, %v2355
  %v2357 = vpop.f32.mrb[0].mxu0
  %2358 = vdwg.mxu0
  %v2359 = vmul.f32 %v2280, 0.35355338
  %v2360 = vmul.f32 %v2356, 0.35355338
  %v2361 = vsel %vm424, %v2359, -inf
  %2362 = vmax.xlane.f32.xlu0 %v2361
  %v2363 = vpop.xlane.xlu0 %2362
  %v2364 = vsel %vm424, %v2360, -inf
  %2365 = vmax.xlane.f32.xlu0 %v2364
  %v2366 = vpop.xlane.xlu0 %2365
  %v2367 = vsub.f32 %v2359, %v2363
  %v2368 = vsub.f32 %v2360, %v2366
  %v2369 = vmul.f32 %v2367, 1.442695
  %v2370 = vpow.pop %v2369
  %v2371 = vmul.f32 %v2368, 1.442695
  %v2372 = vpow.pop %v2371
  %v2373 = vsel %vm424, %v2370, 0.0
  %2374 = vadd.xlane.f32.xlu0 %v2373
  %v2375 = vpop.xlane.xlu0 %2374
  %v2376 = vsel %vm424, %v2372, 0.0
  %2377 = vadd.xlane.f32.xlu0 %v2376
  %v2378 = vpop.xlane.xlu0 %2377
  %v2379 = vrcp.pop %v2375
  %v2380 = vrcp.pop %v2378
  %v2381 = vmul.f32 %v2370, %v2379
  %v2382 = vmul.f32 %v2372, %v2380
  %v2384 = vsel %vm424, %v2381, 0
  %2386 = vmatprep.subr.mxu0 0.0
  %2387 = vmatpush1.msra.mxu0 %v2199
  %2388 = vmatprep.subr.mxu0 0.0
  %2389 = vmatpush1.msra.mxu0 0.0
  %2390 = vmatprep.subr.mxu0 0.0
  %2391 = vmatpush1.msra.mxu0 0.0
  %2392 = vmatprep.subr.mxu0 0.0
  %2393 = vmatpush1.msra.mxu0 0.0
  %2394 = vmatprep.subr.mxu0 0.0
  %2395 = vmatpush1.msra.mxu0 0.0
  %2396 = vmatprep.subr.mxu0 0.0
  %2397 = vmatpush1.msra.mxu0 0.0
  %2398 = vmatprep.subr.mxu0 0.0
  %2399 = vmatpush1.msra.mxu0 0.0
  %2400 = vmatprep.subr.mxu0 0.0
  %2401 = vmatpush1.msra.mxu0 0.0
  %2402 = vmatprep.subr.mxu0 0.0
  %2403 = vmatpush1.msra.mxu0 0.0
  %2404 = vmatprep.subr.mxu0 0.0
  %2405 = vmatpush1.msra.mxu0 0.0
  %2406 = vmatprep.subr.mxu0 0.0
  %2407 = vmatpush1.msra.mxu0 0.0
  %2408 = vmatprep.subr.mxu0 0.0
  %2409 = vmatpush1.msra.mxu0 0.0
  %2410 = vmatprep.subr.mxu0 0.0
  %2411 = vmatpush1.msra.mxu0 0.0
  %2412 = vmatprep.subr.mxu0 0.0
  %2413 = vmatpush1.msra.mxu0 0.0
  %2414 = vmatprep.subr.mxu0 0.0
  %2415 = vmatpush1.msra.mxu0 0.0
  %2416 = vmatprep.subr.mxu0 0.0
  %2417 = vmatpush1.msra.mxu0 0.0
  %2418 = vmatprep.subr.mxu0 0.0
  %2419 = vmatpush1.msra.mxu0 0.0
  %2420 = vmatprep.subr.mxu0 0.0
  %2421 = vmatpush1.msra.mxu0 0.0
  %2422 = vmatprep.subr.mxu0 0.0
  %2423 = vmatpush1.msra.mxu0 0.0
  %2424 = vmatprep.subr.mxu0 0.0
  %2425 = vmatpush1.msra.mxu0 0.0
  %2426 = vmatprep.subr.mxu0 0.0
  %2427 = vmatpush1.msra.mxu0 0.0
  %2428 = vmatprep.subr.mxu0 0.0
  %2429 = vmatpush1.msra.mxu0 0.0
  %2430 = vmatprep.subr.mxu0 0.0
  %2431 = vmatpush1.msra.mxu0 0.0
  %2432 = vmatprep.subr.mxu0 0.0
  %2433 = vmatpush1.msra.mxu0 0.0
  %2434 = vmatprep.subr.mxu0 0.0
  %2435 = vmatpush1.msra.mxu0 0.0
  %2436 = vmatprep.subr.mxu0 0.0
  %2437 = vmatpush1.msra.mxu0 0.0
  %2438 = vmatprep.subr.mxu0 0.0
  %2439 = vmatpush1.msra.mxu0 0.0
  %2440 = vmatprep.subr.mxu0 0.0
  %2441 = vmatpush1.msra.mxu0 0.0
  %2442 = vmatprep.subr.mxu0 0.0
  %2443 = vmatpush1.msra.mxu0 0.0
  %2444 = vmatprep.subr.mxu0 0.0
  %2445 = vmatpush1.msra.mxu0 0.0
  %2446 = vmatprep.subr.mxu0 0.0
  %2447 = vmatpush1.msra.mxu0 0.0
  %2448 = vmatprep.subr.mxu0 0.0
  %2449 = vmatpush1.msra.mxu0 0.0
  %2450 = vmatprep.mubr.f32.mxu0 0.0
  %2451 = vmatmul.mubr.f32.gmra.mrb[0].mxu0 %v2384
  %v2452 = vpop.f32.mrb[0].mxu0
  %v2453 = vadd.f32 0.0, %v2452
  %v2454 = vpop.f32.mrb[0].mxu0
  %2455 = vdwg.mxu0
  %v2457 = vsel %vm424, %v2382, 0
  %2459 = vmatprep.subr.mxu0 0.0
  %2460 = vmatpush1.msra.mxu0 %v2204
  %2461 = vmatprep.subr.mxu0 0.0
  %2462 = vmatpush1.msra.mxu0 0.0
  %2463 = vmatprep.subr.mxu0 0.0
  %2464 = vmatpush1.msra.mxu0 0.0
  %2465 = vmatprep.subr.mxu0 0.0
  %2466 = vmatpush1.msra.mxu0 0.0
  %2467 = vmatprep.subr.mxu0 0.0
  %2468 = vmatpush1.msra.mxu0 0.0
  %2469 = vmatprep.subr.mxu0 0.0
  %2470 = vmatpush1.msra.mxu0 0.0
  %2471 = vmatprep.subr.mxu0 0.0
  %2472 = vmatpush1.msra.mxu0 0.0
  %2473 = vmatprep.subr.mxu0 0.0
  %2474 = vmatpush1.msra.mxu0 0.0
  %2475 = vmatprep.subr.mxu0 0.0
  %2476 = vmatpush1.msra.mxu0 0.0
  %2477 = vmatprep.subr.mxu0 0.0
  %2478 = vmatpush1.msra.mxu0 0.0
  %2479 = vmatprep.subr.mxu0 0.0
  %2480 = vmatpush1.msra.mxu0 0.0
  %2481 = vmatprep.subr.mxu0 0.0
  %2482 = vmatpush1.msra.mxu0 0.0
  %2483 = vmatprep.subr.mxu0 0.0
  %2484 = vmatpush1.msra.mxu0 0.0
  %2485 = vmatprep.subr.mxu0 0.0
  %2486 = vmatpush1.msra.mxu0 0.0
  %2487 = vmatprep.subr.mxu0 0.0
  %2488 = vmatpush1.msra.mxu0 0.0
  %2489 = vmatprep.subr.mxu0 0.0
  %2490 = vmatpush1.msra.mxu0 0.0
  %2491 = vmatprep.subr.mxu0 0.0
  %2492 = vmatpush1.msra.mxu0 0.0
  %2493 = vmatprep.subr.mxu0 0.0
  %2494 = vmatpush1.msra.mxu0 0.0
  %2495 = vmatprep.subr.mxu0 0.0
  %2496 = vmatpush1.msra.mxu0 0.0
  %2497 = vmatprep.subr.mxu0 0.0
  %2498 = vmatpush1.msra.mxu0 0.0
  %2499 = vmatprep.subr.mxu0 0.0
  %2500 = vmatpush1.msra.mxu0 0.0
  %2501 = vmatprep.subr.mxu0 0.0
  %2502 = vmatpush1.msra.mxu0 0.0
  %2503 = vmatprep.subr.mxu0 0.0
  %2504 = vmatpush1.msra.mxu0 0.0
  %2505 = vmatprep.subr.mxu0 0.0
  %2506 = vmatpush1.msra.mxu0 0.0
  %2507 = vmatprep.subr.mxu0 0.0
  %2508 = vmatpush1.msra.mxu0 0.0
  %2509 = vmatprep.subr.mxu0 0.0
  %2510 = vmatpush1.msra.mxu0 0.0
  %2511 = vmatprep.subr.mxu0 0.0
  %2512 = vmatpush1.msra.mxu0 0.0
  %2513 = vmatprep.subr.mxu0 0.0
  %2514 = vmatpush1.msra.mxu0 0.0
  %2515 = vmatprep.subr.mxu0 0.0
  %2516 = vmatpush1.msra.mxu0 0.0
  %2517 = vmatprep.subr.mxu0 0.0
  %2518 = vmatpush1.msra.mxu0 0.0
  %2519 = vmatprep.subr.mxu0 0.0
  %2520 = vmatpush1.msra.mxu0 0.0
  %2521 = vmatprep.subr.mxu0 0.0
  %2522 = vmatpush1.msra.mxu0 0.0
  %2523 = vmatprep.mubr.f32.mxu0 0.0
  %2524 = vmatmul.mubr.f32.gmra.mrb[0].mxu0 %v2457
  %v2525 = vpop.f32.mrb[0].mxu0
  %v2526 = vadd.f32 0.0, %v2525
  %v2527 = vpop.f32.mrb[0].mxu0
  %2528 = vdwg.mxu0
  %2531 = vrot.lane.b32.xlu0 %v2453, 24
  %v2532 = vpop.permute.xlu0 %2531
  %2533 = vrot.lane.b32.xlu0 %v2526, 24
  %v2534 = vpop.permute.xlu0 %2533
  %vm2537 = vcmask 261312
  %2538 = vst.msk [vmem:[#allocation2] sm:$0xff] %vm2537, %v2532
  %2539 = vst.msk [vmem:[#allocation2 + $0x8] sm:$0xff] %vm2537, %v2534
  %v2540 = vld [vmem:[#allocation2] sm:$0xff]
  %v2541 = vld [vmem:[#allocation2 + $0x8] sm:$0xff]
  %v2542 = vld [vmem:[%s5] sm:$0xff]
  %v2543 = vld [vmem:[%s5 + $0x8] sm:$0xff]
  %v2544 = vld [vmem:[%s5 + $0x10] sm:$0xff]
  %v2545 = vld [vmem:[%s5 + $0x18] sm:$0xff]
  %v2546 = vld [vmem:[%s6] sm:$0x1]
  %v2548 = vlaneseq
  %v2549 = vshrl.u32 %v2548, 7
  %v2550 = vsub.s32 0, %v2549
  %v2551 = vrot.slane %v2546, %v2550
  %v2554 = vsel %vm166, %v2540, 0
  %v2557 = vsel %vm166, %v2541, 0
  %2559 = vmatprep.subr.mxu0 0.0
  %2560 = vmatpush1.msra.mxu0 %v2542
  %2561 = vmatprep.subr.mxu0 0.0
  %2562 = vmatpush1.msra.mxu0 %v2543
  %2563 = vmatprep.subr.mxu0 0.0
  %2564 = vmatpush1.msra.mxu0 %v2544
  %2565 = vmatprep.subr.mxu0 0.0
  %2566 = vmatpush1.msra.mxu0 %v2545
  %2567 = vmatprep.subr.mxu0 0.0
  %2568 = vmatpush1.msra.mxu0 0.0
  %2569 = vmatprep.subr.mxu0 0.0
  %2570 = vmatpush1.msra.mxu0 0.0
  %2571 = vmatprep.subr.mxu0 0.0
  %2572 = vmatpush1.msra.mxu0 0.0
  %2573 = vmatprep.subr.mxu0 0.0
  %2574 = vmatpush1.msra.mxu0 0.0
  %2575 = vmatprep.subr.mxu0 0.0
  %2576 = vmatpush1.msra.mxu0 0.0
  %2577 = vmatprep.subr.mxu0 0.0
  %2578 = vmatpush1.msra.mxu0 0.0
  %2579 = vmatprep.subr.mxu0 0.0
  %2580 = vmatpush1.msra.mxu0 0.0
  %2581 = vmatprep.subr.mxu0 0.0
  %2582 = vmatpush1.msra.mxu0 0.0
  %2583 = vmatprep.subr.mxu0 0.0
  %2584 = vmatpush1.msra.mxu0 0.0
  %2585 = vmatprep.subr.mxu0 0.0
  %2586 = vmatpush1.msra.mxu0 0.0
  %2587 = vmatprep.subr.mxu0 0.0
  %2588 = vmatpush1.msra.mxu0 0.0
  %2589 = vmatprep.subr.mxu0 0.0
  %2590 = vmatpush1.msra.mxu0 0.0
  %2591 = vmatprep.subr.mxu0 0.0
  %2592 = vmatpush1.msra.mxu0 0.0
  %2593 = vmatprep.subr.mxu0 0.0
  %2594 = vmatpush1.msra.mxu0 0.0
  %2595 = vmatprep.subr.mxu0 0.0
  %2596 = vmatpush1.msra.mxu0 0.0
  %2597 = vmatprep.subr.mxu0 0.0
  %2598 = vmatpush1.msra.mxu0 0.0
  %2599 = vmatprep.subr.mxu0 0.0
  %2600 = vmatpush1.msra.mxu0 0.0
  %2601 = vmatprep.subr.mxu0 0.0
  %2602 = vmatpush1.msra.mxu0 0.0
  %2603 = vmatprep.subr.mxu0 0.0
  %2604 = vmatpush1.msra.mxu0 0.0
  %2605 = vmatprep.subr.mxu0 0.0
  %2606 = vmatpush1.msra.mxu0 0.0
  %2607 = vmatprep.subr.mxu0 0.0
  %2608 = vmatpush1.msra.mxu0 0.0
  %2609 = vmatprep.subr.mxu0 0.0
  %2610 = vmatpush1.msra.mxu0 0.0
  %2611 = vmatprep.subr.mxu0 0.0
  %2612 = vmatpush1.msra.mxu0 0.0
  %2613 = vmatprep.subr.mxu0 0.0
  %2614 = vmatpush1.msra.mxu0 0.0
  %2615 = vmatprep.subr.mxu0 0.0
  %2616 = vmatpush1.msra.mxu0 0.0
  %2617 = vmatprep.subr.mxu0 0.0
  %2618 = vmatpush1.msra.mxu0 0.0
  %2619 = vmatprep.subr.mxu0 0.0
  %2620 = vmatpush1.msra.mxu0 0.0
  %2621 = vmatprep.subr.mxu0 0.0
  %2622 = vmatpush1.msra.mxu0 0.0
  %2623 = vmatprep.mubr.f32.mxu0 0.0
  %2624 = vmatmul.mubr.f32.gmra.mrb[0].mxu0 %v2554
  %v2625 = vpop.f32.mrb[0].mxu0
  %v2626 = vadd.f32 %v2551, %v2625
  %v2627 = vpop.f32.mrb[0].mxu0
  %2628 = vmatprep.mubr.f32.mxu0 0.0
  %2629 = vmatmul.mubr.f32.gmra.mrb[0].mxu0 %v2557
  %v2630 = vpop.f32.mrb[0].mxu0
  %v2631 = vadd.f32 %v2551, %v2630
  %v2632 = vpop.f32.mrb[0].mxu0
  %2633 = vdwg.mxu0
  %v2634 = vadd.f32 %v147, %v2626
  %v2635 = vadd.f32 %v152, %v2631
  %v2636 = vld [vmem:[%s7] sm:$0x1]
  %v2637 = vld [vmem:[%s8] sm:$0x1]
  %v2638 = vsel %vm166, %v2634, 0.0
  %2639 = vadd.xlane.f32.xlu0 %v2638
  %v2640 = vpop.xlane.xlu0 %2639
  %v2641 = vsel %vm166, %v2635, 0.0
  %2642 = vadd.xlane.f32.xlu0 %v2641
  %v2643 = vpop.xlane.xlu0 %2642
  %v2644 = vrcp.pop 32.0
  %v2645 = vmul.f32 %v2640, %v2644
  %v2646 = vmul.f32 %v2643, %v2644
  %v2647 = vsub.f32 %v2634, %v2645
  %v2648 = vsub.f32 %v2635, %v2646
  %v2649 = vmul.f32 %v2647, %v2647
  %v2650 = vmul.f32 %v2648, %v2648
  %v2651 = vsel %vm166, %v2649, 0.0
  %2652 = vadd.xlane.f32.xlu0 %v2651
  %v2653 = vpop.xlane.xlu0 %2652
  %v2654 = vsel %vm166, %v2650, 0.0
  %2655 = vadd.xlane.f32.xlu0 %v2654
  %v2656 = vpop.xlane.xlu0 %2655
  %v2657 = vmul.f32 %v2653, %v2644
  %v2658 = vmul.f32 %v2656, %v2644
  %v2659 = vadd.f32 %v2657, 1e-05
  %v2660 = vadd.f32 %v2658, 1e-05
  %v2661 = vrsqrt.pop %v2659
  %v2662 = vrsqrt.pop %v2660
  %v2663 = vmul.f32 %v2647, %v2661
  %v2664 = vmul.f32 %v2648, %v2662
  %v2666 = vlaneseq
  %v2667 = vshrl.u32 %v2666, 7
  %v2668 = vsub.s32 0, %v2667
  %v2669 = vrot.slane %v2636, %v2668
  %v2671 = vmul.f32 %v2663, %v2669
  %v2672 = vmul.f32 %v2664, %v2669
  %v2674 = vlaneseq
  %v2675 = vshrl.u32 %v2674, 7
  %v2676 = vsub.s32 0, %v2675
  %v2677 = vrot.slane %v2637, %v2676
  %v2679 = vadd.f32 %v2671, %v2677
  %v2680 = vadd.f32 %v2672, %v2677
  %v2681 = vld [vmem:[%s9] sm:$0xff]
  %v2682 = vld [vmem:[%s9 + $0x8] sm:$0xff]
  %v2683 = vld [vmem:[%s9 + $0x10] sm:$0xff]
  %v2684 = vld [vmem:[%s9 + $0x18] sm:$0xff]
  %v2685 = vld [vmem:[%s10] sm:$0x1]
  %v2687 = vlaneseq
  %v2688 = vshrl.u32 %v2687, 7
  %v2689 = vsub.s32 0, %v2688
  %v2690 = vrot.slane %v2685, %v2689
  %v2693 = vsel %vm166, %v2679, 0
  %v2696 = vsel %vm166, %v2680, 0
  %2698 = vmatprep.subr.mxu0 0.0
  %2699 = vmatpush1.msra.mxu0 %v2681
  %2700 = vmatprep.subr.mxu0 0.0
  %2701 = vmatpush1.msra.mxu0 %v2682
  %2702 = vmatprep.subr.mxu0 0.0
  %2703 = vmatpush1.msra.mxu0 %v2683
  %2704 = vmatprep.subr.mxu0 0.0
  %2705 = vmatpush1.msra.mxu0 %v2684
  %2706 = vmatprep.subr.mxu0 0.0
  %2707 = vmatpush1.msra.mxu0 0.0
  %2708 = vmatprep.subr.mxu0 0.0
  %2709 = vmatpush1.msra.mxu0 0.0
  %2710 = vmatprep.subr.mxu0 0.0
  %2711 = vmatpush1.msra.mxu0 0.0
  %2712 = vmatprep.subr.mxu0 0.0
  %2713 = vmatpush1.msra.mxu0 0.0
  %2714 = vmatprep.subr.mxu0 0.0
  %2715 = vmatpush1.msra.mxu0 0.0
  %2716 = vmatprep.subr.mxu0 0.0
  %2717 = vmatpush1.msra.mxu0 0.0
  %2718 = vmatprep.subr.mxu0 0.0
  %2719 = vmatpush1.msra.mxu0 0.0
  %2720 = vmatprep.subr.mxu0 0.0
  %2721 = vmatpush1.msra.mxu0 0.0
  %2722 = vmatprep.subr.mxu0 0.0
  %2723 = vmatpush1.msra.mxu0 0.0
  %2724 = vmatprep.subr.mxu0 0.0
  %2725 = vmatpush1.msra.mxu0 0.0
  %2726 = vmatprep.subr.mxu0 0.0
  %2727 = vmatpush1.msra.mxu0 0.0
  %2728 = vmatprep.subr.mxu0 0.0
  %2729 = vmatpush1.msra.mxu0 0.0
  %2730 = vmatprep.subr.mxu0 0.0
  %2731 = vmatpush1.msra.mxu0 0.0
  %2732 = vmatprep.subr.mxu0 0.0
  %2733 = vmatpush1.msra.mxu0 0.0
  %2734 = vmatprep.subr.mxu0 0.0
  %2735 = vmatpush1.msra.mxu0 0.0
  %2736 = vmatprep.subr.mxu0 0.0
  %2737 = vmatpush1.msra.mxu0 0.0
  %2738 = vmatprep.subr.mxu0 0.0
  %2739 = vmatpush1.msra.mxu0 0.0
  %2740 = vmatprep.subr.mxu0 0.0
  %2741 = vmatpush1.msra.mxu0 0.0
  %2742 = vmatprep.subr.mxu0 0.0
  %2743 = vmatpush1.msra.mxu0 0.0
  %2744 = vmatprep.subr.mxu0 0.0
  %2745 = vmatpush1.msra.mxu0 0.0
  %2746 = vmatprep.subr.mxu0 0.0
  %2747 = vmatpush1.msra.mxu0 0.0
  %2748 = vmatprep.subr.mxu0 0.0
  %2749 = vmatpush1.msra.mxu0 0.0
  %2750 = vmatprep.subr.mxu0 0.0
  %2751 = vmatpush1.msra.mxu0 0.0
  %2752 = vmatprep.subr.mxu0 0.0
  %2753 = vmatpush1.msra.mxu0 0.0
  %2754 = vmatprep.subr.mxu0 0.0
  %2755 = vmatpush1.msra.mxu0 0.0
  %2756 = vmatprep.subr.mxu0 0.0
  %2757 = vmatpush1.msra.mxu0 0.0
  %2758 = vmatprep.subr.mxu0 0.0
  %2759 = vmatpush1.msra.mxu0 0.0
  %2760 = vmatprep.subr.mxu0 0.0
  %2761 = vmatpush1.msra.mxu0 0.0
  %2762 = vmatprep.mubr.f32.mxu0 0.0
  %2763 = vmatmul.mubr.f32.gmra.mrb[0].mxu0 %v2693
  %v2764 = vpop.f32.mrb[0].mxu0
  %v2765 = vadd.f32 %v2690, %v2764
  %v2766 = vpop.f32.mrb[0].mxu0
  %2767 = vmatprep.mubr.f32.mxu0 0.0
  %2768 = vmatmul.mubr.f32.gmra.mrb[0].mxu0 %v2696
  %v2769 = vpop.f32.mrb[0].mxu0
  %v2770 = vadd.f32 %v2690, %v2769
  %v2771 = vpop.f32.mrb[0].mxu0
  %2772 = vdwg.mxu0
  %v2773 = vmax.f32 %v2765, 0.0
  %v2774 = vmax.f32 %v2770, 0.0
  %v2775 = vld [vmem:[%s11] sm:$0xff]
  %v2776 = vld [vmem:[%s11 + $0x8] sm:$0xff]
  %v2777 = vld [vmem:[%s11 + $0x10] sm:$0xff]
  %v2778 = vld [vmem:[%s11 + $0x18] sm:$0xff]
  %v2779 = vld [vmem:[%s11 + $0x20] sm:$0xff]
  %v2780 = vld [vmem:[%s11 + $0x28] sm:$0xff]
  %v2781 = vld [vmem:[%s11 + $0x30] sm:$0xff]
  %v2782 = vld [vmem:[%s11 + $0x38] sm:$0xff]
  %v2783 = vld [vmem:[%s11 + $0x40] sm:$0xff]
  %v2784 = vld [vmem:[%s11 + $0x48] sm:$0xff]
  %v2785 = vld [vmem:[%s11 + $0x50] sm:$0xff]
  %v2786 = vld [vmem:[%s11 + $0x58] sm:$0xff]
  %v2787 = vld [vmem:[%s11 + $0x60] sm:$0xff]
  %v2788 = vld [vmem:[%s11 + $0x68] sm:$0xff]
  %v2789 = vld [vmem:[%s11 + $0x70] sm:$0xff]
  %v2790 = vld [vmem:[%s11 + $0x78] sm:$0xff]
  %v2791 = vld [vmem:[%s12] sm:$0x1]
  %v2793 = vlaneseq
  %v2794 = vshrl.u32 %v2793, 7
  %v2795 = vsub.s32 0, %v2794
  %v2796 = vrot.slane %v2791, %v2795
  %2798 = vmatprep.subr.mxu0 0.0
  %2799 = vmatpush1.msra.mxu0 %v2775
  %2800 = vmatprep.subr.mxu0 0.0
  %2801 = vmatpush1.msra.mxu0 %v2776
  %2802 = vmatprep.subr.mxu0 0.0
  %2803 = vmatpush1.msra.mxu0 %v2777
  %2804 = vmatprep.subr.mxu0 0.0
  %2805 = vmatpush1.msra.mxu0 %v2778
  %2806 = vmatprep.subr.mxu0 0.0
  %2807 = vmatpush1.msra.mxu0 %v2779
  %2808 = vmatprep.subr.mxu0 0.0
  %2809 = vmatpush1.msra.mxu0 %v2780
  %2810 = vmatprep.subr.mxu0 0.0
  %2811 = vmatpush1.msra.mxu0 %v2781
  %2812 = vmatprep.subr.mxu0 0.0
  %2813 = vmatpush1.msra.mxu0 %v2782
  %2814 = vmatprep.subr.mxu0 0.0
  %2815 = vmatpush1.msra.mxu0 %v2783
  %2816 = vmatprep.subr.mxu0 0.0
  %2817 = vmatpush1.msra.mxu0 %v2784
  %2818 = vmatprep.subr.mxu0 0.0
  %2819 = vmatpush1.msra.mxu0 %v2785
  %2820 = vmatprep.subr.mxu0 0.0
  %2821 = vmatpush1.msra.mxu0 %v2786
  %2822 = vmatprep.subr.mxu0 0.0
  %2823 = vmatpush1.msra.mxu0 %v2787
  %2824 = vmatprep.subr.mxu0 0.0
  %2825 = vmatpush1.msra.mxu0 %v2788
  %2826 = vmatprep.subr.mxu0 0.0
  %2827 = vmatpush1.msra.mxu0 %v2789
  %2828 = vmatprep.subr.mxu0 0.0
  %2829 = vmatpush1.msra.mxu0 %v2790
  %2830 = vmatprep.subr.mxu0 0.0
  %2831 = vmatpush1.msra.mxu0 0.0
  %2832 = vmatprep.subr.mxu0 0.0
  %2833 = vmatpush1.msra.mxu0 0.0
  %2834 = vmatprep.subr.mxu0 0.0
  %2835 = vmatpush1.msra.mxu0 0.0
  %2836 = vmatprep.subr.mxu0 0.0
  %2837 = vmatpush1.msra.mxu0 0.0
  %2838 = vmatprep.subr.mxu0 0.0
  %2839 = vmatpush1.msra.mxu0 0.0
  %2840 = vmatprep.subr.mxu0 0.0
  %2841 = vmatpush1.msra.mxu0 0.0
  %2842 = vmatprep.subr.mxu0 0.0
  %2843 = vmatpush1.msra.mxu0 0.0
  %2844 = vmatprep.subr.mxu0 0.0
  %2845 = vmatpush1.msra.mxu0 0.0
  %2846 = vmatprep.subr.mxu0 0.0
  %2847 = vmatpush1.msra.mxu0 0.0
  %2848 = vmatprep.subr.mxu0 0.0
  %2849 = vmatpush1.msra.mxu0 0.0
  %2850 = vmatprep.subr.mxu0 0.0
  %2851 = vmatpush1.msra.mxu0 0.0
  %2852 = vmatprep.subr.mxu0 0.0
  %2853 = vmatpush1.msra.mxu0 0.0
  %2854 = vmatprep.subr.mxu0 0.0
  %2855 = vmatpush1.msra.mxu0 0.0
  %2856 = vmatprep.subr.mxu0 0.0
  %2857 = vmatpush1.msra.mxu0 0.0
  %2858 = vmatprep.subr.mxu0 0.0
  %2859 = vmatpush1.msra.mxu0 0.0
  %2860 = vmatprep.subr.mxu0 0.0
  %2861 = vmatpush1.msra.mxu0 0.0
  %2862 = vmatprep.mubr.f32.mxu0 0.0
  %2863 = vmatmul.mubr.f32.gmra.mrb[0].mxu0 %v2773
  %v2864 = vpop.f32.mrb[0].mxu0
  %v2865 = vadd.f32 %v2796, %v2864
  %v2866 = vpop.f32.mrb[0].mxu0
  %2867 = vmatprep.mubr.f32.mxu0 0.0
  %2868 = vmatmul.mubr.f32.gmra.mrb[0].mxu0 %v2774
  %v2869 = vpop.f32.mrb[0].mxu0
  %v2870 = vadd.f32 %v2796, %v2869
  %v2871 = vpop.f32.mrb[0].mxu0
  %2872 = vdwg.mxu0
  %v2873 = vadd.f32 %v2679, %v2865
  %v2874 = vadd.f32 %v2680, %v2870
  %v2875 = vld [vmem:[%s13] sm:$0x1]
  %v2876 = vld [vmem:[%s14] sm:$0x1]
  %v2877 = vsel %vm166, %v2873, 0.0
  %2878 = vadd.xlane.f32.xlu0 %v2877
  %v2879 = vpop.xlane.xlu0 %2878
  %v2880 = vsel %vm166, %v2874, 0.0
  %2881 = vadd.xlane.f32.xlu0 %v2880
  %v2882 = vpop.xlane.xlu0 %2881
  %v2883 = vmul.f32 %v2879, %v2644
  %v2884 = vmul.f32 %v2882, %v2644
  %v2885 = vsub.f32 %v2873, %v2883
  %v2886 = vsub.f32 %v2874, %v2884
  %v2887 = vmul.f32 %v2885, %v2885
  %v2888 = vmul.f32 %v2886, %v2886
  %v2889 = vsel %vm166, %v2887, 0.0
  %2890 = vadd.xlane.f32.xlu0 %v2889
  %v2891 = vpop.xlane.xlu0 %2890
  %v2892 = vsel %vm166, %v2888, 0.0
  %2893 = vadd.xlane.f32.xlu0 %v2892
  %v2894 = vpop.xlane.xlu0 %2893
  %v2895 = vmul.f32 %v2891, %v2644
  %v2896 = vmul.f32 %v2894, %v2644
  %v2897 = vadd.f32 %v2895, 1e-05
  %v2898 = vadd.f32 %v2896, 1e-05
  %v2899 = vrsqrt.pop %v2897
  %v2900 = vrsqrt.pop %v2898
  %v2901 = vmul.f32 %v2885, %v2899
  %v2902 = vmul.f32 %v2886, %v2900
  %v2904 = vlaneseq
  %v2905 = vshrl.u32 %v2904, 7
  %v2906 = vsub.s32 0, %v2905
  %v2907 = vrot.slane %v2875, %v2906
  %v2909 = vmul.f32 %v2901, %v2907
  %v2910 = vmul.f32 %v2902, %v2907
  %v2912 = vlaneseq
  %v2913 = vshrl.u32 %v2912, 7
  %v2914 = vsub.s32 0, %v2913
  %v2915 = vrot.slane %v2876, %v2914
  %v2917 = vadd.f32 %v2909, %v2915
  %v2918 = vadd.f32 %v2910, %v2915
  %s2919 = scalar_lea.vmem %s3, 384
  %v2920 = vld [vmem:[%s2919] sm:$0xff]
  %v2921 = vld [vmem:[%s2919 + $0x8] sm:$0xff]
  %v2922 = vld [vmem:[%s2919 + $0x10] sm:$0xff]
  %v2923 = vld [vmem:[%s2919 + $0x18] sm:$0xff]
  %s2924 = scalar_lea.vmem %s4, 12
  %v2925 = vld [vmem:[%s2924] sm:$0x1]
  %v2927 = vlaneseq
  %v2928 = vshrl.u32 %v2927, 7
  %v2929 = vsub.s32 0, %v2928
  %v2930 = vrot.slane %v2925, %v2929
  %v2933 = vsel %vm166, %v2917, 0
  %v2936 = vsel %vm166, %v2918, 0
  %2938 = vmatprep.subr.mxu0 0.0
  %2939 = vmatpush1.msra.mxu0 %v2920
  %2940 = vmatprep.subr.mxu0 0.0
  %2941 = vmatpush1.msra.mxu0 %v2921
  %2942 = vmatprep.subr.mxu0 0.0
  %2943 = vmatpush1.msra.mxu0 %v2922
  %2944 = vmatprep.subr.mxu0 0.0
  %2945 = vmatpush1.msra.mxu0 %v2923
  %2946 = vmatprep.subr.mxu0 0.0
  %2947 = vmatpush1.msra.mxu0 0.0
  %2948 = vmatprep.subr.mxu0 0.0
  %2949 = vmatpush1.msra.mxu0 0.0
  %2950 = vmatprep.subr.mxu0 0.0
  %2951 = vmatpush1.msra.mxu0 0.0
  %2952 = vmatprep.subr.mxu0 0.0
  %2953 = vmatpush1.msra.mxu0 0.0
  %2954 = vmatprep.subr.mxu0 0.0
  %2955 = vmatpush1.msra.mxu0 0.0
  %2956 = vmatprep.subr.mxu0 0.0
  %2957 = vmatpush1.msra.mxu0 0.0
  %2958 = vmatprep.subr.mxu0 0.0
  %2959 = vmatpush1.msra.mxu0 0.0
  %2960 = vmatprep.subr.mxu0 0.0
  %2961 = vmatpush1.msra.mxu0 0.0
  %2962 = vmatprep.subr.mxu0 0.0
  %2963 = vmatpush1.msra.mxu0 0.0
  %2964 = vmatprep.subr.mxu0 0.0
  %2965 = vmatpush1.msra.mxu0 0.0
  %2966 = vmatprep.subr.mxu0 0.0
  %2967 = vmatpush1.msra.mxu0 0.0
  %2968 = vmatprep.subr.mxu0 0.0
  %2969 = vmatpush1.msra.mxu0 0.0
  %2970 = vmatprep.subr.mxu0 0.0
  %2971 = vmatpush1.msra.mxu0 0.0
  %2972 = vmatprep.subr.mxu0 0.0
  %2973 = vmatpush1.msra.mxu0 0.0
  %2974 = vmatprep.subr.mxu0 0.0
  %2975 = vmatpush1.msra.mxu0 0.0
  %2976 = vmatprep.subr.mxu0 0.0
  %2977 = vmatpush1.msra.mxu0 0.0
  %2978 = vmatprep.subr.mxu0 0.0
  %2979 = vmatpush1.msra.mxu0 0.0
  %2980 = vmatprep.subr.mxu0 0.0
  %2981 = vmatpush1.msra.mxu0 0.0
  %2982 = vmatprep.subr.mxu0 0.0
  %2983 = vmatpush1.msra.mxu0 0.0
  %2984 = vmatprep.subr.mxu0 0.0
  %2985 = vmatpush1.msra.mxu0 0.0
  %2986 = vmatprep.subr.mxu0 0.0
  %2987 = vmatpush1.msra.mxu0 0.0
  %2988 = vmatprep.subr.mxu0 0.0
  %2989 = vmatpush1.msra.mxu0 0.0
  %2990 = vmatprep.subr.mxu0 0.0
  %2991 = vmatpush1.msra.mxu0 0.0
  %2992 = vmatprep.subr.mxu0 0.0
  %2993 = vmatpush1.msra.mxu0 0.0
  %2994 = vmatprep.subr.mxu0 0.0
  %2995 = vmatpush1.msra.mxu0 0.0
  %2996 = vmatprep.subr.mxu0 0.0
  %2997 = vmatpush1.msra.mxu0 0.0
  %2998 = vmatprep.subr.mxu0 0.0
  %2999 = vmatpush1.msra.mxu0 0.0
  %3000 = vmatprep.subr.mxu0 0.0
  %3001 = vmatpush1.msra.mxu0 0.0
  %3002 = vmatprep.mubr.f32.mxu0 0.0
  %3003 = vmatmul.mubr.f32.gmra.mrb[0].mxu0 %v2933
  %v3004 = vpop.f32.mrb[0].mxu0
  %v3005 = vadd.f32 %v2930, %v3004
  %v3006 = vpop.f32.mrb[0].mxu0
  %3007 = vmatprep.mubr.f32.mxu0 0.0
  %3008 = vmatmul.mubr.f32.gmra.mrb[0].mxu0 %v2936
  %v3009 = vpop.f32.mrb[0].mxu0
  %v3010 = vadd.f32 %v2930, %v3009
  %v3011 = vpop.f32.mrb[0].mxu0
  %3012 = vdwg.mxu0
  %s3013 = scalar_lea.vmem %s3, 512
  %v3014 = vld [vmem:[%s3013] sm:$0xff]
  %v3015 = vld [vmem:[%s3013 + $0x8] sm:$0xff]
  %v3016 = vld [vmem:[%s3013 + $0x10] sm:$0xff]
  %v3017 = vld [vmem:[%s3013 + $0x18] sm:$0xff]
  %s3018 = scalar_lea.vmem %s4, 16
  %v3019 = vld [vmem:[%s3018] sm:$0x1]
  %v3021 = vlaneseq
  %v3022 = vshrl.u32 %v3021, 7
  %v3023 = vsub.s32 0, %v3022
  %v3024 = vrot.slane %v3019, %v3023
  %3026 = vmatprep.subr.mxu0 0.0
  %3027 = vmatpush1.msra.mxu0 %v3014
  %3028 = vmatprep.subr.mxu0 0.0
  %3029 = vmatpush1.msra.mxu0 %v3015
  %3030 = vmatprep.subr.mxu0 0.0
  %3031 = vmatpush1.msra.mxu0 %v3016
  %3032 = vmatprep.subr.mxu0 0.0
  %3033 = vmatpush1.msra.mxu0 %v3017
  %3034 = vmatprep.subr.mxu0 0.0
  %3035 = vmatpush1.msra.mxu0 0.0
  %3036 = vmatprep.subr.mxu0 0.0
  %3037 = vmatpush1.msra.mxu0 0.0
  %3038 = vmatprep.subr.mxu0 0.0
  %3039 = vmatpush1.msra.mxu0 0.0
  %3040 = vmatprep.subr.mxu0 0.0
  %3041 = vmatpush1.msra.mxu0 0.0
  %3042 = vmatprep.subr.mxu0 0.0
  %3043 = vmatpush1.msra.mxu0 0.0
  %3044 = vmatprep.subr.mxu0 0.0
  %3045 = vmatpush1.msra.mxu0 0.0
  %3046 = vmatprep.subr.mxu0 0.0
  %3047 = vmatpush1.msra.mxu0 0.0
  %3048 = vmatprep.subr.mxu0 0.0
  %3049 = vmatpush1.msra.mxu0 0.0
  %3050 = vmatprep.subr.mxu0 0.0
  %3051 = vmatpush1.msra.mxu0 0.0
  %3052 = vmatprep.subr.mxu0 0.0
  %3053 = vmatpush1.msra.mxu0 0.0
  %3054 = vmatprep.subr.mxu0 0.0
  %3055 = vmatpush1.msra.mxu0 0.0
  %3056 = vmatprep.subr.mxu0 0.0
  %3057 = vmatpush1.msra.mxu0 0.0
  %3058 = vmatprep.subr.mxu0 0.0
  %3059 = vmatpush1.msra.mxu0 0.0
  %3060 = vmatprep.subr.mxu0 0.0
  %3061 = vmatpush1.msra.mxu0 0.0
  %3062 = vmatprep.subr.mxu0 0.0
  %3063 = vmatpush1.msra.mxu0 0.0
  %3064 = vmatprep.subr.mxu0 0.0
  %3065 = vmatpush1.msra.mxu0 0.0
  %3066 = vmatprep.subr.mxu0 0.0
  %3067 = vmatpush1.msra.mxu0 0.0
  %3068 = vmatprep.subr.mxu0 0.0
  %3069 = vmatpush1.msra.mxu0 0.0
  %3070 = vmatprep.subr.mxu0 0.0
  %3071 = vmatpush1.msra.mxu0 0.0
  %3072 = vmatprep.subr.mxu0 0.0
  %3073 = vmatpush1.msra.mxu0 0.0
  %3074 = vmatprep.subr.mxu0 0.0
  %3075 = vmatpush1.msra.mxu0 0.0
  %3076 = vmatprep.subr.mxu0 0.0
  %3077 = vmatpush1.msra.mxu0 0.0
  %3078 = vmatprep.subr.mxu0 0.0
  %3079 = vmatpush1.msra.mxu0 0.0
  %3080 = vmatprep.subr.mxu0 0.0
  %3081 = vmatpush1.msra.mxu0 0.0
  %3082 = vmatprep.subr.mxu0 0.0
  %3083 = vmatpush1.msra.mxu0 0.0
  %3084 = vmatprep.subr.mxu0 0.0
  %3085 = vmatpush1.msra.mxu0 0.0
  %3086 = vmatprep.subr.mxu0 0.0
  %3087 = vmatpush1.msra.mxu0 0.0
  %3088 = vmatprep.subr.mxu0 0.0
  %3089 = vmatpush1.msra.mxu0 0.0
  %3090 = vmatprep.mubr.f32.mxu0 0.0
  %3091 = vmatmul.mubr.f32.gmra.mrb[0].mxu0 %v2933
  %v3092 = vpop.f32.mrb[0].mxu0
  %v3093 = vadd.f32 %v3024, %v3092
  %v3094 = vpop.f32.mrb[0].mxu0
  %3095 = vmatprep.mubr.f32.mxu0 0.0
  %3096 = vmatmul.mubr.f32.gmra.mrb[0].mxu0 %v2936
  %v3097 = vpop.f32.mrb[0].mxu0
  %v3098 = vadd.f32 %v3024, %v3097
  %v3099 = vpop.f32.mrb[0].mxu0
  %3100 = vdwg.mxu0
  %s3101 = scalar_lea.vmem %s3, 640
  %v3102 = vld [vmem:[%s3101] sm:$0xff]
  %v3103 = vld [vmem:[%s3101 + $0x8] sm:$0xff]
  %v3104 = vld [vmem:[%s3101 + $0x10] sm:$0xff]
  %v3105 = vld [vmem:[%s3101 + $0x18] sm:$0xff]
  %s3106 = scalar_lea.vmem %s4, 20
  %v3107 = vld [vmem:[%s3106] sm:$0x1]
  %v3109 = vlaneseq
  %v3110 = vshrl.u32 %v3109, 7
  %v3111 = vsub.s32 0, %v3110
  %v3112 = vrot.slane %v3107, %v3111
  %3114 = vmatprep.subr.mxu0 0.0
  %3115 = vmatpush1.msra.mxu0 %v3102
  %3116 = vmatprep.subr.mxu0 0.0
  %3117 = vmatpush1.msra.mxu0 %v3103
  %3118 = vmatprep.subr.mxu0 0.0
  %3119 = vmatpush1.msra.mxu0 %v3104
  %3120 = vmatprep.subr.mxu0 0.0
  %3121 = vmatpush1.msra.mxu0 %v3105
  %3122 = vmatprep.subr.mxu0 0.0
  %3123 = vmatpush1.msra.mxu0 0.0
  %3124 = vmatprep.subr.mxu0 0.0
  %3125 = vmatpush1.msra.mxu0 0.0
  %3126 = vmatprep.subr.mxu0 0.0
  %3127 = vmatpush1.msra.mxu0 0.0
  %3128 = vmatprep.subr.mxu0 0.0
  %3129 = vmatpush1.msra.mxu0 0.0
  %3130 = vmatprep.subr.mxu0 0.0
  %3131 = vmatpush1.msra.mxu0 0.0
  %3132 = vmatprep.subr.mxu0 0.0
  %3133 = vmatpush1.msra.mxu0 0.0
  %3134 = vmatprep.subr.mxu0 0.0
  %3135 = vmatpush1.msra.mxu0 0.0
  %3136 = vmatprep.subr.mxu0 0.0
  %3137 = vmatpush1.msra.mxu0 0.0
  %3138 = vmatprep.subr.mxu0 0.0
  %3139 = vmatpush1.msra.mxu0 0.0
  %3140 = vmatprep.subr.mxu0 0.0
  %3141 = vmatpush1.msra.mxu0 0.0
  %3142 = vmatprep.subr.mxu0 0.0
  %3143 = vmatpush1.msra.mxu0 0.0
  %3144 = vmatprep.subr.mxu0 0.0
  %3145 = vmatpush1.msra.mxu0 0.0
  %3146 = vmatprep.subr.mxu0 0.0
  %3147 = vmatpush1.msra.mxu0 0.0
  %3148 = vmatprep.subr.mxu0 0.0
  %3149 = vmatpush1.msra.mxu0 0.0
  %3150 = vmatprep.subr.mxu0 0.0
  %3151 = vmatpush1.msra.mxu0 0.0
  %3152 = vmatprep.subr.mxu0 0.0
  %3153 = vmatpush1.msra.mxu0 0.0
  %3154 = vmatprep.subr.mxu0 0.0
  %3155 = vmatpush1.msra.mxu0 0.0
  %3156 = vmatprep.subr.mxu0 0.0
  %3157 = vmatpush1.msra.mxu0 0.0
  %3158 = vmatprep.subr.mxu0 0.0
  %3159 = vmatpush1.msra.mxu0 0.0
  %3160 = vmatprep.subr.mxu0 0.0
  %3161 = vmatpush1.msra.mxu0 0.0
  %3162 = vmatprep.subr.mxu0 0.0
  %3163 = vmatpush1.msra.mxu0 0.0
  %3164 = vmatprep.subr.mxu0 0.0
  %3165 = vmatpush1.msra.mxu0 0.0
  %3166 = vmatprep.subr.mxu0 0.0
  %3167 = vmatpush1.msra.mxu0 0.0
  %3168 = vmatprep.subr.mxu0 0.0
  %3169 = vmatpush1.msra.mxu0 0.0
  %3170 = vmatprep.subr.mxu0 0.0
  %3171 = vmatpush1.msra.mxu0 0.0
  %3172 = vmatprep.subr.mxu0 0.0
  %3173 = vmatpush1.msra.mxu0 0.0
  %3174 = vmatprep.subr.mxu0 0.0
  %3175 = vmatpush1.msra.mxu0 0.0
  %3176 = vmatprep.subr.mxu0 0.0
  %3177 = vmatpush1.msra.mxu0 0.0
  %3178 = vmatprep.mubr.f32.mxu0 0.0
  %3179 = vmatmul.mubr.f32.gmra.mrb[0].mxu0 %v2933
  %v3180 = vpop.f32.mrb[0].mxu0
  %v3181 = vadd.f32 %v3112, %v3180
  %v3182 = vpop.f32.mrb[0].mxu0
  %3183 = vmatprep.mubr.f32.mxu0 0.0
  %3184 = vmatmul.mubr.f32.gmra.mrb[0].mxu0 %v2936
  %v3185 = vpop.f32.mrb[0].mxu0
  %v3186 = vadd.f32 %v3112, %v3185
  %v3187 = vpop.f32.mrb[0].mxu0
  %3188 = vdwg.mxu0
  %v3190 = vsel %vm424, %v3005, 0
  %v3193 = vsel %vm424, %v3093, 0
  %3195 = vmatprep.subr.mxu0 0.0
  %3196 = vmatpush1.xpose.msra.mxu0 %v3193
  %3197 = vmatprep.subr.mxu0 0.0
  %3198 = vmatpush1.xpose.msra.mxu0 0.0
  %3199 = vmatprep.subr.mxu0 0.0
  %3200 = vmatpush1.xpose.msra.mxu0 0.0
  %3201 = vmatprep.subr.mxu0 0.0
  %3202 = vmatpush1.xpose.msra.mxu0 0.0
  %3203 = vmatprep.subr.mxu0 0.0
  %3204 = vmatpush1.xpose.msra.mxu0 0.0
  %3205 = vmatprep.subr.mxu0 0.0
  %3206 = vmatpush1.xpose.msra.mxu0 0.0
  %3207 = vmatprep.subr.mxu0 0.0
  %3208 = vmatpush1.xpose.msra.mxu0 0.0
  %3209 = vmatprep.subr.mxu0 0.0
  %3210 = vmatpush1.xpose.msra.mxu0 0.0
  %3211 = vmatprep.subr.mxu0 0.0
  %3212 = vmatpush1.xpose.msra.mxu0 0.0
  %3213 = vmatprep.subr.mxu0 0.0
  %3214 = vmatpush1.xpose.msra.mxu0 0.0
  %3215 = vmatprep.subr.mxu0 0.0
  %3216 = vmatpush1.xpose.msra.mxu0 0.0
  %3217 = vmatprep.subr.mxu0 0.0
  %3218 = vmatpush1.xpose.msra.mxu0 0.0
  %3219 = vmatprep.subr.mxu0 0.0
  %3220 = vmatpush1.xpose.msra.mxu0 0.0
  %3221 = vmatprep.subr.mxu0 0.0
  %3222 = vmatpush1.xpose.msra.mxu0 0.0
  %3223 = vmatprep.subr.mxu0 0.0
  %3224 = vmatpush1.xpose.msra.mxu0 0.0
  %3225 = vmatprep.subr.mxu0 0.0
  %3226 = vmatpush1.xpose.msra.mxu0 0.0
  %3227 = vmatprep.subr.mxu0 0.0
  %3228 = vmatpush1.xpose.msra.mxu0 0.0
  %3229 = vmatprep.subr.mxu0 0.0
  %3230 = vmatpush1.xpose.msra.mxu0 0.0
  %3231 = vmatprep.subr.mxu0 0.0
  %3232 = vmatpush1.xpose.msra.mxu0 0.0
  %3233 = vmatprep.subr.mxu0 0.0
  %3234 = vmatpush1.xpose.msra.mxu0 0.0
  %3235 = vmatprep.subr.mxu0 0.0
  %3236 = vmatpush1.xpose.msra.mxu0 0.0
  %3237 = vmatprep.subr.mxu0 0.0
  %3238 = vmatpush1.xpose.msra.mxu0 0.0
  %3239 = vmatprep.subr.mxu0 0.0
  %3240 = vmatpush1.xpose.msra.mxu0 0.0
  %3241 = vmatprep.subr.mxu0 0.0
  %3242 = vmatpush1.xpose.msra.mxu0 0.0
  %3243 = vmatprep.subr.mxu0 0.0
  %3244 = vmatpush1.xpose.msra.mxu0 0.0
  %3245 = vmatprep.subr.mxu0 0.0
  %3246 = vmatpush1.xpose.msra.mxu0 0.0
  %3247 = vmatprep.subr.mxu0 0.0
  %3248 = vmatpush1.xpose.msra.mxu0 0.0
  %3249 = vmatprep.subr.mxu0 0.0
  %3250 = vmatpush1.xpose.msra.mxu0 0.0
  %3251 = vmatprep.subr.mxu0 0.0
  %3252 = vmatpush1.xpose.msra.mxu0 0.0
  %3253 = vmatprep.subr.mxu0 0.0
  %3254 = vmatpush1.xpose.msra.mxu0 0.0
  %3255 = vmatprep.subr.mxu0 0.0
  %3256 = vmatpush1.xpose.msra.mxu0 0.0
  %3257 = vmatprep.subr.mxu0 0.0
  %3258 = vmatpush1.xpose.msra.mxu0 0.0
  %3259 = vmatprep.mubr.f32.mxu0 0.0
  %3260 = vmatmul.mubr.f32.gmra.mrb[0].mxu0 %v3190
  %v3261 = vpop.f32.mrb[0].mxu0
  %v3262 = vadd.f32 0.0, %v3261
  %v3263 = vpop.f32.mrb[0].mxu0
  %3264 = vdwg.mxu0
  %v3266 = vsel %vm424, %v3010, 0
  %v3269 = vsel %vm424, %v3098, 0
  %3271 = vmatprep.subr.mxu0 0.0
  %3272 = vmatpush1.xpose.msra.mxu0 %v3269
  %3273 = vmatprep.subr.mxu0 0.0
  %3274 = vmatpush1.xpose.msra.mxu0 0.0
  %3275 = vmatprep.subr.mxu0 0.0
  %3276 = vmatpush1.xpose.msra.mxu0 0.0
  %3277 = vmatprep.subr.mxu0 0.0
  %3278 = vmatpush1.xpose.msra.mxu0 0.0
  %3279 = vmatprep.subr.mxu0 0.0
  %3280 = vmatpush1.xpose.msra.mxu0 0.0
  %3281 = vmatprep.subr.mxu0 0.0
  %3282 = vmatpush1.xpose.msra.mxu0 0.0
  %3283 = vmatprep.subr.mxu0 0.0
  %3284 = vmatpush1.xpose.msra.mxu0 0.0
  %3285 = vmatprep.subr.mxu0 0.0
  %3286 = vmatpush1.xpose.msra.mxu0 0.0
  %3287 = vmatprep.subr.mxu0 0.0
  %3288 = vmatpush1.xpose.msra.mxu0 0.0
  %3289 = vmatprep.subr.mxu0 0.0
  %3290 = vmatpush1.xpose.msra.mxu0 0.0
  %3291 = vmatprep.subr.mxu0 0.0
  %3292 = vmatpush1.xpose.msra.mxu0 0.0
  %3293 = vmatprep.subr.mxu0 0.0
  %3294 = vmatpush1.xpose.msra.mxu0 0.0
  %3295 = vmatprep.subr.mxu0 0.0
  %3296 = vmatpush1.xpose.msra.mxu0 0.0
  %3297 = vmatprep.subr.mxu0 0.0
  %3298 = vmatpush1.xpose.msra.mxu0 0.0
  %3299 = vmatprep.subr.mxu0 0.0
  %3300 = vmatpush1.xpose.msra.mxu0 0.0
  %3301 = vmatprep.subr.mxu0 0.0
  %3302 = vmatpush1.xpose.msra.mxu0 0.0
  %3303 = vmatprep.subr.mxu0 0.0
  %3304 = vmatpush1.xpose.msra.mxu0 0.0
  %3305 = vmatprep.subr.mxu0 0.0
  %3306 = vmatpush1.xpose.msra.mxu0 0.0
  %3307 = vmatprep.subr.mxu0 0.0
  %3308 = vmatpush1.xpose.msra.mxu0 0.0
  %3309 = vmatprep.subr.mxu0 0.0
  %3310 = vmatpush1.xpose.msra.mxu0 0.0
  %3311 = vmatprep.subr.mxu0 0.0
  %3312 = vmatpush1.xpose.msra.mxu0 0.0
  %3313 = vmatprep.subr.mxu0 0.0
  %3314 = vmatpush1.xpose.msra.mxu0 0.0
  %3315 = vmatprep.subr.mxu0 0.0
  %3316 = vmatpush1.xpose.msra.mxu0 0.0
  %3317 = vmatprep.subr.mxu0 0.0
  %3318 = vmatpush1.xpose.msra.mxu0 0.0
  %3319 = vmatprep.subr.mxu0 0.0
  %3320 = vmatpush1.xpose.msra.mxu0 0.0
  %3321 = vmatprep.subr.mxu0 0.0
  %3322 = vmatpush1.xpose.msra.mxu0 0.0
  %3323 = vmatprep.subr.mxu0 0.0
  %3324 = vmatpush1.xpose.msra.mxu0 0.0
  %3325 = vmatprep.subr.mxu0 0.0
  %3326 = vmatpush1.xpose.msra.mxu0 0.0
  %3327 = vmatprep.subr.mxu0 0.0
  %3328 = vmatpush1.xpose.msra.mxu0 0.0
  %3329 = vmatprep.subr.mxu0 0.0
  %3330 = vmatpush1.xpose.msra.mxu0 0.0
  %3331 = vmatprep.subr.mxu0 0.0
  %3332 = vmatpush1.xpose.msra.mxu0 0.0
  %3333 = vmatprep.subr.mxu0 0.0
  %3334 = vmatpush1.xpose.msra.mxu0 0.0
  %3335 = vmatprep.mubr.f32.mxu0 0.0
  %3336 = vmatmul.mubr.f32.gmra.mrb[0].mxu0 %v3266
  %v3337 = vpop.f32.mrb[0].mxu0
  %v3338 = vadd.f32 0.0, %v3337
  %v3339 = vpop.f32.mrb[0].mxu0
  %3340 = vdwg.mxu0
  %v3341 = vmul.f32 %v3262, 0.35355338
  %v3342 = vmul.f32 %v3338, 0.35355338
  %v3343 = vsel %vm424, %v3341, -inf
  %3344 = vmax.xlane.f32.xlu0 %v3343
  %v3345 = vpop.xlane.xlu0 %3344
  %v3346 = vsel %vm424, %v3342, -inf
  %3347 = vmax.xlane.f32.xlu0 %v3346
  %v3348 = vpop.xlane.xlu0 %3347
  %v3349 = vsub.f32 %v3341, %v3345
  %v3350 = vsub.f32 %v3342, %v3348
  %v3351 = vmul.f32 %v3349, 1.442695
  %v3352 = vpow.pop %v3351
  %v3353 = vmul.f32 %v3350, 1.442695
  %v3354 = vpow.pop %v3353
  %v3355 = vsel %vm424, %v3352, 0.0
  %3356 = vadd.xlane.f32.xlu0 %v3355
  %v3357 = vpop.xlane.xlu0 %3356
  %v3358 = vsel %vm424, %v3354, 0.0
  %3359 = vadd.xlane.f32.xlu0 %v3358
  %v3360 = vpop.xlane.xlu0 %3359
  %v3361 = vrcp.pop %v3357
  %v3362 = vrcp.pop %v3360
  %v3363 = vmul.f32 %v3352, %v3361
  %v3364 = vmul.f32 %v3354, %v3362
  %v3366 = vsel %vm424, %v3363, 0
  %3368 = vmatprep.subr.mxu0 0.0
  %3369 = vmatpush1.msra.mxu0 %v3181
  %3370 = vmatprep.subr.mxu0 0.0
  %3371 = vmatpush1.msra.mxu0 0.0
  %3372 = vmatprep.subr.mxu0 0.0
  %3373 = vmatpush1.msra.mxu0 0.0
  %3374 = vmatprep.subr.mxu0 0.0
  %3375 = vmatpush1.msra.mxu0 0.0
  %3376 = vmatprep.subr.mxu0 0.0
  %3377 = vmatpush1.msra.mxu0 0.0
  %3378 = vmatprep.subr.mxu0 0.0
  %3379 = vmatpush1.msra.mxu0 0.0
  %3380 = vmatprep.subr.mxu0 0.0
  %3381 = vmatpush1.msra.mxu0 0.0
  %3382 = vmatprep.subr.mxu0 0.0
  %3383 = vmatpush1.msra.mxu0 0.0
  %3384 = vmatprep.subr.mxu0 0.0
  %3385 = vmatpush1.msra.mxu0 0.0
  %3386 = vmatprep.subr.mxu0 0.0
  %3387 = vmatpush1.msra.mxu0 0.0
  %3388 = vmatprep.subr.mxu0 0.0
  %3389 = vmatpush1.msra.mxu0 0.0
  %3390 = vmatprep.subr.mxu0 0.0
  %3391 = vmatpush1.msra.mxu0 0.0
  %3392 = vmatprep.subr.mxu0 0.0
  %3393 = vmatpush1.msra.mxu0 0.0
  %3394 = vmatprep.subr.mxu0 0.0
  %3395 = vmatpush1.msra.mxu0 0.0
  %3396 = vmatprep.subr.mxu0 0.0
  %3397 = vmatpush1.msra.mxu0 0.0
  %3398 = vmatprep.subr.mxu0 0.0
  %3399 = vmatpush1.msra.mxu0 0.0
  %3400 = vmatprep.subr.mxu0 0.0
  %3401 = vmatpush1.msra.mxu0 0.0
  %3402 = vmatprep.subr.mxu0 0.0
  %3403 = vmatpush1.msra.mxu0 0.0
  %3404 = vmatprep.subr.mxu0 0.0
  %3405 = vmatpush1.msra.mxu0 0.0
  %3406 = vmatprep.subr.mxu0 0.0
  %3407 = vmatpush1.msra.mxu0 0.0
  %3408 = vmatprep.subr.mxu0 0.0
  %3409 = vmatpush1.msra.mxu0 0.0
  %3410 = vmatprep.subr.mxu0 0.0
  %3411 = vmatpush1.msra.mxu0 0.0
  %3412 = vmatprep.subr.mxu0 0.0
  %3413 = vmatpush1.msra.mxu0 0.0
  %3414 = vmatprep.subr.mxu0 0.0
  %3415 = vmatpush1.msra.mxu0 0.0
  %3416 = vmatprep.subr.mxu0 0.0
  %3417 = vmatpush1.msra.mxu0 0.0
  %3418 = vmatprep.subr.mxu0 0.0
  %3419 = vmatpush1.msra.mxu0 0.0
  %3420 = vmatprep.subr.mxu0 0.0
  %3421 = vmatpush1.msra.mxu0 0.0
  %3422 = vmatprep.subr.mxu0 0.0
  %3423 = vmatpush1.msra.mxu0 0.0
  %3424 = vmatprep.subr.mxu0 0.0
  %3425 = vmatpush1.msra.mxu0 0.0
  %3426 = vmatprep.subr.mxu0 0.0
  %3427 = vmatpush1.msra.mxu0 0.0
  %3428 = vmatprep.subr.mxu0 0.0
  %3429 = vmatpush1.msra.mxu0 0.0
  %3430 = vmatprep.subr.mxu0 0.0
  %3431 = vmatpush1.msra.mxu0 0.0
  %3432 = vmatprep.mubr.f32.mxu0 0.0
  %3433 = vmatmul.mubr.f32.gmra.mrb[0].mxu0 %v3366
  %v3434 = vpop.f32.mrb[0].mxu0
  %v3435 = vadd.f32 0.0, %v3434
  %v3436 = vpop.f32.mrb[0].mxu0
  %3437 = vdwg.mxu0
  %v3439 = vsel %vm424, %v3364, 0
  %3441 = vmatprep.subr.mxu0 0.0
  %3442 = vmatpush1.msra.mxu0 %v3186
  %3443 = vmatprep.subr.mxu0 0.0
  %3444 = vmatpush1.msra.mxu0 0.0
  %3445 = vmatprep.subr.mxu0 0.0
  %3446 = vmatpush1.msra.mxu0 0.0
  %3447 = vmatprep.subr.mxu0 0.0
  %3448 = vmatpush1.msra.mxu0 0.0
  %3449 = vmatprep.subr.mxu0 0.0
  %3450 = vmatpush1.msra.mxu0 0.0
  %3451 = vmatprep.subr.mxu0 0.0
  %3452 = vmatpush1.msra.mxu0 0.0
  %3453 = vmatprep.subr.mxu0 0.0
  %3454 = vmatpush1.msra.mxu0 0.0
  %3455 = vmatprep.subr.mxu0 0.0
  %3456 = vmatpush1.msra.mxu0 0.0
  %3457 = vmatprep.subr.mxu0 0.0
  %3458 = vmatpush1.msra.mxu0 0.0
  %3459 = vmatprep.subr.mxu0 0.0
  %3460 = vmatpush1.msra.mxu0 0.0
  %3461 = vmatprep.subr.mxu0 0.0
  %3462 = vmatpush1.msra.mxu0 0.0
  %3463 = vmatprep.subr.mxu0 0.0
  %3464 = vmatpush1.msra.mxu0 0.0
  %3465 = vmatprep.subr.mxu0 0.0
  %3466 = vmatpush1.msra.mxu0 0.0
  %3467 = vmatprep.subr.mxu0 0.0
  %3468 = vmatpush1.msra.mxu0 0.0
  %3469 = vmatprep.subr.mxu0 0.0
  %3470 = vmatpush1.msra.mxu0 0.0
  %3471 = vmatprep.subr.mxu0 0.0
  %3472 = vmatpush1.msra.mxu0 0.0
  %3473 = vmatprep.subr.mxu0 0.0
  %3474 = vmatpush1.msra.mxu0 0.0
  %3475 = vmatprep.subr.mxu0 0.0
  %3476 = vmatpush1.msra.mxu0 0.0
  %3477 = vmatprep.subr.mxu0 0.0
  %3478 = vmatpush1.msra.mxu0 0.0
  %3479 = vmatprep.subr.mxu0 0.0
  %3480 = vmatpush1.msra.mxu0 0.0
  %3481 = vmatprep.subr.mxu0 0.0
  %3482 = vmatpush1.msra.mxu0 0.0
  %3483 = vmatprep.subr.mxu0 0.0
  %3484 = vmatpush1.msra.mxu0 0.0
  %3485 = vmatprep.subr.mxu0 0.0
  %3486 = vmatpush1.msra.mxu0 0.0
  %3487 = vmatprep.subr.mxu0 0.0
  %3488 = vmatpush1.msra.mxu0 0.0
  %3489 = vmatprep.subr.mxu0 0.0
  %3490 = vmatpush1.msra.mxu0 0.0
  %3491 = vmatprep.subr.mxu0 0.0
  %3492 = vmatpush1.msra.mxu0 0.0
  %3493 = vmatprep.subr.mxu0 0.0
  %3494 = vmatpush1.msra.mxu0 0.0
  %3495 = vmatprep.subr.mxu0 0.0
  %3496 = vmatpush1.msra.mxu0 0.0
  %3497 = vmatprep.subr.mxu0 0.0
  %3498 = vmatpush1.msra.mxu0 0.0
  %3499 = vmatprep.subr.mxu0 0.0
  %3500 = vmatpush1.msra.mxu0 0.0
  %3501 = vmatprep.subr.mxu0 0.0
  %3502 = vmatpush1.msra.mxu0 0.0
  %3503 = vmatprep.subr.mxu0 0.0
  %3504 = vmatpush1.msra.mxu0 0.0
  %3505 = vmatprep.mubr.f32.mxu0 0.0
  %3506 = vmatmul.mubr.f32.gmra.mrb[0].mxu0 %v3439
  %v3507 = vpop.f32.mrb[0].mxu0
  %v3508 = vadd.f32 0.0, %v3507
  %v3509 = vpop.f32.mrb[0].mxu0
  %3510 = vdwg.mxu0
  %3511 = vst.msk [vmem:[#allocation2] sm:$0xff] %vm424, %v3435
  %3512 = vst.msk [vmem:[#allocation2 + $0x8] sm:$0xff] %vm424, %v3508
  %s3513 = scalar_lea.vmem %s3, 416
  %v3514 = vld [vmem:[%s3513] sm:$0xff]
  %v3515 = vld [vmem:[%s3513 + $0x8] sm:$0xff]
  %v3516 = vld [vmem:[%s3513 + $0x10] sm:$0xff]
  %v3517 = vld [vmem:[%s3513 + $0x18] sm:$0xff]
  %s3518 = scalar_lea.vmem %s4, 13
  %v3519 = vld [vmem:[%s3518] sm:$0x1]
  %v3521 = vlaneseq
  %v3522 = vshrl.u32 %v3521, 7
  %v3523 = vsub.s32 0, %v3522
  %v3524 = vrot.slane %v3519, %v3523
  %3526 = vmatprep.subr.mxu0 0.0
  %3527 = vmatpush1.msra.mxu0 %v3514
  %3528 = vmatprep.subr.mxu0 0.0
  %3529 = vmatpush1.msra.mxu0 %v3515
  %3530 = vmatprep.subr.mxu0 0.0
  %3531 = vmatpush1.msra.mxu0 %v3516
  %3532 = vmatprep.subr.mxu0 0.0
  %3533 = vmatpush1.msra.mxu0 %v3517
  %3534 = vmatprep.subr.mxu0 0.0
  %3535 = vmatpush1.msra.mxu0 0.0
  %3536 = vmatprep.subr.mxu0 0.0
  %3537 = vmatpush1.msra.mxu0 0.0
  %3538 = vmatprep.subr.mxu0 0.0
  %3539 = vmatpush1.msra.mxu0 0.0
  %3540 = vmatprep.subr.mxu0 0.0
  %3541 = vmatpush1.msra.mxu0 0.0
  %3542 = vmatprep.subr.mxu0 0.0
  %3543 = vmatpush1.msra.mxu0 0.0
  %3544 = vmatprep.subr.mxu0 0.0
  %3545 = vmatpush1.msra.mxu0 0.0
  %3546 = vmatprep.subr.mxu0 0.0
  %3547 = vmatpush1.msra.mxu0 0.0
  %3548 = vmatprep.subr.mxu0 0.0
  %3549 = vmatpush1.msra.mxu0 0.0
  %3550 = vmatprep.subr.mxu0 0.0
  %3551 = vmatpush1.msra.mxu0 0.0
  %3552 = vmatprep.subr.mxu0 0.0
  %3553 = vmatpush1.msra.mxu0 0.0
  %3554 = vmatprep.subr.mxu0 0.0
  %3555 = vmatpush1.msra.mxu0 0.0
  %3556 = vmatprep.subr.mxu0 0.0
  %3557 = vmatpush1.msra.mxu0 0.0
  %3558 = vmatprep.subr.mxu0 0.0
  %3559 = vmatpush1.msra.mxu0 0.0
  %3560 = vmatprep.subr.mxu0 0.0
  %3561 = vmatpush1.msra.mxu0 0.0
  %3562 = vmatprep.subr.mxu0 0.0
  %3563 = vmatpush1.msra.mxu0 0.0
  %3564 = vmatprep.subr.mxu0 0.0
  %3565 = vmatpush1.msra.mxu0 0.0
  %3566 = vmatprep.subr.mxu0 0.0
  %3567 = vmatpush1.msra.mxu0 0.0
  %3568 = vmatprep.subr.mxu0 0.0
  %3569 = vmatpush1.msra.mxu0 0.0
  %3570 = vmatprep.subr.mxu0 0.0
  %3571 = vmatpush1.msra.mxu0 0.0
  %3572 = vmatprep.subr.mxu0 0.0
  %3573 = vmatpush1.msra.mxu0 0.0
  %3574 = vmatprep.subr.mxu0 0.0
  %3575 = vmatpush1.msra.mxu0 0.0
  %3576 = vmatprep.subr.mxu0 0.0
  %3577 = vmatpush1.msra.mxu0 0.0
  %3578 = vmatprep.subr.mxu0 0.0
  %3579 = vmatpush1.msra.mxu0 0.0
  %3580 = vmatprep.subr.mxu0 0.0
  %3581 = vmatpush1.msra.mxu0 0.0
  %3582 = vmatprep.subr.mxu0 0.0
  %3583 = vmatpush1.msra.mxu0 0.0
  %3584 = vmatprep.subr.mxu0 0.0
  %3585 = vmatpush1.msra.mxu0 0.0
  %3586 = vmatprep.subr.mxu0 0.0
  %3587 = vmatpush1.msra.mxu0 0.0
  %3588 = vmatprep.subr.mxu0 0.0
  %3589 = vmatpush1.msra.mxu0 0.0
  %3590 = vmatprep.mubr.f32.mxu0 0.0
  %3591 = vmatmul.mubr.f32.gmra.mrb[0].mxu0 %v2933
  %v3592 = vpop.f32.mrb[0].mxu0
  %v3593 = vadd.f32 %v3524, %v3592
  %v3594 = vpop.f32.mrb[0].mxu0
  %3595 = vmatprep.mubr.f32.mxu0 0.0
  %3596 = vmatmul.mubr.f32.gmra.mrb[0].mxu0 %v2936
  %v3597 = vpop.f32.mrb[0].mxu0
  %v3598 = vadd.f32 %v3524, %v3597
  %v3599 = vpop.f32.mrb[0].mxu0
  %3600 = vdwg.mxu0
  %s3601 = scalar_lea.vmem %s3, 544
  %v3602 = vld [vmem:[%s3601] sm:$0xff]
  %v3603 = vld [vmem:[%s3601 + $0x8] sm:$0xff]
  %v3604 = vld [vmem:[%s3601 + $0x10] sm:$0xff]
  %v3605 = vld [vmem:[%s3601 + $0x18] sm:$0xff]
  %s3606 = scalar_lea.vmem %s4, 17
  %v3607 = vld [vmem:[%s3606] sm:$0x1]
  %v3609 = vlaneseq
  %v3610 = vshrl.u32 %v3609, 7
  %v3611 = vsub.s32 0, %v3610
  %v3612 = vrot.slane %v3607, %v3611
  %3614 = vmatprep.subr.mxu0 0.0
  %3615 = vmatpush1.msra.mxu0 %v3602
  %3616 = vmatprep.subr.mxu0 0.0
  %3617 = vmatpush1.msra.mxu0 %v3603
  %3618 = vmatprep.subr.mxu0 0.0
  %3619 = vmatpush1.msra.mxu0 %v3604
  %3620 = vmatprep.subr.mxu0 0.0
  %3621 = vmatpush1.msra.mxu0 %v3605
  %3622 = vmatprep.subr.mxu0 0.0
  %3623 = vmatpush1.msra.mxu0 0.0
  %3624 = vmatprep.subr.mxu0 0.0
  %3625 = vmatpush1.msra.mxu0 0.0
  %3626 = vmatprep.subr.mxu0 0.0
  %3627 = vmatpush1.msra.mxu0 0.0
  %3628 = vmatprep.subr.mxu0 0.0
  %3629 = vmatpush1.msra.mxu0 0.0
  %3630 = vmatprep.subr.mxu0 0.0
  %3631 = vmatpush1.msra.mxu0 0.0
  %3632 = vmatprep.subr.mxu0 0.0
  %3633 = vmatpush1.msra.mxu0 0.0
  %3634 = vmatprep.subr.mxu0 0.0
  %3635 = vmatpush1.msra.mxu0 0.0
  %3636 = vmatprep.subr.mxu0 0.0
  %3637 = vmatpush1.msra.mxu0 0.0
  %3638 = vmatprep.subr.mxu0 0.0
  %3639 = vmatpush1.msra.mxu0 0.0
  %3640 = vmatprep.subr.mxu0 0.0
  %3641 = vmatpush1.msra.mxu0 0.0
  %3642 = vmatprep.subr.mxu0 0.0
  %3643 = vmatpush1.msra.mxu0 0.0
  %3644 = vmatprep.subr.mxu0 0.0
  %3645 = vmatpush1.msra.mxu0 0.0
  %3646 = vmatprep.subr.mxu0 0.0
  %3647 = vmatpush1.msra.mxu0 0.0
  %3648 = vmatprep.subr.mxu0 0.0
  %3649 = vmatpush1.msra.mxu0 0.0
  %3650 = vmatprep.subr.mxu0 0.0
  %3651 = vmatpush1.msra.mxu0 0.0
  %3652 = vmatprep.subr.mxu0 0.0
  %3653 = vmatpush1.msra.mxu0 0.0
  %3654 = vmatprep.subr.mxu0 0.0
  %3655 = vmatpush1.msra.mxu0 0.0
  %3656 = vmatprep.subr.mxu0 0.0
  %3657 = vmatpush1.msra.mxu0 0.0
  %3658 = vmatprep.subr.mxu0 0.0
  %3659 = vmatpush1.msra.mxu0 0.0
  %3660 = vmatprep.subr.mxu0 0.0
  %3661 = vmatpush1.msra.mxu0 0.0
  %3662 = vmatprep.subr.mxu0 0.0
  %3663 = vmatpush1.msra.mxu0 0.0
  %3664 = vmatprep.subr.mxu0 0.0
  %3665 = vmatpush1.msra.mxu0 0.0
  %3666 = vmatprep.subr.mxu0 0.0
  %3667 = vmatpush1.msra.mxu0 0.0
  %3668 = vmatprep.subr.mxu0 0.0
  %3669 = vmatpush1.msra.mxu0 0.0
  %3670 = vmatprep.subr.mxu0 0.0
  %3671 = vmatpush1.msra.mxu0 0.0
  %3672 = vmatprep.subr.mxu0 0.0
  %3673 = vmatpush1.msra.mxu0 0.0
  %3674 = vmatprep.subr.mxu0 0.0
  %3675 = vmatpush1.msra.mxu0 0.0
  %3676 = vmatprep.subr.mxu0 0.0
  %3677 = vmatpush1.msra.mxu0 0.0
  %3678 = vmatprep.mubr.f32.mxu0 0.0
  %3679 = vmatmul.mubr.f32.gmra.mrb[0].mxu0 %v2933
  %v3680 = vpop.f32.mrb[0].mxu0
  %v3681 = vadd.f32 %v3612, %v3680
  %v3682 = vpop.f32.mrb[0].mxu0
  %3683 = vmatprep.mubr.f32.mxu0 0.0
  %3684 = vmatmul.mubr.f32.gmra.mrb[0].mxu0 %v2936
  %v3685 = vpop.f32.mrb[0].mxu0
  %v3686 = vadd.f32 %v3612, %v3685
  %v3687 = vpop.f32.mrb[0].mxu0
  %3688 = vdwg.mxu0
  %s3689 = scalar_lea.vmem %s3, 672
  %v3690 = vld [vmem:[%s3689] sm:$0xff]
  %v3691 = vld [vmem:[%s3689 + $0x8] sm:$0xff]
  %v3692 = vld [vmem:[%s3689 + $0x10] sm:$0xff]
  %v3693 = vld [vmem:[%s3689 + $0x18] sm:$0xff]
  %s3694 = scalar_lea.vmem %s4, 21
  %v3695 = vld [vmem:[%s3694] sm:$0x1]
  %v3697 = vlaneseq
  %v3698 = vshrl.u32 %v3697, 7
  %v3699 = vsub.s32 0, %v3698
  %v3700 = vrot.slane %v3695, %v3699
  %3702 = vmatprep.subr.mxu0 0.0
  %3703 = vmatpush1.msra.mxu0 %v3690
  %3704 = vmatprep.subr.mxu0 0.0
  %3705 = vmatpush1.msra.mxu0 %v3691
  %3706 = vmatprep.subr.mxu0 0.0
  %3707 = vmatpush1.msra.mxu0 %v3692
  %3708 = vmatprep.subr.mxu0 0.0
  %3709 = vmatpush1.msra.mxu0 %v3693
  %3710 = vmatprep.subr.mxu0 0.0
  %3711 = vmatpush1.msra.mxu0 0.0
  %3712 = vmatprep.subr.mxu0 0.0
  %3713 = vmatpush1.msra.mxu0 0.0
  %3714 = vmatprep.subr.mxu0 0.0
  %3715 = vmatpush1.msra.mxu0 0.0
  %3716 = vmatprep.subr.mxu0 0.0
  %3717 = vmatpush1.msra.mxu0 0.0
  %3718 = vmatprep.subr.mxu0 0.0
  %3719 = vmatpush1.msra.mxu0 0.0
  %3720 = vmatprep.subr.mxu0 0.0
  %3721 = vmatpush1.msra.mxu0 0.0
  %3722 = vmatprep.subr.mxu0 0.0
  %3723 = vmatpush1.msra.mxu0 0.0
  %3724 = vmatprep.subr.mxu0 0.0
  %3725 = vmatpush1.msra.mxu0 0.0
  %3726 = vmatprep.subr.mxu0 0.0
  %3727 = vmatpush1.msra.mxu0 0.0
  %3728 = vmatprep.subr.mxu0 0.0
  %3729 = vmatpush1.msra.mxu0 0.0
  %3730 = vmatprep.subr.mxu0 0.0
  %3731 = vmatpush1.msra.mxu0 0.0
  %3732 = vmatprep.subr.mxu0 0.0
  %3733 = vmatpush1.msra.mxu0 0.0
  %3734 = vmatprep.subr.mxu0 0.0
  %3735 = vmatpush1.msra.mxu0 0.0
  %3736 = vmatprep.subr.mxu0 0.0
  %3737 = vmatpush1.msra.mxu0 0.0
  %3738 = vmatprep.subr.mxu0 0.0
  %3739 = vmatpush1.msra.mxu0 0.0
  %3740 = vmatprep.subr.mxu0 0.0
  %3741 = vmatpush1.msra.mxu0 0.0
  %3742 = vmatprep.subr.mxu0 0.0
  %3743 = vmatpush1.msra.mxu0 0.0
  %3744 = vmatprep.subr.mxu0 0.0
  %3745 = vmatpush1.msra.mxu0 0.0
  %3746 = vmatprep.subr.mxu0 0.0
  %3747 = vmatpush1.msra.mxu0 0.0
  %3748 = vmatprep.subr.mxu0 0.0
  %3749 = vmatpush1.msra.mxu0 0.0
  %3750 = vmatprep.subr.mxu0 0.0
  %3751 = vmatpush1.msra.mxu0 0.0
  %3752 = vmatprep.subr.mxu0 0.0
  %3753 = vmatpush1.msra.mxu0 0.0
  %3754 = vmatprep.subr.mxu0 0.0
  %3755 = vmatpush1.msra.mxu0 0.0
  %3756 = vmatprep.subr.mxu0 0.0
  %3757 = vmatpush1.msra.mxu0 0.0
  %3758 = vmatprep.subr.mxu0 0.0
  %3759 = vmatpush1.msra.mxu0 0.0
  %3760 = vmatprep.subr.mxu0 0.0
  %3761 = vmatpush1.msra.mxu0 0.0
  %3762 = vmatprep.subr.mxu0 0.0
  %3763 = vmatpush1.msra.mxu0 0.0
  %3764 = vmatprep.subr.mxu0 0.0
  %3765 = vmatpush1.msra.mxu0 0.0
  %3766 = vmatprep.mubr.f32.mxu0 0.0
  %3767 = vmatmul.mubr.f32.gmra.mrb[0].mxu0 %v2933
  %v3768 = vpop.f32.mrb[0].mxu0
  %v3769 = vadd.f32 %v3700, %v3768
  %v3770 = vpop.f32.mrb[0].mxu0
  %3771 = vmatprep.mubr.f32.mxu0 0.0
  %3772 = vmatmul.mubr.f32.gmra.mrb[0].mxu0 %v2936
  %v3773 = vpop.f32.mrb[0].mxu0
  %v3774 = vadd.f32 %v3700, %v3773
  %v3775 = vpop.f32.mrb[0].mxu0
  %3776 = vdwg.mxu0
  %v3778 = vsel %vm424, %v3593, 0
  %v3781 = vsel %vm424, %v3681, 0
  %3783 = vmatprep.subr.mxu0 0.0
  %3784 = vmatpush1.xpose.msra.mxu0 %v3781
  %3785 = vmatprep.subr.mxu0 0.0
  %3786 = vmatpush1.xpose.msra.mxu0 0.0
  %3787 = vmatprep.subr.mxu0 0.0
  %3788 = vmatpush1.xpose.msra.mxu0 0.0
  %3789 = vmatprep.subr.mxu0 0.0
  %3790 = vmatpush1.xpose.msra.mxu0 0.0
  %3791 = vmatprep.subr.mxu0 0.0
  %3792 = vmatpush1.xpose.msra.mxu0 0.0
  %3793 = vmatprep.subr.mxu0 0.0
  %3794 = vmatpush1.xpose.msra.mxu0 0.0
  %3795 = vmatprep.subr.mxu0 0.0
  %3796 = vmatpush1.xpose.msra.mxu0 0.0
  %3797 = vmatprep.subr.mxu0 0.0
  %3798 = vmatpush1.xpose.msra.mxu0 0.0
  %3799 = vmatprep.subr.mxu0 0.0
  %3800 = vmatpush1.xpose.msra.mxu0 0.0
  %3801 = vmatprep.subr.mxu0 0.0
  %3802 = vmatpush1.xpose.msra.mxu0 0.0
  %3803 = vmatprep.subr.mxu0 0.0
  %3804 = vmatpush1.xpose.msra.mxu0 0.0
  %3805 = vmatprep.subr.mxu0 0.0
  %3806 = vmatpush1.xpose.msra.mxu0 0.0
  %3807 = vmatprep.subr.mxu0 0.0
  %3808 = vmatpush1.xpose.msra.mxu0 0.0
  %3809 = vmatprep.subr.mxu0 0.0
  %3810 = vmatpush1.xpose.msra.mxu0 0.0
  %3811 = vmatprep.subr.mxu0 0.0
  %3812 = vmatpush1.xpose.msra.mxu0 0.0
  %3813 = vmatprep.subr.mxu0 0.0
  %3814 = vmatpush1.xpose.msra.mxu0 0.0
  %3815 = vmatprep.subr.mxu0 0.0
  %3816 = vmatpush1.xpose.msra.mxu0 0.0
  %3817 = vmatprep.subr.mxu0 0.0
  %3818 = vmatpush1.xpose.msra.mxu0 0.0
  %3819 = vmatprep.subr.mxu0 0.0
  %3820 = vmatpush1.xpose.msra.mxu0 0.0
  %3821 = vmatprep.subr.mxu0 0.0
  %3822 = vmatpush1.xpose.msra.mxu0 0.0
  %3823 = vmatprep.subr.mxu0 0.0
  %3824 = vmatpush1.xpose.msra.mxu0 0.0
  %3825 = vmatprep.subr.mxu0 0.0
  %3826 = vmatpush1.xpose.msra.mxu0 0.0
  %3827 = vmatprep.subr.mxu0 0.0
  %3828 = vmatpush1.xpose.msra.mxu0 0.0
  %3829 = vmatprep.subr.mxu0 0.0
  %3830 = vmatpush1.xpose.msra.mxu0 0.0
  %3831 = vmatprep.subr.mxu0 0.0
  %3832 = vmatpush1.xpose.msra.mxu0 0.0
  %3833 = vmatprep.subr.mxu0 0.0
  %3834 = vmatpush1.xpose.msra.mxu0 0.0
  %3835 = vmatprep.subr.mxu0 0.0
  %3836 = vmatpush1.xpose.msra.mxu0 0.0
  %3837 = vmatprep.subr.mxu0 0.0
  %3838 = vmatpush1.xpose.msra.mxu0 0.0
  %3839 = vmatprep.subr.mxu0 0.0
  %3840 = vmatpush1.xpose.msra.mxu0 0.0
  %3841 = vmatprep.subr.mxu0 0.0
  %3842 = vmatpush1.xpose.msra.mxu0 0.0
  %3843 = vmatprep.subr.mxu0 0.0
  %3844 = vmatpush1.xpose.msra.mxu0 0.0
  %3845 = vmatprep.subr.mxu0 0.0
  %3846 = vmatpush1.xpose.msra.mxu0 0.0
  %3847 = vmatprep.mubr.f32.mxu0 0.0
  %3848 = vmatmul.mubr.f32.gmra.mrb[0].mxu0 %v3778
  %v3849 = vpop.f32.mrb[0].mxu0
  %v3850 = vadd.f32 0.0, %v3849
  %v3851 = vpop.f32.mrb[0].mxu0
  %3852 = vdwg.mxu0
  %v3854 = vsel %vm424, %v3598, 0
  %v3857 = vsel %vm424, %v3686, 0
  %3859 = vmatprep.subr.mxu0 0.0
  %3860 = vmatpush1.xpose.msra.mxu0 %v3857
  %3861 = vmatprep.subr.mxu0 0.0
  %3862 = vmatpush1.xpose.msra.mxu0 0.0
  %3863 = vmatprep.subr.mxu0 0.0
  %3864 = vmatpush1.xpose.msra.mxu0 0.0
  %3865 = vmatprep.subr.mxu0 0.0
  %3866 = vmatpush1.xpose.msra.mxu0 0.0
  %3867 = vmatprep.subr.mxu0 0.0
  %3868 = vmatpush1.xpose.msra.mxu0 0.0
  %3869 = vmatprep.subr.mxu0 0.0
  %3870 = vmatpush1.xpose.msra.mxu0 0.0
  %3871 = vmatprep.subr.mxu0 0.0
  %3872 = vmatpush1.xpose.msra.mxu0 0.0
  %3873 = vmatprep.subr.mxu0 0.0
  %3874 = vmatpush1.xpose.msra.mxu0 0.0
  %3875 = vmatprep.subr.mxu0 0.0
  %3876 = vmatpush1.xpose.msra.mxu0 0.0
  %3877 = vmatprep.subr.mxu0 0.0
  %3878 = vmatpush1.xpose.msra.mxu0 0.0
  %3879 = vmatprep.subr.mxu0 0.0
  %3880 = vmatpush1.xpose.msra.mxu0 0.0
  %3881 = vmatprep.subr.mxu0 0.0
  %3882 = vmatpush1.xpose.msra.mxu0 0.0
  %3883 = vmatprep.subr.mxu0 0.0
  %3884 = vmatpush1.xpose.msra.mxu0 0.0
  %3885 = vmatprep.subr.mxu0 0.0
  %3886 = vmatpush1.xpose.msra.mxu0 0.0
  %3887 = vmatprep.subr.mxu0 0.0
  %3888 = vmatpush1.xpose.msra.mxu0 0.0
  %3889 = vmatprep.subr.mxu0 0.0
  %3890 = vmatpush1.xpose.msra.mxu0 0.0
  %3891 = vmatprep.subr.mxu0 0.0
  %3892 = vmatpush1.xpose.msra.mxu0 0.0
  %3893 = vmatprep.subr.mxu0 0.0
  %3894 = vmatpush1.xpose.msra.mxu0 0.0
  %3895 = vmatprep.subr.mxu0 0.0
  %3896 = vmatpush1.xpose.msra.mxu0 0.0
  %3897 = vmatprep.subr.mxu0 0.0
  %3898 = vmatpush1.xpose.msra.mxu0 0.0
  %3899 = vmatprep.subr.mxu0 0.0
  %3900 = vmatpush1.xpose.msra.mxu0 0.0
  %3901 = vmatprep.subr.mxu0 0.0
  %3902 = vmatpush1.xpose.msra.mxu0 0.0
  %3903 = vmatprep.subr.mxu0 0.0
  %3904 = vmatpush1.xpose.msra.mxu0 0.0
  %3905 = vmatprep.subr.mxu0 0.0
  %3906 = vmatpush1.xpose.msra.mxu0 0.0
  %3907 = vmatprep.subr.mxu0 0.0
  %3908 = vmatpush1.xpose.msra.mxu0 0.0
  %3909 = vmatprep.subr.mxu0 0.0
  %3910 = vmatpush1.xpose.msra.mxu0 0.0
  %3911 = vmatprep.subr.mxu0 0.0
  %3912 = vmatpush1.xpose.msra.mxu0 0.0
  %3913 = vmatprep.subr.mxu0 0.0
  %3914 = vmatpush1.xpose.msra.mxu0 0.0
  %3915 = vmatprep.subr.mxu0 0.0
  %3916 = vmatpush1.xpose.msra.mxu0 0.0
  %3917 = vmatprep.subr.mxu0 0.0
  %3918 = vmatpush1.xpose.msra.mxu0 0.0
  %3919 = vmatprep.subr.mxu0 0.0
  %3920 = vmatpush1.xpose.msra.mxu0 0.0
  %3921 = vmatprep.subr.mxu0 0.0
  %3922 = vmatpush1.xpose.msra.mxu0 0.0
  %3923 = vmatprep.mubr.f32.mxu0 0.0
  %3924 = vmatmul.mubr.f32.gmra.mrb[0].mxu0 %v3854
  %v3925 = vpop.f32.mrb[0].mxu0
  %v3926 = vadd.f32 0.0, %v3925
  %v3927 = vpop.f32.mrb[0].mxu0
  %3928 = vdwg.mxu0
  %v3929 = vmul.f32 %v3850, 0.35355338
  %v3930 = vmul.f32 %v3926, 0.35355338
  %v3931 = vsel %vm424, %v3929, -inf
  %3932 = vmax.xlane.f32.xlu0 %v3931
  %v3933 = vpop.xlane.xlu0 %3932
  %v3934 = vsel %vm424, %v3930, -inf
  %3935 = vmax.xlane.f32.xlu0 %v3934
  %v3936 = vpop.xlane.xlu0 %3935
  %v3937 = vsub.f32 %v3929, %v3933
  %v3938 = vsub.f32 %v3930, %v3936
  %v3939 = vmul.f32 %v3937, 1.442695
  %v3940 = vpow.pop %v3939
  %v3941 = vmul.f32 %v3938, 1.442695
  %v3942 = vpow.pop %v3941
  %v3943 = vsel %vm424, %v3940, 0.0
  %3944 = vadd.xlane.f32.xlu0 %v3943
  %v3945 = vpop.xlane.xlu0 %3944
  %v3946 = vsel %vm424, %v3942, 0.0
  %3947 = vadd.xlane.f32.xlu0 %v3946
  %v3948 = vpop.xlane.xlu0 %3947
  %v3949 = vrcp.pop %v3945
  %v3950 = vrcp.pop %v3948
  %v3951 = vmul.f32 %v3940, %v3949
  %v3952 = vmul.f32 %v3942, %v3950
  %v3954 = vsel %vm424, %v3951, 0
  %3956 = vmatprep.subr.mxu0 0.0
  %3957 = vmatpush1.msra.mxu0 %v3769
  %3958 = vmatprep.subr.mxu0 0.0
  %3959 = vmatpush1.msra.mxu0 0.0
  %3960 = vmatprep.subr.mxu0 0.0
  %3961 = vmatpush1.msra.mxu0 0.0
  %3962 = vmatprep.subr.mxu0 0.0
  %3963 = vmatpush1.msra.mxu0 0.0
  %3964 = vmatprep.subr.mxu0 0.0
  %3965 = vmatpush1.msra.mxu0 0.0
  %3966 = vmatprep.subr.mxu0 0.0
  %3967 = vmatpush1.msra.mxu0 0.0
  %3968 = vmatprep.subr.mxu0 0.0
  %3969 = vmatpush1.msra.mxu0 0.0
  %3970 = vmatprep.subr.mxu0 0.0
  %3971 = vmatpush1.msra.mxu0 0.0
  %3972 = vmatprep.subr.mxu0 0.0
  %3973 = vmatpush1.msra.mxu0 0.0
  %3974 = vmatprep.subr.mxu0 0.0
  %3975 = vmatpush1.msra.mxu0 0.0
  %3976 = vmatprep.subr.mxu0 0.0
  %3977 = vmatpush1.msra.mxu0 0.0
  %3978 = vmatprep.subr.mxu0 0.0
  %3979 = vmatpush1.msra.mxu0 0.0
  %3980 = vmatprep.subr.mxu0 0.0
  %3981 = vmatpush1.msra.mxu0 0.0
  %3982 = vmatprep.subr.mxu0 0.0
  %3983 = vmatpush1.msra.mxu0 0.0
  %3984 = vmatprep.subr.mxu0 0.0
  %3985 = vmatpush1.msra.mxu0 0.0
  %3986 = vmatprep.subr.mxu0 0.0
  %3987 = vmatpush1.msra.mxu0 0.0
  %3988 = vmatprep.subr.mxu0 0.0
  %3989 = vmatpush1.msra.mxu0 0.0
  %3990 = vmatprep.subr.mxu0 0.0
  %3991 = vmatpush1.msra.mxu0 0.0
  %3992 = vmatprep.subr.mxu0 0.0
  %3993 = vmatpush1.msra.mxu0 0.0
  %3994 = vmatprep.subr.mxu0 0.0
  %3995 = vmatpush1.msra.mxu0 0.0
  %3996 = vmatprep.subr.mxu0 0.0
  %3997 = vmatpush1.msra.mxu0 0.0
  %3998 = vmatprep.subr.mxu0 0.0
  %3999 = vmatpush1.msra.mxu0 0.0
  %4000 = vmatprep.subr.mxu0 0.0
  %4001 = vmatpush1.msra.mxu0 0.0
  %4002 = vmatprep.subr.mxu0 0.0
  %4003 = vmatpush1.msra.mxu0 0.0
  %4004 = vmatprep.subr.mxu0 0.0
  %4005 = vmatpush1.msra.mxu0 0.0
  %4006 = vmatprep.subr.mxu0 0.0
  %4007 = vmatpush1.msra.mxu0 0.0
  %4008 = vmatprep.subr.mxu0 0.0
  %4009 = vmatpush1.msra.mxu0 0.0
  %4010 = vmatprep.subr.mxu0 0.0
  %4011 = vmatpush1.msra.mxu0 0.0
  %4012 = vmatprep.subr.mxu0 0.0
  %4013 = vmatpush1.msra.mxu0 0.0
  %4014 = vmatprep.subr.mxu0 0.0
  %4015 = vmatpush1.msra.mxu0 0.0
  %4016 = vmatprep.subr.mxu0 0.0
  %4017 = vmatpush1.msra.mxu0 0.0
  %4018 = vmatprep.subr.mxu0 0.0
  %4019 = vmatpush1.msra.mxu0 0.0
  %4020 = vmatprep.mubr.f32.mxu0 0.0
  %4021 = vmatmul.mubr.f32.gmra.mrb[0].mxu0 %v3954
  %v4022 = vpop.f32.mrb[0].mxu0
  %v4023 = vadd.f32 0.0, %v4022
  %v4024 = vpop.f32.mrb[0].mxu0
  %4025 = vdwg.mxu0
  %v4027 = vsel %vm424, %v3952, 0
  %4029 = vmatprep.subr.mxu0 0.0
  %4030 = vmatpush1.msra.mxu0 %v3774
  %4031 = vmatprep.subr.mxu0 0.0
  %4032 = vmatpush1.msra.mxu0 0.0
  %4033 = vmatprep.subr.mxu0 0.0
  %4034 = vmatpush1.msra.mxu0 0.0
  %4035 = vmatprep.subr.mxu0 0.0
  %4036 = vmatpush1.msra.mxu0 0.0
  %4037 = vmatprep.subr.mxu0 0.0
  %4038 = vmatpush1.msra.mxu0 0.0
  %4039 = vmatprep.subr.mxu0 0.0
  %4040 = vmatpush1.msra.mxu0 0.0
  %4041 = vmatprep.subr.mxu0 0.0
  %4042 = vmatpush1.msra.mxu0 0.0
  %4043 = vmatprep.subr.mxu0 0.0
  %4044 = vmatpush1.msra.mxu0 0.0
  %4045 = vmatprep.subr.mxu0 0.0
  %4046 = vmatpush1.msra.mxu0 0.0
  %4047 = vmatprep.subr.mxu0 0.0
  %4048 = vmatpush1.msra.mxu0 0.0
  %4049 = vmatprep.subr.mxu0 0.0
  %4050 = vmatpush1.msra.mxu0 0.0
  %4051 = vmatprep.subr.mxu0 0.0
  %4052 = vmatpush1.msra.mxu0 0.0
  %4053 = vmatprep.subr.mxu0 0.0
  %4054 = vmatpush1.msra.mxu0 0.0
  %4055 = vmatprep.subr.mxu0 0.0
  %4056 = vmatpush1.msra.mxu0 0.0
  %4057 = vmatprep.subr.mxu0 0.0
  %4058 = vmatpush1.msra.mxu0 0.0
  %4059 = vmatprep.subr.mxu0 0.0
  %4060 = vmatpush1.msra.mxu0 0.0
  %4061 = vmatprep.subr.mxu0 0.0
  %4062 = vmatpush1.msra.mxu0 0.0
  %4063 = vmatprep.subr.mxu0 0.0
  %4064 = vmatpush1.msra.mxu0 0.0
  %4065 = vmatprep.subr.mxu0 0.0
  %4066 = vmatpush1.msra.mxu0 0.0
  %4067 = vmatprep.subr.mxu0 0.0
  %4068 = vmatpush1.msra.mxu0 0.0
  %4069 = vmatprep.subr.mxu0 0.0
  %4070 = vmatpush1.msra.mxu0 0.0
  %4071 = vmatprep.subr.mxu0 0.0
  %4072 = vmatpush1.msra.mxu0 0.0
  %4073 = vmatprep.subr.mxu0 0.0
  %4074 = vmatpush1.msra.mxu0 0.0
  %4075 = vmatprep.subr.mxu0 0.0
  %4076 = vmatpush1.msra.mxu0 0.0
  %4077 = vmatprep.subr.mxu0 0.0
  %4078 = vmatpush1.msra.mxu0 0.0
  %4079 = vmatprep.subr.mxu0 0.0
  %4080 = vmatpush1.msra.mxu0 0.0
  %4081 = vmatprep.subr.mxu0 0.0
  %4082 = vmatpush1.msra.mxu0 0.0
  %4083 = vmatprep.subr.mxu0 0.0
  %4084 = vmatpush1.msra.mxu0 0.0
  %4085 = vmatprep.subr.mxu0 0.0
  %4086 = vmatpush1.msra.mxu0 0.0
  %4087 = vmatprep.subr.mxu0 0.0
  %4088 = vmatpush1.msra.mxu0 0.0
  %4089 = vmatprep.subr.mxu0 0.0
  %4090 = vmatpush1.msra.mxu0 0.0
  %4091 = vmatprep.subr.mxu0 0.0
  %4092 = vmatpush1.msra.mxu0 0.0
  %4093 = vmatprep.mubr.f32.mxu0 0.0
  %4094 = vmatmul.mubr.f32.gmra.mrb[0].mxu0 %v4027
  %v4095 = vpop.f32.mrb[0].mxu0
  %v4096 = vadd.f32 0.0, %v4095
  %v4097 = vpop.f32.mrb[0].mxu0
  %4098 = vdwg.mxu0
  %4101 = vrot.lane.b32.xlu0 %v4023, 8
  %v4102 = vpop.permute.xlu0 %4101
  %4103 = vrot.lane.b32.xlu0 %v4096, 8
  %v4104 = vpop.permute.xlu0 %4103
  %4107 = vst.msk [vmem:[#allocation2] sm:$0xff] %vm1343, %v4102
  %4108 = vst.msk [vmem:[#allocation2 + $0x8] sm:$0xff] %vm1343, %v4104
  %s4109 = scalar_lea.vmem %s3, 448
  %v4110 = vld [vmem:[%s4109] sm:$0xff]
  %v4111 = vld [vmem:[%s4109 + $0x8] sm:$0xff]
  %v4112 = vld [vmem:[%s4109 + $0x10] sm:$0xff]
  %v4113 = vld [vmem:[%s4109 + $0x18] sm:$0xff]
  %s4114 = scalar_lea.vmem %s4, 14
  %v4115 = vld [vmem:[%s4114] sm:$0x1]
  %v4117 = vlaneseq
  %v4118 = vshrl.u32 %v4117, 7
  %v4119 = vsub.s32 0, %v4118
  %v4120 = vrot.slane %v4115, %v4119
  %4122 = vmatprep.subr.mxu0 0.0
  %4123 = vmatpush1.msra.mxu0 %v4110
  %4124 = vmatprep.subr.mxu0 0.0
  %4125 = vmatpush1.msra.mxu0 %v4111
  %4126 = vmatprep.subr.mxu0 0.0
  %4127 = vmatpush1.msra.mxu0 %v4112
  %4128 = vmatprep.subr.mxu0 0.0
  %4129 = vmatpush1.msra.mxu0 %v4113
  %4130 = vmatprep.subr.mxu0 0.0
  %4131 = vmatpush1.msra.mxu0 0.0
  %4132 = vmatprep.subr.mxu0 0.0
  %4133 = vmatpush1.msra.mxu0 0.0
  %4134 = vmatprep.subr.mxu0 0.0
  %4135 = vmatpush1.msra.mxu0 0.0
  %4136 = vmatprep.subr.mxu0 0.0
  %4137 = vmatpush1.msra.mxu0 0.0
  %4138 = vmatprep.subr.mxu0 0.0
  %4139 = vmatpush1.msra.mxu0 0.0
  %4140 = vmatprep.subr.mxu0 0.0
  %4141 = vmatpush1.msra.mxu0 0.0
  %4142 = vmatprep.subr.mxu0 0.0
  %4143 = vmatpush1.msra.mxu0 0.0
  %4144 = vmatprep.subr.mxu0 0.0
  %4145 = vmatpush1.msra.mxu0 0.0
  %4146 = vmatprep.subr.mxu0 0.0
  %4147 = vmatpush1.msra.mxu0 0.0
  %4148 = vmatprep.subr.mxu0 0.0
  %4149 = vmatpush1.msra.mxu0 0.0
  %4150 = vmatprep.subr.mxu0 0.0
  %4151 = vmatpush1.msra.mxu0 0.0
  %4152 = vmatprep.subr.mxu0 0.0
  %4153 = vmatpush1.msra.mxu0 0.0
  %4154 = vmatprep.subr.mxu0 0.0
  %4155 = vmatpush1.msra.mxu0 0.0
  %4156 = vmatprep.subr.mxu0 0.0
  %4157 = vmatpush1.msra.mxu0 0.0
  %4158 = vmatprep.subr.mxu0 0.0
  %4159 = vmatpush1.msra.mxu0 0.0
  %4160 = vmatprep.subr.mxu0 0.0
  %4161 = vmatpush1.msra.mxu0 0.0
  %4162 = vmatprep.subr.mxu0 0.0
  %4163 = vmatpush1.msra.mxu0 0.0
  %4164 = vmatprep.subr.mxu0 0.0
  %4165 = vmatpush1.msra.mxu0 0.0
  %4166 = vmatprep.subr.mxu0 0.0
  %4167 = vmatpush1.msra.mxu0 0.0
  %4168 = vmatprep.subr.mxu0 0.0
  %4169 = vmatpush1.msra.mxu0 0.0
  %4170 = vmatprep.subr.mxu0 0.0
  %4171 = vmatpush1.msra.mxu0 0.0
  %4172 = vmatprep.subr.mxu0 0.0
  %4173 = vmatpush1.msra.mxu0 0.0
  %4174 = vmatprep.subr.mxu0 0.0
  %4175 = vmatpush1.msra.mxu0 0.0
  %4176 = vmatprep.subr.mxu0 0.0
  %4177 = vmatpush1.msra.mxu0 0.0
  %4178 = vmatprep.subr.mxu0 0.0
  %4179 = vmatpush1.msra.mxu0 0.0
  %4180 = vmatprep.subr.mxu0 0.0
  %4181 = vmatpush1.msra.mxu0 0.0
  %4182 = vmatprep.subr.mxu0 0.0
  %4183 = vmatpush1.msra.mxu0 0.0
  %4184 = vmatprep.subr.mxu0 0.0
  %4185 = vmatpush1.msra.mxu0 0.0
  %4186 = vmatprep.mubr.f32.mxu0 0.0
  %4187 = vmatmul.mubr.f32.gmra.mrb[0].mxu0 %v2933
  %v4188 = vpop.f32.mrb[0].mxu0
  %v4189 = vadd.f32 %v4120, %v4188
  %v4190 = vpop.f32.mrb[0].mxu0
  %4191 = vmatprep.mubr.f32.mxu0 0.0
  %4192 = vmatmul.mubr.f32.gmra.mrb[0].mxu0 %v2936
  %v4193 = vpop.f32.mrb[0].mxu0
  %v4194 = vadd.f32 %v4120, %v4193
  %v4195 = vpop.f32.mrb[0].mxu0
  %4196 = vdwg.mxu0
  %s4197 = scalar_lea.vmem %s3, 576
  %v4198 = vld [vmem:[%s4197] sm:$0xff]
  %v4199 = vld [vmem:[%s4197 + $0x8] sm:$0xff]
  %v4200 = vld [vmem:[%s4197 + $0x10] sm:$0xff]
  %v4201 = vld [vmem:[%s4197 + $0x18] sm:$0xff]
  %s4202 = scalar_lea.vmem %s4, 18
  %v4203 = vld [vmem:[%s4202] sm:$0x1]
  %v4205 = vlaneseq
  %v4206 = vshrl.u32 %v4205, 7
  %v4207 = vsub.s32 0, %v4206
  %v4208 = vrot.slane %v4203, %v4207
  %4210 = vmatprep.subr.mxu0 0.0
  %4211 = vmatpush1.msra.mxu0 %v4198
  %4212 = vmatprep.subr.mxu0 0.0
  %4213 = vmatpush1.msra.mxu0 %v4199
  %4214 = vmatprep.subr.mxu0 0.0
  %4215 = vmatpush1.msra.mxu0 %v4200
  %4216 = vmatprep.subr.mxu0 0.0
  %4217 = vmatpush1.msra.mxu0 %v4201
  %4218 = vmatprep.subr.mxu0 0.0
  %4219 = vmatpush1.msra.mxu0 0.0
  %4220 = vmatprep.subr.mxu0 0.0
  %4221 = vmatpush1.msra.mxu0 0.0
  %4222 = vmatprep.subr.mxu0 0.0
  %4223 = vmatpush1.msra.mxu0 0.0
  %4224 = vmatprep.subr.mxu0 0.0
  %4225 = vmatpush1.msra.mxu0 0.0
  %4226 = vmatprep.subr.mxu0 0.0
  %4227 = vmatpush1.msra.mxu0 0.0
  %4228 = vmatprep.subr.mxu0 0.0
  %4229 = vmatpush1.msra.mxu0 0.0
  %4230 = vmatprep.subr.mxu0 0.0
  %4231 = vmatpush1.msra.mxu0 0.0
  %4232 = vmatprep.subr.mxu0 0.0
  %4233 = vmatpush1.msra.mxu0 0.0
  %4234 = vmatprep.subr.mxu0 0.0
  %4235 = vmatpush1.msra.mxu0 0.0
  %4236 = vmatprep.subr.mxu0 0.0
  %4237 = vmatpush1.msra.mxu0 0.0
  %4238 = vmatprep.subr.mxu0 0.0
  %4239 = vmatpush1.msra.mxu0 0.0
  %4240 = vmatprep.subr.mxu0 0.0
  %4241 = vmatpush1.msra.mxu0 0.0
  %4242 = vmatprep.subr.mxu0 0.0
  %4243 = vmatpush1.msra.mxu0 0.0
  %4244 = vmatprep.subr.mxu0 0.0
  %4245 = vmatpush1.msra.mxu0 0.0
  %4246 = vmatprep.subr.mxu0 0.0
  %4247 = vmatpush1.msra.mxu0 0.0
  %4248 = vmatprep.subr.mxu0 0.0
  %4249 = vmatpush1.msra.mxu0 0.0
  %4250 = vmatprep.subr.mxu0 0.0
  %4251 = vmatpush1.msra.mxu0 0.0
  %4252 = vmatprep.subr.mxu0 0.0
  %4253 = vmatpush1.msra.mxu0 0.0
  %4254 = vmatprep.subr.mxu0 0.0
  %4255 = vmatpush1.msra.mxu0 0.0
  %4256 = vmatprep.subr.mxu0 0.0
  %4257 = vmatpush1.msra.mxu0 0.0
  %4258 = vmatprep.subr.mxu0 0.0
  %4259 = vmatpush1.msra.mxu0 0.0
  %4260 = vmatprep.subr.mxu0 0.0
  %4261 = vmatpush1.msra.mxu0 0.0
  %4262 = vmatprep.subr.mxu0 0.0
  %4263 = vmatpush1.msra.mxu0 0.0
  %4264 = vmatprep.subr.mxu0 0.0
  %4265 = vmatpush1.msra.mxu0 0.0
  %4266 = vmatprep.subr.mxu0 0.0
  %4267 = vmatpush1.msra.mxu0 0.0
  %4268 = vmatprep.subr.mxu0 0.0
  %4269 = vmatpush1.msra.mxu0 0.0
  %4270 = vmatprep.subr.mxu0 0.0
  %4271 = vmatpush1.msra.mxu0 0.0
  %4272 = vmatprep.subr.mxu0 0.0
  %4273 = vmatpush1.msra.mxu0 0.0
  %4274 = vmatprep.mubr.f32.mxu0 0.0
  %4275 = vmatmul.mubr.f32.gmra.mrb[0].mxu0 %v2933
  %v4276 = vpop.f32.mrb[0].mxu0
  %v4277 = vadd.f32 %v4208, %v4276
  %v4278 = vpop.f32.mrb[0].mxu0
  %4279 = vmatprep.mubr.f32.mxu0 0.0
  %4280 = vmatmul.mubr.f32.gmra.mrb[0].mxu0 %v2936
  %v4281 = vpop.f32.mrb[0].mxu0
  %v4282 = vadd.f32 %v4208, %v4281
  %v4283 = vpop.f32.mrb[0].mxu0
  %4284 = vdwg.mxu0
  %s4285 = scalar_lea.vmem %s3, 704
  %v4286 = vld [vmem:[%s4285] sm:$0xff]
  %v4287 = vld [vmem:[%s4285 + $0x8] sm:$0xff]
  %v4288 = vld [vmem:[%s4285 + $0x10] sm:$0xff]
  %v4289 = vld [vmem:[%s4285 + $0x18] sm:$0xff]
  %s4290 = scalar_lea.vmem %s4, 22
  %v4291 = vld [vmem:[%s4290] sm:$0x1]
  %v4293 = vlaneseq
  %v4294 = vshrl.u32 %v4293, 7
  %v4295 = vsub.s32 0, %v4294
  %v4296 = vrot.slane %v4291, %v4295
  %4298 = vmatprep.subr.mxu0 0.0
  %4299 = vmatpush1.msra.mxu0 %v4286
  %4300 = vmatprep.subr.mxu0 0.0
  %4301 = vmatpush1.msra.mxu0 %v4287
  %4302 = vmatprep.subr.mxu0 0.0
  %4303 = vmatpush1.msra.mxu0 %v4288
  %4304 = vmatprep.subr.mxu0 0.0
  %4305 = vmatpush1.msra.mxu0 %v4289
  %4306 = vmatprep.subr.mxu0 0.0
  %4307 = vmatpush1.msra.mxu0 0.0
  %4308 = vmatprep.subr.mxu0 0.0
  %4309 = vmatpush1.msra.mxu0 0.0
  %4310 = vmatprep.subr.mxu0 0.0
  %4311 = vmatpush1.msra.mxu0 0.0
  %4312 = vmatprep.subr.mxu0 0.0
  %4313 = vmatpush1.msra.mxu0 0.0
  %4314 = vmatprep.subr.mxu0 0.0
  %4315 = vmatpush1.msra.mxu0 0.0
  %4316 = vmatprep.subr.mxu0 0.0
  %4317 = vmatpush1.msra.mxu0 0.0
  %4318 = vmatprep.subr.mxu0 0.0
  %4319 = vmatpush1.msra.mxu0 0.0
  %4320 = vmatprep.subr.mxu0 0.0
  %4321 = vmatpush1.msra.mxu0 0.0
  %4322 = vmatprep.subr.mxu0 0.0
  %4323 = vmatpush1.msra.mxu0 0.0
  %4324 = vmatprep.subr.mxu0 0.0
  %4325 = vmatpush1.msra.mxu0 0.0
  %4326 = vmatprep.subr.mxu0 0.0
  %4327 = vmatpush1.msra.mxu0 0.0
  %4328 = vmatprep.subr.mxu0 0.0
  %4329 = vmatpush1.msra.mxu0 0.0
  %4330 = vmatprep.subr.mxu0 0.0
  %4331 = vmatpush1.msra.mxu0 0.0
  %4332 = vmatprep.subr.mxu0 0.0
  %4333 = vmatpush1.msra.mxu0 0.0
  %4334 = vmatprep.subr.mxu0 0.0
  %4335 = vmatpush1.msra.mxu0 0.0
  %4336 = vmatprep.subr.mxu0 0.0
  %4337 = vmatpush1.msra.mxu0 0.0
  %4338 = vmatprep.subr.mxu0 0.0
  %4339 = vmatpush1.msra.mxu0 0.0
  %4340 = vmatprep.subr.mxu0 0.0
  %4341 = vmatpush1.msra.mxu0 0.0
  %4342 = vmatprep.subr.mxu0 0.0
  %4343 = vmatpush1.msra.mxu0 0.0
  %4344 = vmatprep.subr.mxu0 0.0
  %4345 = vmatpush1.msra.mxu0 0.0
  %4346 = vmatprep.subr.mxu0 0.0
  %4347 = vmatpush1.msra.mxu0 0.0
  %4348 = vmatprep.subr.mxu0 0.0
  %4349 = vmatpush1.msra.mxu0 0.0
  %4350 = vmatprep.subr.mxu0 0.0
  %4351 = vmatpush1.msra.mxu0 0.0
  %4352 = vmatprep.subr.mxu0 0.0
  %4353 = vmatpush1.msra.mxu0 0.0
  %4354 = vmatprep.subr.mxu0 0.0
  %4355 = vmatpush1.msra.mxu0 0.0
  %4356 = vmatprep.subr.mxu0 0.0
  %4357 = vmatpush1.msra.mxu0 0.0
  %4358 = vmatprep.subr.mxu0 0.0
  %4359 = vmatpush1.msra.mxu0 0.0
  %4360 = vmatprep.subr.mxu0 0.0
  %4361 = vmatpush1.msra.mxu0 0.0
  %4362 = vmatprep.mubr.f32.mxu0 0.0
  %4363 = vmatmul.mubr.f32.gmra.mrb[0].mxu0 %v2933
  %v4364 = vpop.f32.mrb[0].mxu0
  %v4365 = vadd.f32 %v4296, %v4364
  %v4366 = vpop.f32.mrb[0].mxu0
  %4367 = vmatprep.mubr.f32.mxu0 0.0
  %4368 = vmatmul.mubr.f32.gmra.mrb[0].mxu0 %v2936
  %v4369 = vpop.f32.mrb[0].mxu0
  %v4370 = vadd.f32 %v4296, %v4369
  %v4371 = vpop.f32.mrb[0].mxu0
  %4372 = vdwg.mxu0
  %v4374 = vsel %vm424, %v4189, 0
  %v4377 = vsel %vm424, %v4277, 0
  %4379 = vmatprep.subr.mxu0 0.0
  %4380 = vmatpush1.xpose.msra.mxu0 %v4377
  %4381 = vmatprep.subr.mxu0 0.0
  %4382 = vmatpush1.xpose.msra.mxu0 0.0
  %4383 = vmatprep.subr.mxu0 0.0
  %4384 = vmatpush1.xpose.msra.mxu0 0.0
  %4385 = vmatprep.subr.mxu0 0.0
  %4386 = vmatpush1.xpose.msra.mxu0 0.0
  %4387 = vmatprep.subr.mxu0 0.0
  %4388 = vmatpush1.xpose.msra.mxu0 0.0
  %4389 = vmatprep.subr.mxu0 0.0
  %4390 = vmatpush1.xpose.msra.mxu0 0.0
  %4391 = vmatprep.subr.mxu0 0.0
  %4392 = vmatpush1.xpose.msra.mxu0 0.0
  %4393 = vmatprep.subr.mxu0 0.0
  %4394 = vmatpush1.xpose.msra.mxu0 0.0
  %4395 = vmatprep.subr.mxu0 0.0
  %4396 = vmatpush1.xpose.msra.mxu0 0.0
  %4397 = vmatprep.subr.mxu0 0.0
  %4398 = vmatpush1.xpose.msra.mxu0 0.0
  %4399 = vmatprep.subr.mxu0 0.0
  %4400 = vmatpush1.xpose.msra.mxu0 0.0
  %4401 = vmatprep.subr.mxu0 0.0
  %4402 = vmatpush1.xpose.msra.mxu0 0.0
  %4403 = vmatprep.subr.mxu0 0.0
  %4404 = vmatpush1.xpose.msra.mxu0 0.0
  %4405 = vmatprep.subr.mxu0 0.0
  %4406 = vmatpush1.xpose.msra.mxu0 0.0
  %4407 = vmatprep.subr.mxu0 0.0
  %4408 = vmatpush1.xpose.msra.mxu0 0.0
  %4409 = vmatprep.subr.mxu0 0.0
  %4410 = vmatpush1.xpose.msra.mxu0 0.0
  %4411 = vmatprep.subr.mxu0 0.0
  %4412 = vmatpush1.xpose.msra.mxu0 0.0
  %4413 = vmatprep.subr.mxu0 0.0
  %4414 = vmatpush1.xpose.msra.mxu0 0.0
  %4415 = vmatprep.subr.mxu0 0.0
  %4416 = vmatpush1.xpose.msra.mxu0 0.0
  %4417 = vmatprep.subr.mxu0 0.0
  %4418 = vmatpush1.xpose.msra.mxu0 0.0
  %4419 = vmatprep.subr.mxu0 0.0
  %4420 = vmatpush1.xpose.msra.mxu0 0.0
  %4421 = vmatprep.subr.mxu0 0.0
  %4422 = vmatpush1.xpose.msra.mxu0 0.0
  %4423 = vmatprep.subr.mxu0 0.0
  %4424 = vmatpush1.xpose.msra.mxu0 0.0
  %4425 = vmatprep.subr.mxu0 0.0
  %4426 = vmatpush1.xpose.msra.mxu0 0.0
  %4427 = vmatprep.subr.mxu0 0.0
  %4428 = vmatpush1.xpose.msra.mxu0 0.0
  %4429 = vmatprep.subr.mxu0 0.0
  %4430 = vmatpush1.xpose.msra.mxu0 0.0
  %4431 = vmatprep.subr.mxu0 0.0
  %4432 = vmatpush1.xpose.msra.mxu0 0.0
  %4433 = vmatprep.subr.mxu0 0.0
  %4434 = vmatpush1.xpose.msra.mxu0 0.0
  %4435 = vmatprep.subr.mxu0 0.0
  %4436 = vmatpush1.xpose.msra.mxu0 0.0
  %4437 = vmatprep.subr.mxu0 0.0
  %4438 = vmatpush1.xpose.msra.mxu0 0.0
  %4439 = vmatprep.subr.mxu0 0.0
  %4440 = vmatpush1.xpose.msra.mxu0 0.0
  %4441 = vmatprep.subr.mxu0 0.0
  %4442 = vmatpush1.xpose.msra.mxu0 0.0
  %4443 = vmatprep.mubr.f32.mxu0 0.0
  %4444 = vmatmul.mubr.f32.gmra.mrb[0].mxu0 %v4374
  %v4445 = vpop.f32.mrb[0].mxu0
  %v4446 = vadd.f32 0.0, %v4445
  %v4447 = vpop.f32.mrb[0].mxu0
  %4448 = vdwg.mxu0
  %v4450 = vsel %vm424, %v4194, 0
  %v4453 = vsel %vm424, %v4282, 0
  %4455 = vmatprep.subr.mxu0 0.0
  %4456 = vmatpush1.xpose.msra.mxu0 %v4453
  %4457 = vmatprep.subr.mxu0 0.0
  %4458 = vmatpush1.xpose.msra.mxu0 0.0
  %4459 = vmatprep.subr.mxu0 0.0
  %4460 = vmatpush1.xpose.msra.mxu0 0.0
  %4461 = vmatprep.subr.mxu0 0.0
  %4462 = vmatpush1.xpose.msra.mxu0 0.0
  %4463 = vmatprep.subr.mxu0 0.0
  %4464 = vmatpush1.xpose.msra.mxu0 0.0
  %4465 = vmatprep.subr.mxu0 0.0
  %4466 = vmatpush1.xpose.msra.mxu0 0.0
  %4467 = vmatprep.subr.mxu0 0.0
  %4468 = vmatpush1.xpose.msra.mxu0 0.0
  %4469 = vmatprep.subr.mxu0 0.0
  %4470 = vmatpush1.xpose.msra.mxu0 0.0
  %4471 = vmatprep.subr.mxu0 0.0
  %4472 = vmatpush1.xpose.msra.mxu0 0.0
  %4473 = vmatprep.subr.mxu0 0.0
  %4474 = vmatpush1.xpose.msra.mxu0 0.0
  %4475 = vmatprep.subr.mxu0 0.0
  %4476 = vmatpush1.xpose.msra.mxu0 0.0
  %4477 = vmatprep.subr.mxu0 0.0
  %4478 = vmatpush1.xpose.msra.mxu0 0.0
  %4479 = vmatprep.subr.mxu0 0.0
  %4480 = vmatpush1.xpose.msra.mxu0 0.0
  %4481 = vmatprep.subr.mxu0 0.0
  %4482 = vmatpush1.xpose.msra.mxu0 0.0
  %4483 = vmatprep.subr.mxu0 0.0
  %4484 = vmatpush1.xpose.msra.mxu0 0.0
  %4485 = vmatprep.subr.mxu0 0.0
  %4486 = vmatpush1.xpose.msra.mxu0 0.0
  %4487 = vmatprep.subr.mxu0 0.0
  %4488 = vmatpush1.xpose.msra.mxu0 0.0
  %4489 = vmatprep.subr.mxu0 0.0
  %4490 = vmatpush1.xpose.msra.mxu0 0.0
  %4491 = vmatprep.subr.mxu0 0.0
  %4492 = vmatpush1.xpose.msra.mxu0 0.0
  %4493 = vmatprep.subr.mxu0 0.0
  %4494 = vmatpush1.xpose.msra.mxu0 0.0
  %4495 = vmatprep.subr.mxu0 0.0
  %4496 = vmatpush1.xpose.msra.mxu0 0.0
  %4497 = vmatprep.subr.mxu0 0.0
  %4498 = vmatpush1.xpose.msra.mxu0 0.0
  %4499 = vmatprep.subr.mxu0 0.0
  %4500 = vmatpush1.xpose.msra.mxu0 0.0
  %4501 = vmatprep.subr.mxu0 0.0
  %4502 = vmatpush1.xpose.msra.mxu0 0.0
  %4503 = vmatprep.subr.mxu0 0.0
  %4504 = vmatpush1.xpose.msra.mxu0 0.0
  %4505 = vmatprep.subr.mxu0 0.0
  %4506 = vmatpush1.xpose.msra.mxu0 0.0
  %4507 = vmatprep.subr.mxu0 0.0
  %4508 = vmatpush1.xpose.msra.mxu0 0.0
  %4509 = vmatprep.subr.mxu0 0.0
  %4510 = vmatpush1.xpose.msra.mxu0 0.0
  %4511 = vmatprep.subr.mxu0 0.0
  %4512 = vmatpush1.xpose.msra.mxu0 0.0
  %4513 = vmatprep.subr.mxu0 0.0
  %4514 = vmatpush1.xpose.msra.mxu0 0.0
  %4515 = vmatprep.subr.mxu0 0.0
  %4516 = vmatpush1.xpose.msra.mxu0 0.0
  %4517 = vmatprep.subr.mxu0 0.0
  %4518 = vmatpush1.xpose.msra.mxu0 0.0
  %4519 = vmatprep.mubr.f32.mxu0 0.0
  %4520 = vmatmul.mubr.f32.gmra.mrb[0].mxu0 %v4450
  %v4521 = vpop.f32.mrb[0].mxu0
  %v4522 = vadd.f32 0.0, %v4521
  %v4523 = vpop.f32.mrb[0].mxu0
  %4524 = vdwg.mxu0
  %v4525 = vmul.f32 %v4446, 0.35355338
  %v4526 = vmul.f32 %v4522, 0.35355338
  %v4527 = vsel %vm424, %v4525, -inf
  %4528 = vmax.xlane.f32.xlu0 %v4527
  %v4529 = vpop.xlane.xlu0 %4528
  %v4530 = vsel %vm424, %v4526, -inf
  %4531 = vmax.xlane.f32.xlu0 %v4530
  %v4532 = vpop.xlane.xlu0 %4531
  %v4533 = vsub.f32 %v4525, %v4529
  %v4534 = vsub.f32 %v4526, %v4532
  %v4535 = vmul.f32 %v4533, 1.442695
  %v4536 = vpow.pop %v4535
  %v4537 = vmul.f32 %v4534, 1.442695
  %v4538 = vpow.pop %v4537
  %v4539 = vsel %vm424, %v4536, 0.0
  %4540 = vadd.xlane.f32.xlu0 %v4539
  %v4541 = vpop.xlane.xlu0 %4540
  %v4542 = vsel %vm424, %v4538, 0.0
  %4543 = vadd.xlane.f32.xlu0 %v4542
  %v4544 = vpop.xlane.xlu0 %4543
  %v4545 = vrcp.pop %v4541
  %v4546 = vrcp.pop %v4544
  %v4547 = vmul.f32 %v4536, %v4545
  %v4548 = vmul.f32 %v4538, %v4546
  %v4550 = vsel %vm424, %v4547, 0
  %4552 = vmatprep.subr.mxu0 0.0
  %4553 = vmatpush1.msra.mxu0 %v4365
  %4554 = vmatprep.subr.mxu0 0.0
  %4555 = vmatpush1.msra.mxu0 0.0
  %4556 = vmatprep.subr.mxu0 0.0
  %4557 = vmatpush1.msra.mxu0 0.0
  %4558 = vmatprep.subr.mxu0 0.0
  %4559 = vmatpush1.msra.mxu0 0.0
  %4560 = vmatprep.subr.mxu0 0.0
  %4561 = vmatpush1.msra.mxu0 0.0
  %4562 = vmatprep.subr.mxu0 0.0
  %4563 = vmatpush1.msra.mxu0 0.0
  %4564 = vmatprep.subr.mxu0 0.0
  %4565 = vmatpush1.msra.mxu0 0.0
  %4566 = vmatprep.subr.mxu0 0.0
  %4567 = vmatpush1.msra.mxu0 0.0
  %4568 = vmatprep.subr.mxu0 0.0
  %4569 = vmatpush1.msra.mxu0 0.0
  %4570 = vmatprep.subr.mxu0 0.0
  %4571 = vmatpush1.msra.mxu0 0.0
  %4572 = vmatprep.subr.mxu0 0.0
  %4573 = vmatpush1.msra.mxu0 0.0
  %4574 = vmatprep.subr.mxu0 0.0
  %4575 = vmatpush1.msra.mxu0 0.0
  %4576 = vmatprep.subr.mxu0 0.0
  %4577 = vmatpush1.msra.mxu0 0.0
  %4578 = vmatprep.subr.mxu0 0.0
  %4579 = vmatpush1.msra.mxu0 0.0
  %4580 = vmatprep.subr.mxu0 0.0
  %4581 = vmatpush1.msra.mxu0 0.0
  %4582 = vmatprep.subr.mxu0 0.0
  %4583 = vmatpush1.msra.mxu0 0.0
  %4584 = vmatprep.subr.mxu0 0.0
  %4585 = vmatpush1.msra.mxu0 0.0
  %4586 = vmatprep.subr.mxu0 0.0
  %4587 = vmatpush1.msra.mxu0 0.0
  %4588 = vmatprep.subr.mxu0 0.0
  %4589 = vmatpush1.msra.mxu0 0.0
  %4590 = vmatprep.subr.mxu0 0.0
  %4591 = vmatpush1.msra.mxu0 0.0
  %4592 = vmatprep.subr.mxu0 0.0
  %4593 = vmatpush1.msra.mxu0 0.0
  %4594 = vmatprep.subr.mxu0 0.0
  %4595 = vmatpush1.msra.mxu0 0.0
  %4596 = vmatprep.subr.mxu0 0.0
  %4597 = vmatpush1.msra.mxu0 0.0
  %4598 = vmatprep.subr.mxu0 0.0
  %4599 = vmatpush1.msra.mxu0 0.0
  %4600 = vmatprep.subr.mxu0 0.0
  %4601 = vmatpush1.msra.mxu0 0.0
  %4602 = vmatprep.subr.mxu0 0.0
  %4603 = vmatpush1.msra.mxu0 0.0
  %4604 = vmatprep.subr.mxu0 0.0
  %4605 = vmatpush1.msra.mxu0 0.0
  %4606 = vmatprep.subr.mxu0 0.0
  %4607 = vmatpush1.msra.mxu0 0.0
  %4608 = vmatprep.subr.mxu0 0.0
  %4609 = vmatpush1.msra.mxu0 0.0
  %4610 = vmatprep.subr.mxu0 0.0
  %4611 = vmatpush1.msra.mxu0 0.0
  %4612 = vmatprep.subr.mxu0 0.0
  %4613 = vmatpush1.msra.mxu0 0.0
  %4614 = vmatprep.subr.mxu0 0.0
  %4615 = vmatpush1.msra.mxu0 0.0
  %4616 = vmatprep.mubr.f32.mxu0 0.0
  %4617 = vmatmul.mubr.f32.gmra.mrb[0].mxu0 %v4550
  %v4618 = vpop.f32.mrb[0].mxu0
  %v4619 = vadd.f32 0.0, %v4618
  %v4620 = vpop.f32.mrb[0].mxu0
  %4621 = vdwg.mxu0
  %v4623 = vsel %vm424, %v4548, 0
  %4625 = vmatprep.subr.mxu0 0.0
  %4626 = vmatpush1.msra.mxu0 %v4370
  %4627 = vmatprep.subr.mxu0 0.0
  %4628 = vmatpush1.msra.mxu0 0.0
  %4629 = vmatprep.subr.mxu0 0.0
  %4630 = vmatpush1.msra.mxu0 0.0
  %4631 = vmatprep.subr.mxu0 0.0
  %4632 = vmatpush1.msra.mxu0 0.0
  %4633 = vmatprep.subr.mxu0 0.0
  %4634 = vmatpush1.msra.mxu0 0.0
  %4635 = vmatprep.subr.mxu0 0.0
  %4636 = vmatpush1.msra.mxu0 0.0
  %4637 = vmatprep.subr.mxu0 0.0
  %4638 = vmatpush1.msra.mxu0 0.0
  %4639 = vmatprep.subr.mxu0 0.0
  %4640 = vmatpush1.msra.mxu0 0.0
  %4641 = vmatprep.subr.mxu0 0.0
  %4642 = vmatpush1.msra.mxu0 0.0
  %4643 = vmatprep.subr.mxu0 0.0
  %4644 = vmatpush1.msra.mxu0 0.0
  %4645 = vmatprep.subr.mxu0 0.0
  %4646 = vmatpush1.msra.mxu0 0.0
  %4647 = vmatprep.subr.mxu0 0.0
  %4648 = vmatpush1.msra.mxu0 0.0
  %4649 = vmatprep.subr.mxu0 0.0
  %4650 = vmatpush1.msra.mxu0 0.0
  %4651 = vmatprep.subr.mxu0 0.0
  %4652 = vmatpush1.msra.mxu0 0.0
  %4653 = vmatprep.subr.mxu0 0.0
  %4654 = vmatpush1.msra.mxu0 0.0
  %4655 = vmatprep.subr.mxu0 0.0
  %4656 = vmatpush1.msra.mxu0 0.0
  %4657 = vmatprep.subr.mxu0 0.0
  %4658 = vmatpush1.msra.mxu0 0.0
  %4659 = vmatprep.subr.mxu0 0.0
  %4660 = vmatpush1.msra.mxu0 0.0
  %4661 = vmatprep.subr.mxu0 0.0
  %4662 = vmatpush1.msra.mxu0 0.0
  %4663 = vmatprep.subr.mxu0 0.0
  %4664 = vmatpush1.msra.mxu0 0.0
  %4665 = vmatprep.subr.mxu0 0.0
  %4666 = vmatpush1.msra.mxu0 0.0
  %4667 = vmatprep.subr.mxu0 0.0
  %4668 = vmatpush1.msra.mxu0 0.0
  %4669 = vmatprep.subr.mxu0 0.0
  %4670 = vmatpush1.msra.mxu0 0.0
  %4671 = vmatprep.subr.mxu0 0.0
  %4672 = vmatpush1.msra.mxu0 0.0
  %4673 = vmatprep.subr.mxu0 0.0
  %4674 = vmatpush1.msra.mxu0 0.0
  %4675 = vmatprep.subr.mxu0 0.0
  %4676 = vmatpush1.msra.mxu0 0.0
  %4677 = vmatprep.subr.mxu0 0.0
  %4678 = vmatpush1.msra.mxu0 0.0
  %4679 = vmatprep.subr.mxu0 0.0
  %4680 = vmatpush1.msra.mxu0 0.0
  %4681 = vmatprep.subr.mxu0 0.0
  %4682 = vmatpush1.msra.mxu0 0.0
  %4683 = vmatprep.subr.mxu0 0.0
  %4684 = vmatpush1.msra.mxu0 0.0
  %4685 = vmatprep.subr.mxu0 0.0
  %4686 = vmatpush1.msra.mxu0 0.0
  %4687 = vmatprep.subr.mxu0 0.0
  %4688 = vmatpush1.msra.mxu0 0.0
  %4689 = vmatprep.mubr.f32.mxu0 0.0
  %4690 = vmatmul.mubr.f32.gmra.mrb[0].mxu0 %v4623
  %v4691 = vpop.f32.mrb[0].mxu0
  %v4692 = vadd.f32 0.0, %v4691
  %v4693 = vpop.f32.mrb[0].mxu0
  %4694 = vdwg.mxu0
  %4697 = vrot.lane.b32.xlu0 %v4619, 16
  %v4698 = vpop.permute.xlu0 %4697
  %4699 = vrot.lane.b32.xlu0 %v4692, 16
  %v4700 = vpop.permute.xlu0 %4699
  %4703 = vst.msk [vmem:[#allocation2] sm:$0xff] %vm1940, %v4698
  %4704 = vst.msk [vmem:[#allocation2 + $0x8] sm:$0xff] %vm1940, %v4700
  %s4705 = scalar_lea.vmem %s3, 480
  %v4706 = vld [vmem:[%s4705] sm:$0xff]
  %v4707 = vld [vmem:[%s4705 + $0x8] sm:$0xff]
  %v4708 = vld [vmem:[%s4705 + $0x10] sm:$0xff]
  %v4709 = vld [vmem:[%s4705 + $0x18] sm:$0xff]
  %s4710 = scalar_lea.vmem %s4, 15
  %v4711 = vld [vmem:[%s4710] sm:$0x1]
  %v4713 = vlaneseq
  %v4714 = vshrl.u32 %v4713, 7
  %v4715 = vsub.s32 0, %v4714
  %v4716 = vrot.slane %v4711, %v4715
  %4718 = vmatprep.subr.mxu0 0.0
  %4719 = vmatpush1.msra.mxu0 %v4706
  %4720 = vmatprep.subr.mxu0 0.0
  %4721 = vmatpush1.msra.mxu0 %v4707
  %4722 = vmatprep.subr.mxu0 0.0
  %4723 = vmatpush1.msra.mxu0 %v4708
  %4724 = vmatprep.subr.mxu0 0.0
  %4725 = vmatpush1.msra.mxu0 %v4709
  %4726 = vmatprep.subr.mxu0 0.0
  %4727 = vmatpush1.msra.mxu0 0.0
  %4728 = vmatprep.subr.mxu0 0.0
  %4729 = vmatpush1.msra.mxu0 0.0
  %4730 = vmatprep.subr.mxu0 0.0
  %4731 = vmatpush1.msra.mxu0 0.0
  %4732 = vmatprep.subr.mxu0 0.0
  %4733 = vmatpush1.msra.mxu0 0.0
  %4734 = vmatprep.subr.mxu0 0.0
  %4735 = vmatpush1.msra.mxu0 0.0
  %4736 = vmatprep.subr.mxu0 0.0
  %4737 = vmatpush1.msra.mxu0 0.0
  %4738 = vmatprep.subr.mxu0 0.0
  %4739 = vmatpush1.msra.mxu0 0.0
  %4740 = vmatprep.subr.mxu0 0.0
  %4741 = vmatpush1.msra.mxu0 0.0
  %4742 = vmatprep.subr.mxu0 0.0
  %4743 = vmatpush1.msra.mxu0 0.0
  %4744 = vmatprep.subr.mxu0 0.0
  %4745 = vmatpush1.msra.mxu0 0.0
  %4746 = vmatprep.subr.mxu0 0.0
  %4747 = vmatpush1.msra.mxu0 0.0
  %4748 = vmatprep.subr.mxu0 0.0
  %4749 = vmatpush1.msra.mxu0 0.0
  %4750 = vmatprep.subr.mxu0 0.0
  %4751 = vmatpush1.msra.mxu0 0.0
  %4752 = vmatprep.subr.mxu0 0.0
  %4753 = vmatpush1.msra.mxu0 0.0
  %4754 = vmatprep.subr.mxu0 0.0
  %4755 = vmatpush1.msra.mxu0 0.0
  %4756 = vmatprep.subr.mxu0 0.0
  %4757 = vmatpush1.msra.mxu0 0.0
  %4758 = vmatprep.subr.mxu0 0.0
  %4759 = vmatpush1.msra.mxu0 0.0
  %4760 = vmatprep.subr.mxu0 0.0
  %4761 = vmatpush1.msra.mxu0 0.0
  %4762 = vmatprep.subr.mxu0 0.0
  %4763 = vmatpush1.msra.mxu0 0.0
  %4764 = vmatprep.subr.mxu0 0.0
  %4765 = vmatpush1.msra.mxu0 0.0
  %4766 = vmatprep.subr.mxu0 0.0
  %4767 = vmatpush1.msra.mxu0 0.0
  %4768 = vmatprep.subr.mxu0 0.0
  %4769 = vmatpush1.msra.mxu0 0.0
  %4770 = vmatprep.subr.mxu0 0.0
  %4771 = vmatpush1.msra.mxu0 0.0
  %4772 = vmatprep.subr.mxu0 0.0
  %4773 = vmatpush1.msra.mxu0 0.0
  %4774 = vmatprep.subr.mxu0 0.0
  %4775 = vmatpush1.msra.mxu0 0.0
  %4776 = vmatprep.subr.mxu0 0.0
  %4777 = vmatpush1.msra.mxu0 0.0
  %4778 = vmatprep.subr.mxu0 0.0
  %4779 = vmatpush1.msra.mxu0 0.0
  %4780 = vmatprep.subr.mxu0 0.0
  %4781 = vmatpush1.msra.mxu0 0.0
  %4782 = vmatprep.mubr.f32.mxu0 0.0
  %4783 = vmatmul.mubr.f32.gmra.mrb[0].mxu0 %v2933
  %v4784 = vpop.f32.mrb[0].mxu0
  %v4785 = vadd.f32 %v4716, %v4784
  %v4786 = vpop.f32.mrb[0].mxu0
  %4787 = vmatprep.mubr.f32.mxu0 0.0
  %4788 = vmatmul.mubr.f32.gmra.mrb[0].mxu0 %v2936
  %v4789 = vpop.f32.mrb[0].mxu0
  %v4790 = vadd.f32 %v4716, %v4789
  %v4791 = vpop.f32.mrb[0].mxu0
  %4792 = vdwg.mxu0
  %s4793 = scalar_lea.vmem %s3, 608
  %v4794 = vld [vmem:[%s4793] sm:$0xff]
  %v4795 = vld [vmem:[%s4793 + $0x8] sm:$0xff]
  %v4796 = vld [vmem:[%s4793 + $0x10] sm:$0xff]
  %v4797 = vld [vmem:[%s4793 + $0x18] sm:$0xff]
  %s4798 = scalar_lea.vmem %s4, 19
  %v4799 = vld [vmem:[%s4798] sm:$0x1]
  %v4801 = vlaneseq
  %v4802 = vshrl.u32 %v4801, 7
  %v4803 = vsub.s32 0, %v4802
  %v4804 = vrot.slane %v4799, %v4803
  %4806 = vmatprep.subr.mxu0 0.0
  %4807 = vmatpush1.msra.mxu0 %v4794
  %4808 = vmatprep.subr.mxu0 0.0
  %4809 = vmatpush1.msra.mxu0 %v4795
  %4810 = vmatprep.subr.mxu0 0.0
  %4811 = vmatpush1.msra.mxu0 %v4796
  %4812 = vmatprep.subr.mxu0 0.0
  %4813 = vmatpush1.msra.mxu0 %v4797
  %4814 = vmatprep.subr.mxu0 0.0
  %4815 = vmatpush1.msra.mxu0 0.0
  %4816 = vmatprep.subr.mxu0 0.0
  %4817 = vmatpush1.msra.mxu0 0.0
  %4818 = vmatprep.subr.mxu0 0.0
  %4819 = vmatpush1.msra.mxu0 0.0
  %4820 = vmatprep.subr.mxu0 0.0
  %4821 = vmatpush1.msra.mxu0 0.0
  %4822 = vmatprep.subr.mxu0 0.0
  %4823 = vmatpush1.msra.mxu0 0.0
  %4824 = vmatprep.subr.mxu0 0.0
  %4825 = vmatpush1.msra.mxu0 0.0
  %4826 = vmatprep.subr.mxu0 0.0
  %4827 = vmatpush1.msra.mxu0 0.0
  %4828 = vmatprep.subr.mxu0 0.0
  %4829 = vmatpush1.msra.mxu0 0.0
  %4830 = vmatprep.subr.mxu0 0.0
  %4831 = vmatpush1.msra.mxu0 0.0
  %4832 = vmatprep.subr.mxu0 0.0
  %4833 = vmatpush1.msra.mxu0 0.0
  %4834 = vmatprep.subr.mxu0 0.0
  %4835 = vmatpush1.msra.mxu0 0.0
  %4836 = vmatprep.subr.mxu0 0.0
  %4837 = vmatpush1.msra.mxu0 0.0
  %4838 = vmatprep.subr.mxu0 0.0
  %4839 = vmatpush1.msra.mxu0 0.0
  %4840 = vmatprep.subr.mxu0 0.0
  %4841 = vmatpush1.msra.mxu0 0.0
  %4842 = vmatprep.subr.mxu0 0.0
  %4843 = vmatpush1.msra.mxu0 0.0
  %4844 = vmatprep.subr.mxu0 0.0
  %4845 = vmatpush1.msra.mxu0 0.0
  %4846 = vmatprep.subr.mxu0 0.0
  %4847 = vmatpush1.msra.mxu0 0.0
  %4848 = vmatprep.subr.mxu0 0.0
  %4849 = vmatpush1.msra.mxu0 0.0
  %4850 = vmatprep.subr.mxu0 0.0
  %4851 = vmatpush1.msra.mxu0 0.0
  %4852 = vmatprep.subr.mxu0 0.0
  %4853 = vmatpush1.msra.mxu0 0.0
  %4854 = vmatprep.subr.mxu0 0.0
  %4855 = vmatpush1.msra.mxu0 0.0
  %4856 = vmatprep.subr.mxu0 0.0
  %4857 = vmatpush1.msra.mxu0 0.0
  %4858 = vmatprep.subr.mxu0 0.0
  %4859 = vmatpush1.msra.mxu0 0.0
  %4860 = vmatprep.subr.mxu0 0.0
  %4861 = vmatpush1.msra.mxu0 0.0
  %4862 = vmatprep.subr.mxu0 0.0
  %4863 = vmatpush1.msra.mxu0 0.0
  %4864 = vmatprep.subr.mxu0 0.0
  %4865 = vmatpush1.msra.mxu0 0.0
  %4866 = vmatprep.subr.mxu0 0.0
  %4867 = vmatpush1.msra.mxu0 0.0
  %4868 = vmatprep.subr.mxu0 0.0
  %4869 = vmatpush1.msra.mxu0 0.0
  %4870 = vmatprep.mubr.f32.mxu0 0.0
  %4871 = vmatmul.mubr.f32.gmra.mrb[0].mxu0 %v2933
  %v4872 = vpop.f32.mrb[0].mxu0
  %v4873 = vadd.f32 %v4804, %v4872
  %v4874 = vpop.f32.mrb[0].mxu0
  %4875 = vmatprep.mubr.f32.mxu0 0.0
  %4876 = vmatmul.mubr.f32.gmra.mrb[0].mxu0 %v2936
  %v4877 = vpop.f32.mrb[0].mxu0
  %v4878 = vadd.f32 %v4804, %v4877
  %v4879 = vpop.f32.mrb[0].mxu0
  %4880 = vdwg.mxu0
  %s4881 = scalar_lea.vmem %s3, 736
  %v4882 = vld [vmem:[%s4881] sm:$0xff]
  %v4883 = vld [vmem:[%s4881 + $0x8] sm:$0xff]
  %v4884 = vld [vmem:[%s4881 + $0x10] sm:$0xff]
  %v4885 = vld [vmem:[%s4881 + $0x18] sm:$0xff]
  %s4886 = scalar_lea.vmem %s4, 23
  %v4887 = vld [vmem:[%s4886] sm:$0x1]
  %v4889 = vlaneseq
  %v4890 = vshrl.u32 %v4889, 7
  %v4891 = vsub.s32 0, %v4890
  %v4892 = vrot.slane %v4887, %v4891
  %4894 = vmatprep.subr.mxu0 0.0
  %4895 = vmatpush1.msra.mxu0 %v4882
  %4896 = vmatprep.subr.mxu0 0.0
  %4897 = vmatpush1.msra.mxu0 %v4883
  %4898 = vmatprep.subr.mxu0 0.0
  %4899 = vmatpush1.msra.mxu0 %v4884
  %4900 = vmatprep.subr.mxu0 0.0
  %4901 = vmatpush1.msra.mxu0 %v4885
  %4902 = vmatprep.subr.mxu0 0.0
  %4903 = vmatpush1.msra.mxu0 0.0
  %4904 = vmatprep.subr.mxu0 0.0
  %4905 = vmatpush1.msra.mxu0 0.0
  %4906 = vmatprep.subr.mxu0 0.0
  %4907 = vmatpush1.msra.mxu0 0.0
  %4908 = vmatprep.subr.mxu0 0.0
  %4909 = vmatpush1.msra.mxu0 0.0
  %4910 = vmatprep.subr.mxu0 0.0
  %4911 = vmatpush1.msra.mxu0 0.0
  %4912 = vmatprep.subr.mxu0 0.0
  %4913 = vmatpush1.msra.mxu0 0.0
  %4914 = vmatprep.subr.mxu0 0.0
  %4915 = vmatpush1.msra.mxu0 0.0
  %4916 = vmatprep.subr.mxu0 0.0
  %4917 = vmatpush1.msra.mxu0 0.0
  %4918 = vmatprep.subr.mxu0 0.0
  %4919 = vmatpush1.msra.mxu0 0.0
  %4920 = vmatprep.subr.mxu0 0.0
  %4921 = vmatpush1.msra.mxu0 0.0
  %4922 = vmatprep.subr.mxu0 0.0
  %4923 = vmatpush1.msra.mxu0 0.0
  %4924 = vmatprep.subr.mxu0 0.0
  %4925 = vmatpush1.msra.mxu0 0.0
  %4926 = vmatprep.subr.mxu0 0.0
  %4927 = vmatpush1.msra.mxu0 0.0
  %4928 = vmatprep.subr.mxu0 0.0
  %4929 = vmatpush1.msra.mxu0 0.0
  %4930 = vmatprep.subr.mxu0 0.0
  %4931 = vmatpush1.msra.mxu0 0.0
  %4932 = vmatprep.subr.mxu0 0.0
  %4933 = vmatpush1.msra.mxu0 0.0
  %4934 = vmatprep.subr.mxu0 0.0
  %4935 = vmatpush1.msra.mxu0 0.0
  %4936 = vmatprep.subr.mxu0 0.0
  %4937 = vmatpush1.msra.mxu0 0.0
  %4938 = vmatprep.subr.mxu0 0.0
  %4939 = vmatpush1.msra.mxu0 0.0
  %4940 = vmatprep.subr.mxu0 0.0
  %4941 = vmatpush1.msra.mxu0 0.0
  %4942 = vmatprep.subr.mxu0 0.0
  %4943 = vmatpush1.msra.mxu0 0.0
  %4944 = vmatprep.subr.mxu0 0.0
  %4945 = vmatpush1.msra.mxu0 0.0
  %4946 = vmatprep.subr.mxu0 0.0
  %4947 = vmatpush1.msra.mxu0 0.0
  %4948 = vmatprep.subr.mxu0 0.0
  %4949 = vmatpush1.msra.mxu0 0.0
  %4950 = vmatprep.subr.mxu0 0.0
  %4951 = vmatpush1.msra.mxu0 0.0
  %4952 = vmatprep.subr.mxu0 0.0
  %4953 = vmatpush1.msra.mxu0 0.0
  %4954 = vmatprep.subr.mxu0 0.0
  %4955 = vmatpush1.msra.mxu0 0.0
  %4956 = vmatprep.subr.mxu0 0.0
  %4957 = vmatpush1.msra.mxu0 0.0
  %4958 = vmatprep.mubr.f32.mxu0 0.0
  %4959 = vmatmul.mubr.f32.gmra.mrb[0].mxu0 %v2933
  %v4960 = vpop.f32.mrb[0].mxu0
  %v4961 = vadd.f32 %v4892, %v4960
  %v4962 = vpop.f32.mrb[0].mxu0
  %4963 = vmatprep.mubr.f32.mxu0 0.0
  %4964 = vmatmul.mubr.f32.gmra.mrb[0].mxu0 %v2936
  %v4965 = vpop.f32.mrb[0].mxu0
  %v4966 = vadd.f32 %v4892, %v4965
  %v4967 = vpop.f32.mrb[0].mxu0
  %4968 = vdwg.mxu0
  %v4970 = vsel %vm424, %v4785, 0
  %v4973 = vsel %vm424, %v4873, 0
  %4975 = vmatprep.subr.mxu0 0.0
  %4976 = vmatpush1.xpose.msra.mxu0 %v4973
  %4977 = vmatprep.subr.mxu0 0.0
  %4978 = vmatpush1.xpose.msra.mxu0 0.0
  %4979 = vmatprep.subr.mxu0 0.0
  %4980 = vmatpush1.xpose.msra.mxu0 0.0
  %4981 = vmatprep.subr.mxu0 0.0
  %4982 = vmatpush1.xpose.msra.mxu0 0.0
  %4983 = vmatprep.subr.mxu0 0.0
  %4984 = vmatpush1.xpose.msra.mxu0 0.0
  %4985 = vmatprep.subr.mxu0 0.0
  %4986 = vmatpush1.xpose.msra.mxu0 0.0
  %4987 = vmatprep.subr.mxu0 0.0
  %4988 = vmatpush1.xpose.msra.mxu0 0.0
  %4989 = vmatprep.subr.mxu0 0.0
  %4990 = vmatpush1.xpose.msra.mxu0 0.0
  %4991 = vmatprep.subr.mxu0 0.0
  %4992 = vmatpush1.xpose.msra.mxu0 0.0
  %4993 = vmatprep.subr.mxu0 0.0
  %4994 = vmatpush1.xpose.msra.mxu0 0.0
  %4995 = vmatprep.subr.mxu0 0.0
  %4996 = vmatpush1.xpose.msra.mxu0 0.0
  %4997 = vmatprep.subr.mxu0 0.0
  %4998 = vmatpush1.xpose.msra.mxu0 0.0
  %4999 = vmatprep.subr.mxu0 0.0
  %5000 = vmatpush1.xpose.msra.mxu0 0.0
  %5001 = vmatprep.subr.mxu0 0.0
  %5002 = vmatpush1.xpose.msra.mxu0 0.0
  %5003 = vmatprep.subr.mxu0 0.0
  %5004 = vmatpush1.xpose.msra.mxu0 0.0
  %5005 = vmatprep.subr.mxu0 0.0
  %5006 = vmatpush1.xpose.msra.mxu0 0.0
  %5007 = vmatprep.subr.mxu0 0.0
  %5008 = vmatpush1.xpose.msra.mxu0 0.0
  %5009 = vmatprep.subr.mxu0 0.0
  %5010 = vmatpush1.xpose.msra.mxu0 0.0
  %5011 = vmatprep.subr.mxu0 0.0
  %5012 = vmatpush1.xpose.msra.mxu0 0.0
  %5013 = vmatprep.subr.mxu0 0.0
  %5014 = vmatpush1.xpose.msra.mxu0 0.0
  %5015 = vmatprep.subr.mxu0 0.0
  %5016 = vmatpush1.xpose.msra.mxu0 0.0
  %5017 = vmatprep.subr.mxu0 0.0
  %5018 = vmatpush1.xpose.msra.mxu0 0.0
  %5019 = vmatprep.subr.mxu0 0.0
  %5020 = vmatpush1.xpose.msra.mxu0 0.0
  %5021 = vmatprep.subr.mxu0 0.0
  %5022 = vmatpush1.xpose.msra.mxu0 0.0
  %5023 = vmatprep.subr.mxu0 0.0
  %5024 = vmatpush1.xpose.msra.mxu0 0.0
  %5025 = vmatprep.subr.mxu0 0.0
  %5026 = vmatpush1.xpose.msra.mxu0 0.0
  %5027 = vmatprep.subr.mxu0 0.0
  %5028 = vmatpush1.xpose.msra.mxu0 0.0
  %5029 = vmatprep.subr.mxu0 0.0
  %5030 = vmatpush1.xpose.msra.mxu0 0.0
  %5031 = vmatprep.subr.mxu0 0.0
  %5032 = vmatpush1.xpose.msra.mxu0 0.0
  %5033 = vmatprep.subr.mxu0 0.0
  %5034 = vmatpush1.xpose.msra.mxu0 0.0
  %5035 = vmatprep.subr.mxu0 0.0
  %5036 = vmatpush1.xpose.msra.mxu0 0.0
  %5037 = vmatprep.subr.mxu0 0.0
  %5038 = vmatpush1.xpose.msra.mxu0 0.0
  %5039 = vmatprep.mubr.f32.mxu0 0.0
  %5040 = vmatmul.mubr.f32.gmra.mrb[0].mxu0 %v4970
  %v5041 = vpop.f32.mrb[0].mxu0
  %v5042 = vadd.f32 0.0, %v5041
  %v5043 = vpop.f32.mrb[0].mxu0
  %5044 = vdwg.mxu0
  %v5046 = vsel %vm424, %v4790, 0
  %v5049 = vsel %vm424, %v4878, 0
  %5051 = vmatprep.subr.mxu0 0.0
  %5052 = vmatpush1.xpose.msra.mxu0 %v5049
  %5053 = vmatprep.subr.mxu0 0.0
  %5054 = vmatpush1.xpose.msra.mxu0 0.0
  %5055 = vmatprep.subr.mxu0 0.0
  %5056 = vmatpush1.xpose.msra.mxu0 0.0
  %5057 = vmatprep.subr.mxu0 0.0
  %5058 = vmatpush1.xpose.msra.mxu0 0.0
  %5059 = vmatprep.subr.mxu0 0.0
  %5060 = vmatpush1.xpose.msra.mxu0 0.0
  %5061 = vmatprep.subr.mxu0 0.0
  %5062 = vmatpush1.xpose.msra.mxu0 0.0
  %5063 = vmatprep.subr.mxu0 0.0
  %5064 = vmatpush1.xpose.msra.mxu0 0.0
  %5065 = vmatprep.subr.mxu0 0.0
  %5066 = vmatpush1.xpose.msra.mxu0 0.0
  %5067 = vmatprep.subr.mxu0 0.0
  %5068 = vmatpush1.xpose.msra.mxu0 0.0
  %5069 = vmatprep.subr.mxu0 0.0
  %5070 = vmatpush1.xpose.msra.mxu0 0.0
  %5071 = vmatprep.subr.mxu0 0.0
  %5072 = vmatpush1.xpose.msra.mxu0 0.0
  %5073 = vmatprep.subr.mxu0 0.0
  %5074 = vmatpush1.xpose.msra.mxu0 0.0
  %5075 = vmatprep.subr.mxu0 0.0
  %5076 = vmatpush1.xpose.msra.mxu0 0.0
  %5077 = vmatprep.subr.mxu0 0.0
  %5078 = vmatpush1.xpose.msra.mxu0 0.0
  %5079 = vmatprep.subr.mxu0 0.0
  %5080 = vmatpush1.xpose.msra.mxu0 0.0
  %5081 = vmatprep.subr.mxu0 0.0
  %5082 = vmatpush1.xpose.msra.mxu0 0.0
  %5083 = vmatprep.subr.mxu0 0.0
  %5084 = vmatpush1.xpose.msra.mxu0 0.0
  %5085 = vmatprep.subr.mxu0 0.0
  %5086 = vmatpush1.xpose.msra.mxu0 0.0
  %5087 = vmatprep.subr.mxu0 0.0
  %5088 = vmatpush1.xpose.msra.mxu0 0.0
  %5089 = vmatprep.subr.mxu0 0.0
  %5090 = vmatpush1.xpose.msra.mxu0 0.0
  %5091 = vmatprep.subr.mxu0 0.0
  %5092 = vmatpush1.xpose.msra.mxu0 0.0
  %5093 = vmatprep.subr.mxu0 0.0
  %5094 = vmatpush1.xpose.msra.mxu0 0.0
  %5095 = vmatprep.subr.mxu0 0.0
  %5096 = vmatpush1.xpose.msra.mxu0 0.0
  %5097 = vmatprep.subr.mxu0 0.0
  %5098 = vmatpush1.xpose.msra.mxu0 0.0
  %5099 = vmatprep.subr.mxu0 0.0
  %5100 = vmatpush1.xpose.msra.mxu0 0.0
  %5101 = vmatprep.subr.mxu0 0.0
  %5102 = vmatpush1.xpose.msra.mxu0 0.0
  %5103 = vmatprep.subr.mxu0 0.0
  %5104 = vmatpush1.xpose.msra.mxu0 0.0
  %5105 = vmatprep.subr.mxu0 0.0
  %5106 = vmatpush1.xpose.msra.mxu0 0.0
  %5107 = vmatprep.subr.mxu0 0.0
  %5108 = vmatpush1.xpose.msra.mxu0 0.0
  %5109 = vmatprep.subr.mxu0 0.0
  %5110 = vmatpush1.xpose.msra.mxu0 0.0
  %5111 = vmatprep.subr.mxu0 0.0
  %5112 = vmatpush1.xpose.msra.mxu0 0.0
  %5113 = vmatprep.subr.mxu0 0.0
  %5114 = vmatpush1.xpose.msra.mxu0 0.0
  %5115 = vmatprep.mubr.f32.mxu0 0.0
  %5116 = vmatmul.mubr.f32.gmra.mrb[0].mxu0 %v5046
  %v5117 = vpop.f32.mrb[0].mxu0
  %v5118 = vadd.f32 0.0, %v5117
  %v5119 = vpop.f32.mrb[0].mxu0
  %5120 = vdwg.mxu0
  %v5121 = vmul.f32 %v5042, 0.35355338
  %v5122 = vmul.f32 %v5118, 0.35355338
  %v5123 = vsel %vm424, %v5121, -inf
  %5124 = vmax.xlane.f32.xlu0 %v5123
  %v5125 = vpop.xlane.xlu0 %5124
  %v5126 = vsel %vm424, %v5122, -inf
  %5127 = vmax.xlane.f32.xlu0 %v5126
  %v5128 = vpop.xlane.xlu0 %5127
  %v5129 = vsub.f32 %v5121, %v5125
  %v5130 = vsub.f32 %v5122, %v5128
  %v5131 = vmul.f32 %v5129, 1.442695
  %v5132 = vpow.pop %v5131
  %v5133 = vmul.f32 %v5130, 1.442695
  %v5134 = vpow.pop %v5133
  %v5135 = vsel %vm424, %v5132, 0.0
  %5136 = vadd.xlane.f32.xlu0 %v5135
  %v5137 = vpop.xlane.xlu0 %5136
  %v5138 = vsel %vm424, %v5134, 0.0
  %5139 = vadd.xlane.f32.xlu0 %v5138
  %v5140 = vpop.xlane.xlu0 %5139
  %v5141 = vrcp.pop %v5137
  %v5142 = vrcp.pop %v5140
  %v5143 = vmul.f32 %v5132, %v5141
  %v5144 = vmul.f32 %v5134, %v5142
  %v5146 = vsel %vm424, %v5143, 0
  %5148 = vmatprep.subr.mxu0 0.0
  %5149 = vmatpush1.msra.mxu0 %v4961
  %5150 = vmatprep.subr.mxu0 0.0
  %5151 = vmatpush1.msra.mxu0 0.0
  %5152 = vmatprep.subr.mxu0 0.0
  %5153 = vmatpush1.msra.mxu0 0.0
  %5154 = vmatprep.subr.mxu0 0.0
  %5155 = vmatpush1.msra.mxu0 0.0
  %5156 = vmatprep.subr.mxu0 0.0
  %5157 = vmatpush1.msra.mxu0 0.0
  %5158 = vmatprep.subr.mxu0 0.0
  %5159 = vmatpush1.msra.mxu0 0.0
  %5160 = vmatprep.subr.mxu0 0.0
  %5161 = vmatpush1.msra.mxu0 0.0
  %5162 = vmatprep.subr.mxu0 0.0
  %5163 = vmatpush1.msra.mxu0 0.0
  %5164 = vmatprep.subr.mxu0 0.0
  %5165 = vmatpush1.msra.mxu0 0.0
  %5166 = vmatprep.subr.mxu0 0.0
  %5167 = vmatpush1.msra.mxu0 0.0
  %5168 = vmatprep.subr.mxu0 0.0
  %5169 = vmatpush1.msra.mxu0 0.0
  %5170 = vmatprep.subr.mxu0 0.0
  %5171 = vmatpush1.msra.mxu0 0.0
  %5172 = vmatprep.subr.mxu0 0.0
  %5173 = vmatpush1.msra.mxu0 0.0
  %5174 = vmatprep.subr.mxu0 0.0
  %5175 = vmatpush1.msra.mxu0 0.0
  %5176 = vmatprep.subr.mxu0 0.0
  %5177 = vmatpush1.msra.mxu0 0.0
  %5178 = vmatprep.subr.mxu0 0.0
  %5179 = vmatpush1.msra.mxu0 0.0
  %5180 = vmatprep.subr.mxu0 0.0
  %5181 = vmatpush1.msra.mxu0 0.0
  %5182 = vmatprep.subr.mxu0 0.0
  %5183 = vmatpush1.msra.mxu0 0.0
  %5184 = vmatprep.subr.mxu0 0.0
  %5185 = vmatpush1.msra.mxu0 0.0
  %5186 = vmatprep.subr.mxu0 0.0
  %5187 = vmatpush1.msra.mxu0 0.0
  %5188 = vmatprep.subr.mxu0 0.0
  %5189 = vmatpush1.msra.mxu0 0.0
  %5190 = vmatprep.subr.mxu0 0.0
  %5191 = vmatpush1.msra.mxu0 0.0
  %5192 = vmatprep.subr.mxu0 0.0
  %5193 = vmatpush1.msra.mxu0 0.0
  %5194 = vmatprep.subr.mxu0 0.0
  %5195 = vmatpush1.msra.mxu0 0.0
  %5196 = vmatprep.subr.mxu0 0.0
  %5197 = vmatpush1.msra.mxu0 0.0
  %5198 = vmatprep.subr.mxu0 0.0
  %5199 = vmatpush1.msra.mxu0 0.0
  %5200 = vmatprep.subr.mxu0 0.0
  %5201 = vmatpush1.msra.mxu0 0.0
  %5202 = vmatprep.subr.mxu0 0.0
  %5203 = vmatpush1.msra.mxu0 0.0
  %5204 = vmatprep.subr.mxu0 0.0
  %5205 = vmatpush1.msra.mxu0 0.0
  %5206 = vmatprep.subr.mxu0 0.0
  %5207 = vmatpush1.msra.mxu0 0.0
  %5208 = vmatprep.subr.mxu0 0.0
  %5209 = vmatpush1.msra.mxu0 0.0
  %5210 = vmatprep.subr.mxu0 0.0
  %5211 = vmatpush1.msra.mxu0 0.0
  %5212 = vmatprep.mubr.f32.mxu0 0.0
  %5213 = vmatmul.mubr.f32.gmra.mrb[0].mxu0 %v5146
  %v5214 = vpop.f32.mrb[0].mxu0
  %v5215 = vadd.f32 0.0, %v5214
  %v5216 = vpop.f32.mrb[0].mxu0
  %5217 = vdwg.mxu0
  %v5219 = vsel %vm424, %v5144, 0
  %5221 = vmatprep.subr.mxu0 0.0
  %5222 = vmatpush1.msra.mxu0 %v4966
  %5223 = vmatprep.subr.mxu0 0.0
  %5224 = vmatpush1.msra.mxu0 0.0
  %5225 = vmatprep.subr.mxu0 0.0
  %5226 = vmatpush1.msra.mxu0 0.0
  %5227 = vmatprep.subr.mxu0 0.0
  %5228 = vmatpush1.msra.mxu0 0.0
  %5229 = vmatprep.subr.mxu0 0.0
  %5230 = vmatpush1.msra.mxu0 0.0
  %5231 = vmatprep.subr.mxu0 0.0
  %5232 = vmatpush1.msra.mxu0 0.0
  %5233 = vmatprep.subr.mxu0 0.0
  %5234 = vmatpush1.msra.mxu0 0.0
  %5235 = vmatprep.subr.mxu0 0.0
  %5236 = vmatpush1.msra.mxu0 0.0
  %5237 = vmatprep.subr.mxu0 0.0
  %5238 = vmatpush1.msra.mxu0 0.0
  %5239 = vmatprep.subr.mxu0 0.0
  %5240 = vmatpush1.msra.mxu0 0.0
  %5241 = vmatprep.subr.mxu0 0.0
  %5242 = vmatpush1.msra.mxu0 0.0
  %5243 = vmatprep.subr.mxu0 0.0
  %5244 = vmatpush1.msra.mxu0 0.0
  %5245 = vmatprep.subr.mxu0 0.0
  %5246 = vmatpush1.msra.mxu0 0.0
  %5247 = vmatprep.subr.mxu0 0.0
  %5248 = vmatpush1.msra.mxu0 0.0
  %5249 = vmatprep.subr.mxu0 0.0
  %5250 = vmatpush1.msra.mxu0 0.0
  %5251 = vmatprep.subr.mxu0 0.0
  %5252 = vmatpush1.msra.mxu0 0.0
  %5253 = vmatprep.subr.mxu0 0.0
  %5254 = vmatpush1.msra.mxu0 0.0
  %5255 = vmatprep.subr.mxu0 0.0
  %5256 = vmatpush1.msra.mxu0 0.0
  %5257 = vmatprep.subr.mxu0 0.0
  %5258 = vmatpush1.msra.mxu0 0.0
  %5259 = vmatprep.subr.mxu0 0.0
  %5260 = vmatpush1.msra.mxu0 0.0
  %5261 = vmatprep.subr.mxu0 0.0
  %5262 = vmatpush1.msra.mxu0 0.0
  %5263 = vmatprep.subr.mxu0 0.0
  %5264 = vmatpush1.msra.mxu0 0.0
  %5265 = vmatprep.subr.mxu0 0.0
  %5266 = vmatpush1.msra.mxu0 0.0
  %5267 = vmatprep.subr.mxu0 0.0
  %5268 = vmatpush1.msra.mxu0 0.0
  %5269 = vmatprep.subr.mxu0 0.0
  %5270 = vmatpush1.msra.mxu0 0.0
  %5271 = vmatprep.subr.mxu0 0.0
  %5272 = vmatpush1.msra.mxu0 0.0
  %5273 = vmatprep.subr.mxu0 0.0
  %5274 = vmatpush1.msra.mxu0 0.0
  %5275 = vmatprep.subr.mxu0 0.0
  %5276 = vmatpush1.msra.mxu0 0.0
  %5277 = vmatprep.subr.mxu0 0.0
  %5278 = vmatpush1.msra.mxu0 0.0
  %5279 = vmatprep.subr.mxu0 0.0
  %5280 = vmatpush1.msra.mxu0 0.0
  %5281 = vmatprep.subr.mxu0 0.0
  %5282 = vmatpush1.msra.mxu0 0.0
  %5283 = vmatprep.subr.mxu0 0.0
  %5284 = vmatpush1.msra.mxu0 0.0
  %5285 = vmatprep.mubr.f32.mxu0 0.0
  %5286 = vmatmul.mubr.f32.gmra.mrb[0].mxu0 %v5219
  %v5287 = vpop.f32.mrb[0].mxu0
  %v5288 = vadd.f32 0.0, %v5287
  %v5289 = vpop.f32.mrb[0].mxu0
  %5290 = vdwg.mxu0
  %5293 = vrot.lane.b32.xlu0 %v5215, 24
  %v5294 = vpop.permute.xlu0 %5293
  %5295 = vrot.lane.b32.xlu0 %v5288, 24
  %v5296 = vpop.permute.xlu0 %5295
  %5299 = vst.msk [vmem:[#allocation2] sm:$0xff] %vm2537, %v5294
  %5300 = vst.msk [vmem:[#allocation2 + $0x8] sm:$0xff] %vm2537, %v5296
  %v5301 = vld [vmem:[#allocation2] sm:$0xff]
  %v5302 = vld [vmem:[#allocation2 + $0x8] sm:$0xff]
  %s5303 = scalar_lea.vmem %s5, 32
  %v5304 = vld [vmem:[%s5303] sm:$0xff]
  %v5305 = vld [vmem:[%s5303 + $0x8] sm:$0xff]
  %v5306 = vld [vmem:[%s5303 + $0x10] sm:$0xff]
  %v5307 = vld [vmem:[%s5303 + $0x18] sm:$0xff]
  %s5308 = scalar_lea.vmem %s6, 1
  %v5309 = vld [vmem:[%s5308] sm:$0x1]
  %v5311 = vlaneseq
  %v5312 = vshrl.u32 %v5311, 7
  %v5313 = vsub.s32 0, %v5312
  %v5314 = vrot.slane %v5309, %v5313
  %v5317 = vsel %vm166, %v5301, 0
  %v5320 = vsel %vm166, %v5302, 0
  %5322 = vmatprep.subr.mxu0 0.0
  %5323 = vmatpush1.msra.mxu0 %v5304
  %5324 = vmatprep.subr.mxu0 0.0
  %5325 = vmatpush1.msra.mxu0 %v5305
  %5326 = vmatprep.subr.mxu0 0.0
  %5327 = vmatpush1.msra.mxu0 %v5306
  %5328 = vmatprep.subr.mxu0 0.0
  %5329 = vmatpush1.msra.mxu0 %v5307
  %5330 = vmatprep.subr.mxu0 0.0
  %5331 = vmatpush1.msra.mxu0 0.0
  %5332 = vmatprep.subr.mxu0 0.0
  %5333 = vmatpush1.msra.mxu0 0.0
  %5334 = vmatprep.subr.mxu0 0.0
  %5335 = vmatpush1.msra.mxu0 0.0
  %5336 = vmatprep.subr.mxu0 0.0
  %5337 = vmatpush1.msra.mxu0 0.0
  %5338 = vmatprep.subr.mxu0 0.0
  %5339 = vmatpush1.msra.mxu0 0.0
  %5340 = vmatprep.subr.mxu0 0.0
  %5341 = vmatpush1.msra.mxu0 0.0
  %5342 = vmatprep.subr.mxu0 0.0
  %5343 = vmatpush1.msra.mxu0 0.0
  %5344 = vmatprep.subr.mxu0 0.0
  %5345 = vmatpush1.msra.mxu0 0.0
  %5346 = vmatprep.subr.mxu0 0.0
  %5347 = vmatpush1.msra.mxu0 0.0
  %5348 = vmatprep.subr.mxu0 0.0
  %5349 = vmatpush1.msra.mxu0 0.0
  %5350 = vmatprep.subr.mxu0 0.0
  %5351 = vmatpush1.msra.mxu0 0.0
  %5352 = vmatprep.subr.mxu0 0.0
  %5353 = vmatpush1.msra.mxu0 0.0
  %5354 = vmatprep.subr.mxu0 0.0
  %5355 = vmatpush1.msra.mxu0 0.0
  %5356 = vmatprep.subr.mxu0 0.0
  %5357 = vmatpush1.msra.mxu0 0.0
  %5358 = vmatprep.subr.mxu0 0.0
  %5359 = vmatpush1.msra.mxu0 0.0
  %5360 = vmatprep.subr.mxu0 0.0
  %5361 = vmatpush1.msra.mxu0 0.0
  %5362 = vmatprep.subr.mxu0 0.0
  %5363 = vmatpush1.msra.mxu0 0.0
  %5364 = vmatprep.subr.mxu0 0.0
  %5365 = vmatpush1.msra.mxu0 0.0
  %5366 = vmatprep.subr.mxu0 0.0
  %5367 = vmatpush1.msra.mxu0 0.0
  %5368 = vmatprep.subr.mxu0 0.0
  %5369 = vmatpush1.msra.mxu0 0.0
  %5370 = vmatprep.subr.mxu0 0.0
  %5371 = vmatpush1.msra.mxu0 0.0
  %5372 = vmatprep.subr.mxu0 0.0
  %5373 = vmatpush1.msra.mxu0 0.0
  %5374 = vmatprep.subr.mxu0 0.0
  %5375 = vmatpush1.msra.mxu0 0.0
  %5376 = vmatprep.subr.mxu0 0.0
  %5377 = vmatpush1.msra.mxu0 0.0
  %5378 = vmatprep.subr.mxu0 0.0
  %5379 = vmatpush1.msra.mxu0 0.0
  %5380 = vmatprep.subr.mxu0 0.0
  %5381 = vmatpush1.msra.mxu0 0.0
  %5382 = vmatprep.subr.mxu0 0.0
  %5383 = vmatpush1.msra.mxu0 0.0
  %5384 = vmatprep.subr.mxu0 0.0
  %5385 = vmatpush1.msra.mxu0 0.0
  %5386 = vmatprep.mubr.f32.mxu0 0.0
  %5387 = vmatmul.mubr.f32.gmra.mrb[0].mxu0 %v5317
  %v5388 = vpop.f32.mrb[0].mxu0
  %v5389 = vadd.f32 %v5314, %v5388
  %v5390 = vpop.f32.mrb[0].mxu0
  %5391 = vmatprep.mubr.f32.mxu0 0.0
  %5392 = vmatmul.mubr.f32.gmra.mrb[0].mxu0 %v5320
  %v5393 = vpop.f32.mrb[0].mxu0
  %v5394 = vadd.f32 %v5314, %v5393
  %v5395 = vpop.f32.mrb[0].mxu0
  %5396 = vdwg.mxu0
  %v5397 = vadd.f32 %v2917, %v5389
  %v5398 = vadd.f32 %v2918, %v5394
  %s5399 = scalar_lea.vmem %s7, 1
  %v5400 = vld [vmem:[%s5399] sm:$0x1]
  %s5401 = scalar_lea.vmem %s8, 1
  %v5402 = vld [vmem:[%s5401] sm:$0x1]
  %v5403 = vsel %vm166, %v5397, 0.0
  %5404 = vadd.xlane.f32.xlu0 %v5403
  %v5405 = vpop.xlane.xlu0 %5404
  %v5406 = vsel %vm166, %v5398, 0.0
  %5407 = vadd.xlane.f32.xlu0 %v5406
  %v5408 = vpop.xlane.xlu0 %5407
  %v5409 = vmul.f32 %v5405, %v2644
  %v5410 = vmul.f32 %v5408, %v2644
  %v5411 = vsub.f32 %v5397, %v5409
  %v5412 = vsub.f32 %v5398, %v5410
  %v5413 = vmul.f32 %v5411, %v5411
  %v5414 = vmul.f32 %v5412, %v5412
  %v5415 = vsel %vm166, %v5413, 0.0
  %5416 = vadd.xlane.f32.xlu0 %v5415
  %v5417 = vpop.xlane.xlu0 %5416
  %v5418 = vsel %vm166, %v5414, 0.0
  %5419 = vadd.xlane.f32.xlu0 %v5418
  %v5420 = vpop.xlane.xlu0 %5419
  %v5421 = vmul.f32 %v5417, %v2644
  %v5422 = vmul.f32 %v5420, %v2644
  %v5423 = vadd.f32 %v5421, 1e-05
  %v5424 = vadd.f32 %v5422, 1e-05
  %v5425 = vrsqrt.pop %v5423
  %v5426 = vrsqrt.pop %v5424
  %v5427 = vmul.f32 %v5411, %v5425
  %v5428 = vmul.f32 %v5412, %v5426
  %v5430 = vlaneseq
  %v5431 = vshrl.u32 %v5430, 7
  %v5432 = vsub.s32 0, %v5431
  %v5433 = vrot.slane %v5400, %v5432
  %v5435 = vmul.f32 %v5427, %v5433
  %v5436 = vmul.f32 %v5428, %v5433
  %v5438 = vlaneseq
  %v5439 = vshrl.u32 %v5438, 7
  %v5440 = vsub.s32 0, %v5439
  %v5441 = vrot.slane %v5402, %v5440
  %v5443 = vadd.f32 %v5435, %v5441
  %v5444 = vadd.f32 %v5436, %v5441
  %s5445 = scalar_lea.vmem %s9, 32
  %v5446 = vld [vmem:[%s5445] sm:$0xff]
  %v5447 = vld [vmem:[%s5445 + $0x8] sm:$0xff]
  %v5448 = vld [vmem:[%s5445 + $0x10] sm:$0xff]
  %v5449 = vld [vmem:[%s5445 + $0x18] sm:$0xff]
  %s5450 = scalar_lea.vmem %s10, 1
  %v5451 = vld [vmem:[%s5450] sm:$0x1]
  %v5453 = vlaneseq
  %v5454 = vshrl.u32 %v5453, 7
  %v5455 = vsub.s32 0, %v5454
  %v5456 = vrot.slane %v5451, %v5455
  %v5459 = vsel %vm166, %v5443, 0
  %v5462 = vsel %vm166, %v5444, 0
  %5464 = vmatprep.subr.mxu0 0.0
  %5465 = vmatpush1.msra.mxu0 %v5446
  %5466 = vmatprep.subr.mxu0 0.0
  %5467 = vmatpush1.msra.mxu0 %v5447
  %5468 = vmatprep.subr.mxu0 0.0
  %5469 = vmatpush1.msra.mxu0 %v5448
  %5470 = vmatprep.subr.mxu0 0.0
  %5471 = vmatpush1.msra.mxu0 %v5449
  %5472 = vmatprep.subr.mxu0 0.0
  %5473 = vmatpush1.msra.mxu0 0.0
  %5474 = vmatprep.subr.mxu0 0.0
  %5475 = vmatpush1.msra.mxu0 0.0
  %5476 = vmatprep.subr.mxu0 0.0
  %5477 = vmatpush1.msra.mxu0 0.0
  %5478 = vmatprep.subr.mxu0 0.0
  %5479 = vmatpush1.msra.mxu0 0.0
  %5480 = vmatprep.subr.mxu0 0.0
  %5481 = vmatpush1.msra.mxu0 0.0
  %5482 = vmatprep.subr.mxu0 0.0
  %5483 = vmatpush1.msra.mxu0 0.0
  %5484 = vmatprep.subr.mxu0 0.0
  %5485 = vmatpush1.msra.mxu0 0.0
  %5486 = vmatprep.subr.mxu0 0.0
  %5487 = vmatpush1.msra.mxu0 0.0
  %5488 = vmatprep.subr.mxu0 0.0
  %5489 = vmatpush1.msra.mxu0 0.0
  %5490 = vmatprep.subr.mxu0 0.0
  %5491 = vmatpush1.msra.mxu0 0.0
  %5492 = vmatprep.subr.mxu0 0.0
  %5493 = vmatpush1.msra.mxu0 0.0
  %5494 = vmatprep.subr.mxu0 0.0
  %5495 = vmatpush1.msra.mxu0 0.0
  %5496 = vmatprep.subr.mxu0 0.0
  %5497 = vmatpush1.msra.mxu0 0.0
  %5498 = vmatprep.subr.mxu0 0.0
  %5499 = vmatpush1.msra.mxu0 0.0
  %5500 = vmatprep.subr.mxu0 0.0
  %5501 = vmatpush1.msra.mxu0 0.0
  %5502 = vmatprep.subr.mxu0 0.0
  %5503 = vmatpush1.msra.mxu0 0.0
  %5504 = vmatprep.subr.mxu0 0.0
  %5505 = vmatpush1.msra.mxu0 0.0
  %5506 = vmatprep.subr.mxu0 0.0
  %5507 = vmatpush1.msra.mxu0 0.0
  %5508 = vmatprep.subr.mxu0 0.0
  %5509 = vmatpush1.msra.mxu0 0.0
  %5510 = vmatprep.subr.mxu0 0.0
  %5511 = vmatpush1.msra.mxu0 0.0
  %5512 = vmatprep.subr.mxu0 0.0
  %5513 = vmatpush1.msra.mxu0 0.0
  %5514 = vmatprep.subr.mxu0 0.0
  %5515 = vmatpush1.msra.mxu0 0.0
  %5516 = vmatprep.subr.mxu0 0.0
  %5517 = vmatpush1.msra.mxu0 0.0
  %5518 = vmatprep.subr.mxu0 0.0
  %5519 = vmatpush1.msra.mxu0 0.0
  %5520 = vmatprep.subr.mxu0 0.0
  %5521 = vmatpush1.msra.mxu0 0.0
  %5522 = vmatprep.subr.mxu0 0.0
  %5523 = vmatpush1.msra.mxu0 0.0
  %5524 = vmatprep.subr.mxu0 0.0
  %5525 = vmatpush1.msra.mxu0 0.0
  %5526 = vmatprep.subr.mxu0 0.0
  %5527 = vmatpush1.msra.mxu0 0.0
  %5528 = vmatprep.mubr.f32.mxu0 0.0
  %5529 = vmatmul.mubr.f32.gmra.mrb[0].mxu0 %v5459
  %v5530 = vpop.f32.mrb[0].mxu0
  %v5531 = vadd.f32 %v5456, %v5530
  %v5532 = vpop.f32.mrb[0].mxu0
  %5533 = vmatprep.mubr.f32.mxu0 0.0
  %5534 = vmatmul.mubr.f32.gmra.mrb[0].mxu0 %v5462
  %v5535 = vpop.f32.mrb[0].mxu0
  %v5536 = vadd.f32 %v5456, %v5535
  %v5537 = vpop.f32.mrb[0].mxu0
  %5538 = vdwg.mxu0
  %v5539 = vmax.f32 %v5531, 0.0
  %v5540 = vmax.f32 %v5536, 0.0
  %s5541 = scalar_lea.vmem %s11, 128
  %v5542 = vld [vmem:[%s5541] sm:$0xff]
  %v5543 = vld [vmem:[%s5541 + $0x8] sm:$0xff]
  %v5544 = vld [vmem:[%s5541 + $0x10] sm:$0xff]
  %v5545 = vld [vmem:[%s5541 + $0x18] sm:$0xff]
  %v5546 = vld [vmem:[%s5541 + $0x20] sm:$0xff]
  %v5547 = vld [vmem:[%s5541 + $0x28] sm:$0xff]
  %v5548 = vld [vmem:[%s5541 + $0x30] sm:$0xff]
  %v5549 = vld [vmem:[%s5541 + $0x38] sm:$0xff]
  %v5550 = vld [vmem:[%s5541 + $0x40] sm:$0xff]
  %v5551 = vld [vmem:[%s5541 + $0x48] sm:$0xff]
  %v5552 = vld [vmem:[%s5541 + $0x50] sm:$0xff]
  %v5553 = vld [vmem:[%s5541 + $0x58] sm:$0xff]
  %v5554 = vld [vmem:[%s5541 + $0x60] sm:$0xff]
  %v5555 = vld [vmem:[%s5541 + $0x68] sm:$0xff]
  %v5556 = vld [vmem:[%s5541 + $0x70] sm:$0xff]
  %v5557 = vld [vmem:[%s5541 + $0x78] sm:$0xff]
  %s5558 = scalar_lea.vmem %s12, 1
  %v5559 = vld [vmem:[%s5558] sm:$0x1]
  %v5561 = vlaneseq
  %v5562 = vshrl.u32 %v5561, 7
  %v5563 = vsub.s32 0, %v5562
  %v5564 = vrot.slane %v5559, %v5563
  %5566 = vmatprep.subr.mxu0 0.0
  %5567 = vmatpush1.msra.mxu0 %v5542
  %5568 = vmatprep.subr.mxu0 0.0
  %5569 = vmatpush1.msra.mxu0 %v5543
  %5570 = vmatprep.subr.mxu0 0.0
  %5571 = vmatpush1.msra.mxu0 %v5544
  %5572 = vmatprep.subr.mxu0 0.0
  %5573 = vmatpush1.msra.mxu0 %v5545
  %5574 = vmatprep.subr.mxu0 0.0
  %5575 = vmatpush1.msra.mxu0 %v5546
  %5576 = vmatprep.subr.mxu0 0.0
  %5577 = vmatpush1.msra.mxu0 %v5547
  %5578 = vmatprep.subr.mxu0 0.0
  %5579 = vmatpush1.msra.mxu0 %v5548
  %5580 = vmatprep.subr.mxu0 0.0
  %5581 = vmatpush1.msra.mxu0 %v5549
  %5582 = vmatprep.subr.mxu0 0.0
  %5583 = vmatpush1.msra.mxu0 %v5550
  %5584 = vmatprep.subr.mxu0 0.0
  %5585 = vmatpush1.msra.mxu0 %v5551
  %5586 = vmatprep.subr.mxu0 0.0
  %5587 = vmatpush1.msra.mxu0 %v5552
  %5588 = vmatprep.subr.mxu0 0.0
  %5589 = vmatpush1.msra.mxu0 %v5553
  %5590 = vmatprep.subr.mxu0 0.0
  %5591 = vmatpush1.msra.mxu0 %v5554
  %5592 = vmatprep.subr.mxu0 0.0
  %5593 = vmatpush1.msra.mxu0 %v5555
  %5594 = vmatprep.subr.mxu0 0.0
  %5595 = vmatpush1.msra.mxu0 %v5556
  %5596 = vmatprep.subr.mxu0 0.0
  %5597 = vmatpush1.msra.mxu0 %v5557
  %5598 = vmatprep.subr.mxu0 0.0
  %5599 = vmatpush1.msra.mxu0 0.0
  %5600 = vmatprep.subr.mxu0 0.0
  %5601 = vmatpush1.msra.mxu0 0.0
  %5602 = vmatprep.subr.mxu0 0.0
  %5603 = vmatpush1.msra.mxu0 0.0
  %5604 = vmatprep.subr.mxu0 0.0
  %5605 = vmatpush1.msra.mxu0 0.0
  %5606 = vmatprep.subr.mxu0 0.0
  %5607 = vmatpush1.msra.mxu0 0.0
  %5608 = vmatprep.subr.mxu0 0.0
  %5609 = vmatpush1.msra.mxu0 0.0
  %5610 = vmatprep.subr.mxu0 0.0
  %5611 = vmatpush1.msra.mxu0 0.0
  %5612 = vmatprep.subr.mxu0 0.0
  %5613 = vmatpush1.msra.mxu0 0.0
  %5614 = vmatprep.subr.mxu0 0.0
  %5615 = vmatpush1.msra.mxu0 0.0
  %5616 = vmatprep.subr.mxu0 0.0
  %5617 = vmatpush1.msra.mxu0 0.0
  %5618 = vmatprep.subr.mxu0 0.0
  %5619 = vmatpush1.msra.mxu0 0.0
  %5620 = vmatprep.subr.mxu0 0.0
  %5621 = vmatpush1.msra.mxu0 0.0
  %5622 = vmatprep.subr.mxu0 0.0
  %5623 = vmatpush1.msra.mxu0 0.0
  %5624 = vmatprep.subr.mxu0 0.0
  %5625 = vmatpush1.msra.mxu0 0.0
  %5626 = vmatprep.subr.mxu0 0.0
  %5627 = vmatpush1.msra.mxu0 0.0
  %5628 = vmatprep.subr.mxu0 0.0
  %5629 = vmatpush1.msra.mxu0 0.0
  %5630 = vmatprep.mubr.f32.mxu0 0.0
  %5631 = vmatmul.mubr.f32.gmra.mrb[0].mxu0 %v5539
  %v5632 = vpop.f32.mrb[0].mxu0
  %v5633 = vadd.f32 %v5564, %v5632
  %v5634 = vpop.f32.mrb[0].mxu0
  %5635 = vmatprep.mubr.f32.mxu0 0.0
  %5636 = vmatmul.mubr.f32.gmra.mrb[0].mxu0 %v5540
  %v5637 = vpop.f32.mrb[0].mxu0
  %v5638 = vadd.f32 %v5564, %v5637
  %v5639 = vpop.f32.mrb[0].mxu0
  %5640 = vdwg.mxu0
  %v5641 = vadd.f32 %v5443, %v5633
  %v5642 = vadd.f32 %v5444, %v5638
  %s5643 = scalar_lea.vmem %s13, 1
  %v5644 = vld [vmem:[%s5643] sm:$0x1]
  %s5645 = scalar_lea.vmem %s14, 1
  %v5646 = vld [vmem:[%s5645] sm:$0x1]
  %v5647 = vsel %vm166, %v5641, 0.0
  %5648 = vadd.xlane.f32.xlu0 %v5647
  %v5649 = vpop.xlane.xlu0 %5648
  %v5650 = vsel %vm166, %v5642, 0.0
  %5651 = vadd.xlane.f32.xlu0 %v5650
  %v5652 = vpop.xlane.xlu0 %5651
  %v5653 = vmul.f32 %v5649, %v2644
  %v5654 = vmul.f32 %v5652, %v2644
  %v5655 = vsub.f32 %v5641, %v5653
  %v5656 = vsub.f32 %v5642, %v5654
  %v5657 = vmul.f32 %v5655, %v5655
  %v5658 = vmul.f32 %v5656, %v5656
  %v5659 = vsel %vm166, %v5657, 0.0
  %5660 = vadd.xlane.f32.xlu0 %v5659
  %v5661 = vpop.xlane.xlu0 %5660
  %v5662 = vsel %vm166, %v5658, 0.0
  %5663 = vadd.xlane.f32.xlu0 %v5662
  %v5664 = vpop.xlane.xlu0 %5663
  %v5665 = vmul.f32 %v5661, %v2644
  %v5666 = vmul.f32 %v5664, %v2644
  %v5667 = vadd.f32 %v5665, 1e-05
  %v5668 = vadd.f32 %v5666, 1e-05
  %v5669 = vrsqrt.pop %v5667
  %v5670 = vrsqrt.pop %v5668
  %v5671 = vmul.f32 %v5655, %v5669
  %v5672 = vmul.f32 %v5656, %v5670
  %v5674 = vlaneseq
  %v5675 = vshrl.u32 %v5674, 7
  %v5676 = vsub.s32 0, %v5675
  %v5677 = vrot.slane %v5644, %v5676
  %v5679 = vmul.f32 %v5671, %v5677
  %v5680 = vmul.f32 %v5672, %v5677
  %v5682 = vlaneseq
  %v5683 = vshrl.u32 %v5682, 7
  %v5684 = vsub.s32 0, %v5683
  %v5685 = vrot.slane %v5646, %v5684
  %v5687 = vadd.f32 %v5679, %v5685
  %v5688 = vadd.f32 %v5680, %v5685
  %v5689 = vld [vmem:[%s15] sm:$0x1]
  %v5691 = vlaneseq
  %v5692 = vshrl.u32 %v5691, 7
  %v5693 = vsub.s32 0, %v5692
  %v5694 = vrot.slane %v5689, %v5693
  %v5696 = vmul.f32 %v5687, %v5694
  %v5697 = vmul.f32 %v5688, %v5694
  %v5700 = vrot.slane %v5697, 7
  %vm5703 = vcmask 261127
  %v5704 = vsel %vm5703, %v5696, 0.0
  %5705 = vadd.xlane.f32.xlu0 %v5704
  %v5706 = vpop.xlane.xlu0 %5705
  %vm5707 = vcmask 253952
  %v5708 = vsel %vm5707, %v5700, 0.0
  %5709 = vadd.xlane.f32.xlu0 %v5708
  %v5710 = vpop.xlane.xlu0 %5709
  %v5711 = vld [vmem:[#allocation3] sm:$0x1]
  %v5713 = vlaneseq
  %v5714 = vshrl.u32 %v5713, 7
  %v5715 = vsub.s32 0, %v5714
  %v5716 = vrot.slane %v5711, %v5715
  %v5718 = vadd.f32 %v5706, %v5716
  %v5719 = vadd.f32 %v5710, %v5716
  %vm5720 = vcmask 7175
  %5721 = vst.msk [vmem:[%s17 - $0x7] sm:$0x80] %vm5720, %v5718
  %vm5722 = vcmask 0
  %5723 = vst.msk [vmem:[%s17 + $0x1] sm:$0x1] %vm5722, %v5719
  // Predicated region
  $region70: #{tpu_custom_call.1} parent=0 // pred_check
    _
  $region71: #{tpu_custom_call.1} parent=0 // pred_check_branch
    %5725 = sbr.rel (0) target = $region73
  $region72: #{tpu_custom_call.1} parent=0 // pred_region
    _
  $region73: #{tpu_custom_call.1} parent=0 // pred_fallthru
    _
  // Predicated region
  $region74: #{tpu_custom_call.1} parent=0 // pred_check
    _
  $region75: #{tpu_custom_call.1} parent=0 // pred_check_branch
    %5727 = sbr.rel (0) target = $region77
  $region76: #{tpu_custom_call.1} parent=0 // pred_region
    _
  $region77: #{tpu_custom_call.1} parent=0 // pred_fallthru
    _

</llo_original>
